<compile_context>
chip_gen: v7x
topology: tpu7x:2x2x1
jax: 0.10.0
libtpu: 0.0.40
codegen_flags: <defaults>
</compile_context>

<pallas_src>
import functools

import jax
import jax.numpy as jnp
from jax import lax
from jax.experimental import pallas as pl
from jax.experimental.pallas import tpu as pltpu


# -----------------------------------------------------------------------------
# Fused kernel: one (batch, query-tile) step computes BOTH the intra and the
# inter aggregate for one output side, all heads, and writes their sum.
# -----------------------------------------------------------------------------
def _fused_hgn_kernel(src_tile_ref, src_full_ref, tgt_full_ref,
                      adj_intra_ref, adj_inter_ref,
                      w1i_ref, b1i_ref, w1x_ref, b1x_ref,
                      w2_ref, b2_ref, w3_ref, b3_ref,
                      wo_ref, blin_ref, bout_ref,
                      out_ref,
                      f2_intra_c, f2_inter_c, f3_c, msg_c,
                      *, num_heads, hidden_dim, compute_dtype):
    cdt = compute_dtype
    H = hidden_dim
    prec = (lax.Precision.HIGHEST
            if jnp.dtype(cdt) == jnp.dtype(jnp.float32) else lax.Precision.DEFAULT)

    # Per-batch caches: full-N key projections (both target sets) and the
    # full-N source value projection.  Computed once per batch (q == 0) so the
    # q_block < N path is both correct and not recomputing (N,F)x(F,nh*H)
    # matmuls every query tile.
    @pl.when(pl.program_id(1) == 0)
    def _fill_caches():
        src_full = src_full_ref[0].astype(cdt)           # (N, F)
        tgt_full = tgt_full_ref[0].astype(cdt)           # (N, F)
        f2_intra_c[...] = (jnp.dot(src_full, w2_ref[...], precision=prec,
                                   preferred_element_type=jnp.float32)
                           + b2_ref[...]).astype(cdt)
        f2_inter_c[...] = (jnp.dot(tgt_full, w2_ref[...], precision=prec,
                                   preferred_element_type=jnp.float32)
                           + b2_ref[...]).astype(cdt)
        f3_c[...] = (jnp.dot(src_full, w3_ref[...], precision=prec,
                             preferred_element_type=jnp.float32)
                     + b3_ref[...]).astype(cdt)

    src_tile = src_tile_ref[0].astype(cdt)               # (Tq, F)

    def one_aggregate(w1_ref, b1_ref, f2_c, adj):
        # edge_weight is pre-folded into w1/b1 on the host, so a single
        # full-width matmul already yields q_h = F1_h(src) @ W_edge per head.
        q = (jnp.dot(src_tile, w1_ref[...], precision=prec,
                     preferred_element_type=jnp.float32)
             + b1_ref[...]).astype(cdt)                  # (Tq, nh*H)
        for h in range(num_heads):                       # static, unrolled
            sl = slice(h * H, (h + 1) * H)
            # scores = q_h @ f2_h^T with no materialized transpose into the MXU.
            scores = lax.dot_general(q[:, sl], f2_c[:, sl],
                                     (((1,), (1,)), ((), ())),
                                     precision=prec,
                                     preferred_element_type=jnp.float32)  # (Tq, N)
            masked = scores * adj                         # elementwise, per spec
            m = jnp.max(masked, axis=-1, keepdims=True)
            e = jnp.exp(masked - m)                       # (Tq, N) f32
            denom = jnp.sum(e, axis=-1, keepdims=True)
            msg = jnp.dot(e.astype(cdt), f3_c[:, sl], precision=prec,
                          preferred_element_type=jnp.float32)             # (Tq, H)
            # Deferred softmax normalization with an EXACT reciprocal.
            msg_c[:, sl] = (msg * (1.0 / denom)).astype(cdt)
        y = (jnp.dot(msg_c[...], wo_ref[...], precision=prec,
                     preferred_element_type=jnp.float32) + blin_ref[...])
        return jnp.maximum(y, 0.0) + bout_ref[...]

    y_intra = one_aggregate(w1i_ref, b1i_ref, f2_intra_c, adj_intra_ref[0])
    y_inter = one_aggregate(w1x_ref, b1x_ref, f2_inter_c, adj_inter_ref[0])
    out_ref[0] = (y_intra + y_inter).astype(out_ref.dtype)


# -----------------------------------------------------------------------------
# Wrapper: one output side (intra + inter) in a single pallas_call.
# -----------------------------------------------------------------------------
def _default_q_block(n):
    # Bounded query tile (lane-dense 128-multiple when it actually tiles) so
    # (Tq, N) score/adjacency tiles stay inside v7x's 64 MiB VMEM.
    if n <= 256:
        return n
    for cand in (256, 128):
        if n % cand == 0:
            return cand
    return n


def fused_aggregate(src, tgt, adj_intra, adj_inter, weights, *,
                    num_heads, hidden_dim, compute_dtype, q_block=None):
    """out = relu_proj(attn(src, src, adj_intra)) + relu_proj(attn(src, tgt, adj_inter)).

    src/tgt: (B, N, F); adj_*: (B, N, N) with rows indexed by src (pass the
    pre-transposed A_inter^T for the `b` side).  `weights` comes from
    _pack_params (edge weights already folded into w1/b1).
    """
    B, N, F = src.shape
    assert tgt.shape == (B, N, F), "module requires Na == Nb"
    assert adj_intra.shape == (B, N, N) and adj_inter.shape == (B, N, N)
    nhH = num_heads * hidden_dim
    assert nhH == F, "module requires feature_dim == hidden_dim * num_heads"

    if q_block is None:
        q_block = _default_q_block(N)
    assert N % q_block == 0
    nq = N // q_block

    cbytes = jnp.dtype(compute_dtype).itemsize
    # Rough VMEM budget: double-buffered activations + resident weights +
    # per-batch caches + in-flight score rows.  Raises the default scoped
    # limit for large configs; clamped to fit every generation's physical VMEM.
    est = (2 * 4 * (2 * q_block * F + 2 * N * F + 2 * q_block * N)
           + 2 * cbytes * 5 * F * nhH
           + cbytes * (3 * N * nhH + q_block * nhH)
           + 4 * 4 * q_block * N)
    vmem_limit = int(min(64 << 20, max(32 << 20, 2 * est)))

    tile_spec = pl.BlockSpec((1, q_block, F), lambda b, q: (b, q, 0))
    full_spec = pl.BlockSpec((1, N, F), lambda b, q: (b, 0, 0))
    adj_spec = pl.BlockSpec((1, q_block, N), lambda b, q: (b, q, 0))
    out_spec = pl.BlockSpec((1, q_block, F), lambda b, q: (b, q, 0))

    def resident(shape):
        # Constant index_map: DMA'd once, VMEM-resident across the whole grid.
        # (pipeline_mode=pl.Buffered(1) would halve the allocation; kept at the
        #  default here for lowering compatibility.)
        return pl.BlockSpec(shape, lambda b, q: (0,) * len(shape))

    w = weights
    in_specs = [tile_spec, full_spec, full_spec, adj_spec, adj_spec,
                resident((F, nhH)), resident((1, nhH)),
                resident((F, nhH)), resident((1, nhH)),
                resident((F, nhH)), resident((1, nhH)),
                resident((F, nhH)), resident((1, nhH)),
                resident((nhH, F)), resident((1, F)), resident((1, F))]
    args = [src, src, tgt, adj_intra, adj_inter,
            w["w1_intra"], w["b1_intra"], w["w1_inter"], w["b1_inter"],
            w["w2"], w["b2"], w["w3"], w["b3"],
            w["wo"], w["blin"], w["bout"]]

    kernel = functools.partial(_fused_hgn_kernel, num_heads=num_heads,
                               hidden_dim=hidden_dim, compute_dtype=compute_dtype)

    return pl.pallas_call(
        kernel,
        out_shape=jax.ShapeDtypeStruct((B, N, F), jnp.float32),
        grid_spec=pltpu.PrefetchScalarGridSpec(
            num_scalar_prefetch=0,
            grid=(B, nq),
            in_specs=in_specs,
            out_specs=out_spec,
            scratch_shapes=[pltpu.VMEM((N, nhH), compute_dtype),    # f2 intra cache
                            pltpu.VMEM((N, nhH), compute_dtype),    # f2 inter cache
                            pltpu.VMEM((N, nhH), compute_dtype),    # f3 cache
                            pltpu.VMEM((q_block, nhH), compute_dtype)]),  # msg staging
        compiler_params=pltpu.CompilerParams(
            # q axis carries the per-batch f2/f3 caches -> "arbitrary".
            dimension_semantics=("parallel", "arbitrary"),
            vmem_limit_bytes=vmem_limit),
    )(*args)


# -----------------------------------------------------------------------------
# Host-side weight packing (done once per forward, not per aggregate call).
# -----------------------------------------------------------------------------
def _pack_params(params, compute_dtype):
    nh, F, H = params["w1"].shape
    nhH = nh * H
    prec = lax.Precision.HIGHEST

    def cat(w, b):
        # (nh, F, H)/(nh, H) -> (F, nh*H)/(1, nh*H); head h owns lanes [h*H:(h+1)*H].
        return (w.transpose(1, 0, 2).reshape(F, nhH).astype(compute_dtype),
                b.reshape(1, nhH).astype(jnp.float32))

    def fold(edge_w):
        # Fold the edge weight into the F1 projection: (src@w1+b1)@We == src@(w1@We)+(b1@We).
        wf = jnp.einsum("nfh,hk->nfk", params["w1"], edge_w, precision=prec)
        bf = jnp.einsum("nh,hk->nk", params["b1"], edge_w, precision=prec)
        return cat(wf, bf)

    packed = {}
    packed["w1_intra_a"], packed["b1_intra_a"] = fold(params["W_intra_a"])
    packed["w1_intra_b"], packed["b1_intra_b"] = fold(params["W_intra_b"])
    packed["w1_inter"], packed["b1_inter"] = fold(params["W_inter"])
    packed["w2"], packed["b2"] = cat(params["w2"], params["b2"])
    packed["w3"], packed["b3"] = cat(params["w3"], params["b3"])
    packed["wo"] = params["w_out"].reshape(nhH, F).astype(compute_dtype)
    packed["blin"] = params["b_out_lin"].reshape(1, F).astype(jnp.float32)
    packed["bout"] = params["b_output"].reshape(1, F).astype(jnp.float32)
    return packed


def hgn_forward(params, node_a, node_b, A_intra_a, A_intra_b, A_inter,
                *, compute_dtype=jnp.bfloat16, q_block=None):
    nh, _, H = params["w1"].shape
    packed = _pack_params(params, compute_dtype)

    # One XLA transpose (amortized over all grid steps) instead of an in-kernel
    # .T of a narrow (N, Tq) tile on every step.
    A_inter_T = jnp.swapaxes(A_inter, 1, 2)

    def side(src, tgt, adj_intra, adj_inter, w1i, b1i):
        w = dict(packed, w1_intra=w1i, b1_intra=b1i)
        return fused_aggregate(src, tgt, adj_intra, adj_inter, w,
                               num_heads=nh, hidden_dim=H,
                               compute_dtype=compute_dtype, q_block=q_block)

    out_a = side(node_a, node_b, A_intra_a, A_inter,
                 packed["w1_intra_a"], packed["b1_intra_a"])
    out_b = side(node_b, node_a, A_intra_b, A_inter_T,
                 packed["w1_intra_b"], packed["b1_intra_b"])
    return out_a, out_b


# -----------------------------------------------------------------------------
# Pure-JAX reference mirroring the PyTorch code (for correctness check).
# -----------------------------------------------------------------------------
def _aggregate_ref(src, tgt, adj, edge_w, params):
    nh = params["w1"].shape[0]
    prec = lax.Precision.HIGHEST
    msgs = []
    for i in range(nh):
        f1 = jnp.einsum("bnf,fh->bnh", src, params["w1"][i], precision=prec) + params["b1"][i]
        f2 = jnp.einsum("bnf,fh->bnh", tgt, params["w2"][i], precision=prec) + params["b2"][i]
        f3 = jnp.einsum("bnf,fh->bnh", src, params["w3"][i], precision=prec) + params["b3"][i]
        scores = jnp.einsum("bnh,hk,bmk->bnm", f1, edge_w, f2, precision=prec)
        attn = jax.nn.softmax(scores * adj, axis=-1)
        msgs.append(jnp.einsum("bnm,bmh->bnh", attn, f3, precision=prec))
    concat = jnp.concatenate(msgs, axis=-1)
    w_full = params["w_out"].reshape(-1, params["w_out"].shape[-1])
    y = jnp.einsum("bnk,kf->bnf", concat, w_full, precision=prec) + params["b_out_lin"]
    return jax.nn.relu(y) + params["b_output"]


def hgn_forward_ref(params, a, b, Aa, Ab, Aab):
    ua = _aggregate_ref(a, a, Aa, params["W_intra_a"], params)
    ub = _aggregate_ref(b, b, Ab, params["W_intra_b"], params)
    ia = _aggregate_ref(a, b, Aab, params["W_inter"], params)
    ib = _aggregate_ref(b, a, jnp.transpose(Aab, (0, 2, 1)), params["W_inter"], params)
    return ua + ia, ub + ib


# -----------------------------------------------------------------------------
# Deterministic synthetic parameters (shapes from the module's __init__).
# -----------------------------------------------------------------------------
def init_params(key, feature_dim, hidden_dim, num_heads):
    ks = jax.random.split(key, 12)
    s = 0.1    # linear-layer scale
    se = 0.02  # edge-weight scale: keeps synthetic softmax logits moderate for
               # the bf16-vs-f32 numeric check (semantics are scale-agnostic)
    return {
        # Linear weights stored pre-transposed: (nh, F_in, H_out)
        "w1": s * jax.random.normal(ks[0], (num_heads, feature_dim, hidden_dim), jnp.float32),
        "b1": s * jax.random.normal(ks[1], (num_heads, hidden_dim), jnp.float32),
        "w2": s * jax.random.normal(ks[2], (num_heads, feature_dim, hidden_dim), jnp.float32),
        "b2": s * jax.random.normal(ks[3], (num_heads, hidden_dim), jnp.float32),
        "w3": s * jax.random.normal(ks[4], (num_heads, feature_dim, hidden_dim), jnp.float32),
        "b3": s * jax.random.normal(ks[5], (num_heads, hidden_dim), jnp.float32),
        "W_intra_a": se * jax.random.normal(ks[6], (hidden_dim, hidden_dim), jnp.float32),
        "W_intra_b": se * jax.random.normal(ks[7], (hidden_dim, hidden_dim), jnp.float32),
        "W_inter": se * jax.random.normal(ks[8], (hidden_dim, hidden_dim), jnp.float32),
        # W_output: Linear(nh*H -> F), stored transposed & split per head (nh, H, F).
        "w_out": s * jax.random.normal(ks[9], (num_heads, hidden_dim, feature_dim), jnp.float32),
        "b_out_lin": s * jax.random.normal(ks[10], (1, feature_dim), jnp.float32),
        "b_output": jnp.zeros((1, feature_dim), jnp.float32),
    }


if __name__ == "__main__":
    # Full-precision f32 matmuls for the reference / host-side weight fold.
    jax.config.update("jax_default_matmul_precision", "highest")

    # The module requires feature_dim == hidden_dim * num_heads and Na == Nb.
    B, N = 2, 16
    hidden_dim, num_heads = 64, 2
    feature_dim = hidden_dim * num_heads  # 128 -> lane-dense output stores

    key = jax.random.PRNGKey(0)
    kp, ka, kb, kAa, kAb, kAi = jax.random.split(key, 6)
    params = init_params(kp, feature_dim, hidden_dim, num_heads)
    node_a = jax.random.normal(ka, (B, N, feature_dim), jnp.float32)
    node_b = jax.random.normal(kb, (B, N, feature_dim), jnp.float32)
    A_intra_a = (jax.random.uniform(kAa, (B, N, N)) > 0.5).astype(jnp.float32)
    A_intra_b = (jax.random.uniform(kAb, (B, N, N)) > 0.5).astype(jnp.float32)
    A_inter = (jax.random.uniform(kAi, (B, N, N)) > 0.5).astype(jnp.float32)
    inputs = (node_a, node_b, A_intra_a, A_intra_b, A_inter)

    ref_a, ref_b = hgn_forward_ref(params, *inputs)

    def check(out_a, out_b, tol, tag):
        ea = float(jnp.max(jnp.abs(out_a - ref_a)))
        eb = float(jnp.max(jnp.abs(out_b - ref_b)))
        ok = bool(jnp.allclose(out_a, ref_a, atol=tol, rtol=tol)) and \
             bool(jnp.allclose(out_b, ref_b, atol=tol, rtol=tol))
        assert ok, f"{tag}: max errs a={ea:.3e} b={eb:.3e} (tol={tol})"

    # 1) f32 MXU path, untiled queries: tight agreement with the reference
    #    (exact softmax normalization, full-precision matmuls).
    out = jax.jit(functools.partial(hgn_forward, compute_dtype=jnp.float32))(params, *inputs)
    jax.block_until_ready(out)
    check(*out, 5e-3, "f32")

    # 2) f32 path with q_block < N: exercises the query tiling and the
    #    per-batch full-N f2/f3 caches (the previously broken path).
    out = jax.jit(functools.partial(hgn_forward, compute_dtype=jnp.float32,
                                    q_block=8))(params, *inputs)
    jax.block_until_ready(out)
    check(*out, 5e-3, "f32/q_block=8")

    # 3) Default perf config: bf16 MXU operands, f32 accumulation & softmax.
    out = jax.jit(hgn_forward)(params, *inputs)
    jax.block_until_ready(out)
    check(*out, 6e-2, "bf16")

    print("KERNEL_OK")
</pallas_src>

<mosaic_0001>
module attributes {stable_mosaic.version = 11 : i64} {
  func.func @_fused_hgn_kernel(%arg0: i32, %arg1: i32, %arg2: memref<1x16x128xf32, #tpu.memory_space<vmem>>, %arg3: memref<1x16x128xf32, #tpu.memory_space<vmem>>, %arg4: memref<1x16x128xf32, #tpu.memory_space<vmem>>, %arg5: memref<1x16x16xf32, #tpu.memory_space<vmem>>, %arg6: memref<1x16x16xf32, #tpu.memory_space<vmem>>, %arg7: memref<128x128xf32, #tpu.memory_space<vmem>>, %arg8: memref<1x128xf32, #tpu.memory_space<vmem>>, %arg9: memref<128x128xf32, #tpu.memory_space<vmem>>, %arg10: memref<1x128xf32, #tpu.memory_space<vmem>>, %arg11: memref<128x128xf32, #tpu.memory_space<vmem>>, %arg12: memref<1x128xf32, #tpu.memory_space<vmem>>, %arg13: memref<128x128xf32, #tpu.memory_space<vmem>>, %arg14: memref<1x128xf32, #tpu.memory_space<vmem>>, %arg15: memref<128x128xf32, #tpu.memory_space<vmem>>, %arg16: memref<1x128xf32, #tpu.memory_space<vmem>>, %arg17: memref<1x128xf32, #tpu.memory_space<vmem>>, %arg18: memref<1x16x128xf32, #tpu.memory_space<vmem>>, %arg19: memref<16x128xf32, #tpu.memory_space<vmem>>, %arg20: memref<16x128xf32, #tpu.memory_space<vmem>>, %arg21: memref<16x128xf32, #tpu.memory_space<vmem>>, %arg22: memref<16x128xf32, #tpu.memory_space<vmem>>) attributes {dimension_semantics = [#tpu.dimension_semantics<parallel>, #tpu.dimension_semantics<arbitrary>], iteration_bounds = array<i64: 2, 1>, scalar_prefetch = 0 : i64, scratch_operands = 4 : i64, tpu.core_type = #tpu.core_type<tc>, window_params = [{transform_indices = @transform_0, window_bounds = array<i64: 1, 16, 128>}, {transform_indices = @transform_1, window_bounds = array<i64: 1, 16, 128>}, {transform_indices = @transform_2, window_bounds = array<i64: 1, 16, 128>}, {transform_indices = @transform_3, window_bounds = array<i64: 1, 16, 16>}, {transform_indices = @transform_4, window_bounds = array<i64: 1, 16, 16>}, {pipeline_mode = #tpu.pipeline_mode<synchronous>, transform_indices = @transform_5, window_bounds = array<i64: 128, 128>}, {pipeline_mode = #tpu.pipeline_mode<synchronous>, transform_indices = @transform_6, window_bounds = array<i64: 1, 128>}, {pipeline_mode = #tpu.pipeline_mode<synchronous>, transform_indices = @transform_7, window_bounds = array<i64: 128, 128>}, {pipeline_mode = #tpu.pipeline_mode<synchronous>, transform_indices = @transform_8, window_bounds = array<i64: 1, 128>}, {pipeline_mode = #tpu.pipeline_mode<synchronous>, transform_indices = @transform_9, window_bounds = array<i64: 128, 128>}, {pipeline_mode = #tpu.pipeline_mode<synchronous>, transform_indices = @transform_10, window_bounds = array<i64: 1, 128>}, {pipeline_mode = #tpu.pipeline_mode<synchronous>, transform_indices = @transform_11, window_bounds = array<i64: 128, 128>}, {pipeline_mode = #tpu.pipeline_mode<synchronous>, transform_indices = @transform_12, window_bounds = array<i64: 1, 128>}, {pipeline_mode = #tpu.pipeline_mode<synchronous>, transform_indices = @transform_13, window_bounds = array<i64: 128, 128>}, {pipeline_mode = #tpu.pipeline_mode<synchronous>, transform_indices = @transform_14, window_bounds = array<i64: 1, 128>}, {pipeline_mode = #tpu.pipeline_mode<synchronous>, transform_indices = @transform_15, window_bounds = array<i64: 1, 128>}, {transform_indices = @transform_16, window_bounds = array<i64: 1, 16, 128>}]} {
    %c0_i32 = arith.constant 0 : i32
    %0 = arith.cmpi eq, %arg1, %c0_i32 : i32
    %1 = arith.extui %0 : i1 to i32
    %c0_i32_0 = arith.constant 0 : i32
    %2 = arith.cmpi ne, %1, %c0_i32_0 : i32
    scf.if %2 {
      %c0_84 = arith.constant 0 : index
      %c0_85 = arith.constant 0 : index
      %c0_86 = arith.constant 0 : index
      %117 = vector.load %arg3[%c0_84, %c0_85, %c0_86] : memref<1x16x128xf32, #tpu.memory_space<vmem>>, vector<1x16x128xf32>
      %118 = vector.shape_cast %117 : vector<1x16x128xf32> to vector<16x128xf32>
      %c0_87 = arith.constant 0 : index
      %c0_88 = arith.constant 0 : index
      %c0_89 = arith.constant 0 : index
      %119 = vector.load %arg4[%c0_87, %c0_88, %c0_89] : memref<1x16x128xf32, #tpu.memory_space<vmem>>, vector<1x16x128xf32>
      %120 = vector.shape_cast %119 : vector<1x16x128xf32> to vector<16x128xf32>
      %c0_90 = arith.constant 0 : index
      %c0_91 = arith.constant 0 : index
      %121 = vector.load %arg11[%c0_90, %c0_91] : memref<128x128xf32, #tpu.memory_space<vmem>>, vector<128x128xf32>
      %cst_92 = arith.constant dense<0.000000e+00> : vector<16x128xf32>
      %122 = tpu.matmul %118, %121, %cst_92 {dimension_numbers = #tpu.dot_dimension_numbers<[1], [0], [0], [1], [0, 0, 1, 1], [], []>, precision = #tpu.contract_precision<fp32>} : vector<16x128xf32>, vector<128x128xf32>, vector<16x128xf32> -> vector<16x128xf32>
      %c0_93 = arith.constant 0 : index
      %c0_94 = arith.constant 0 : index
      %123 = vector.load %arg12[%c0_93, %c0_94] : memref<1x128xf32, #tpu.memory_space<vmem>>, vector<1x128xf32>
      %124 = vector.broadcast %123 : vector<1x128xf32> to vector<16x128xf32>
      %125 = arith.addf %122, %124 : vector<16x128xf32>
      %c0_95 = arith.constant 0 : index
      %c0_96 = arith.constant 0 : index
      %126 = vector.load %arg19[%c0_95, %c0_96] : memref<16x128xf32, #tpu.memory_space<vmem>>, vector<16x128xf32>
      tpu.vector_store %arg19[%c0_95, %c0_96], %125 {strides = array<i32>} : memref<16x128xf32, #tpu.memory_space<vmem>>, vector<16x128xf32>,
      %c0_97 = arith.constant 0 : index
      %c0_98 = arith.constant 0 : index
      %127 = vector.load %arg11[%c0_97, %c0_98] : memref<128x128xf32, #tpu.memory_space<vmem>>, vector<128x128xf32>
      %cst_99 = arith.constant dense<0.000000e+00> : vector<16x128xf32>
      %128 = tpu.matmul %120, %127, %cst_99 {dimension_numbers = #tpu.dot_dimension_numbers<[1], [0], [0], [1], [0, 0, 1, 1], [], []>, precision = #tpu.contract_precision<fp32>} : vector<16x128xf32>, vector<128x128xf32>, vector<16x128xf32> -> vector<16x128xf32>
      %c0_100 = arith.constant 0 : index
      %c0_101 = arith.constant 0 : index
      %129 = vector.load %arg12[%c0_100, %c0_101] : memref<1x128xf32, #tpu.memory_space<vmem>>, vector<1x128xf32>
      %130 = vector.broadcast %129 : vector<1x128xf32> to vector<16x128xf32>
      %131 = arith.addf %128, %130 : vector<16x128xf32>
      %c0_102 = arith.constant 0 : index
      %c0_103 = arith.constant 0 : index
      %132 = vector.load %arg20[%c0_102, %c0_103] : memref<16x128xf32, #tpu.memory_space<vmem>>, vector<16x128xf32>
      tpu.vector_store %arg20[%c0_102, %c0_103], %131 {strides = array<i32>} : memref<16x128xf32, #tpu.memory_space<vmem>>, vector<16x128xf32>,
      %c0_104 = arith.constant 0 : index
      %c0_105 = arith.constant 0 : index
      %133 = vector.load %arg13[%c0_104, %c0_105] : memref<128x128xf32, #tpu.memory_space<vmem>>, vector<128x128xf32>
      %cst_106 = arith.constant dense<0.000000e+00> : vector<16x128xf32>
      %134 = tpu.matmul %118, %133, %cst_106 {dimension_numbers = #tpu.dot_dimension_numbers<[1], [0], [0], [1], [0, 0, 1, 1], [], []>, precision = #tpu.contract_precision<fp32>} : vector<16x128xf32>, vector<128x128xf32>, vector<16x128xf32> -> vector<16x128xf32>
      %c0_107 = arith.constant 0 : index
      %c0_108 = arith.constant 0 : index
      %135 = vector.load %arg14[%c0_107, %c0_108] : memref<1x128xf32, #tpu.memory_space<vmem>>, vector<1x128xf32>
      %136 = vector.broadcast %135 : vector<1x128xf32> to vector<16x128xf32>
      %137 = arith.addf %134, %136 : vector<16x128xf32>
      %c0_109 = arith.constant 0 : index
      %c0_110 = arith.constant 0 : index
      %138 = vector.load %arg21[%c0_109, %c0_110] : memref<16x128xf32, #tpu.memory_space<vmem>>, vector<16x128xf32>
      tpu.vector_store %arg21[%c0_109, %c0_110], %137 {strides = array<i32>} : memref<16x128xf32, #tpu.memory_space<vmem>>, vector<16x128xf32>,
    } else {
    }
    %c0 = arith.constant 0 : index
    %c0_1 = arith.constant 0 : index
    %c0_2 = arith.constant 0 : index
    %3 = vector.load %arg2[%c0, %c0_1, %c0_2] : memref<1x16x128xf32, #tpu.memory_space<vmem>>, vector<1x16x128xf32>
    %4 = vector.shape_cast %3 : vector<1x16x128xf32> to vector<16x128xf32>
    %c0_3 = arith.constant 0 : index
    %c0_4 = arith.constant 0 : index
    %c0_5 = arith.constant 0 : index
    %5 = vector.load %arg5[%c0_3, %c0_4, %c0_5] : memref<1x16x16xf32, #tpu.memory_space<vmem>>, vector<1x16x16xf32>
    %6 = vector.shape_cast %5 : vector<1x16x16xf32> to vector<16x16xf32>
    %c0_6 = arith.constant 0 : index
    %c0_7 = arith.constant 0 : index
    %7 = vector.load %arg7[%c0_6, %c0_7] : memref<128x128xf32, #tpu.memory_space<vmem>>, vector<128x128xf32>
    %cst = arith.constant dense<0.000000e+00> : vector<16x128xf32>
    %8 = tpu.matmul %4, %7, %cst {dimension_numbers = #tpu.dot_dimension_numbers<[1], [0], [0], [1], [0, 0, 1, 1], [], []>, precision = #tpu.contract_precision<fp32>} : vector<16x128xf32>, vector<128x128xf32>, vector<16x128xf32> -> vector<16x128xf32>
    %c0_8 = arith.constant 0 : index
    %c0_9 = arith.constant 0 : index
    %9 = vector.load %arg8[%c0_8, %c0_9] : memref<1x128xf32, #tpu.memory_space<vmem>>, vector<1x128xf32>
    %10 = vector.broadcast %9 : vector<1x128xf32> to vector<16x128xf32>
    %11 = arith.addf %8, %10 : vector<16x128xf32>
    %12 = vector.extract_strided_slice %11 {offsets = [0, 0], sizes = [16, 64], strides = [1, 1]} : vector<16x128xf32> to vector<16x64xf32>
    %c0_10 = arith.constant 0 : index
    %c0_11 = arith.constant 0 : index
    %13 = vector.load %arg19[%c0_10, %c0_11] : memref<16x128xf32, #tpu.memory_space<vmem>>, vector<16x64xf32>
    %cst_12 = arith.constant dense<0.000000e+00> : vector<16x16xf32>
    %14 = tpu.matmul %12, %13, %cst_12 {dimension_numbers = #tpu.dot_dimension_numbers<[1], [1], [0], [0], [0, 0, 1, 0], [], []>, precision = #tpu.contract_precision<fp32>} : vector<16x64xf32>, vector<16x64xf32>, vector<16x16xf32> -> vector<16x16xf32>
    %15 = arith.mulf %14, %6 : vector<16x16xf32>
    %cst_13 = arith.constant dense<0xFF800000> : vector<16xf32>
    %16 = vector.multi_reduction <maximumf>, %15, %cst_13 [1] : vector<16x16xf32> to vector<16xf32>
    %17 = vector.shape_cast %16 : vector<16xf32> to vector<16x1xf32>
    %18 = vector.broadcast %17 : vector<16x1xf32> to vector<16x16xf32>
    %19 = arith.subf %15, %18 : vector<16x16xf32>
    %20 = math.exp %19 : vector<16x16xf32>
    %cst_14 = arith.constant dense<0.000000e+00> : vector<16xf32>
    %21 = vector.multi_reduction <add>, %20, %cst_14 [1] : vector<16x16xf32> to vector<16xf32>
    %22 = vector.shape_cast %21 : vector<16xf32> to vector<16x1xf32>
    %c0_15 = arith.constant 0 : index
    %c0_16 = arith.constant 0 : index
    %23 = vector.load %arg21[%c0_15, %c0_16] : memref<16x128xf32, #tpu.memory_space<vmem>>, vector<16x64xf32>
    %cst_17 = arith.constant dense<0.000000e+00> : vector<16x64xf32>
    %24 = tpu.matmul %20, %23, %cst_17 {dimension_numbers = #tpu.dot_dimension_numbers<[1], [0], [0], [1], [0, 0, 1, 1], [], []>, precision = #tpu.contract_precision<fp32>} : vector<16x16xf32>, vector<16x64xf32>, vector<16x64xf32> -> vector<16x64xf32>
    %cst_18 = arith.constant 1.000000e+00 : f32
    %25 = vector.broadcast %cst_18 : f32 to vector<16x1xf32>
    %26 = arith.divf %25, %22 : vector<16x1xf32>
    %27 = vector.broadcast %26 : vector<16x1xf32> to vector<16x64xf32>
    %28 = arith.mulf %24, %27 : vector<16x64xf32>
    %c0_19 = arith.constant 0 : index
    %c0_20 = arith.constant 0 : index
    %29 = vector.load %arg22[%c0_19, %c0_20] : memref<16x128xf32, #tpu.memory_space<vmem>>, vector<16x64xf32>
    tpu.vector_store %arg22[%c0_19, %c0_20], %28 {strides = array<i32>} : memref<16x128xf32, #tpu.memory_space<vmem>>, vector<16x64xf32>,
    %30 = vector.extract_strided_slice %11 {offsets = [0, 64], sizes = [16, 64], strides = [1, 1]} : vector<16x128xf32> to vector<16x64xf32>
    %c0_21 = arith.constant 0 : index
    %c64 = arith.constant 64 : index
    %31 = vector.load %arg19[%c0_21, %c64] : memref<16x128xf32, #tpu.memory_space<vmem>>, vector<16x64xf32>
    %cst_22 = arith.constant dense<0.000000e+00> : vector<16x16xf32>
    %32 = tpu.matmul %30, %31, %cst_22 {dimension_numbers = #tpu.dot_dimension_numbers<[1], [1], [0], [0], [0, 0, 1, 0], [], []>, precision = #tpu.contract_precision<fp32>} : vector<16x64xf32>, vector<16x64xf32>, vector<16x16xf32> -> vector<16x16xf32>
    %33 = arith.mulf %32, %6 : vector<16x16xf32>
    %cst_23 = arith.constant dense<0xFF800000> : vector<16xf32>
    %34 = vector.multi_reduction <maximumf>, %33, %cst_23 [1] : vector<16x16xf32> to vector<16xf32>
    %35 = vector.shape_cast %34 : vector<16xf32> to vector<16x1xf32>
    %36 = vector.broadcast %35 : vector<16x1xf32> to vector<16x16xf32>
    %37 = arith.subf %33, %36 : vector<16x16xf32>
    %38 = math.exp %37 : vector<16x16xf32>
    %cst_24 = arith.constant dense<0.000000e+00> : vector<16xf32>
    %39 = vector.multi_reduction <add>, %38, %cst_24 [1] : vector<16x16xf32> to vector<16xf32>
    %40 = vector.shape_cast %39 : vector<16xf32> to vector<16x1xf32>
    %c0_25 = arith.constant 0 : index
    %c64_26 = arith.constant 64 : index
    %41 = vector.load %arg21[%c0_25, %c64_26] : memref<16x128xf32, #tpu.memory_space<vmem>>, vector<16x64xf32>
    %cst_27 = arith.constant dense<0.000000e+00> : vector<16x64xf32>
    %42 = tpu.matmul %38, %41, %cst_27 {dimension_numbers = #tpu.dot_dimension_numbers<[1], [0], [0], [1], [0, 0, 1, 1], [], []>, precision = #tpu.contract_precision<fp32>} : vector<16x16xf32>, vector<16x64xf32>, vector<16x64xf32> -> vector<16x64xf32>
    %cst_28 = arith.constant 1.000000e+00 : f32
    %43 = vector.broadcast %cst_28 : f32 to vector<16x1xf32>
    %44 = arith.divf %43, %40 : vector<16x1xf32>
    %45 = vector.broadcast %44 : vector<16x1xf32> to vector<16x64xf32>
    %46 = arith.mulf %42, %45 : vector<16x64xf32>
    %c0_29 = arith.constant 0 : index
    %c64_30 = arith.constant 64 : index
    %47 = vector.load %arg22[%c0_29, %c64_30] : memref<16x128xf32, #tpu.memory_space<vmem>>, vector<16x64xf32>
    tpu.vector_store %arg22[%c0_29, %c64_30], %46 {strides = array<i32>} : memref<16x128xf32, #tpu.memory_space<vmem>>, vector<16x64xf32>,
    %c0_31 = arith.constant 0 : index
    %c0_32 = arith.constant 0 : index
    %48 = vector.load %arg22[%c0_31, %c0_32] : memref<16x128xf32, #tpu.memory_space<vmem>>, vector<16x128xf32>
    %c0_33 = arith.constant 0 : index
    %c0_34 = arith.constant 0 : index
    %49 = vector.load %arg15[%c0_33, %c0_34] : memref<128x128xf32, #tpu.memory_space<vmem>>, vector<128x128xf32>
    %cst_35 = arith.constant dense<0.000000e+00> : vector<16x128xf32>
    %50 = tpu.matmul %48, %49, %cst_35 {dimension_numbers = #tpu.dot_dimension_numbers<[1], [0], [0], [1], [0, 0, 1, 1], [], []>, precision = #tpu.contract_precision<fp32>} : vector<16x128xf32>, vector<128x128xf32>, vector<16x128xf32> -> vector<16x128xf32>
    %c0_36 = arith.constant 0 : index
    %c0_37 = arith.constant 0 : index
    %51 = vector.load %arg16[%c0_36, %c0_37] : memref<1x128xf32, #tpu.memory_space<vmem>>, vector<1x128xf32>
    %52 = vector.broadcast %51 : vector<1x128xf32> to vector<16x128xf32>
    %53 = arith.addf %50, %52 : vector<16x128xf32>
    %cst_38 = arith.constant 0.000000e+00 : f32
    %54 = vector.broadcast %cst_38 : f32 to vector<16x128xf32>
    %55 = arith.maximumf %53, %54 : vector<16x128xf32>
    %c0_39 = arith.constant 0 : index
    %c0_40 = arith.constant 0 : index
    %56 = vector.load %arg17[%c0_39, %c0_40] : memref<1x128xf32, #tpu.memory_space<vmem>>, vector<1x128xf32>
    %57 = vector.broadcast %56 : vector<1x128xf32> to vector<16x128xf32>
    %58 = arith.addf %55, %57 : vector<16x128xf32>
    %c0_41 = arith.constant 0 : index
    %c0_42 = arith.constant 0 : index
    %c0_43 = arith.constant 0 : index
    %59 = vector.load %arg6[%c0_41, %c0_42, %c0_43] : memref<1x16x16xf32, #tpu.memory_space<vmem>>, vector<1x16x16xf32>
    %60 = vector.shape_cast %59 : vector<1x16x16xf32> to vector<16x16xf32>
    %c0_44 = arith.constant 0 : index
    %c0_45 = arith.constant 0 : index
    %61 = vector.load %arg9[%c0_44, %c0_45] : memref<128x128xf32, #tpu.memory_space<vmem>>, vector<128x128xf32>
    %cst_46 = arith.constant dense<0.000000e+00> : vector<16x128xf32>
    %62 = tpu.matmul %4, %61, %cst_46 {dimension_numbers = #tpu.dot_dimension_numbers<[1], [0], [0], [1], [0, 0, 1, 1], [], []>, precision = #tpu.contract_precision<fp32>} : vector<16x128xf32>, vector<128x128xf32>, vector<16x128xf32> -> vector<16x128xf32>
    %c0_47 = arith.constant 0 : index
    %c0_48 = arith.constant 0 : index
    %63 = vector.load %arg10[%c0_47, %c0_48] : memref<1x128xf32, #tpu.memory_space<vmem>>, vector<1x128xf32>
    %64 = vector.broadcast %63 : vector<1x128xf32> to vector<16x128xf32>
    %65 = arith.addf %62, %64 : vector<16x128xf32>
    %66 = vector.extract_strided_slice %65 {offsets = [0, 0], sizes = [16, 64], strides = [1, 1]} : vector<16x128xf32> to vector<16x64xf32>
    %c0_49 = arith.constant 0 : index
    %c0_50 = arith.constant 0 : index
    %67 = vector.load %arg20[%c0_49, %c0_50] : memref<16x128xf32, #tpu.memory_space<vmem>>, vector<16x64xf32>
    %cst_51 = arith.constant dense<0.000000e+00> : vector<16x16xf32>
    %68 = tpu.matmul %66, %67, %cst_51 {dimension_numbers = #tpu.dot_dimension_numbers<[1], [1], [0], [0], [0, 0, 1, 0], [], []>, precision = #tpu.contract_precision<fp32>} : vector<16x64xf32>, vector<16x64xf32>, vector<16x16xf32> -> vector<16x16xf32>
    %69 = arith.mulf %68, %60 : vector<16x16xf32>
    %cst_52 = arith.constant dense<0xFF800000> : vector<16xf32>
    %70 = vector.multi_reduction <maximumf>, %69, %cst_52 [1] : vector<16x16xf32> to vector<16xf32>
    %71 = vector.shape_cast %70 : vector<16xf32> to vector<16x1xf32>
    %72 = vector.broadcast %71 : vector<16x1xf32> to vector<16x16xf32>
    %73 = arith.subf %69, %72 : vector<16x16xf32>
    %74 = math.exp %73 : vector<16x16xf32>
    %cst_53 = arith.constant dense<0.000000e+00> : vector<16xf32>
    %75 = vector.multi_reduction <add>, %74, %cst_53 [1] : vector<16x16xf32> to vector<16xf32>
    %76 = vector.shape_cast %75 : vector<16xf32> to vector<16x1xf32>
    %c0_54 = arith.constant 0 : index
    %c0_55 = arith.constant 0 : index
    %77 = vector.load %arg21[%c0_54, %c0_55] : memref<16x128xf32, #tpu.memory_space<vmem>>, vector<16x64xf32>
    %cst_56 = arith.constant dense<0.000000e+00> : vector<16x64xf32>
    %78 = tpu.matmul %74, %77, %cst_56 {dimension_numbers = #tpu.dot_dimension_numbers<[1], [0], [0], [1], [0, 0, 1, 1], [], []>, precision = #tpu.contract_precision<fp32>} : vector<16x16xf32>, vector<16x64xf32>, vector<16x64xf32> -> vector<16x64xf32>
    %cst_57 = arith.constant 1.000000e+00 : f32
    %79 = vector.broadcast %cst_57 : f32 to vector<16x1xf32>
    %80 = arith.divf %79, %76 : vector<16x1xf32>
    %81 = vector.broadcast %80 : vector<16x1xf32> to vector<16x64xf32>
    %82 = arith.mulf %78, %81 : vector<16x64xf32>
    %c0_58 = arith.constant 0 : index
    %c0_59 = arith.constant 0 : index
    %83 = vector.load %arg22[%c0_58, %c0_59] : memref<16x128xf32, #tpu.memory_space<vmem>>, vector<16x64xf32>
    tpu.vector_store %arg22[%c0_58, %c0_59], %82 {strides = array<i32>} : memref<16x128xf32, #tpu.memory_space<vmem>>, vector<16x64xf32>,
    %84 = vector.extract_strided_slice %65 {offsets = [0, 64], sizes = [16, 64], strides = [1, 1]} : vector<16x128xf32> to vector<16x64xf32>
    %c0_60 = arith.constant 0 : index
    %c64_61 = arith.constant 64 : index
    %85 = vector.load %arg20[%c0_60, %c64_61] : memref<16x128xf32, #tpu.memory_space<vmem>>, vector<16x64xf32>
    %cst_62 = arith.constant dense<0.000000e+00> : vector<16x16xf32>
    %86 = tpu.matmul %84, %85, %cst_62 {dimension_numbers = #tpu.dot_dimension_numbers<[1], [1], [0], [0], [0, 0, 1, 0], [], []>, precision = #tpu.contract_precision<fp32>} : vector<16x64xf32>, vector<16x64xf32>, vector<16x16xf32> -> vector<16x16xf32>
    %87 = arith.mulf %86, %60 : vector<16x16xf32>
    %cst_63 = arith.constant dense<0xFF800000> : vector<16xf32>
    %88 = vector.multi_reduction <maximumf>, %87, %cst_63 [1] : vector<16x16xf32> to vector<16xf32>
    %89 = vector.shape_cast %88 : vector<16xf32> to vector<16x1xf32>
    %90 = vector.broadcast %89 : vector<16x1xf32> to vector<16x16xf32>
    %91 = arith.subf %87, %90 : vector<16x16xf32>
    %92 = math.exp %91 : vector<16x16xf32>
    %cst_64 = arith.constant dense<0.000000e+00> : vector<16xf32>
    %93 = vector.multi_reduction <add>, %92, %cst_64 [1] : vector<16x16xf32> to vector<16xf32>
    %94 = vector.shape_cast %93 : vector<16xf32> to vector<16x1xf32>
    %c0_65 = arith.constant 0 : index
    %c64_66 = arith.constant 64 : index
    %95 = vector.load %arg21[%c0_65, %c64_66] : memref<16x128xf32, #tpu.memory_space<vmem>>, vector<16x64xf32>
    %cst_67 = arith.constant dense<0.000000e+00> : vector<16x64xf32>
    %96 = tpu.matmul %92, %95, %cst_67 {dimension_numbers = #tpu.dot_dimension_numbers<[1], [0], [0], [1], [0, 0, 1, 1], [], []>, precision = #tpu.contract_precision<fp32>} : vector<16x16xf32>, vector<16x64xf32>, vector<16x64xf32> -> vector<16x64xf32>
    %cst_68 = arith.constant 1.000000e+00 : f32
    %97 = vector.broadcast %cst_68 : f32 to vector<16x1xf32>
    %98 = arith.divf %97, %94 : vector<16x1xf32>
    %99 = vector.broadcast %98 : vector<16x1xf32> to vector<16x64xf32>
    %100 = arith.mulf %96, %99 : vector<16x64xf32>
    %c0_69 = arith.constant 0 : index
    %c64_70 = arith.constant 64 : index
    %101 = vector.load %arg22[%c0_69, %c64_70] : memref<16x128xf32, #tpu.memory_space<vmem>>, vector<16x64xf32>
    tpu.vector_store %arg22[%c0_69, %c64_70], %100 {strides = array<i32>} : memref<16x128xf32, #tpu.memory_space<vmem>>, vector<16x64xf32>,
    %c0_71 = arith.constant 0 : index
    %c0_72 = arith.constant 0 : index
    %102 = vector.load %arg22[%c0_71, %c0_72] : memref<16x128xf32, #tpu.memory_space<vmem>>, vector<16x128xf32>
    %c0_73 = arith.constant 0 : index
    %c0_74 = arith.constant 0 : index
    %103 = vector.load %arg15[%c0_73, %c0_74] : memref<128x128xf32, #tpu.memory_space<vmem>>, vector<128x128xf32>
    %cst_75 = arith.constant dense<0.000000e+00> : vector<16x128xf32>
    %104 = tpu.matmul %102, %103, %cst_75 {dimension_numbers = #tpu.dot_dimension_numbers<[1], [0], [0], [1], [0, 0, 1, 1], [], []>, precision = #tpu.contract_precision<fp32>} : vector<16x128xf32>, vector<128x128xf32>, vector<16x128xf32> -> vector<16x128xf32>
    %c0_76 = arith.constant 0 : index
    %c0_77 = arith.constant 0 : index
    %105 = vector.load %arg16[%c0_76, %c0_77] : memref<1x128xf32, #tpu.memory_space<vmem>>, vector<1x128xf32>
    %106 = vector.broadcast %105 : vector<1x128xf32> to vector<16x128xf32>
    %107 = arith.addf %104, %106 : vector<16x128xf32>
    %cst_78 = arith.constant 0.000000e+00 : f32
    %108 = vector.broadcast %cst_78 : f32 to vector<16x128xf32>
    %109 = arith.maximumf %107, %108 : vector<16x128xf32>
    %c0_79 = arith.constant 0 : index
    %c0_80 = arith.constant 0 : index
    %110 = vector.load %arg17[%c0_79, %c0_80] : memref<1x128xf32, #tpu.memory_space<vmem>>, vector<1x128xf32>
    %111 = vector.broadcast %110 : vector<1x128xf32> to vector<16x128xf32>
    %112 = arith.addf %109, %111 : vector<16x128xf32>
    %113 = arith.addf %58, %112 : vector<16x128xf32>
    %c0_81 = arith.constant 0 : index
    %c0_82 = arith.constant 0 : index
    %c0_83 = arith.constant 0 : index
    %114 = vector.load %arg18[%c0_81, %c0_82, %c0_83] : memref<1x16x128xf32, #tpu.memory_space<vmem>>, vector<1x16x128xf32>
    %115 = vector.shape_cast %114 : vector<1x16x128xf32> to vector<16x128xf32>
    %116 = vector.shape_cast %113 : vector<16x128xf32> to vector<1x16x128xf32>
    tpu.vector_store %arg18[%c0_81, %c0_82, %c0_83], %116 {strides = array<i32>} : memref<1x16x128xf32, #tpu.memory_space<vmem>>, vector<1x16x128xf32>,
    return
  }
  func.func @transform_0(%arg0: i32, %arg1: i32) -> (i32, i32, i32) {
    %c0_i32 = arith.constant 0 : i32
    %c0_i32_0 = arith.constant 0 : i32
    return %arg0, %arg1, %c0_i32 : i32, i32, i32
  }
  func.func @transform_1(%arg0: i32, %arg1: i32) -> (i32, i32, i32) {
    %c0_i32 = arith.constant 0 : i32
    %c0_i32_0 = arith.constant 0 : i32
    %c0_i32_1 = arith.constant 0 : i32
    return %arg0, %c0_i32, %c0_i32_0 : i32, i32, i32
  }
  func.func @transform_2(%arg0: i32, %arg1: i32) -> (i32, i32, i32) {
    %c0_i32 = arith.constant 0 : i32
    %c0_i32_0 = arith.constant 0 : i32
    %c0_i32_1 = arith.constant 0 : i32
    return %arg0, %c0_i32, %c0_i32_0 : i32, i32, i32
  }
  func.func @transform_3(%arg0: i32, %arg1: i32) -> (i32, i32, i32) {
    %c0_i32 = arith.constant 0 : i32
    %c0_i32_0 = arith.constant 0 : i32
    return %arg0, %arg1, %c0_i32 : i32, i32, i32
  }
  func.func @transform_4(%arg0: i32, %arg1: i32) -> (i32, i32, i32) {
    %c0_i32 = arith.constant 0 : i32
    %c0_i32_0 = arith.constant 0 : i32
    return %arg0, %arg1, %c0_i32 : i32, i32, i32
  }
  func.func @transform_5(%arg0: i32, %arg1: i32) -> (i32, i32) {
    %c0_i32 = arith.constant 0 : i32
    %c0_i32_0 = arith.constant 0 : i32
    %c0_i32_1 = arith.constant 0 : i32
    return %c0_i32, %c0_i32_0 : i32, i32
  }
  func.func @transform_6(%arg0: i32, %arg1: i32) -> (i32, i32) {
    %c0_i32 = arith.constant 0 : i32
    %c0_i32_0 = arith.constant 0 : i32
    %c0_i32_1 = arith.constant 0 : i32
    return %c0_i32, %c0_i32_0 : i32, i32
  }
  func.func @transform_7(%arg0: i32, %arg1: i32) -> (i32, i32) {
    %c0_i32 = arith.constant 0 : i32
    %c0_i32_0 = arith.constant 0 : i32
    %c0_i32_1 = arith.constant 0 : i32
    return %c0_i32, %c0_i32_0 : i32, i32
  }
  func.func @transform_8(%arg0: i32, %arg1: i32) -> (i32, i32) {
    %c0_i32 = arith.constant 0 : i32
    %c0_i32_0 = arith.constant 0 : i32
    %c0_i32_1 = arith.constant 0 : i32
    return %c0_i32, %c0_i32_0 : i32, i32
  }
  func.func @transform_9(%arg0: i32, %arg1: i32) -> (i32, i32) {
    %c0_i32 = arith.constant 0 : i32
    %c0_i32_0 = arith.constant 0 : i32
    %c0_i32_1 = arith.constant 0 : i32
    return %c0_i32, %c0_i32_0 : i32, i32
  }
  func.func @transform_10(%arg0: i32, %arg1: i32) -> (i32, i32) {
    %c0_i32 = arith.constant 0 : i32
    %c0_i32_0 = arith.constant 0 : i32
    %c0_i32_1 = arith.constant 0 : i32
    return %c0_i32, %c0_i32_0 : i32, i32
  }
  func.func @transform_11(%arg0: i32, %arg1: i32) -> (i32, i32) {
    %c0_i32 = arith.constant 0 : i32
    %c0_i32_0 = arith.constant 0 : i32
    %c0_i32_1 = arith.constant 0 : i32
    return %c0_i32, %c0_i32_0 : i32, i32
  }
  func.func @transform_12(%arg0: i32, %arg1: i32) -> (i32, i32) {
    %c0_i32 = arith.constant 0 : i32
    %c0_i32_0 = arith.constant 0 : i32
    %c0_i32_1 = arith.constant 0 : i32
    return %c0_i32, %c0_i32_0 : i32, i32
  }
  func.func @transform_13(%arg0: i32, %arg1: i32) -> (i32, i32) {
    %c0_i32 = arith.constant 0 : i32
    %c0_i32_0 = arith.constant 0 : i32
    %c0_i32_1 = arith.constant 0 : i32
    return %c0_i32, %c0_i32_0 : i32, i32
  }
  func.func @transform_14(%arg0: i32, %arg1: i32) -> (i32, i32) {
    %c0_i32 = arith.constant 0 : i32
    %c0_i32_0 = arith.constant 0 : i32
    %c0_i32_1 = arith.constant 0 : i32
    return %c0_i32, %c0_i32_0 : i32, i32
  }
  func.func @transform_15(%arg0: i32, %arg1: i32) -> (i32, i32) {
    %c0_i32 = arith.constant 0 : i32
    %c0_i32_0 = arith.constant 0 : i32
    %c0_i32_1 = arith.constant 0 : i32
    return %c0_i32, %c0_i32_0 : i32, i32
  }
  func.func @transform_16(%arg0: i32, %arg1: i32) -> (i32, i32, i32) {
    %c0_i32 = arith.constant 0 : i32
    %c0_i32_0 = arith.constant 0 : i32
    return %arg0, %arg1, %c0_i32 : i32, i32, i32
  }
}

</mosaic_0001>

<llo_original>
// kernel: hgn_forward.3
$region0: #{hgn_forward.3}
  #allocation0 [shape = 'u32[]', space=smem, size = 0x4, offset = 0x4, fixed_abs, tag = 'smem constant byte address 0x4 - core index']
  #allocation1 [shape = 'u32[144,128]{1,0:T(1,128)}', space=vmem, size = 0x12000, scoped, tag = 'internal scratch']
  #allocation2 [shape = 'f32[16,128]{1,0:T(8,128)}', space=vmem, size = 0x2000, scoped, tag = 'scratch operand']
  #allocation3 [shape = 'f32[16,128]{1,0:T(8,128)}', space=vmem, size = 0x2000, scoped, tag = 'scratch operand']
  #allocation4 [shape = 'f32[16,128]{1,0:T(8,128)}', space=vmem, size = 0x2000, scoped, tag = 'scratch operand']
  #allocation5 [shape = 'f32[16,128]{1,0:T(8,128)}', space=vmem, size = 0x2000, scoped, tag = 'scratch operand']
  %s0 = inlined_call_operand.vmem [shape: f32[2,16,128], index: 0, kind: input, shape index: {}, may-alias: {0,1}]
  %s1 = inlined_call_operand.vmem [shape: f32[2,16,128], index: 1, kind: input, shape index: {}, may-alias: {0,1}]
  %s2 = inlined_call_operand.vmem [shape: f32[2,16,128], index: 2, kind: input, shape index: {}]
  %s3 = inlined_call_operand.vmem [shape: f32[2,16,16], index: 3, kind: input, shape index: {}]
  %s4 = inlined_call_operand.vmem [shape: f32[2,16,16], index: 4, kind: input, shape index: {}]
  %s5 = inlined_call_operand.vmem [shape: f32[128,128], index: 5, kind: input, shape index: {}]
  %s6 = inlined_call_operand.vmem [shape: f32[1,128], index: 6, kind: input, shape index: {}]
  %s7 = inlined_call_operand.vmem [shape: f32[128,128], index: 7, kind: input, shape index: {}]
  %s8 = inlined_call_operand.vmem [shape: f32[1,128], index: 8, kind: input, shape index: {}]
  %s9 = inlined_call_operand.vmem [shape: f32[128,128], index: 9, kind: input, shape index: {}]
  %s10 = inlined_call_operand.vmem [shape: f32[1,128], index: 10, kind: input, shape index: {}]
  %s11 = inlined_call_operand.vmem [shape: f32[128,128], index: 11, kind: input, shape index: {}]
  %s12 = inlined_call_operand.vmem [shape: f32[1,128], index: 12, kind: input, shape index: {}]
  %s13 = inlined_call_operand.vmem [shape: f32[128,128], index: 13, kind: input, shape index: {}]
  %s14 = inlined_call_operand.vmem [shape: f32[1,128], index: 14, kind: input, shape index: {}]
  %s15 = inlined_call_operand.vmem [shape: f32[1,128], index: 15, kind: input, shape index: {}]
  %s16 = inlined_call_operand.hbm [shape: f32[2,16,128], index: 16, kind: output, shape index: {}]
  %s17 = sld [smem:[#allocation0]]
  $region101: #{hgn_forward.3} parent=0
    _
  %s19 = ssub.s32 1, %s17
  %s20 = scalar_select 0, %s19, %s17
  $region1: #{hgn_forward.3} parent=0
    #allocation6 [shape = 'u8[16384]{0}', space=vmem, size = 0x4000, scoped, tag = 'output window, operand 0']
    #allocation7 [shape = 's32[2]{0}', space=sflag, size = 0x8, scoped, tag = 'scoped memory for hgn_forward.3']
    %21 = vsyncpa [#allocation7], 0
    %s22 = scalar_lea.sflag [#allocation7], 1
    %23 = vsyncpa %s22, 0
    loop: start=0, step=1, limit=4
    $region2: #{hgn_forward.3} parent=1 // loop_pre_header
      _
    $region3: #{hgn_forward.3} parent=1 // loop_header
      %s25 = sphi 0, %s29
      %p26 = scmp.ge.s32.totalorder %s25, 4
      %s32 = sphi 0, %s44
      %s33 = sphi 0, %s40
      %s34 = sphi 0, %s32
      %s35 = sphi 0, %s33
      %s36 = sphi 0, %s34
      %s37 = sphi 0, %s35
      %s49 = sphi 0, %s51
      %s52 = sphi 0, %s49
      %s53 = sphi 0, %s52
      %s69 = sphi 0, %s53
      %s75 = sphi 0, %s77
      %s78 = sphi 0, %s75
      %s79 = sphi 0, %s78
      %s95 = sphi 0, %s79
      %s101 = sphi 0, %s103
      %s104 = sphi 0, %s101
      %s105 = sphi 0, %s104
      %s121 = sphi 0, %s105
      %s129 = sphi 0, %s131
      %s132 = sphi 0, %s129
      %s133 = sphi 0, %s132
      %s149 = sphi 0, %s133
      %s157 = sphi 0, %s159
      %s160 = sphi 0, %s157
      %s161 = sphi 0, %s160
      %s177 = sphi 0, %s161
      %s181 = sphi 0, %s181
      %s183 = sphi 0, %s181
      %s184 = sphi 0, %s183
      %s198 = sphi 0, %s184
      %s202 = sphi 0, %s202
      %s204 = sphi 0, %s202
      %s205 = sphi 0, %s204
      %s219 = sphi 0, %s205
      %s223 = sphi 0, %s223
      %s225 = sphi 0, %s223
      %s226 = sphi 0, %s225
      %s240 = sphi 0, %s226
      %s244 = sphi 0, %s244
      %s246 = sphi 0, %s244
      %s247 = sphi 0, %s246
      %s261 = sphi 0, %s247
      %s265 = sphi 0, %s265
      %s267 = sphi 0, %s265
      %s268 = sphi 0, %s267
      %s282 = sphi 0, %s268
      %s286 = sphi 0, %s286
      %s288 = sphi 0, %s286
      %s289 = sphi 0, %s288
      %s303 = sphi 0, %s289
      %s307 = sphi 0, %s307
      %s309 = sphi 0, %s307
      %s310 = sphi 0, %s309
      %s324 = sphi 0, %s310
      %s328 = sphi 0, %s328
      %s330 = sphi 0, %s328
      %s331 = sphi 0, %s330
      %s345 = sphi 0, %s331
      %s349 = sphi 0, %s349
      %s351 = sphi 0, %s349
      %s352 = sphi 0, %s351
      %s366 = sphi 0, %s352
      %s370 = sphi 0, %s370
      %s372 = sphi 0, %s370
      %s373 = sphi 0, %s372
      %s387 = sphi 0, %s373
      %s391 = sphi 0, %s391
      %s393 = sphi 0, %s391
      %s394 = sphi 0, %s393
      %s408 = sphi 0, %s394
      %s416 = sphi 0, %s418
      %s419 = sphi 0, %s416
      %s420 = sphi 0, %s419
      %s436 = sphi 0, %s420
    $region4: #{hgn_forward.3} parent=1 // loop_header_branch
      %28 = sbr.rel (%p26) target = $region8
    $region5: #{hgn_forward.3} parent=1 // loop_body
      %s30 = ssub.s32 %s25, 1
      %s31 = ssub.s32 %s25, 2
      %s38 = sadd.s32 1, %s33
      %p39 = scmp.ge.s32.totalorder %s38, 1
      %s40 = scalar_select %p39, 0, %s38
      %s41 = sadd.s32 1, %s32
      %s42 = scalar_select %p39, %s41, %s32
      %p43 = scmp.ge.s32.totalorder %s42, 2
      %s44 = scalar_select %p43, 0, %s42
      %s45 = ssub.s32 %s32, %s44
      %s46 = ssub.s32 %s33, %s40
      %s47 = sor.u32 %s45, %s46
      %p48 = scmp.eq.s32.totalorder %s47, 0
      %s50 = sadd.s32 %s49, 1
      %s51 = scalar_select %p48, %s49, %s50
      %p54 = pneg %p48
      %p55 = scmp.eq.s32.totalorder %s25, 1
      %p56 = por %p54, %p55
      %p57 = scmp.ne.s32.totalorder %s49, %s52
      %p58 = scmp.eq.s32.totalorder %s25, 0
      %p59 = por %p57, %p58
      %p60 = scmp.ne.s32.totalorder %s49, %s52
      %p61 = scmp.eq.s32.totalorder %s30, 1
      %p62 = por %p60, %p61
      %p63 = scmp.ne.s32.totalorder %s52, %s53
      %p64 = scmp.eq.s32.totalorder %s30, 0
      %p65 = por %p63, %p64
      %p66 = scmp.ne.s32.totalorder %s52, %s53
      %p67 = scmp.eq.s32.totalorder %s31, 1
      %p68 = por %p66, %p67
      %p70 = scmp.ne.s32.totalorder %s53, %s69
      %p71 = scmp.eq.s32.totalorder %s31, 0
      %p72 = por %p70, %p71
      %s73 = ssub.s32 %s32, %s44
      %p74 = scmp.eq.s32.totalorder %s73, 0
      %s76 = sadd.s32 %s75, 1
      %s77 = scalar_select %p74, %s75, %s76
      %p80 = pneg %p74
      %p81 = scmp.eq.s32.totalorder %s25, 1
      %p82 = por %p80, %p81
      %p83 = scmp.ne.s32.totalorder %s75, %s78
      %p84 = scmp.eq.s32.totalorder %s25, 0
      %p85 = por %p83, %p84
      %p86 = scmp.ne.s32.totalorder %s75, %s78
      %p87 = scmp.eq.s32.totalorder %s30, 1
      %p88 = por %p86, %p87
      %p89 = scmp.ne.s32.totalorder %s78, %s79
      %p90 = scmp.eq.s32.totalorder %s30, 0
      %p91 = por %p89, %p90
      %p92 = scmp.ne.s32.totalorder %s78, %s79
      %p93 = scmp.eq.s32.totalorder %s31, 1
      %p94 = por %p92, %p93
      %p96 = scmp.ne.s32.totalorder %s79, %s95
      %p97 = scmp.eq.s32.totalorder %s31, 0
      %p98 = por %p96, %p97
      %s99 = ssub.s32 %s32, %s44
      %p100 = scmp.eq.s32.totalorder %s99, 0
      %s102 = sadd.s32 %s101, 1
      %s103 = scalar_select %p100, %s101, %s102
      %p106 = pneg %p100
      %p107 = scmp.eq.s32.totalorder %s25, 1
      %p108 = por %p106, %p107
      %p109 = scmp.ne.s32.totalorder %s101, %s104
      %p110 = scmp.eq.s32.totalorder %s25, 0
      %p111 = por %p109, %p110
      %p112 = scmp.ne.s32.totalorder %s101, %s104
      %p113 = scmp.eq.s32.totalorder %s30, 1
      %p114 = por %p112, %p113
      %p115 = scmp.ne.s32.totalorder %s104, %s105
      %p116 = scmp.eq.s32.totalorder %s30, 0
      %p117 = por %p115, %p116
      %p118 = scmp.ne.s32.totalorder %s104, %s105
      %p119 = scmp.eq.s32.totalorder %s31, 1
      %p120 = por %p118, %p119
      %p122 = scmp.ne.s32.totalorder %s105, %s121
      %p123 = scmp.eq.s32.totalorder %s31, 0
      %p124 = por %p122, %p123
      %s125 = ssub.s32 %s32, %s44
      %s126 = ssub.s32 %s33, %s40
      %s127 = sor.u32 %s125, %s126
      %p128 = scmp.eq.s32.totalorder %s127, 0
      %s130 = sadd.s32 %s129, 1
      %s131 = scalar_select %p128, %s129, %s130
      %p134 = pneg %p128
      %p135 = scmp.eq.s32.totalorder %s25, 1
      %p136 = por %p134, %p135
      %p137 = scmp.ne.s32.totalorder %s129, %s132
      %p138 = scmp.eq.s32.totalorder %s25, 0
      %p139 = por %p137, %p138
      %p140 = scmp.ne.s32.totalorder %s129, %s132
      %p141 = scmp.eq.s32.totalorder %s30, 1
      %p142 = por %p140, %p141
      %p143 = scmp.ne.s32.totalorder %s132, %s133
      %p144 = scmp.eq.s32.totalorder %s30, 0
      %p145 = por %p143, %p144
      %p146 = scmp.ne.s32.totalorder %s132, %s133
      %p147 = scmp.eq.s32.totalorder %s31, 1
      %p148 = por %p146, %p147
      %p150 = scmp.ne.s32.totalorder %s133, %s149
      %p151 = scmp.eq.s32.totalorder %s31, 0
      %p152 = por %p150, %p151
      %s153 = ssub.s32 %s32, %s44
      %s154 = ssub.s32 %s33, %s40
      %s155 = sor.u32 %s153, %s154
      %p156 = scmp.eq.s32.totalorder %s155, 0
      %s158 = sadd.s32 %s157, 1
      %s159 = scalar_select %p156, %s157, %s158
      %p162 = pneg %p156
      %p163 = scmp.eq.s32.totalorder %s25, 1
      %p164 = por %p162, %p163
      %p165 = scmp.ne.s32.totalorder %s157, %s160
      %p166 = scmp.eq.s32.totalorder %s25, 0
      %p167 = por %p165, %p166
      %p168 = scmp.ne.s32.totalorder %s157, %s160
      %p169 = scmp.eq.s32.totalorder %s30, 1
      %p170 = por %p168, %p169
      %p171 = scmp.ne.s32.totalorder %s160, %s161
      %p172 = scmp.eq.s32.totalorder %s30, 0
      %p173 = por %p171, %p172
      %p174 = scmp.ne.s32.totalorder %s160, %s161
      %p175 = scmp.eq.s32.totalorder %s31, 1
      %p176 = por %p174, %p175
      %p178 = scmp.ne.s32.totalorder %s161, %s177
      %p179 = scmp.eq.s32.totalorder %s31, 0
      %p180 = por %p178, %p179
      %s182 = sadd.s32 %s181, 1
      %p185 = scmp.eq.s32.totalorder %s25, 1
      %p186 = scmp.ne.s32.totalorder %s181, %s183
      %p187 = scmp.eq.s32.totalorder %s25, 0
      %p188 = por %p186, %p187
      %p189 = scmp.ne.s32.totalorder %s181, %s183
      %p190 = scmp.eq.s32.totalorder %s30, 1
      %p191 = por %p189, %p190
      %p192 = scmp.ne.s32.totalorder %s183, %s184
      %p193 = scmp.eq.s32.totalorder %s30, 0
      %p194 = por %p192, %p193
      %p195 = scmp.ne.s32.totalorder %s183, %s184
      %p196 = scmp.eq.s32.totalorder %s31, 1
      %p197 = por %p195, %p196
      %p199 = scmp.ne.s32.totalorder %s184, %s198
      %p200 = scmp.eq.s32.totalorder %s31, 0
      %p201 = por %p199, %p200
      %s203 = sadd.s32 %s202, 1
      %p206 = scmp.eq.s32.totalorder %s25, 1
      %p207 = scmp.ne.s32.totalorder %s202, %s204
      %p208 = scmp.eq.s32.totalorder %s25, 0
      %p209 = por %p207, %p208
      %p210 = scmp.ne.s32.totalorder %s202, %s204
      %p211 = scmp.eq.s32.totalorder %s30, 1
      %p212 = por %p210, %p211
      %p213 = scmp.ne.s32.totalorder %s204, %s205
      %p214 = scmp.eq.s32.totalorder %s30, 0
      %p215 = por %p213, %p214
      %p216 = scmp.ne.s32.totalorder %s204, %s205
      %p217 = scmp.eq.s32.totalorder %s31, 1
      %p218 = por %p216, %p217
      %p220 = scmp.ne.s32.totalorder %s205, %s219
      %p221 = scmp.eq.s32.totalorder %s31, 0
      %p222 = por %p220, %p221
      %s224 = sadd.s32 %s223, 1
      %p227 = scmp.eq.s32.totalorder %s25, 1
      %p228 = scmp.ne.s32.totalorder %s223, %s225
      %p229 = scmp.eq.s32.totalorder %s25, 0
      %p230 = por %p228, %p229
      %p231 = scmp.ne.s32.totalorder %s223, %s225
      %p232 = scmp.eq.s32.totalorder %s30, 1
      %p233 = por %p231, %p232
      %p234 = scmp.ne.s32.totalorder %s225, %s226
      %p235 = scmp.eq.s32.totalorder %s30, 0
      %p236 = por %p234, %p235
      %p237 = scmp.ne.s32.totalorder %s225, %s226
      %p238 = scmp.eq.s32.totalorder %s31, 1
      %p239 = por %p237, %p238
      %p241 = scmp.ne.s32.totalorder %s226, %s240
      %p242 = scmp.eq.s32.totalorder %s31, 0
      %p243 = por %p241, %p242
      %s245 = sadd.s32 %s244, 1
      %p248 = scmp.eq.s32.totalorder %s25, 1
      %p249 = scmp.ne.s32.totalorder %s244, %s246
      %p250 = scmp.eq.s32.totalorder %s25, 0
      %p251 = por %p249, %p250
      %p252 = scmp.ne.s32.totalorder %s244, %s246
      %p253 = scmp.eq.s32.totalorder %s30, 1
      %p254 = por %p252, %p253
      %p255 = scmp.ne.s32.totalorder %s246, %s247
      %p256 = scmp.eq.s32.totalorder %s30, 0
      %p257 = por %p255, %p256
      %p258 = scmp.ne.s32.totalorder %s246, %s247
      %p259 = scmp.eq.s32.totalorder %s31, 1
      %p260 = por %p258, %p259
      %p262 = scmp.ne.s32.totalorder %s247, %s261
      %p263 = scmp.eq.s32.totalorder %s31, 0
      %p264 = por %p262, %p263
      %s266 = sadd.s32 %s265, 1
      %p269 = scmp.eq.s32.totalorder %s25, 1
      %p270 = scmp.ne.s32.totalorder %s265, %s267
      %p271 = scmp.eq.s32.totalorder %s25, 0
      %p272 = por %p270, %p271
      %p273 = scmp.ne.s32.totalorder %s265, %s267
      %p274 = scmp.eq.s32.totalorder %s30, 1
      %p275 = por %p273, %p274
      %p276 = scmp.ne.s32.totalorder %s267, %s268
      %p277 = scmp.eq.s32.totalorder %s30, 0
      %p278 = por %p276, %p277
      %p279 = scmp.ne.s32.totalorder %s267, %s268
      %p280 = scmp.eq.s32.totalorder %s31, 1
      %p281 = por %p279, %p280
      %p283 = scmp.ne.s32.totalorder %s268, %s282
      %p284 = scmp.eq.s32.totalorder %s31, 0
      %p285 = por %p283, %p284
      %s287 = sadd.s32 %s286, 1
      %p290 = scmp.eq.s32.totalorder %s25, 1
      %p291 = scmp.ne.s32.totalorder %s286, %s288
      %p292 = scmp.eq.s32.totalorder %s25, 0
      %p293 = por %p291, %p292
      %p294 = scmp.ne.s32.totalorder %s286, %s288
      %p295 = scmp.eq.s32.totalorder %s30, 1
      %p296 = por %p294, %p295
      %p297 = scmp.ne.s32.totalorder %s288, %s289
      %p298 = scmp.eq.s32.totalorder %s30, 0
      %p299 = por %p297, %p298
      %p300 = scmp.ne.s32.totalorder %s288, %s289
      %p301 = scmp.eq.s32.totalorder %s31, 1
      %p302 = por %p300, %p301
      %p304 = scmp.ne.s32.totalorder %s289, %s303
      %p305 = scmp.eq.s32.totalorder %s31, 0
      %p306 = por %p304, %p305
      %s308 = sadd.s32 %s307, 1
      %p311 = scmp.eq.s32.totalorder %s25, 1
      %p312 = scmp.ne.s32.totalorder %s307, %s309
      %p313 = scmp.eq.s32.totalorder %s25, 0
      %p314 = por %p312, %p313
      %p315 = scmp.ne.s32.totalorder %s307, %s309
      %p316 = scmp.eq.s32.totalorder %s30, 1
      %p317 = por %p315, %p316
      %p318 = scmp.ne.s32.totalorder %s309, %s310
      %p319 = scmp.eq.s32.totalorder %s30, 0
      %p320 = por %p318, %p319
      %p321 = scmp.ne.s32.totalorder %s309, %s310
      %p322 = scmp.eq.s32.totalorder %s31, 1
      %p323 = por %p321, %p322
      %p325 = scmp.ne.s32.totalorder %s310, %s324
      %p326 = scmp.eq.s32.totalorder %s31, 0
      %p327 = por %p325, %p326
      %s329 = sadd.s32 %s328, 1
      %p332 = scmp.eq.s32.totalorder %s25, 1
      %p333 = scmp.ne.s32.totalorder %s328, %s330
      %p334 = scmp.eq.s32.totalorder %s25, 0
      %p335 = por %p333, %p334
      %p336 = scmp.ne.s32.totalorder %s328, %s330
      %p337 = scmp.eq.s32.totalorder %s30, 1
      %p338 = por %p336, %p337
      %p339 = scmp.ne.s32.totalorder %s330, %s331
      %p340 = scmp.eq.s32.totalorder %s30, 0
      %p341 = por %p339, %p340
      %p342 = scmp.ne.s32.totalorder %s330, %s331
      %p343 = scmp.eq.s32.totalorder %s31, 1
      %p344 = por %p342, %p343
      %p346 = scmp.ne.s32.totalorder %s331, %s345
      %p347 = scmp.eq.s32.totalorder %s31, 0
      %p348 = por %p346, %p347
      %s350 = sadd.s32 %s349, 1
      %p353 = scmp.eq.s32.totalorder %s25, 1
      %p354 = scmp.ne.s32.totalorder %s349, %s351
      %p355 = scmp.eq.s32.totalorder %s25, 0
      %p356 = por %p354, %p355
      %p357 = scmp.ne.s32.totalorder %s349, %s351
      %p358 = scmp.eq.s32.totalorder %s30, 1
      %p359 = por %p357, %p358
      %p360 = scmp.ne.s32.totalorder %s351, %s352
      %p361 = scmp.eq.s32.totalorder %s30, 0
      %p362 = por %p360, %p361
      %p363 = scmp.ne.s32.totalorder %s351, %s352
      %p364 = scmp.eq.s32.totalorder %s31, 1
      %p365 = por %p363, %p364
      %p367 = scmp.ne.s32.totalorder %s352, %s366
      %p368 = scmp.eq.s32.totalorder %s31, 0
      %p369 = por %p367, %p368
      %s371 = sadd.s32 %s370, 1
      %p374 = scmp.eq.s32.totalorder %s25, 1
      %p375 = scmp.ne.s32.totalorder %s370, %s372
      %p376 = scmp.eq.s32.totalorder %s25, 0
      %p377 = por %p375, %p376
      %p378 = scmp.ne.s32.totalorder %s370, %s372
      %p379 = scmp.eq.s32.totalorder %s30, 1
      %p380 = por %p378, %p379
      %p381 = scmp.ne.s32.totalorder %s372, %s373
      %p382 = scmp.eq.s32.totalorder %s30, 0
      %p383 = por %p381, %p382
      %p384 = scmp.ne.s32.totalorder %s372, %s373
      %p385 = scmp.eq.s32.totalorder %s31, 1
      %p386 = por %p384, %p385
      %p388 = scmp.ne.s32.totalorder %s373, %s387
      %p389 = scmp.eq.s32.totalorder %s31, 0
      %p390 = por %p388, %p389
      %s392 = sadd.s32 %s391, 1
      %p395 = scmp.eq.s32.totalorder %s25, 1
      %p396 = scmp.ne.s32.totalorder %s391, %s393
      %p397 = scmp.eq.s32.totalorder %s25, 0
      %p398 = por %p396, %p397
      %p399 = scmp.ne.s32.totalorder %s391, %s393
      %p400 = scmp.eq.s32.totalorder %s30, 1
      %p401 = por %p399, %p400
      %p402 = scmp.ne.s32.totalorder %s393, %s394
      %p403 = scmp.eq.s32.totalorder %s30, 0
      %p404 = por %p402, %p403
      %p405 = scmp.ne.s32.totalorder %s393, %s394
      %p406 = scmp.eq.s32.totalorder %s31, 1
      %p407 = por %p405, %p406
      %p409 = scmp.ne.s32.totalorder %s394, %s408
      %p410 = scmp.eq.s32.totalorder %s31, 0
      %p411 = por %p409, %p410
      %s412 = ssub.s32 %s32, %s44
      %s413 = ssub.s32 %s33, %s40
      %s414 = sor.u32 %s412, %s413
      %p415 = scmp.eq.s32.totalorder %s414, 0
      %s417 = sadd.s32 %s416, 1
      %s418 = scalar_select %p415, %s416, %s417
      %p421 = pneg %p415
      %p422 = scmp.eq.s32.totalorder %s25, 1
      %p423 = por %p421, %p422
      %p424 = scmp.ne.s32.totalorder %s416, %s419
      %p425 = scmp.eq.s32.totalorder %s25, 0
      %p426 = por %p424, %p425
      %p427 = scmp.ne.s32.totalorder %s416, %s419
      %p428 = scmp.eq.s32.totalorder %s30, 1
      %p429 = por %p427, %p428
      %p430 = scmp.ne.s32.totalorder %s419, %s420
      %p431 = scmp.eq.s32.totalorder %s30, 0
      %p432 = por %p430, %p431
      %p433 = scmp.ne.s32.totalorder %s419, %s420
      %p434 = scmp.eq.s32.totalorder %s31, 1
      %p435 = por %p433, %p434
      %p437 = scmp.ne.s32.totalorder %s420, %s436
      %p438 = scmp.eq.s32.totalorder %s31, 0
      %p439 = por %p437, %p438
      %p440 = scmp.le.s32.totalorder 1, %s25
      %p441 = scmp.lt.s32.totalorder %s25, 3
      %p442 = pnand %p440, %p441
      %p443 = pneg %p442
      // Predicated region
      $region9: #{hgn_forward.3} parent=5 // pred_check
        _
      $region10: #{hgn_forward.3} parent=5 // pred_check_branch
        %445 = sbr.rel (%p442) target = $region12
      $region11: #{hgn_forward.3} parent=5 // pred_region
        %s446 = ssub.s32 %s25, 1
        // Predicated region
        $region13: #{hgn_forward.3} parent=11 // pred_check
          %p447 = pneg %p194
        $region14: #{hgn_forward.3} parent=11 // pred_check_branch
          %449 = sbr.rel (%p447) target = $region16
        $region15: #{hgn_forward.3} parent=11 // pred_region
          _
        $region16: #{hgn_forward.3} parent=11 // pred_fallthru
          _
        // Predicated region
        $region17: #{hgn_forward.3} parent=11 // pred_check
          %p450 = pneg %p215
        $region18: #{hgn_forward.3} parent=11 // pred_check_branch
          %452 = sbr.rel (%p450) target = $region20
        $region19: #{hgn_forward.3} parent=11 // pred_region
          _
        $region20: #{hgn_forward.3} parent=11 // pred_fallthru
          _
        // Predicated region
        $region21: #{hgn_forward.3} parent=11 // pred_check
          %p453 = pneg %p236
        $region22: #{hgn_forward.3} parent=11 // pred_check_branch
          %455 = sbr.rel (%p453) target = $region24
        $region23: #{hgn_forward.3} parent=11 // pred_region
          _
        $region24: #{hgn_forward.3} parent=11 // pred_fallthru
          _
        // Predicated region
        $region25: #{hgn_forward.3} parent=11 // pred_check
          %p456 = pneg %p257
        $region26: #{hgn_forward.3} parent=11 // pred_check_branch
          %458 = sbr.rel (%p456) target = $region28
        $region27: #{hgn_forward.3} parent=11 // pred_region
          _
        $region28: #{hgn_forward.3} parent=11 // pred_fallthru
          _
        // Predicated region
        $region29: #{hgn_forward.3} parent=11 // pred_check
          %p459 = pneg %p278
        $region30: #{hgn_forward.3} parent=11 // pred_check_branch
          %461 = sbr.rel (%p459) target = $region32
        $region31: #{hgn_forward.3} parent=11 // pred_region
          _
        $region32: #{hgn_forward.3} parent=11 // pred_fallthru
          _
        // Predicated region
        $region33: #{hgn_forward.3} parent=11 // pred_check
          %p462 = pneg %p299
        $region34: #{hgn_forward.3} parent=11 // pred_check_branch
          %464 = sbr.rel (%p462) target = $region36
        $region35: #{hgn_forward.3} parent=11 // pred_region
          _
        $region36: #{hgn_forward.3} parent=11 // pred_fallthru
          _
        // Predicated region
        $region37: #{hgn_forward.3} parent=11 // pred_check
          %p465 = pneg %p320
        $region38: #{hgn_forward.3} parent=11 // pred_check_branch
          %467 = sbr.rel (%p465) target = $region40
        $region39: #{hgn_forward.3} parent=11 // pred_region
          _
        $region40: #{hgn_forward.3} parent=11 // pred_fallthru
          _
        // Predicated region
        $region41: #{hgn_forward.3} parent=11 // pred_check
          %p468 = pneg %p341
        $region42: #{hgn_forward.3} parent=11 // pred_check_branch
          %470 = sbr.rel (%p468) target = $region44
        $region43: #{hgn_forward.3} parent=11 // pred_region
          _
        $region44: #{hgn_forward.3} parent=11 // pred_fallthru
          _
        // Predicated region
        $region45: #{hgn_forward.3} parent=11 // pred_check
          %p471 = pneg %p362
        $region46: #{hgn_forward.3} parent=11 // pred_check_branch
          %473 = sbr.rel (%p471) target = $region48
        $region47: #{hgn_forward.3} parent=11 // pred_region
          _
        $region48: #{hgn_forward.3} parent=11 // pred_fallthru
          _
        // Predicated region
        $region49: #{hgn_forward.3} parent=11 // pred_check
          %p474 = pneg %p383
        $region50: #{hgn_forward.3} parent=11 // pred_check_branch
          %476 = sbr.rel (%p474) target = $region52
        $region51: #{hgn_forward.3} parent=11 // pred_region
          _
        $region52: #{hgn_forward.3} parent=11 // pred_fallthru
          _
        // Predicated region
        $region53: #{hgn_forward.3} parent=11 // pred_check
          %p477 = pneg %p404
        $region54: #{hgn_forward.3} parent=11 // pred_check_branch
          %479 = sbr.rel (%p477) target = $region56
        $region55: #{hgn_forward.3} parent=11 // pred_region
          _
        $region56: #{hgn_forward.3} parent=11 // pred_fallthru
          _
      $region12: #{hgn_forward.3} parent=5 // pred_fallthru
        _
      %p480 = scmp.lt.s32.totalorder %s25, 2
      // Predicated region
      $region57: #{hgn_forward.3} parent=5 // pred_check
        %p481 = pneg %p480
      $region58: #{hgn_forward.3} parent=5 // pred_check_branch
        %483 = sbr.rel (%p481) target = $region60
      $region59: #{hgn_forward.3} parent=5 // pred_region
        // Predicated region
        $region61: #{hgn_forward.3} parent=59 // pred_check
          %p484 = pneg %p59
        $region62: #{hgn_forward.3} parent=59 // pred_check_branch
          %486 = sbr.rel (%p484) target = $region64
        $region63: #{hgn_forward.3} parent=59 // pred_region
          %s487 = smul.u32 2, %s33
          %p488 = scmp.lt.s32.totalorder %s32, 1
          %s489 = scalar_select %p488, %s32, 1
          %p490 = scmp.lt.s32.totalorder %s487, 1
          %s491 = scalar_select %p490, %s487, 1
          %s492 = smul.addr %s489, 2
          %s493 = sadd.s32 %s491, %s492
          %s494 = smul.addr %s493, 8
          %s495 = scalar_lea.vmem %s0, %s494
          %s496 = smul.u32 2, %s33
        $region64: #{hgn_forward.3} parent=59 // pred_fallthru
          _
        // Predicated region
        $region65: #{hgn_forward.3} parent=59 // pred_check
          %p497 = pneg %p85
        $region66: #{hgn_forward.3} parent=59 // pred_check_branch
          %499 = sbr.rel (%p497) target = $region68
        $region67: #{hgn_forward.3} parent=59 // pred_region
          %p500 = scmp.lt.s32.totalorder %s32, 1
          %s501 = scalar_select %p500, %s32, 1
          %s502 = smul.addr %s501, 2
          %s503 = smul.addr %s502, 8
          %s504 = scalar_lea.vmem %s1, %s503
        $region68: #{hgn_forward.3} parent=59 // pred_fallthru
          _
        // Predicated region
        $region69: #{hgn_forward.3} parent=59 // pred_check
          %p505 = pneg %p111
        $region70: #{hgn_forward.3} parent=59 // pred_check_branch
          %507 = sbr.rel (%p505) target = $region72
        $region71: #{hgn_forward.3} parent=59 // pred_region
          %p508 = scmp.lt.s32.totalorder %s32, 1
          %s509 = scalar_select %p508, %s32, 1
          %s510 = smul.addr %s509, 2
          %s511 = smul.addr %s510, 8
          %s512 = scalar_lea.vmem %s2, %s511
        $region72: #{hgn_forward.3} parent=59 // pred_fallthru
          _
        // Predicated region
        $region73: #{hgn_forward.3} parent=59 // pred_check
          %p513 = pneg %p139
        $region74: #{hgn_forward.3} parent=59 // pred_check_branch
          %515 = sbr.rel (%p513) target = $region76
        $region75: #{hgn_forward.3} parent=59 // pred_region
          %s516 = smul.u32 2, %s33
          %p517 = scmp.lt.s32.totalorder %s32, 1
          %s518 = scalar_select %p517, %s32, 1
          %p519 = scmp.lt.s32.totalorder %s516, 1
          %s520 = scalar_select %p519, %s516, 1
          %s521 = smul.addr %s518, 2
          %s522 = sadd.s32 %s520, %s521
          %s523 = smul.addr %s522, 8
          %s524 = scalar_lea.vmem %s3, %s523
          %s525 = smul.u32 2, %s33
        $region76: #{hgn_forward.3} parent=59 // pred_fallthru
          _
        // Predicated region
        $region77: #{hgn_forward.3} parent=59 // pred_check
          %p526 = pneg %p167
        $region78: #{hgn_forward.3} parent=59 // pred_check_branch
          %528 = sbr.rel (%p526) target = $region80
        $region79: #{hgn_forward.3} parent=59 // pred_region
          %s529 = smul.u32 2, %s33
          %p530 = scmp.lt.s32.totalorder %s32, 1
          %s531 = scalar_select %p530, %s32, 1
          %p532 = scmp.lt.s32.totalorder %s529, 1
          %s533 = scalar_select %p532, %s529, 1
          %s534 = smul.addr %s531, 2
          %s535 = sadd.s32 %s533, %s534
          %s536 = smul.addr %s535, 8
          %s537 = scalar_lea.vmem %s4, %s536
          %s538 = smul.u32 2, %s33
        $region80: #{hgn_forward.3} parent=59 // pred_fallthru
          _
      $region60: #{hgn_forward.3} parent=5 // pred_fallthru
        _
      %p539 = scmp.le.s32.totalorder 1, %s25
      %p540 = scmp.lt.s32.totalorder %s25, 3
      %p541 = pnand %p539, %p540
      %p542 = pneg %p541
      // Predicated region
      $region81: #{hgn_forward.3} parent=5 // pred_check
        _
      $region82: #{hgn_forward.3} parent=5 // pred_check_branch
        %544 = sbr.rel (%p541) target = $region84
      $region83: #{hgn_forward.3} parent=5 // pred_region
        %s545 = ssub.s32 %s25, 1
        %s546 = smul.u32 2, %s35
        %p547 = scmp.lt.s32.totalorder %s34, 1
        %s548 = scalar_select %p547, %s34, 1
        %p549 = scmp.lt.s32.totalorder %s546, 1
        %s550 = scalar_select %p549, %s546, 1
        %s551 = smul.addr %s548, 2
        %s552 = sadd.s32 %s550, %s551
        %s553 = smul.addr %s552, 8
        %s554 = scalar_lea.vmem %s0, %s553
        %p555 = pneg %p65
        %p556 = pneg %p62
        %p557 = scmp.lt.s32.totalorder %s34, 1
        %s558 = scalar_select %p557, %s34, 1
        %s559 = smul.addr %s558, 2
        %s560 = smul.addr %s559, 8
        %s561 = scalar_lea.vmem %s1, %s560
        %p562 = pneg %p91
        %p563 = pneg %p88
        %p564 = scmp.lt.s32.totalorder %s34, 1
        %s565 = scalar_select %p564, %s34, 1
        %s566 = smul.addr %s565, 2
        %s567 = smul.addr %s566, 8
        %s568 = scalar_lea.vmem %s2, %s567
        %p569 = pneg %p117
        %p570 = pneg %p114
        %s571 = smul.u32 2, %s35
        %p572 = scmp.lt.s32.totalorder %s34, 1
        %s573 = scalar_select %p572, %s34, 1
        %p574 = scmp.lt.s32.totalorder %s571, 1
        %s575 = scalar_select %p574, %s571, 1
        %s576 = smul.addr %s573, 2
        %s577 = sadd.s32 %s575, %s576
        %s578 = smul.addr %s577, 8
        %s579 = scalar_lea.vmem %s3, %s578
        %p580 = pneg %p145
        %p581 = pneg %p142
        %s582 = smul.u32 2, %s35
        %p583 = scmp.lt.s32.totalorder %s34, 1
        %s584 = scalar_select %p583, %s34, 1
        %p585 = scmp.lt.s32.totalorder %s582, 1
        %s586 = scalar_select %p585, %s582, 1
        %s587 = smul.addr %s584, 2
        %s588 = sadd.s32 %s586, %s587
        %s589 = smul.addr %s588, 8
        %s590 = scalar_lea.vmem %s4, %s589
        %p591 = pneg %p173
        %p592 = pneg %p170
        %p593 = pneg %p194
        %p594 = pneg %p191
        %p595 = pneg %p215
        %p596 = pneg %p212
        %p597 = pneg %p236
        %p598 = pneg %p233
        %p599 = pneg %p257
        %p600 = pneg %p254
        %p601 = pneg %p278
        %p602 = pneg %p275
        %p603 = pneg %p299
        %p604 = pneg %p296
        %p605 = pneg %p320
        %p606 = pneg %p317
        %p607 = pneg %p341
        %p608 = pneg %p338
        %p609 = pneg %p362
        %p610 = pneg %p359
        %p611 = pneg %p383
        %p612 = pneg %p380
        %p613 = pneg %p404
        %p614 = pneg %p401
        %p615 = pneg %p432
        %p616 = pneg %p429
        %s617 = sand.u32 %s419, 1
        %s618 = scalar_lea.sflag [#allocation7], %s617
        %s619 = sand.u32 %s419, 1
        %s620 = smul.addr %s619, 16
        %s621 = scalar_lea.vmem [#allocation6], %s620
        %s622 = smul.u32 2, %s35
        %p623 = scmp.lt.s32.totalorder %s34, 1
        %s624 = scalar_select %p623, %s34, 1
        %p625 = scmp.lt.s32.totalorder %s622, 1
        %s626 = scalar_select %p625, %s622, 1
        %s627 = smul.addr %s624, 2
        %s628 = sadd.s32 %s626, %s627
        %s629 = smul.addr %s628, 8
        %s630 = scalar_lea.vmem %s0, %s629
        %s631 = smul.u32 2, %s35
        %p632 = scmp.lt.s32.totalorder %s34, 1
        %s633 = scalar_select %p632, %s34, 1
        %s634 = smul.addr %s633, 2
        %s635 = smul.addr %s634, 8
        %s636 = scalar_lea.vmem %s1, %s635
        %p637 = scmp.lt.s32.totalorder %s34, 1
        %s638 = scalar_select %p637, %s34, 1
        %s639 = smul.addr %s638, 2
        %s640 = smul.addr %s639, 8
        %s641 = scalar_lea.vmem %s2, %s640
        %s642 = smul.u32 2, %s35
        %p643 = scmp.lt.s32.totalorder %s34, 1
        %s644 = scalar_select %p643, %s34, 1
        %p645 = scmp.lt.s32.totalorder %s642, 1
        %s646 = scalar_select %p645, %s642, 1
        %s647 = smul.addr %s644, 2
        %s648 = sadd.s32 %s646, %s647
        %s649 = smul.addr %s648, 8
        %s650 = scalar_lea.vmem %s3, %s649
        %s651 = smul.u32 2, %s35
        %s652 = smul.u32 2, %s35
        %p653 = scmp.lt.s32.totalorder %s34, 1
        %s654 = scalar_select %p653, %s34, 1
        %p655 = scmp.lt.s32.totalorder %s652, 1
        %s656 = scalar_select %p655, %s652, 1
        %s657 = smul.addr %s654, 2
        %s658 = sadd.s32 %s656, %s657
        %s659 = smul.addr %s658, 8
        %s660 = scalar_lea.vmem %s4, %s659
        %s661 = smul.u32 2, %s35
        %s662 = smul.u32 2, %s35
        %p663 = scmp.eq.s32.totalorder %s35, 0
        // Predicated region
        $region85: #{hgn_forward.3} parent=83 // pred_check
          %p664 = pneg %p663
        $region86: #{hgn_forward.3} parent=83 // pred_check_branch
          %666 = sbr.rel (%p664) target = $region88
        $region87: #{hgn_forward.3} parent=83 // pred_region
          %v667 = vld [vmem:[%s636] sm:$0xff]
          %v668 = vld [vmem:[%s636 + $0x8] sm:$0xff]
          %v669 = vld [vmem:[%s641] sm:$0xff]
          %v670 = vld [vmem:[%s641 + $0x8] sm:$0xff]
          %v671 = vld [vmem:[%s9] sm:$0xff]
          %v672 = vld [vmem:[%s9 + $0x8] sm:$0xff]
          %v673 = vld [vmem:[%s9 + $0x10] sm:$0xff]
          %v674 = vld [vmem:[%s9 + $0x18] sm:$0xff]
          %v675 = vld [vmem:[%s9 + $0x20] sm:$0xff]
          %v676 = vld [vmem:[%s9 + $0x28] sm:$0xff]
          %v677 = vld [vmem:[%s9 + $0x30] sm:$0xff]
          %v678 = vld [vmem:[%s9 + $0x38] sm:$0xff]
          %v679 = vld [vmem:[%s9 + $0x40] sm:$0xff]
          %v680 = vld [vmem:[%s9 + $0x48] sm:$0xff]
          %v681 = vld [vmem:[%s9 + $0x50] sm:$0xff]
          %v682 = vld [vmem:[%s9 + $0x58] sm:$0xff]
          %v683 = vld [vmem:[%s9 + $0x60] sm:$0xff]
          %v684 = vld [vmem:[%s9 + $0x68] sm:$0xff]
          %v685 = vld [vmem:[%s9 + $0x70] sm:$0xff]
          %v686 = vld [vmem:[%s9 + $0x78] sm:$0xff]
          %v687 = vld [vmem:[%s10] sm:$0x1]
          %v689 = vlaneseq
          %v690 = vshrl.u32 %v689, 7
          %v691 = vsub.s32 0, %v690
          %v692 = vrot.slane %v687, %v691
          %694 = vmatprep.subr.mxu0 0.0
          %v695 = vand.u32 %v671, 4294901760
          %696 = vmatpush1.msra.mxu0 %v695
          %697 = vmatprep.subr.mxu0 0.0
          %v698 = vand.u32 %v672, 4294901760
          %699 = vmatpush1.msra.mxu0 %v698
          %700 = vmatprep.subr.mxu0 0.0
          %v701 = vand.u32 %v673, 4294901760
          %702 = vmatpush1.msra.mxu0 %v701
          %703 = vmatprep.subr.mxu0 0.0
          %v704 = vand.u32 %v674, 4294901760
          %705 = vmatpush1.msra.mxu0 %v704
          %706 = vmatprep.subr.mxu0 0.0
          %v707 = vand.u32 %v675, 4294901760
          %708 = vmatpush1.msra.mxu0 %v707
          %709 = vmatprep.subr.mxu0 0.0
          %v710 = vand.u32 %v676, 4294901760
          %711 = vmatpush1.msra.mxu0 %v710
          %712 = vmatprep.subr.mxu0 0.0
          %v713 = vand.u32 %v677, 4294901760
          %714 = vmatpush1.msra.mxu0 %v713
          %715 = vmatprep.subr.mxu0 0.0
          %v716 = vand.u32 %v678, 4294901760
          %717 = vmatpush1.msra.mxu0 %v716
          %718 = vmatprep.subr.mxu0 0.0
          %v719 = vand.u32 %v679, 4294901760
          %720 = vmatpush1.msra.mxu0 %v719
          %721 = vmatprep.subr.mxu0 0.0
          %v722 = vand.u32 %v680, 4294901760
          %723 = vmatpush1.msra.mxu0 %v722
          %724 = vmatprep.subr.mxu0 0.0
          %v725 = vand.u32 %v681, 4294901760
          %726 = vmatpush1.msra.mxu0 %v725
          %727 = vmatprep.subr.mxu0 0.0
          %v728 = vand.u32 %v682, 4294901760
          %729 = vmatpush1.msra.mxu0 %v728
          %730 = vmatprep.subr.mxu0 0.0
          %v731 = vand.u32 %v683, 4294901760
          %732 = vmatpush1.msra.mxu0 %v731
          %733 = vmatprep.subr.mxu0 0.0
          %v734 = vand.u32 %v684, 4294901760
          %735 = vmatpush1.msra.mxu0 %v734
          %736 = vmatprep.subr.mxu0 0.0
          %v737 = vand.u32 %v685, 4294901760
          %738 = vmatpush1.msra.mxu0 %v737
          %739 = vmatprep.subr.mxu0 0.0
          %v740 = vand.u32 %v686, 4294901760
          %741 = vmatpush1.msra.mxu0 %v740
          %742 = vmatprep.subr.mxu0 0.0
          %743 = vmatpush1.msra.mxu0 0.0
          %744 = vmatprep.subr.mxu0 0.0
          %745 = vmatpush1.msra.mxu0 0.0
          %746 = vmatprep.subr.mxu0 0.0
          %747 = vmatpush1.msra.mxu0 0.0
          %748 = vmatprep.subr.mxu0 0.0
          %749 = vmatpush1.msra.mxu0 0.0
          %750 = vmatprep.subr.mxu0 0.0
          %751 = vmatpush1.msra.mxu0 0.0
          %752 = vmatprep.subr.mxu0 0.0
          %753 = vmatpush1.msra.mxu0 0.0
          %754 = vmatprep.subr.mxu0 0.0
          %755 = vmatpush1.msra.mxu0 0.0
          %756 = vmatprep.subr.mxu0 0.0
          %757 = vmatpush1.msra.mxu0 0.0
          %758 = vmatprep.subr.mxu0 0.0
          %759 = vmatpush1.msra.mxu0 0.0
          %760 = vmatprep.subr.mxu0 0.0
          %761 = vmatpush1.msra.mxu0 0.0
          %762 = vmatprep.subr.mxu0 0.0
          %763 = vmatpush1.msra.mxu0 0.0
          %764 = vmatprep.subr.mxu0 0.0
          %765 = vmatpush1.msra.mxu0 0.0
          %766 = vmatprep.subr.mxu0 0.0
          %767 = vmatpush1.msra.mxu0 0.0
          %768 = vmatprep.subr.mxu0 0.0
          %769 = vmatpush1.msra.mxu0 0.0
          %770 = vmatprep.subr.mxu0 0.0
          %771 = vmatpush1.msra.mxu0 0.0
          %772 = vmatprep.subr.mxu0 0.0
          %773 = vmatpush1.msra.mxu0 0.0
          %774 = vmatprep.mubr.f32.mxu0 0.0
          %v775 = vand.u32 %v667, 4294901760
          %v776 = vsub.f32 %v667, %v775
          %v777 = vand.u32 %v776, 4294901760
          %v778 = vsub.f32 %v776, %v777
          %v779 = vand.u32 %v778, 4294901760
          %780 = vmatmul.mubr.f32.gmra.mrb[0].mxu0 %v779
          %v781 = vpop.f32.mrb[0].mxu0
          %v782 = vadd.f32 %v692, %v781
          %v783 = vpop.f32.mrb[0].mxu0
          %784 = vmatprep.mubr.f32.mxu0 0.0
          %v785 = vand.u32 %v668, 4294901760
          %v786 = vsub.f32 %v668, %v785
          %v787 = vand.u32 %v786, 4294901760
          %v788 = vsub.f32 %v786, %v787
          %v789 = vand.u32 %v788, 4294901760
          %790 = vmatmul.mubr.f32.gmra.mrb[0].mxu0 %v789
          %v791 = vpop.f32.mrb[0].mxu0
          %v792 = vadd.f32 %v692, %v791
          %v793 = vpop.f32.mrb[0].mxu0
          %794 = vdwg.mxu0
          %795 = vmatprep.subr.mxu0 0.0
          %v796 = vand.u32 %v671, 4294901760
          %v797 = vsub.f32 %v671, %v796
          %v798 = vand.u32 %v797, 4294901760
          %v799 = vsub.f32 %v797, %v798
          %v800 = vand.u32 %v799, 4294901760
          %801 = vmatpush1.msra.mxu0 %v800
          %802 = vmatprep.subr.mxu0 0.0
          %v803 = vand.u32 %v672, 4294901760
          %v804 = vsub.f32 %v672, %v803
          %v805 = vand.u32 %v804, 4294901760
          %v806 = vsub.f32 %v804, %v805
          %v807 = vand.u32 %v806, 4294901760
          %808 = vmatpush1.msra.mxu0 %v807
          %809 = vmatprep.subr.mxu0 0.0
          %v810 = vand.u32 %v673, 4294901760
          %v811 = vsub.f32 %v673, %v810
          %v812 = vand.u32 %v811, 4294901760
          %v813 = vsub.f32 %v811, %v812
          %v814 = vand.u32 %v813, 4294901760
          %815 = vmatpush1.msra.mxu0 %v814
          %816 = vmatprep.subr.mxu0 0.0
          %v817 = vand.u32 %v674, 4294901760
          %v818 = vsub.f32 %v674, %v817
          %v819 = vand.u32 %v818, 4294901760
          %v820 = vsub.f32 %v818, %v819
          %v821 = vand.u32 %v820, 4294901760
          %822 = vmatpush1.msra.mxu0 %v821
          %823 = vmatprep.subr.mxu0 0.0
          %v824 = vand.u32 %v675, 4294901760
          %v825 = vsub.f32 %v675, %v824
          %v826 = vand.u32 %v825, 4294901760
          %v827 = vsub.f32 %v825, %v826
          %v828 = vand.u32 %v827, 4294901760
          %829 = vmatpush1.msra.mxu0 %v828
          %830 = vmatprep.subr.mxu0 0.0
          %v831 = vand.u32 %v676, 4294901760
          %v832 = vsub.f32 %v676, %v831
          %v833 = vand.u32 %v832, 4294901760
          %v834 = vsub.f32 %v832, %v833
          %v835 = vand.u32 %v834, 4294901760
          %836 = vmatpush1.msra.mxu0 %v835
          %837 = vmatprep.subr.mxu0 0.0
          %v838 = vand.u32 %v677, 4294901760
          %v839 = vsub.f32 %v677, %v838
          %v840 = vand.u32 %v839, 4294901760
          %v841 = vsub.f32 %v839, %v840
          %v842 = vand.u32 %v841, 4294901760
          %843 = vmatpush1.msra.mxu0 %v842
          %844 = vmatprep.subr.mxu0 0.0
          %v845 = vand.u32 %v678, 4294901760
          %v846 = vsub.f32 %v678, %v845
          %v847 = vand.u32 %v846, 4294901760
          %v848 = vsub.f32 %v846, %v847
          %v849 = vand.u32 %v848, 4294901760
          %850 = vmatpush1.msra.mxu0 %v849
          %851 = vmatprep.subr.mxu0 0.0
          %v852 = vand.u32 %v679, 4294901760
          %v853 = vsub.f32 %v679, %v852
          %v854 = vand.u32 %v853, 4294901760
          %v855 = vsub.f32 %v853, %v854
          %v856 = vand.u32 %v855, 4294901760
          %857 = vmatpush1.msra.mxu0 %v856
          %858 = vmatprep.subr.mxu0 0.0
          %v859 = vand.u32 %v680, 4294901760
          %v860 = vsub.f32 %v680, %v859
          %v861 = vand.u32 %v860, 4294901760
          %v862 = vsub.f32 %v860, %v861
          %v863 = vand.u32 %v862, 4294901760
          %864 = vmatpush1.msra.mxu0 %v863
          %865 = vmatprep.subr.mxu0 0.0
          %v866 = vand.u32 %v681, 4294901760
          %v867 = vsub.f32 %v681, %v866
          %v868 = vand.u32 %v867, 4294901760
          %v869 = vsub.f32 %v867, %v868
          %v870 = vand.u32 %v869, 4294901760
          %871 = vmatpush1.msra.mxu0 %v870
          %872 = vmatprep.subr.mxu0 0.0
          %v873 = vand.u32 %v682, 4294901760
          %v874 = vsub.f32 %v682, %v873
          %v875 = vand.u32 %v874, 4294901760
          %v876 = vsub.f32 %v874, %v875
          %v877 = vand.u32 %v876, 4294901760
          %878 = vmatpush1.msra.mxu0 %v877
          %879 = vmatprep.subr.mxu0 0.0
          %v880 = vand.u32 %v683, 4294901760
          %v881 = vsub.f32 %v683, %v880
          %v882 = vand.u32 %v881, 4294901760
          %v883 = vsub.f32 %v881, %v882
          %v884 = vand.u32 %v883, 4294901760
          %885 = vmatpush1.msra.mxu0 %v884
          %886 = vmatprep.subr.mxu0 0.0
          %v887 = vand.u32 %v684, 4294901760
          %v888 = vsub.f32 %v684, %v887
          %v889 = vand.u32 %v888, 4294901760
          %v890 = vsub.f32 %v888, %v889
          %v891 = vand.u32 %v890, 4294901760
          %892 = vmatpush1.msra.mxu0 %v891
          %893 = vmatprep.subr.mxu0 0.0
          %v894 = vand.u32 %v685, 4294901760
          %v895 = vsub.f32 %v685, %v894
          %v896 = vand.u32 %v895, 4294901760
          %v897 = vsub.f32 %v895, %v896
          %v898 = vand.u32 %v897, 4294901760
          %899 = vmatpush1.msra.mxu0 %v898
          %900 = vmatprep.subr.mxu0 0.0
          %v901 = vand.u32 %v686, 4294901760
          %v902 = vsub.f32 %v686, %v901
          %v903 = vand.u32 %v902, 4294901760
          %v904 = vsub.f32 %v902, %v903
          %v905 = vand.u32 %v904, 4294901760
          %906 = vmatpush1.msra.mxu0 %v905
          %907 = vmatprep.subr.mxu0 0.0
          %908 = vmatpush1.msra.mxu0 0.0
          %909 = vmatprep.subr.mxu0 0.0
          %910 = vmatpush1.msra.mxu0 0.0
          %911 = vmatprep.subr.mxu0 0.0
          %912 = vmatpush1.msra.mxu0 0.0
          %913 = vmatprep.subr.mxu0 0.0
          %914 = vmatpush1.msra.mxu0 0.0
          %915 = vmatprep.subr.mxu0 0.0
          %916 = vmatpush1.msra.mxu0 0.0
          %917 = vmatprep.subr.mxu0 0.0
          %918 = vmatpush1.msra.mxu0 0.0
          %919 = vmatprep.subr.mxu0 0.0
          %920 = vmatpush1.msra.mxu0 0.0
          %921 = vmatprep.subr.mxu0 0.0
          %922 = vmatpush1.msra.mxu0 0.0
          %923 = vmatprep.subr.mxu0 0.0
          %924 = vmatpush1.msra.mxu0 0.0
          %925 = vmatprep.subr.mxu0 0.0
          %926 = vmatpush1.msra.mxu0 0.0
          %927 = vmatprep.subr.mxu0 0.0
          %928 = vmatpush1.msra.mxu0 0.0
          %929 = vmatprep.subr.mxu0 0.0
          %930 = vmatpush1.msra.mxu0 0.0
          %931 = vmatprep.subr.mxu0 0.0
          %932 = vmatpush1.msra.mxu0 0.0
          %933 = vmatprep.subr.mxu0 0.0
          %934 = vmatpush1.msra.mxu0 0.0
          %935 = vmatprep.subr.mxu0 0.0
          %936 = vmatpush1.msra.mxu0 0.0
          %937 = vmatprep.subr.mxu0 0.0
          %938 = vmatpush1.msra.mxu0 0.0
          %939 = vmatprep.mubr.f32.mxu0 0.0
          %v940 = vand.u32 %v667, 4294901760
          %941 = vmatmul.mubr.f32.gmra.mrb[0].mxu0 %v940
          %v942 = vpop.f32.mrb[0].mxu0
          %v943 = vadd.f32 %v782, %v942
          %v944 = vpop.f32.mrb[0].mxu0
          %945 = vmatprep.mubr.f32.mxu0 0.0
          %v946 = vand.u32 %v668, 4294901760
          %947 = vmatmul.mubr.f32.gmra.mrb[0].mxu0 %v946
          %v948 = vpop.f32.mrb[0].mxu0
          %v949 = vadd.f32 %v792, %v948
          %v950 = vpop.f32.mrb[0].mxu0
          %951 = vdwg.mxu0
          %952 = vmatprep.subr.mxu0 0.0
          %v953 = vand.u32 %v671, 4294901760
          %v954 = vsub.f32 %v671, %v953
          %955 = vmatpush1.msra.mxu0 %v954
          %956 = vmatprep.subr.mxu0 0.0
          %v957 = vand.u32 %v672, 4294901760
          %v958 = vsub.f32 %v672, %v957
          %959 = vmatpush1.msra.mxu0 %v958
          %960 = vmatprep.subr.mxu0 0.0
          %v961 = vand.u32 %v673, 4294901760
          %v962 = vsub.f32 %v673, %v961
          %963 = vmatpush1.msra.mxu0 %v962
          %964 = vmatprep.subr.mxu0 0.0
          %v965 = vand.u32 %v674, 4294901760
          %v966 = vsub.f32 %v674, %v965
          %967 = vmatpush1.msra.mxu0 %v966
          %968 = vmatprep.subr.mxu0 0.0
          %v969 = vand.u32 %v675, 4294901760
          %v970 = vsub.f32 %v675, %v969
          %971 = vmatpush1.msra.mxu0 %v970
          %972 = vmatprep.subr.mxu0 0.0
          %v973 = vand.u32 %v676, 4294901760
          %v974 = vsub.f32 %v676, %v973
          %975 = vmatpush1.msra.mxu0 %v974
          %976 = vmatprep.subr.mxu0 0.0
          %v977 = vand.u32 %v677, 4294901760
          %v978 = vsub.f32 %v677, %v977
          %979 = vmatpush1.msra.mxu0 %v978
          %980 = vmatprep.subr.mxu0 0.0
          %v981 = vand.u32 %v678, 4294901760
          %v982 = vsub.f32 %v678, %v981
          %983 = vmatpush1.msra.mxu0 %v982
          %984 = vmatprep.subr.mxu0 0.0
          %v985 = vand.u32 %v679, 4294901760
          %v986 = vsub.f32 %v679, %v985
          %987 = vmatpush1.msra.mxu0 %v986
          %988 = vmatprep.subr.mxu0 0.0
          %v989 = vand.u32 %v680, 4294901760
          %v990 = vsub.f32 %v680, %v989
          %991 = vmatpush1.msra.mxu0 %v990
          %992 = vmatprep.subr.mxu0 0.0
          %v993 = vand.u32 %v681, 4294901760
          %v994 = vsub.f32 %v681, %v993
          %995 = vmatpush1.msra.mxu0 %v994
          %996 = vmatprep.subr.mxu0 0.0
          %v997 = vand.u32 %v682, 4294901760
          %v998 = vsub.f32 %v682, %v997
          %999 = vmatpush1.msra.mxu0 %v998
          %1000 = vmatprep.subr.mxu0 0.0
          %v1001 = vand.u32 %v683, 4294901760
          %v1002 = vsub.f32 %v683, %v1001
          %1003 = vmatpush1.msra.mxu0 %v1002
          %1004 = vmatprep.subr.mxu0 0.0
          %v1005 = vand.u32 %v684, 4294901760
          %v1006 = vsub.f32 %v684, %v1005
          %1007 = vmatpush1.msra.mxu0 %v1006
          %1008 = vmatprep.subr.mxu0 0.0
          %v1009 = vand.u32 %v685, 4294901760
          %v1010 = vsub.f32 %v685, %v1009
          %1011 = vmatpush1.msra.mxu0 %v1010
          %1012 = vmatprep.subr.mxu0 0.0
          %v1013 = vand.u32 %v686, 4294901760
          %v1014 = vsub.f32 %v686, %v1013
          %1015 = vmatpush1.msra.mxu0 %v1014
          %1016 = vmatprep.subr.mxu0 0.0
          %1017 = vmatpush1.msra.mxu0 0.0
          %1018 = vmatprep.subr.mxu0 0.0
          %1019 = vmatpush1.msra.mxu0 0.0
          %1020 = vmatprep.subr.mxu0 0.0
          %1021 = vmatpush1.msra.mxu0 0.0
          %1022 = vmatprep.subr.mxu0 0.0
          %1023 = vmatpush1.msra.mxu0 0.0
          %1024 = vmatprep.subr.mxu0 0.0
          %1025 = vmatpush1.msra.mxu0 0.0
          %1026 = vmatprep.subr.mxu0 0.0
          %1027 = vmatpush1.msra.mxu0 0.0
          %1028 = vmatprep.subr.mxu0 0.0
          %1029 = vmatpush1.msra.mxu0 0.0
          %1030 = vmatprep.subr.mxu0 0.0
          %1031 = vmatpush1.msra.mxu0 0.0
          %1032 = vmatprep.subr.mxu0 0.0
          %1033 = vmatpush1.msra.mxu0 0.0
          %1034 = vmatprep.subr.mxu0 0.0
          %1035 = vmatpush1.msra.mxu0 0.0
          %1036 = vmatprep.subr.mxu0 0.0
          %1037 = vmatpush1.msra.mxu0 0.0
          %1038 = vmatprep.subr.mxu0 0.0
          %1039 = vmatpush1.msra.mxu0 0.0
          %1040 = vmatprep.subr.mxu0 0.0
          %1041 = vmatpush1.msra.mxu0 0.0
          %1042 = vmatprep.subr.mxu0 0.0
          %1043 = vmatpush1.msra.mxu0 0.0
          %1044 = vmatprep.subr.mxu0 0.0
          %1045 = vmatpush1.msra.mxu0 0.0
          %1046 = vmatprep.subr.mxu0 0.0
          %1047 = vmatpush1.msra.mxu0 0.0
          %1048 = vmatprep.mubr.f32.mxu0 0.0
          %v1049 = vand.u32 %v667, 4294901760
          %v1050 = vsub.f32 %v667, %v1049
          %1051 = vmatmul.mubr.f32.gmra.mrb[0].mxu0 %v1050
          %v1052 = vpop.f32.mrb[0].mxu0
          %v1053 = vadd.f32 %v943, %v1052
          %v1054 = vpop.f32.mrb[0].mxu0
          %1055 = vmatprep.mubr.f32.mxu0 0.0
          %v1056 = vand.u32 %v668, 4294901760
          %v1057 = vsub.f32 %v668, %v1056
          %1058 = vmatmul.mubr.f32.gmra.mrb[0].mxu0 %v1057
          %v1059 = vpop.f32.mrb[0].mxu0
          %v1060 = vadd.f32 %v949, %v1059
          %v1061 = vpop.f32.mrb[0].mxu0
          %1062 = vdwg.mxu0
          %1063 = vmatprep.subr.mxu0 0.0
          %v1064 = vand.u32 %v671, 4294901760
          %1065 = vmatpush1.msra.mxu0 %v1064
          %1066 = vmatprep.subr.mxu0 0.0
          %v1067 = vand.u32 %v672, 4294901760
          %1068 = vmatpush1.msra.mxu0 %v1067
          %1069 = vmatprep.subr.mxu0 0.0
          %v1070 = vand.u32 %v673, 4294901760
          %1071 = vmatpush1.msra.mxu0 %v1070
          %1072 = vmatprep.subr.mxu0 0.0
          %v1073 = vand.u32 %v674, 4294901760
          %1074 = vmatpush1.msra.mxu0 %v1073
          %1075 = vmatprep.subr.mxu0 0.0
          %v1076 = vand.u32 %v675, 4294901760
          %1077 = vmatpush1.msra.mxu0 %v1076
          %1078 = vmatprep.subr.mxu0 0.0
          %v1079 = vand.u32 %v676, 4294901760
          %1080 = vmatpush1.msra.mxu0 %v1079
          %1081 = vmatprep.subr.mxu0 0.0
          %v1082 = vand.u32 %v677, 4294901760
          %1083 = vmatpush1.msra.mxu0 %v1082
          %1084 = vmatprep.subr.mxu0 0.0
          %v1085 = vand.u32 %v678, 4294901760
          %1086 = vmatpush1.msra.mxu0 %v1085
          %1087 = vmatprep.subr.mxu0 0.0
          %v1088 = vand.u32 %v679, 4294901760
          %1089 = vmatpush1.msra.mxu0 %v1088
          %1090 = vmatprep.subr.mxu0 0.0
          %v1091 = vand.u32 %v680, 4294901760
          %1092 = vmatpush1.msra.mxu0 %v1091
          %1093 = vmatprep.subr.mxu0 0.0
          %v1094 = vand.u32 %v681, 4294901760
          %1095 = vmatpush1.msra.mxu0 %v1094
          %1096 = vmatprep.subr.mxu0 0.0
          %v1097 = vand.u32 %v682, 4294901760
          %1098 = vmatpush1.msra.mxu0 %v1097
          %1099 = vmatprep.subr.mxu0 0.0
          %v1100 = vand.u32 %v683, 4294901760
          %1101 = vmatpush1.msra.mxu0 %v1100
          %1102 = vmatprep.subr.mxu0 0.0
          %v1103 = vand.u32 %v684, 4294901760
          %1104 = vmatpush1.msra.mxu0 %v1103
          %1105 = vmatprep.subr.mxu0 0.0
          %v1106 = vand.u32 %v685, 4294901760
          %1107 = vmatpush1.msra.mxu0 %v1106
          %1108 = vmatprep.subr.mxu0 0.0
          %v1109 = vand.u32 %v686, 4294901760
          %1110 = vmatpush1.msra.mxu0 %v1109
          %1111 = vmatprep.subr.mxu0 0.0
          %1112 = vmatpush1.msra.mxu0 0.0
          %1113 = vmatprep.subr.mxu0 0.0
          %1114 = vmatpush1.msra.mxu0 0.0
          %1115 = vmatprep.subr.mxu0 0.0
          %1116 = vmatpush1.msra.mxu0 0.0
          %1117 = vmatprep.subr.mxu0 0.0
          %1118 = vmatpush1.msra.mxu0 0.0
          %1119 = vmatprep.subr.mxu0 0.0
          %1120 = vmatpush1.msra.mxu0 0.0
          %1121 = vmatprep.subr.mxu0 0.0
          %1122 = vmatpush1.msra.mxu0 0.0
          %1123 = vmatprep.subr.mxu0 0.0
          %1124 = vmatpush1.msra.mxu0 0.0
          %1125 = vmatprep.subr.mxu0 0.0
          %1126 = vmatpush1.msra.mxu0 0.0
          %1127 = vmatprep.subr.mxu0 0.0
          %1128 = vmatpush1.msra.mxu0 0.0
          %1129 = vmatprep.subr.mxu0 0.0
          %1130 = vmatpush1.msra.mxu0 0.0
          %1131 = vmatprep.subr.mxu0 0.0
          %1132 = vmatpush1.msra.mxu0 0.0
          %1133 = vmatprep.subr.mxu0 0.0
          %1134 = vmatpush1.msra.mxu0 0.0
          %1135 = vmatprep.subr.mxu0 0.0
          %1136 = vmatpush1.msra.mxu0 0.0
          %1137 = vmatprep.subr.mxu0 0.0
          %1138 = vmatpush1.msra.mxu0 0.0
          %1139 = vmatprep.subr.mxu0 0.0
          %1140 = vmatpush1.msra.mxu0 0.0
          %1141 = vmatprep.subr.mxu0 0.0
          %1142 = vmatpush1.msra.mxu0 0.0
          %1143 = vmatprep.mubr.f32.mxu0 0.0
          %v1144 = vand.u32 %v667, 4294901760
          %v1145 = vsub.f32 %v667, %v1144
          %v1146 = vand.u32 %v1145, 4294901760
          %1147 = vmatmul.mubr.f32.gmra.mrb[0].mxu0 %v1146
          %v1148 = vpop.f32.mrb[0].mxu0
          %v1149 = vadd.f32 %v1053, %v1148
          %v1150 = vpop.f32.mrb[0].mxu0
          %1151 = vmatprep.mubr.f32.mxu0 0.0
          %v1152 = vand.u32 %v668, 4294901760
          %v1153 = vsub.f32 %v668, %v1152
          %v1154 = vand.u32 %v1153, 4294901760
          %1155 = vmatmul.mubr.f32.gmra.mrb[0].mxu0 %v1154
          %v1156 = vpop.f32.mrb[0].mxu0
          %v1157 = vadd.f32 %v1060, %v1156
          %v1158 = vpop.f32.mrb[0].mxu0
          %1159 = vdwg.mxu0
          %1160 = vmatprep.subr.mxu0 0.0
          %v1161 = vand.u32 %v671, 4294901760
          %v1162 = vsub.f32 %v671, %v1161
          %v1163 = vand.u32 %v1162, 4294901760
          %1164 = vmatpush1.msra.mxu0 %v1163
          %1165 = vmatprep.subr.mxu0 0.0
          %v1166 = vand.u32 %v672, 4294901760
          %v1167 = vsub.f32 %v672, %v1166
          %v1168 = vand.u32 %v1167, 4294901760
          %1169 = vmatpush1.msra.mxu0 %v1168
          %1170 = vmatprep.subr.mxu0 0.0
          %v1171 = vand.u32 %v673, 4294901760
          %v1172 = vsub.f32 %v673, %v1171
          %v1173 = vand.u32 %v1172, 4294901760
          %1174 = vmatpush1.msra.mxu0 %v1173
          %1175 = vmatprep.subr.mxu0 0.0
          %v1176 = vand.u32 %v674, 4294901760
          %v1177 = vsub.f32 %v674, %v1176
          %v1178 = vand.u32 %v1177, 4294901760
          %1179 = vmatpush1.msra.mxu0 %v1178
          %1180 = vmatprep.subr.mxu0 0.0
          %v1181 = vand.u32 %v675, 4294901760
          %v1182 = vsub.f32 %v675, %v1181
          %v1183 = vand.u32 %v1182, 4294901760
          %1184 = vmatpush1.msra.mxu0 %v1183
          %1185 = vmatprep.subr.mxu0 0.0
          %v1186 = vand.u32 %v676, 4294901760
          %v1187 = vsub.f32 %v676, %v1186
          %v1188 = vand.u32 %v1187, 4294901760
          %1189 = vmatpush1.msra.mxu0 %v1188
          %1190 = vmatprep.subr.mxu0 0.0
          %v1191 = vand.u32 %v677, 4294901760
          %v1192 = vsub.f32 %v677, %v1191
          %v1193 = vand.u32 %v1192, 4294901760
          %1194 = vmatpush1.msra.mxu0 %v1193
          %1195 = vmatprep.subr.mxu0 0.0
          %v1196 = vand.u32 %v678, 4294901760
          %v1197 = vsub.f32 %v678, %v1196
          %v1198 = vand.u32 %v1197, 4294901760
          %1199 = vmatpush1.msra.mxu0 %v1198
          %1200 = vmatprep.subr.mxu0 0.0
          %v1201 = vand.u32 %v679, 4294901760
          %v1202 = vsub.f32 %v679, %v1201
          %v1203 = vand.u32 %v1202, 4294901760
          %1204 = vmatpush1.msra.mxu0 %v1203
          %1205 = vmatprep.subr.mxu0 0.0
          %v1206 = vand.u32 %v680, 4294901760
          %v1207 = vsub.f32 %v680, %v1206
          %v1208 = vand.u32 %v1207, 4294901760
          %1209 = vmatpush1.msra.mxu0 %v1208
          %1210 = vmatprep.subr.mxu0 0.0
          %v1211 = vand.u32 %v681, 4294901760
          %v1212 = vsub.f32 %v681, %v1211
          %v1213 = vand.u32 %v1212, 4294901760
          %1214 = vmatpush1.msra.mxu0 %v1213
          %1215 = vmatprep.subr.mxu0 0.0
          %v1216 = vand.u32 %v682, 4294901760
          %v1217 = vsub.f32 %v682, %v1216
          %v1218 = vand.u32 %v1217, 4294901760
          %1219 = vmatpush1.msra.mxu0 %v1218
          %1220 = vmatprep.subr.mxu0 0.0
          %v1221 = vand.u32 %v683, 4294901760
          %v1222 = vsub.f32 %v683, %v1221
          %v1223 = vand.u32 %v1222, 4294901760
          %1224 = vmatpush1.msra.mxu0 %v1223
          %1225 = vmatprep.subr.mxu0 0.0
          %v1226 = vand.u32 %v684, 4294901760
          %v1227 = vsub.f32 %v684, %v1226
          %v1228 = vand.u32 %v1227, 4294901760
          %1229 = vmatpush1.msra.mxu0 %v1228
          %1230 = vmatprep.subr.mxu0 0.0
          %v1231 = vand.u32 %v685, 4294901760
          %v1232 = vsub.f32 %v685, %v1231
          %v1233 = vand.u32 %v1232, 4294901760
          %1234 = vmatpush1.msra.mxu0 %v1233
          %1235 = vmatprep.subr.mxu0 0.0
          %v1236 = vand.u32 %v686, 4294901760
          %v1237 = vsub.f32 %v686, %v1236
          %v1238 = vand.u32 %v1237, 4294901760
          %1239 = vmatpush1.msra.mxu0 %v1238
          %1240 = vmatprep.subr.mxu0 0.0
          %1241 = vmatpush1.msra.mxu0 0.0
          %1242 = vmatprep.subr.mxu0 0.0
          %1243 = vmatpush1.msra.mxu0 0.0
          %1244 = vmatprep.subr.mxu0 0.0
          %1245 = vmatpush1.msra.mxu0 0.0
          %1246 = vmatprep.subr.mxu0 0.0
          %1247 = vmatpush1.msra.mxu0 0.0
          %1248 = vmatprep.subr.mxu0 0.0
          %1249 = vmatpush1.msra.mxu0 0.0
          %1250 = vmatprep.subr.mxu0 0.0
          %1251 = vmatpush1.msra.mxu0 0.0
          %1252 = vmatprep.subr.mxu0 0.0
          %1253 = vmatpush1.msra.mxu0 0.0
          %1254 = vmatprep.subr.mxu0 0.0
          %1255 = vmatpush1.msra.mxu0 0.0
          %1256 = vmatprep.subr.mxu0 0.0
          %1257 = vmatpush1.msra.mxu0 0.0
          %1258 = vmatprep.subr.mxu0 0.0
          %1259 = vmatpush1.msra.mxu0 0.0
          %1260 = vmatprep.subr.mxu0 0.0
          %1261 = vmatpush1.msra.mxu0 0.0
          %1262 = vmatprep.subr.mxu0 0.0
          %1263 = vmatpush1.msra.mxu0 0.0
          %1264 = vmatprep.subr.mxu0 0.0
          %1265 = vmatpush1.msra.mxu0 0.0
          %1266 = vmatprep.subr.mxu0 0.0
          %1267 = vmatpush1.msra.mxu0 0.0
          %1268 = vmatprep.subr.mxu0 0.0
          %1269 = vmatpush1.msra.mxu0 0.0
          %1270 = vmatprep.subr.mxu0 0.0
          %1271 = vmatpush1.msra.mxu0 0.0
          %1272 = vmatprep.mubr.f32.mxu0 0.0
          %v1273 = vand.u32 %v667, 4294901760
          %1274 = vmatmul.mubr.f32.gmra.mrb[0].mxu0 %v1273
          %v1275 = vpop.f32.mrb[0].mxu0
          %v1276 = vadd.f32 %v1149, %v1275
          %v1277 = vpop.f32.mrb[0].mxu0
          %1278 = vmatprep.mubr.f32.mxu0 0.0
          %v1279 = vand.u32 %v668, 4294901760
          %1280 = vmatmul.mubr.f32.gmra.mrb[0].mxu0 %v1279
          %v1281 = vpop.f32.mrb[0].mxu0
          %v1282 = vadd.f32 %v1157, %v1281
          %v1283 = vpop.f32.mrb[0].mxu0
          %1284 = vdwg.mxu0
          %1285 = vmatprep.subr.mxu0 0.0
          %v1286 = vand.u32 %v671, 4294901760
          %1287 = vmatpush1.msra.mxu0 %v1286
          %1288 = vmatprep.subr.mxu0 0.0
          %v1289 = vand.u32 %v672, 4294901760
          %1290 = vmatpush1.msra.mxu0 %v1289
          %1291 = vmatprep.subr.mxu0 0.0
          %v1292 = vand.u32 %v673, 4294901760
          %1293 = vmatpush1.msra.mxu0 %v1292
          %1294 = vmatprep.subr.mxu0 0.0
          %v1295 = vand.u32 %v674, 4294901760
          %1296 = vmatpush1.msra.mxu0 %v1295
          %1297 = vmatprep.subr.mxu0 0.0
          %v1298 = vand.u32 %v675, 4294901760
          %1299 = vmatpush1.msra.mxu0 %v1298
          %1300 = vmatprep.subr.mxu0 0.0
          %v1301 = vand.u32 %v676, 4294901760
          %1302 = vmatpush1.msra.mxu0 %v1301
          %1303 = vmatprep.subr.mxu0 0.0
          %v1304 = vand.u32 %v677, 4294901760
          %1305 = vmatpush1.msra.mxu0 %v1304
          %1306 = vmatprep.subr.mxu0 0.0
          %v1307 = vand.u32 %v678, 4294901760
          %1308 = vmatpush1.msra.mxu0 %v1307
          %1309 = vmatprep.subr.mxu0 0.0
          %v1310 = vand.u32 %v679, 4294901760
          %1311 = vmatpush1.msra.mxu0 %v1310
          %1312 = vmatprep.subr.mxu0 0.0
          %v1313 = vand.u32 %v680, 4294901760
          %1314 = vmatpush1.msra.mxu0 %v1313
          %1315 = vmatprep.subr.mxu0 0.0
          %v1316 = vand.u32 %v681, 4294901760
          %1317 = vmatpush1.msra.mxu0 %v1316
          %1318 = vmatprep.subr.mxu0 0.0
          %v1319 = vand.u32 %v682, 4294901760
          %1320 = vmatpush1.msra.mxu0 %v1319
          %1321 = vmatprep.subr.mxu0 0.0
          %v1322 = vand.u32 %v683, 4294901760
          %1323 = vmatpush1.msra.mxu0 %v1322
          %1324 = vmatprep.subr.mxu0 0.0
          %v1325 = vand.u32 %v684, 4294901760
          %1326 = vmatpush1.msra.mxu0 %v1325
          %1327 = vmatprep.subr.mxu0 0.0
          %v1328 = vand.u32 %v685, 4294901760
          %1329 = vmatpush1.msra.mxu0 %v1328
          %1330 = vmatprep.subr.mxu0 0.0
          %v1331 = vand.u32 %v686, 4294901760
          %1332 = vmatpush1.msra.mxu0 %v1331
          %1333 = vmatprep.subr.mxu0 0.0
          %1334 = vmatpush1.msra.mxu0 0.0
          %1335 = vmatprep.subr.mxu0 0.0
          %1336 = vmatpush1.msra.mxu0 0.0
          %1337 = vmatprep.subr.mxu0 0.0
          %1338 = vmatpush1.msra.mxu0 0.0
          %1339 = vmatprep.subr.mxu0 0.0
          %1340 = vmatpush1.msra.mxu0 0.0
          %1341 = vmatprep.subr.mxu0 0.0
          %1342 = vmatpush1.msra.mxu0 0.0
          %1343 = vmatprep.subr.mxu0 0.0
          %1344 = vmatpush1.msra.mxu0 0.0
          %1345 = vmatprep.subr.mxu0 0.0
          %1346 = vmatpush1.msra.mxu0 0.0
          %1347 = vmatprep.subr.mxu0 0.0
          %1348 = vmatpush1.msra.mxu0 0.0
          %1349 = vmatprep.subr.mxu0 0.0
          %1350 = vmatpush1.msra.mxu0 0.0
          %1351 = vmatprep.subr.mxu0 0.0
          %1352 = vmatpush1.msra.mxu0 0.0
          %1353 = vmatprep.subr.mxu0 0.0
          %1354 = vmatpush1.msra.mxu0 0.0
          %1355 = vmatprep.subr.mxu0 0.0
          %1356 = vmatpush1.msra.mxu0 0.0
          %1357 = vmatprep.subr.mxu0 0.0
          %1358 = vmatpush1.msra.mxu0 0.0
          %1359 = vmatprep.subr.mxu0 0.0
          %1360 = vmatpush1.msra.mxu0 0.0
          %1361 = vmatprep.subr.mxu0 0.0
          %1362 = vmatpush1.msra.mxu0 0.0
          %1363 = vmatprep.subr.mxu0 0.0
          %1364 = vmatpush1.msra.mxu0 0.0
          %1365 = vmatprep.mubr.f32.mxu0 0.0
          %v1366 = vand.u32 %v667, 4294901760
          %1367 = vmatmul.mubr.f32.gmra.mrb[0].mxu0 %v1366
          %v1368 = vpop.f32.mrb[0].mxu0
          %v1369 = vadd.f32 %v1276, %v1368
          %v1370 = vpop.f32.mrb[0].mxu0
          %1371 = vmatprep.mubr.f32.mxu0 0.0
          %v1372 = vand.u32 %v668, 4294901760
          %1373 = vmatmul.mubr.f32.gmra.mrb[0].mxu0 %v1372
          %v1374 = vpop.f32.mrb[0].mxu0
          %v1375 = vadd.f32 %v1282, %v1374
          %v1376 = vpop.f32.mrb[0].mxu0
          %1377 = vdwg.mxu0
          %1378 = vst [vmem:[#allocation2] sm:$0xff] %v1369
          %1379 = vst [vmem:[#allocation2 + $0x8] sm:$0xff] %v1375
          %v1380 = vld [vmem:[%s9] sm:$0xff]
          %v1381 = vld [vmem:[%s9 + $0x8] sm:$0xff]
          %v1382 = vld [vmem:[%s9 + $0x10] sm:$0xff]
          %v1383 = vld [vmem:[%s9 + $0x18] sm:$0xff]
          %v1384 = vld [vmem:[%s9 + $0x20] sm:$0xff]
          %v1385 = vld [vmem:[%s9 + $0x28] sm:$0xff]
          %v1386 = vld [vmem:[%s9 + $0x30] sm:$0xff]
          %v1387 = vld [vmem:[%s9 + $0x38] sm:$0xff]
          %v1388 = vld [vmem:[%s9 + $0x40] sm:$0xff]
          %v1389 = vld [vmem:[%s9 + $0x48] sm:$0xff]
          %v1390 = vld [vmem:[%s9 + $0x50] sm:$0xff]
          %v1391 = vld [vmem:[%s9 + $0x58] sm:$0xff]
          %v1392 = vld [vmem:[%s9 + $0x60] sm:$0xff]
          %v1393 = vld [vmem:[%s9 + $0x68] sm:$0xff]
          %v1394 = vld [vmem:[%s9 + $0x70] sm:$0xff]
          %v1395 = vld [vmem:[%s9 + $0x78] sm:$0xff]
          %v1396 = vld [vmem:[%s10] sm:$0x1]
          %v1398 = vlaneseq
          %v1399 = vshrl.u32 %v1398, 7
          %v1400 = vsub.s32 0, %v1399
          %v1401 = vrot.slane %v1396, %v1400
          %1403 = vmatprep.subr.mxu0 0.0
          %v1404 = vand.u32 %v1380, 4294901760
          %1405 = vmatpush1.msra.mxu0 %v1404
          %1406 = vmatprep.subr.mxu0 0.0
          %v1407 = vand.u32 %v1381, 4294901760
          %1408 = vmatpush1.msra.mxu0 %v1407
          %1409 = vmatprep.subr.mxu0 0.0
          %v1410 = vand.u32 %v1382, 4294901760
          %1411 = vmatpush1.msra.mxu0 %v1410
          %1412 = vmatprep.subr.mxu0 0.0
          %v1413 = vand.u32 %v1383, 4294901760
          %1414 = vmatpush1.msra.mxu0 %v1413
          %1415 = vmatprep.subr.mxu0 0.0
          %v1416 = vand.u32 %v1384, 4294901760
          %1417 = vmatpush1.msra.mxu0 %v1416
          %1418 = vmatprep.subr.mxu0 0.0
          %v1419 = vand.u32 %v1385, 4294901760
          %1420 = vmatpush1.msra.mxu0 %v1419
          %1421 = vmatprep.subr.mxu0 0.0
          %v1422 = vand.u32 %v1386, 4294901760
          %1423 = vmatpush1.msra.mxu0 %v1422
          %1424 = vmatprep.subr.mxu0 0.0
          %v1425 = vand.u32 %v1387, 4294901760
          %1426 = vmatpush1.msra.mxu0 %v1425
          %1427 = vmatprep.subr.mxu0 0.0
          %v1428 = vand.u32 %v1388, 4294901760
          %1429 = vmatpush1.msra.mxu0 %v1428
          %1430 = vmatprep.subr.mxu0 0.0
          %v1431 = vand.u32 %v1389, 4294901760
          %1432 = vmatpush1.msra.mxu0 %v1431
          %1433 = vmatprep.subr.mxu0 0.0
          %v1434 = vand.u32 %v1390, 4294901760
          %1435 = vmatpush1.msra.mxu0 %v1434
          %1436 = vmatprep.subr.mxu0 0.0
          %v1437 = vand.u32 %v1391, 4294901760
          %1438 = vmatpush1.msra.mxu0 %v1437
          %1439 = vmatprep.subr.mxu0 0.0
          %v1440 = vand.u32 %v1392, 4294901760
          %1441 = vmatpush1.msra.mxu0 %v1440
          %1442 = vmatprep.subr.mxu0 0.0
          %v1443 = vand.u32 %v1393, 4294901760
          %1444 = vmatpush1.msra.mxu0 %v1443
          %1445 = vmatprep.subr.mxu0 0.0
          %v1446 = vand.u32 %v1394, 4294901760
          %1447 = vmatpush1.msra.mxu0 %v1446
          %1448 = vmatprep.subr.mxu0 0.0
          %v1449 = vand.u32 %v1395, 4294901760
          %1450 = vmatpush1.msra.mxu0 %v1449
          %1451 = vmatprep.subr.mxu0 0.0
          %1452 = vmatpush1.msra.mxu0 0.0
          %1453 = vmatprep.subr.mxu0 0.0
          %1454 = vmatpush1.msra.mxu0 0.0
          %1455 = vmatprep.subr.mxu0 0.0
          %1456 = vmatpush1.msra.mxu0 0.0
          %1457 = vmatprep.subr.mxu0 0.0
          %1458 = vmatpush1.msra.mxu0 0.0
          %1459 = vmatprep.subr.mxu0 0.0
          %1460 = vmatpush1.msra.mxu0 0.0
          %1461 = vmatprep.subr.mxu0 0.0
          %1462 = vmatpush1.msra.mxu0 0.0
          %1463 = vmatprep.subr.mxu0 0.0
          %1464 = vmatpush1.msra.mxu0 0.0
          %1465 = vmatprep.subr.mxu0 0.0
          %1466 = vmatpush1.msra.mxu0 0.0
          %1467 = vmatprep.subr.mxu0 0.0
          %1468 = vmatpush1.msra.mxu0 0.0
          %1469 = vmatprep.subr.mxu0 0.0
          %1470 = vmatpush1.msra.mxu0 0.0
          %1471 = vmatprep.subr.mxu0 0.0
          %1472 = vmatpush1.msra.mxu0 0.0
          %1473 = vmatprep.subr.mxu0 0.0
          %1474 = vmatpush1.msra.mxu0 0.0
          %1475 = vmatprep.subr.mxu0 0.0
          %1476 = vmatpush1.msra.mxu0 0.0
          %1477 = vmatprep.subr.mxu0 0.0
          %1478 = vmatpush1.msra.mxu0 0.0
          %1479 = vmatprep.subr.mxu0 0.0
          %1480 = vmatpush1.msra.mxu0 0.0
          %1481 = vmatprep.subr.mxu0 0.0
          %1482 = vmatpush1.msra.mxu0 0.0
          %1483 = vmatprep.mubr.f32.mxu0 0.0
          %v1484 = vand.u32 %v669, 4294901760
          %v1485 = vsub.f32 %v669, %v1484
          %v1486 = vand.u32 %v1485, 4294901760
          %v1487 = vsub.f32 %v1485, %v1486
          %v1488 = vand.u32 %v1487, 4294901760
          %1489 = vmatmul.mubr.f32.gmra.mrb[0].mxu0 %v1488
          %v1490 = vpop.f32.mrb[0].mxu0
          %v1491 = vadd.f32 %v1401, %v1490
          %v1492 = vpop.f32.mrb[0].mxu0
          %1493 = vmatprep.mubr.f32.mxu0 0.0
          %v1494 = vand.u32 %v670, 4294901760
          %v1495 = vsub.f32 %v670, %v1494
          %v1496 = vand.u32 %v1495, 4294901760
          %v1497 = vsub.f32 %v1495, %v1496
          %v1498 = vand.u32 %v1497, 4294901760
          %1499 = vmatmul.mubr.f32.gmra.mrb[0].mxu0 %v1498
          %v1500 = vpop.f32.mrb[0].mxu0
          %v1501 = vadd.f32 %v1401, %v1500
          %v1502 = vpop.f32.mrb[0].mxu0
          %1503 = vdwg.mxu0
          %1504 = vmatprep.subr.mxu0 0.0
          %v1505 = vand.u32 %v1380, 4294901760
          %v1506 = vsub.f32 %v1380, %v1505
          %v1507 = vand.u32 %v1506, 4294901760
          %v1508 = vsub.f32 %v1506, %v1507
          %v1509 = vand.u32 %v1508, 4294901760
          %1510 = vmatpush1.msra.mxu0 %v1509
          %1511 = vmatprep.subr.mxu0 0.0
          %v1512 = vand.u32 %v1381, 4294901760
          %v1513 = vsub.f32 %v1381, %v1512
          %v1514 = vand.u32 %v1513, 4294901760
          %v1515 = vsub.f32 %v1513, %v1514
          %v1516 = vand.u32 %v1515, 4294901760
          %1517 = vmatpush1.msra.mxu0 %v1516
          %1518 = vmatprep.subr.mxu0 0.0
          %v1519 = vand.u32 %v1382, 4294901760
          %v1520 = vsub.f32 %v1382, %v1519
          %v1521 = vand.u32 %v1520, 4294901760
          %v1522 = vsub.f32 %v1520, %v1521
          %v1523 = vand.u32 %v1522, 4294901760
          %1524 = vmatpush1.msra.mxu0 %v1523
          %1525 = vmatprep.subr.mxu0 0.0
          %v1526 = vand.u32 %v1383, 4294901760
          %v1527 = vsub.f32 %v1383, %v1526
          %v1528 = vand.u32 %v1527, 4294901760
          %v1529 = vsub.f32 %v1527, %v1528
          %v1530 = vand.u32 %v1529, 4294901760
          %1531 = vmatpush1.msra.mxu0 %v1530
          %1532 = vmatprep.subr.mxu0 0.0
          %v1533 = vand.u32 %v1384, 4294901760
          %v1534 = vsub.f32 %v1384, %v1533
          %v1535 = vand.u32 %v1534, 4294901760
          %v1536 = vsub.f32 %v1534, %v1535
          %v1537 = vand.u32 %v1536, 4294901760
          %1538 = vmatpush1.msra.mxu0 %v1537
          %1539 = vmatprep.subr.mxu0 0.0
          %v1540 = vand.u32 %v1385, 4294901760
          %v1541 = vsub.f32 %v1385, %v1540
          %v1542 = vand.u32 %v1541, 4294901760
          %v1543 = vsub.f32 %v1541, %v1542
          %v1544 = vand.u32 %v1543, 4294901760
          %1545 = vmatpush1.msra.mxu0 %v1544
          %1546 = vmatprep.subr.mxu0 0.0
          %v1547 = vand.u32 %v1386, 4294901760
          %v1548 = vsub.f32 %v1386, %v1547
          %v1549 = vand.u32 %v1548, 4294901760
          %v1550 = vsub.f32 %v1548, %v1549
          %v1551 = vand.u32 %v1550, 4294901760
          %1552 = vmatpush1.msra.mxu0 %v1551
          %1553 = vmatprep.subr.mxu0 0.0
          %v1554 = vand.u32 %v1387, 4294901760
          %v1555 = vsub.f32 %v1387, %v1554
          %v1556 = vand.u32 %v1555, 4294901760
          %v1557 = vsub.f32 %v1555, %v1556
          %v1558 = vand.u32 %v1557, 4294901760
          %1559 = vmatpush1.msra.mxu0 %v1558
          %1560 = vmatprep.subr.mxu0 0.0
          %v1561 = vand.u32 %v1388, 4294901760
          %v1562 = vsub.f32 %v1388, %v1561
          %v1563 = vand.u32 %v1562, 4294901760
          %v1564 = vsub.f32 %v1562, %v1563
          %v1565 = vand.u32 %v1564, 4294901760
          %1566 = vmatpush1.msra.mxu0 %v1565
          %1567 = vmatprep.subr.mxu0 0.0
          %v1568 = vand.u32 %v1389, 4294901760
          %v1569 = vsub.f32 %v1389, %v1568
          %v1570 = vand.u32 %v1569, 4294901760
          %v1571 = vsub.f32 %v1569, %v1570
          %v1572 = vand.u32 %v1571, 4294901760
          %1573 = vmatpush1.msra.mxu0 %v1572
          %1574 = vmatprep.subr.mxu0 0.0
          %v1575 = vand.u32 %v1390, 4294901760
          %v1576 = vsub.f32 %v1390, %v1575
          %v1577 = vand.u32 %v1576, 4294901760
          %v1578 = vsub.f32 %v1576, %v1577
          %v1579 = vand.u32 %v1578, 4294901760
          %1580 = vmatpush1.msra.mxu0 %v1579
          %1581 = vmatprep.subr.mxu0 0.0
          %v1582 = vand.u32 %v1391, 4294901760
          %v1583 = vsub.f32 %v1391, %v1582
          %v1584 = vand.u32 %v1583, 4294901760
          %v1585 = vsub.f32 %v1583, %v1584
          %v1586 = vand.u32 %v1585, 4294901760
          %1587 = vmatpush1.msra.mxu0 %v1586
          %1588 = vmatprep.subr.mxu0 0.0
          %v1589 = vand.u32 %v1392, 4294901760
          %v1590 = vsub.f32 %v1392, %v1589
          %v1591 = vand.u32 %v1590, 4294901760
          %v1592 = vsub.f32 %v1590, %v1591
          %v1593 = vand.u32 %v1592, 4294901760
          %1594 = vmatpush1.msra.mxu0 %v1593
          %1595 = vmatprep.subr.mxu0 0.0
          %v1596 = vand.u32 %v1393, 4294901760
          %v1597 = vsub.f32 %v1393, %v1596
          %v1598 = vand.u32 %v1597, 4294901760
          %v1599 = vsub.f32 %v1597, %v1598
          %v1600 = vand.u32 %v1599, 4294901760
          %1601 = vmatpush1.msra.mxu0 %v1600
          %1602 = vmatprep.subr.mxu0 0.0
          %v1603 = vand.u32 %v1394, 4294901760
          %v1604 = vsub.f32 %v1394, %v1603
          %v1605 = vand.u32 %v1604, 4294901760
          %v1606 = vsub.f32 %v1604, %v1605
          %v1607 = vand.u32 %v1606, 4294901760
          %1608 = vmatpush1.msra.mxu0 %v1607
          %1609 = vmatprep.subr.mxu0 0.0
          %v1610 = vand.u32 %v1395, 4294901760
          %v1611 = vsub.f32 %v1395, %v1610
          %v1612 = vand.u32 %v1611, 4294901760
          %v1613 = vsub.f32 %v1611, %v1612
          %v1614 = vand.u32 %v1613, 4294901760
          %1615 = vmatpush1.msra.mxu0 %v1614
          %1616 = vmatprep.subr.mxu0 0.0
          %1617 = vmatpush1.msra.mxu0 0.0
          %1618 = vmatprep.subr.mxu0 0.0
          %1619 = vmatpush1.msra.mxu0 0.0
          %1620 = vmatprep.subr.mxu0 0.0
          %1621 = vmatpush1.msra.mxu0 0.0
          %1622 = vmatprep.subr.mxu0 0.0
          %1623 = vmatpush1.msra.mxu0 0.0
          %1624 = vmatprep.subr.mxu0 0.0
          %1625 = vmatpush1.msra.mxu0 0.0
          %1626 = vmatprep.subr.mxu0 0.0
          %1627 = vmatpush1.msra.mxu0 0.0
          %1628 = vmatprep.subr.mxu0 0.0
          %1629 = vmatpush1.msra.mxu0 0.0
          %1630 = vmatprep.subr.mxu0 0.0
          %1631 = vmatpush1.msra.mxu0 0.0
          %1632 = vmatprep.subr.mxu0 0.0
          %1633 = vmatpush1.msra.mxu0 0.0
          %1634 = vmatprep.subr.mxu0 0.0
          %1635 = vmatpush1.msra.mxu0 0.0
          %1636 = vmatprep.subr.mxu0 0.0
          %1637 = vmatpush1.msra.mxu0 0.0
          %1638 = vmatprep.subr.mxu0 0.0
          %1639 = vmatpush1.msra.mxu0 0.0
          %1640 = vmatprep.subr.mxu0 0.0
          %1641 = vmatpush1.msra.mxu0 0.0
          %1642 = vmatprep.subr.mxu0 0.0
          %1643 = vmatpush1.msra.mxu0 0.0
          %1644 = vmatprep.subr.mxu0 0.0
          %1645 = vmatpush1.msra.mxu0 0.0
          %1646 = vmatprep.subr.mxu0 0.0
          %1647 = vmatpush1.msra.mxu0 0.0
          %1648 = vmatprep.mubr.f32.mxu0 0.0
          %v1649 = vand.u32 %v669, 4294901760
          %1650 = vmatmul.mubr.f32.gmra.mrb[0].mxu0 %v1649
          %v1651 = vpop.f32.mrb[0].mxu0
          %v1652 = vadd.f32 %v1491, %v1651
          %v1653 = vpop.f32.mrb[0].mxu0
          %1654 = vmatprep.mubr.f32.mxu0 0.0
          %v1655 = vand.u32 %v670, 4294901760
          %1656 = vmatmul.mubr.f32.gmra.mrb[0].mxu0 %v1655
          %v1657 = vpop.f32.mrb[0].mxu0
          %v1658 = vadd.f32 %v1501, %v1657
          %v1659 = vpop.f32.mrb[0].mxu0
          %1660 = vdwg.mxu0
          %1661 = vmatprep.subr.mxu0 0.0
          %v1662 = vand.u32 %v1380, 4294901760
          %v1663 = vsub.f32 %v1380, %v1662
          %1664 = vmatpush1.msra.mxu0 %v1663
          %1665 = vmatprep.subr.mxu0 0.0
          %v1666 = vand.u32 %v1381, 4294901760
          %v1667 = vsub.f32 %v1381, %v1666
          %1668 = vmatpush1.msra.mxu0 %v1667
          %1669 = vmatprep.subr.mxu0 0.0
          %v1670 = vand.u32 %v1382, 4294901760
          %v1671 = vsub.f32 %v1382, %v1670
          %1672 = vmatpush1.msra.mxu0 %v1671
          %1673 = vmatprep.subr.mxu0 0.0
          %v1674 = vand.u32 %v1383, 4294901760
          %v1675 = vsub.f32 %v1383, %v1674
          %1676 = vmatpush1.msra.mxu0 %v1675
          %1677 = vmatprep.subr.mxu0 0.0
          %v1678 = vand.u32 %v1384, 4294901760
          %v1679 = vsub.f32 %v1384, %v1678
          %1680 = vmatpush1.msra.mxu0 %v1679
          %1681 = vmatprep.subr.mxu0 0.0
          %v1682 = vand.u32 %v1385, 4294901760
          %v1683 = vsub.f32 %v1385, %v1682
          %1684 = vmatpush1.msra.mxu0 %v1683
          %1685 = vmatprep.subr.mxu0 0.0
          %v1686 = vand.u32 %v1386, 4294901760
          %v1687 = vsub.f32 %v1386, %v1686
          %1688 = vmatpush1.msra.mxu0 %v1687
          %1689 = vmatprep.subr.mxu0 0.0
          %v1690 = vand.u32 %v1387, 4294901760
          %v1691 = vsub.f32 %v1387, %v1690
          %1692 = vmatpush1.msra.mxu0 %v1691
          %1693 = vmatprep.subr.mxu0 0.0
          %v1694 = vand.u32 %v1388, 4294901760
          %v1695 = vsub.f32 %v1388, %v1694
          %1696 = vmatpush1.msra.mxu0 %v1695
          %1697 = vmatprep.subr.mxu0 0.0
          %v1698 = vand.u32 %v1389, 4294901760
          %v1699 = vsub.f32 %v1389, %v1698
          %1700 = vmatpush1.msra.mxu0 %v1699
          %1701 = vmatprep.subr.mxu0 0.0
          %v1702 = vand.u32 %v1390, 4294901760
          %v1703 = vsub.f32 %v1390, %v1702
          %1704 = vmatpush1.msra.mxu0 %v1703
          %1705 = vmatprep.subr.mxu0 0.0
          %v1706 = vand.u32 %v1391, 4294901760
          %v1707 = vsub.f32 %v1391, %v1706
          %1708 = vmatpush1.msra.mxu0 %v1707
          %1709 = vmatprep.subr.mxu0 0.0
          %v1710 = vand.u32 %v1392, 4294901760
          %v1711 = vsub.f32 %v1392, %v1710
          %1712 = vmatpush1.msra.mxu0 %v1711
          %1713 = vmatprep.subr.mxu0 0.0
          %v1714 = vand.u32 %v1393, 4294901760
          %v1715 = vsub.f32 %v1393, %v1714
          %1716 = vmatpush1.msra.mxu0 %v1715
          %1717 = vmatprep.subr.mxu0 0.0
          %v1718 = vand.u32 %v1394, 4294901760
          %v1719 = vsub.f32 %v1394, %v1718
          %1720 = vmatpush1.msra.mxu0 %v1719
          %1721 = vmatprep.subr.mxu0 0.0
          %v1722 = vand.u32 %v1395, 4294901760
          %v1723 = vsub.f32 %v1395, %v1722
          %1724 = vmatpush1.msra.mxu0 %v1723
          %1725 = vmatprep.subr.mxu0 0.0
          %1726 = vmatpush1.msra.mxu0 0.0
          %1727 = vmatprep.subr.mxu0 0.0
          %1728 = vmatpush1.msra.mxu0 0.0
          %1729 = vmatprep.subr.mxu0 0.0
          %1730 = vmatpush1.msra.mxu0 0.0
          %1731 = vmatprep.subr.mxu0 0.0
          %1732 = vmatpush1.msra.mxu0 0.0
          %1733 = vmatprep.subr.mxu0 0.0
          %1734 = vmatpush1.msra.mxu0 0.0
          %1735 = vmatprep.subr.mxu0 0.0
          %1736 = vmatpush1.msra.mxu0 0.0
          %1737 = vmatprep.subr.mxu0 0.0
          %1738 = vmatpush1.msra.mxu0 0.0
          %1739 = vmatprep.subr.mxu0 0.0
          %1740 = vmatpush1.msra.mxu0 0.0
          %1741 = vmatprep.subr.mxu0 0.0
          %1742 = vmatpush1.msra.mxu0 0.0
          %1743 = vmatprep.subr.mxu0 0.0
          %1744 = vmatpush1.msra.mxu0 0.0
          %1745 = vmatprep.subr.mxu0 0.0
          %1746 = vmatpush1.msra.mxu0 0.0
          %1747 = vmatprep.subr.mxu0 0.0
          %1748 = vmatpush1.msra.mxu0 0.0
          %1749 = vmatprep.subr.mxu0 0.0
          %1750 = vmatpush1.msra.mxu0 0.0
          %1751 = vmatprep.subr.mxu0 0.0
          %1752 = vmatpush1.msra.mxu0 0.0
          %1753 = vmatprep.subr.mxu0 0.0
          %1754 = vmatpush1.msra.mxu0 0.0
          %1755 = vmatprep.subr.mxu0 0.0
          %1756 = vmatpush1.msra.mxu0 0.0
          %1757 = vmatprep.mubr.f32.mxu0 0.0
          %v1758 = vand.u32 %v669, 4294901760
          %v1759 = vsub.f32 %v669, %v1758
          %1760 = vmatmul.mubr.f32.gmra.mrb[0].mxu0 %v1759
          %v1761 = vpop.f32.mrb[0].mxu0
          %v1762 = vadd.f32 %v1652, %v1761
          %v1763 = vpop.f32.mrb[0].mxu0
          %1764 = vmatprep.mubr.f32.mxu0 0.0
          %v1765 = vand.u32 %v670, 4294901760
          %v1766 = vsub.f32 %v670, %v1765
          %1767 = vmatmul.mubr.f32.gmra.mrb[0].mxu0 %v1766
          %v1768 = vpop.f32.mrb[0].mxu0
          %v1769 = vadd.f32 %v1658, %v1768
          %v1770 = vpop.f32.mrb[0].mxu0
          %1771 = vdwg.mxu0
          %1772 = vmatprep.subr.mxu0 0.0
          %v1773 = vand.u32 %v1380, 4294901760
          %1774 = vmatpush1.msra.mxu0 %v1773
          %1775 = vmatprep.subr.mxu0 0.0
          %v1776 = vand.u32 %v1381, 4294901760
          %1777 = vmatpush1.msra.mxu0 %v1776
          %1778 = vmatprep.subr.mxu0 0.0
          %v1779 = vand.u32 %v1382, 4294901760
          %1780 = vmatpush1.msra.mxu0 %v1779
          %1781 = vmatprep.subr.mxu0 0.0
          %v1782 = vand.u32 %v1383, 4294901760
          %1783 = vmatpush1.msra.mxu0 %v1782
          %1784 = vmatprep.subr.mxu0 0.0
          %v1785 = vand.u32 %v1384, 4294901760
          %1786 = vmatpush1.msra.mxu0 %v1785
          %1787 = vmatprep.subr.mxu0 0.0
          %v1788 = vand.u32 %v1385, 4294901760
          %1789 = vmatpush1.msra.mxu0 %v1788
          %1790 = vmatprep.subr.mxu0 0.0
          %v1791 = vand.u32 %v1386, 4294901760
          %1792 = vmatpush1.msra.mxu0 %v1791
          %1793 = vmatprep.subr.mxu0 0.0
          %v1794 = vand.u32 %v1387, 4294901760
          %1795 = vmatpush1.msra.mxu0 %v1794
          %1796 = vmatprep.subr.mxu0 0.0
          %v1797 = vand.u32 %v1388, 4294901760
          %1798 = vmatpush1.msra.mxu0 %v1797
          %1799 = vmatprep.subr.mxu0 0.0
          %v1800 = vand.u32 %v1389, 4294901760
          %1801 = vmatpush1.msra.mxu0 %v1800
          %1802 = vmatprep.subr.mxu0 0.0
          %v1803 = vand.u32 %v1390, 4294901760
          %1804 = vmatpush1.msra.mxu0 %v1803
          %1805 = vmatprep.subr.mxu0 0.0
          %v1806 = vand.u32 %v1391, 4294901760
          %1807 = vmatpush1.msra.mxu0 %v1806
          %1808 = vmatprep.subr.mxu0 0.0
          %v1809 = vand.u32 %v1392, 4294901760
          %1810 = vmatpush1.msra.mxu0 %v1809
          %1811 = vmatprep.subr.mxu0 0.0
          %v1812 = vand.u32 %v1393, 4294901760
          %1813 = vmatpush1.msra.mxu0 %v1812
          %1814 = vmatprep.subr.mxu0 0.0
          %v1815 = vand.u32 %v1394, 4294901760
          %1816 = vmatpush1.msra.mxu0 %v1815
          %1817 = vmatprep.subr.mxu0 0.0
          %v1818 = vand.u32 %v1395, 4294901760
          %1819 = vmatpush1.msra.mxu0 %v1818
          %1820 = vmatprep.subr.mxu0 0.0
          %1821 = vmatpush1.msra.mxu0 0.0
          %1822 = vmatprep.subr.mxu0 0.0
          %1823 = vmatpush1.msra.mxu0 0.0
          %1824 = vmatprep.subr.mxu0 0.0
          %1825 = vmatpush1.msra.mxu0 0.0
          %1826 = vmatprep.subr.mxu0 0.0
          %1827 = vmatpush1.msra.mxu0 0.0
          %1828 = vmatprep.subr.mxu0 0.0
          %1829 = vmatpush1.msra.mxu0 0.0
          %1830 = vmatprep.subr.mxu0 0.0
          %1831 = vmatpush1.msra.mxu0 0.0
          %1832 = vmatprep.subr.mxu0 0.0
          %1833 = vmatpush1.msra.mxu0 0.0
          %1834 = vmatprep.subr.mxu0 0.0
          %1835 = vmatpush1.msra.mxu0 0.0
          %1836 = vmatprep.subr.mxu0 0.0
          %1837 = vmatpush1.msra.mxu0 0.0
          %1838 = vmatprep.subr.mxu0 0.0
          %1839 = vmatpush1.msra.mxu0 0.0
          %1840 = vmatprep.subr.mxu0 0.0
          %1841 = vmatpush1.msra.mxu0 0.0
          %1842 = vmatprep.subr.mxu0 0.0
          %1843 = vmatpush1.msra.mxu0 0.0
          %1844 = vmatprep.subr.mxu0 0.0
          %1845 = vmatpush1.msra.mxu0 0.0
          %1846 = vmatprep.subr.mxu0 0.0
          %1847 = vmatpush1.msra.mxu0 0.0
          %1848 = vmatprep.subr.mxu0 0.0
          %1849 = vmatpush1.msra.mxu0 0.0
          %1850 = vmatprep.subr.mxu0 0.0
          %1851 = vmatpush1.msra.mxu0 0.0
          %1852 = vmatprep.mubr.f32.mxu0 0.0
          %v1853 = vand.u32 %v669, 4294901760
          %v1854 = vsub.f32 %v669, %v1853
          %v1855 = vand.u32 %v1854, 4294901760
          %1856 = vmatmul.mubr.f32.gmra.mrb[0].mxu0 %v1855
          %v1857 = vpop.f32.mrb[0].mxu0
          %v1858 = vadd.f32 %v1762, %v1857
          %v1859 = vpop.f32.mrb[0].mxu0
          %1860 = vmatprep.mubr.f32.mxu0 0.0
          %v1861 = vand.u32 %v670, 4294901760
          %v1862 = vsub.f32 %v670, %v1861
          %v1863 = vand.u32 %v1862, 4294901760
          %1864 = vmatmul.mubr.f32.gmra.mrb[0].mxu0 %v1863
          %v1865 = vpop.f32.mrb[0].mxu0
          %v1866 = vadd.f32 %v1769, %v1865
          %v1867 = vpop.f32.mrb[0].mxu0
          %1868 = vdwg.mxu0
          %1869 = vmatprep.subr.mxu0 0.0
          %v1870 = vand.u32 %v1380, 4294901760
          %v1871 = vsub.f32 %v1380, %v1870
          %v1872 = vand.u32 %v1871, 4294901760
          %1873 = vmatpush1.msra.mxu0 %v1872
          %1874 = vmatprep.subr.mxu0 0.0
          %v1875 = vand.u32 %v1381, 4294901760
          %v1876 = vsub.f32 %v1381, %v1875
          %v1877 = vand.u32 %v1876, 4294901760
          %1878 = vmatpush1.msra.mxu0 %v1877
          %1879 = vmatprep.subr.mxu0 0.0
          %v1880 = vand.u32 %v1382, 4294901760
          %v1881 = vsub.f32 %v1382, %v1880
          %v1882 = vand.u32 %v1881, 4294901760
          %1883 = vmatpush1.msra.mxu0 %v1882
          %1884 = vmatprep.subr.mxu0 0.0
          %v1885 = vand.u32 %v1383, 4294901760
          %v1886 = vsub.f32 %v1383, %v1885
          %v1887 = vand.u32 %v1886, 4294901760
          %1888 = vmatpush1.msra.mxu0 %v1887
          %1889 = vmatprep.subr.mxu0 0.0
          %v1890 = vand.u32 %v1384, 4294901760
          %v1891 = vsub.f32 %v1384, %v1890
          %v1892 = vand.u32 %v1891, 4294901760
          %1893 = vmatpush1.msra.mxu0 %v1892
          %1894 = vmatprep.subr.mxu0 0.0
          %v1895 = vand.u32 %v1385, 4294901760
          %v1896 = vsub.f32 %v1385, %v1895
          %v1897 = vand.u32 %v1896, 4294901760
          %1898 = vmatpush1.msra.mxu0 %v1897
          %1899 = vmatprep.subr.mxu0 0.0
          %v1900 = vand.u32 %v1386, 4294901760
          %v1901 = vsub.f32 %v1386, %v1900
          %v1902 = vand.u32 %v1901, 4294901760
          %1903 = vmatpush1.msra.mxu0 %v1902
          %1904 = vmatprep.subr.mxu0 0.0
          %v1905 = vand.u32 %v1387, 4294901760
          %v1906 = vsub.f32 %v1387, %v1905
          %v1907 = vand.u32 %v1906, 4294901760
          %1908 = vmatpush1.msra.mxu0 %v1907
          %1909 = vmatprep.subr.mxu0 0.0
          %v1910 = vand.u32 %v1388, 4294901760
          %v1911 = vsub.f32 %v1388, %v1910
          %v1912 = vand.u32 %v1911, 4294901760
          %1913 = vmatpush1.msra.mxu0 %v1912
          %1914 = vmatprep.subr.mxu0 0.0
          %v1915 = vand.u32 %v1389, 4294901760
          %v1916 = vsub.f32 %v1389, %v1915
          %v1917 = vand.u32 %v1916, 4294901760
          %1918 = vmatpush1.msra.mxu0 %v1917
          %1919 = vmatprep.subr.mxu0 0.0
          %v1920 = vand.u32 %v1390, 4294901760
          %v1921 = vsub.f32 %v1390, %v1920
          %v1922 = vand.u32 %v1921, 4294901760
          %1923 = vmatpush1.msra.mxu0 %v1922
          %1924 = vmatprep.subr.mxu0 0.0
          %v1925 = vand.u32 %v1391, 4294901760
          %v1926 = vsub.f32 %v1391, %v1925
          %v1927 = vand.u32 %v1926, 4294901760
          %1928 = vmatpush1.msra.mxu0 %v1927
          %1929 = vmatprep.subr.mxu0 0.0
          %v1930 = vand.u32 %v1392, 4294901760
          %v1931 = vsub.f32 %v1392, %v1930
          %v1932 = vand.u32 %v1931, 4294901760
          %1933 = vmatpush1.msra.mxu0 %v1932
          %1934 = vmatprep.subr.mxu0 0.0
          %v1935 = vand.u32 %v1393, 4294901760
          %v1936 = vsub.f32 %v1393, %v1935
          %v1937 = vand.u32 %v1936, 4294901760
          %1938 = vmatpush1.msra.mxu0 %v1937
          %1939 = vmatprep.subr.mxu0 0.0
          %v1940 = vand.u32 %v1394, 4294901760
          %v1941 = vsub.f32 %v1394, %v1940
          %v1942 = vand.u32 %v1941, 4294901760
          %1943 = vmatpush1.msra.mxu0 %v1942
          %1944 = vmatprep.subr.mxu0 0.0
          %v1945 = vand.u32 %v1395, 4294901760
          %v1946 = vsub.f32 %v1395, %v1945
          %v1947 = vand.u32 %v1946, 4294901760
          %1948 = vmatpush1.msra.mxu0 %v1947
          %1949 = vmatprep.subr.mxu0 0.0
          %1950 = vmatpush1.msra.mxu0 0.0
          %1951 = vmatprep.subr.mxu0 0.0
          %1952 = vmatpush1.msra.mxu0 0.0
          %1953 = vmatprep.subr.mxu0 0.0
          %1954 = vmatpush1.msra.mxu0 0.0
          %1955 = vmatprep.subr.mxu0 0.0
          %1956 = vmatpush1.msra.mxu0 0.0
          %1957 = vmatprep.subr.mxu0 0.0
          %1958 = vmatpush1.msra.mxu0 0.0
          %1959 = vmatprep.subr.mxu0 0.0
          %1960 = vmatpush1.msra.mxu0 0.0
          %1961 = vmatprep.subr.mxu0 0.0
          %1962 = vmatpush1.msra.mxu0 0.0
          %1963 = vmatprep.subr.mxu0 0.0
          %1964 = vmatpush1.msra.mxu0 0.0
          %1965 = vmatprep.subr.mxu0 0.0
          %1966 = vmatpush1.msra.mxu0 0.0
          %1967 = vmatprep.subr.mxu0 0.0
          %1968 = vmatpush1.msra.mxu0 0.0
          %1969 = vmatprep.subr.mxu0 0.0
          %1970 = vmatpush1.msra.mxu0 0.0
          %1971 = vmatprep.subr.mxu0 0.0
          %1972 = vmatpush1.msra.mxu0 0.0
          %1973 = vmatprep.subr.mxu0 0.0
          %1974 = vmatpush1.msra.mxu0 0.0
          %1975 = vmatprep.subr.mxu0 0.0
          %1976 = vmatpush1.msra.mxu0 0.0
          %1977 = vmatprep.subr.mxu0 0.0
          %1978 = vmatpush1.msra.mxu0 0.0
          %1979 = vmatprep.subr.mxu0 0.0
          %1980 = vmatpush1.msra.mxu0 0.0
          %1981 = vmatprep.mubr.f32.mxu0 0.0
          %v1982 = vand.u32 %v669, 4294901760
          %1983 = vmatmul.mubr.f32.gmra.mrb[0].mxu0 %v1982
          %v1984 = vpop.f32.mrb[0].mxu0
          %v1985 = vadd.f32 %v1858, %v1984
          %v1986 = vpop.f32.mrb[0].mxu0
          %1987 = vmatprep.mubr.f32.mxu0 0.0
          %v1988 = vand.u32 %v670, 4294901760
          %1989 = vmatmul.mubr.f32.gmra.mrb[0].mxu0 %v1988
          %v1990 = vpop.f32.mrb[0].mxu0
          %v1991 = vadd.f32 %v1866, %v1990
          %v1992 = vpop.f32.mrb[0].mxu0
          %1993 = vdwg.mxu0
          %1994 = vmatprep.subr.mxu0 0.0
          %v1995 = vand.u32 %v1380, 4294901760
          %1996 = vmatpush1.msra.mxu0 %v1995
          %1997 = vmatprep.subr.mxu0 0.0
          %v1998 = vand.u32 %v1381, 4294901760
          %1999 = vmatpush1.msra.mxu0 %v1998
          %2000 = vmatprep.subr.mxu0 0.0
          %v2001 = vand.u32 %v1382, 4294901760
          %2002 = vmatpush1.msra.mxu0 %v2001
          %2003 = vmatprep.subr.mxu0 0.0
          %v2004 = vand.u32 %v1383, 4294901760
          %2005 = vmatpush1.msra.mxu0 %v2004
          %2006 = vmatprep.subr.mxu0 0.0
          %v2007 = vand.u32 %v1384, 4294901760
          %2008 = vmatpush1.msra.mxu0 %v2007
          %2009 = vmatprep.subr.mxu0 0.0
          %v2010 = vand.u32 %v1385, 4294901760
          %2011 = vmatpush1.msra.mxu0 %v2010
          %2012 = vmatprep.subr.mxu0 0.0
          %v2013 = vand.u32 %v1386, 4294901760
          %2014 = vmatpush1.msra.mxu0 %v2013
          %2015 = vmatprep.subr.mxu0 0.0
          %v2016 = vand.u32 %v1387, 4294901760
          %2017 = vmatpush1.msra.mxu0 %v2016
          %2018 = vmatprep.subr.mxu0 0.0
          %v2019 = vand.u32 %v1388, 4294901760
          %2020 = vmatpush1.msra.mxu0 %v2019
          %2021 = vmatprep.subr.mxu0 0.0
          %v2022 = vand.u32 %v1389, 4294901760
          %2023 = vmatpush1.msra.mxu0 %v2022
          %2024 = vmatprep.subr.mxu0 0.0
          %v2025 = vand.u32 %v1390, 4294901760
          %2026 = vmatpush1.msra.mxu0 %v2025
          %2027 = vmatprep.subr.mxu0 0.0
          %v2028 = vand.u32 %v1391, 4294901760
          %2029 = vmatpush1.msra.mxu0 %v2028
          %2030 = vmatprep.subr.mxu0 0.0
          %v2031 = vand.u32 %v1392, 4294901760
          %2032 = vmatpush1.msra.mxu0 %v2031
          %2033 = vmatprep.subr.mxu0 0.0
          %v2034 = vand.u32 %v1393, 4294901760
          %2035 = vmatpush1.msra.mxu0 %v2034
          %2036 = vmatprep.subr.mxu0 0.0
          %v2037 = vand.u32 %v1394, 4294901760
          %2038 = vmatpush1.msra.mxu0 %v2037
          %2039 = vmatprep.subr.mxu0 0.0
          %v2040 = vand.u32 %v1395, 4294901760
          %2041 = vmatpush1.msra.mxu0 %v2040
          %2042 = vmatprep.subr.mxu0 0.0
          %2043 = vmatpush1.msra.mxu0 0.0
          %2044 = vmatprep.subr.mxu0 0.0
          %2045 = vmatpush1.msra.mxu0 0.0
          %2046 = vmatprep.subr.mxu0 0.0
          %2047 = vmatpush1.msra.mxu0 0.0
          %2048 = vmatprep.subr.mxu0 0.0
          %2049 = vmatpush1.msra.mxu0 0.0
          %2050 = vmatprep.subr.mxu0 0.0
          %2051 = vmatpush1.msra.mxu0 0.0
          %2052 = vmatprep.subr.mxu0 0.0
          %2053 = vmatpush1.msra.mxu0 0.0
          %2054 = vmatprep.subr.mxu0 0.0
          %2055 = vmatpush1.msra.mxu0 0.0
          %2056 = vmatprep.subr.mxu0 0.0
          %2057 = vmatpush1.msra.mxu0 0.0
          %2058 = vmatprep.subr.mxu0 0.0
          %2059 = vmatpush1.msra.mxu0 0.0
          %2060 = vmatprep.subr.mxu0 0.0
          %2061 = vmatpush1.msra.mxu0 0.0
          %2062 = vmatprep.subr.mxu0 0.0
          %2063 = vmatpush1.msra.mxu0 0.0
          %2064 = vmatprep.subr.mxu0 0.0
          %2065 = vmatpush1.msra.mxu0 0.0
          %2066 = vmatprep.subr.mxu0 0.0
          %2067 = vmatpush1.msra.mxu0 0.0
          %2068 = vmatprep.subr.mxu0 0.0
          %2069 = vmatpush1.msra.mxu0 0.0
          %2070 = vmatprep.subr.mxu0 0.0
          %2071 = vmatpush1.msra.mxu0 0.0
          %2072 = vmatprep.subr.mxu0 0.0
          %2073 = vmatpush1.msra.mxu0 0.0
          %2074 = vmatprep.mubr.f32.mxu0 0.0
          %v2075 = vand.u32 %v669, 4294901760
          %2076 = vmatmul.mubr.f32.gmra.mrb[0].mxu0 %v2075
          %v2077 = vpop.f32.mrb[0].mxu0
          %v2078 = vadd.f32 %v1985, %v2077
          %v2079 = vpop.f32.mrb[0].mxu0
          %2080 = vmatprep.mubr.f32.mxu0 0.0
          %v2081 = vand.u32 %v670, 4294901760
          %2082 = vmatmul.mubr.f32.gmra.mrb[0].mxu0 %v2081
          %v2083 = vpop.f32.mrb[0].mxu0
          %v2084 = vadd.f32 %v1991, %v2083
          %v2085 = vpop.f32.mrb[0].mxu0
          %2086 = vdwg.mxu0
          %2087 = vst [vmem:[#allocation3] sm:$0xff] %v2078
          %2088 = vst [vmem:[#allocation3 + $0x8] sm:$0xff] %v2084
          %v2089 = vld [vmem:[%s11] sm:$0xff]
          %v2090 = vld [vmem:[%s11 + $0x8] sm:$0xff]
          %v2091 = vld [vmem:[%s11 + $0x10] sm:$0xff]
          %v2092 = vld [vmem:[%s11 + $0x18] sm:$0xff]
          %v2093 = vld [vmem:[%s11 + $0x20] sm:$0xff]
          %v2094 = vld [vmem:[%s11 + $0x28] sm:$0xff]
          %v2095 = vld [vmem:[%s11 + $0x30] sm:$0xff]
          %v2096 = vld [vmem:[%s11 + $0x38] sm:$0xff]
          %v2097 = vld [vmem:[%s11 + $0x40] sm:$0xff]
          %v2098 = vld [vmem:[%s11 + $0x48] sm:$0xff]
          %v2099 = vld [vmem:[%s11 + $0x50] sm:$0xff]
          %v2100 = vld [vmem:[%s11 + $0x58] sm:$0xff]
          %v2101 = vld [vmem:[%s11 + $0x60] sm:$0xff]
          %v2102 = vld [vmem:[%s11 + $0x68] sm:$0xff]
          %v2103 = vld [vmem:[%s11 + $0x70] sm:$0xff]
          %v2104 = vld [vmem:[%s11 + $0x78] sm:$0xff]
          %v2105 = vld [vmem:[%s12] sm:$0x1]
          %v2107 = vlaneseq
          %v2108 = vshrl.u32 %v2107, 7
          %v2109 = vsub.s32 0, %v2108
          %v2110 = vrot.slane %v2105, %v2109
          %2112 = vmatprep.subr.mxu0 0.0
          %v2113 = vand.u32 %v2089, 4294901760
          %2114 = vmatpush1.msra.mxu0 %v2113
          %2115 = vmatprep.subr.mxu0 0.0
          %v2116 = vand.u32 %v2090, 4294901760
          %2117 = vmatpush1.msra.mxu0 %v2116
          %2118 = vmatprep.subr.mxu0 0.0
          %v2119 = vand.u32 %v2091, 4294901760
          %2120 = vmatpush1.msra.mxu0 %v2119
          %2121 = vmatprep.subr.mxu0 0.0
          %v2122 = vand.u32 %v2092, 4294901760
          %2123 = vmatpush1.msra.mxu0 %v2122
          %2124 = vmatprep.subr.mxu0 0.0
          %v2125 = vand.u32 %v2093, 4294901760
          %2126 = vmatpush1.msra.mxu0 %v2125
          %2127 = vmatprep.subr.mxu0 0.0
          %v2128 = vand.u32 %v2094, 4294901760
          %2129 = vmatpush1.msra.mxu0 %v2128
          %2130 = vmatprep.subr.mxu0 0.0
          %v2131 = vand.u32 %v2095, 4294901760
          %2132 = vmatpush1.msra.mxu0 %v2131
          %2133 = vmatprep.subr.mxu0 0.0
          %v2134 = vand.u32 %v2096, 4294901760
          %2135 = vmatpush1.msra.mxu0 %v2134
          %2136 = vmatprep.subr.mxu0 0.0
          %v2137 = vand.u32 %v2097, 4294901760
          %2138 = vmatpush1.msra.mxu0 %v2137
          %2139 = vmatprep.subr.mxu0 0.0
          %v2140 = vand.u32 %v2098, 4294901760
          %2141 = vmatpush1.msra.mxu0 %v2140
          %2142 = vmatprep.subr.mxu0 0.0
          %v2143 = vand.u32 %v2099, 4294901760
          %2144 = vmatpush1.msra.mxu0 %v2143
          %2145 = vmatprep.subr.mxu0 0.0
          %v2146 = vand.u32 %v2100, 4294901760
          %2147 = vmatpush1.msra.mxu0 %v2146
          %2148 = vmatprep.subr.mxu0 0.0
          %v2149 = vand.u32 %v2101, 4294901760
          %2150 = vmatpush1.msra.mxu0 %v2149
          %2151 = vmatprep.subr.mxu0 0.0
          %v2152 = vand.u32 %v2102, 4294901760
          %2153 = vmatpush1.msra.mxu0 %v2152
          %2154 = vmatprep.subr.mxu0 0.0
          %v2155 = vand.u32 %v2103, 4294901760
          %2156 = vmatpush1.msra.mxu0 %v2155
          %2157 = vmatprep.subr.mxu0 0.0
          %v2158 = vand.u32 %v2104, 4294901760
          %2159 = vmatpush1.msra.mxu0 %v2158
          %2160 = vmatprep.subr.mxu0 0.0
          %2161 = vmatpush1.msra.mxu0 0.0
          %2162 = vmatprep.subr.mxu0 0.0
          %2163 = vmatpush1.msra.mxu0 0.0
          %2164 = vmatprep.subr.mxu0 0.0
          %2165 = vmatpush1.msra.mxu0 0.0
          %2166 = vmatprep.subr.mxu0 0.0
          %2167 = vmatpush1.msra.mxu0 0.0
          %2168 = vmatprep.subr.mxu0 0.0
          %2169 = vmatpush1.msra.mxu0 0.0
          %2170 = vmatprep.subr.mxu0 0.0
          %2171 = vmatpush1.msra.mxu0 0.0
          %2172 = vmatprep.subr.mxu0 0.0
          %2173 = vmatpush1.msra.mxu0 0.0
          %2174 = vmatprep.subr.mxu0 0.0
          %2175 = vmatpush1.msra.mxu0 0.0
          %2176 = vmatprep.subr.mxu0 0.0
          %2177 = vmatpush1.msra.mxu0 0.0
          %2178 = vmatprep.subr.mxu0 0.0
          %2179 = vmatpush1.msra.mxu0 0.0
          %2180 = vmatprep.subr.mxu0 0.0
          %2181 = vmatpush1.msra.mxu0 0.0
          %2182 = vmatprep.subr.mxu0 0.0
          %2183 = vmatpush1.msra.mxu0 0.0
          %2184 = vmatprep.subr.mxu0 0.0
          %2185 = vmatpush1.msra.mxu0 0.0
          %2186 = vmatprep.subr.mxu0 0.0
          %2187 = vmatpush1.msra.mxu0 0.0
          %2188 = vmatprep.subr.mxu0 0.0
          %2189 = vmatpush1.msra.mxu0 0.0
          %2190 = vmatprep.subr.mxu0 0.0
          %2191 = vmatpush1.msra.mxu0 0.0
          %2192 = vmatprep.mubr.f32.mxu0 0.0
          %v2193 = vand.u32 %v667, 4294901760
          %v2194 = vsub.f32 %v667, %v2193
          %v2195 = vand.u32 %v2194, 4294901760
          %v2196 = vsub.f32 %v2194, %v2195
          %v2197 = vand.u32 %v2196, 4294901760
          %2198 = vmatmul.mubr.f32.gmra.mrb[0].mxu0 %v2197
          %v2199 = vpop.f32.mrb[0].mxu0
          %v2200 = vadd.f32 %v2110, %v2199
          %v2201 = vpop.f32.mrb[0].mxu0
          %2202 = vmatprep.mubr.f32.mxu0 0.0
          %v2203 = vand.u32 %v668, 4294901760
          %v2204 = vsub.f32 %v668, %v2203
          %v2205 = vand.u32 %v2204, 4294901760
          %v2206 = vsub.f32 %v2204, %v2205
          %v2207 = vand.u32 %v2206, 4294901760
          %2208 = vmatmul.mubr.f32.gmra.mrb[0].mxu0 %v2207
          %v2209 = vpop.f32.mrb[0].mxu0
          %v2210 = vadd.f32 %v2110, %v2209
          %v2211 = vpop.f32.mrb[0].mxu0
          %2212 = vdwg.mxu0
          %2213 = vmatprep.subr.mxu0 0.0
          %v2214 = vand.u32 %v2089, 4294901760
          %v2215 = vsub.f32 %v2089, %v2214
          %v2216 = vand.u32 %v2215, 4294901760
          %v2217 = vsub.f32 %v2215, %v2216
          %v2218 = vand.u32 %v2217, 4294901760
          %2219 = vmatpush1.msra.mxu0 %v2218
          %2220 = vmatprep.subr.mxu0 0.0
          %v2221 = vand.u32 %v2090, 4294901760
          %v2222 = vsub.f32 %v2090, %v2221
          %v2223 = vand.u32 %v2222, 4294901760
          %v2224 = vsub.f32 %v2222, %v2223
          %v2225 = vand.u32 %v2224, 4294901760
          %2226 = vmatpush1.msra.mxu0 %v2225
          %2227 = vmatprep.subr.mxu0 0.0
          %v2228 = vand.u32 %v2091, 4294901760
          %v2229 = vsub.f32 %v2091, %v2228
          %v2230 = vand.u32 %v2229, 4294901760
          %v2231 = vsub.f32 %v2229, %v2230
          %v2232 = vand.u32 %v2231, 4294901760
          %2233 = vmatpush1.msra.mxu0 %v2232
          %2234 = vmatprep.subr.mxu0 0.0
          %v2235 = vand.u32 %v2092, 4294901760
          %v2236 = vsub.f32 %v2092, %v2235
          %v2237 = vand.u32 %v2236, 4294901760
          %v2238 = vsub.f32 %v2236, %v2237
          %v2239 = vand.u32 %v2238, 4294901760
          %2240 = vmatpush1.msra.mxu0 %v2239
          %2241 = vmatprep.subr.mxu0 0.0
          %v2242 = vand.u32 %v2093, 4294901760
          %v2243 = vsub.f32 %v2093, %v2242
          %v2244 = vand.u32 %v2243, 4294901760
          %v2245 = vsub.f32 %v2243, %v2244
          %v2246 = vand.u32 %v2245, 4294901760
          %2247 = vmatpush1.msra.mxu0 %v2246
          %2248 = vmatprep.subr.mxu0 0.0
          %v2249 = vand.u32 %v2094, 4294901760
          %v2250 = vsub.f32 %v2094, %v2249
          %v2251 = vand.u32 %v2250, 4294901760
          %v2252 = vsub.f32 %v2250, %v2251
          %v2253 = vand.u32 %v2252, 4294901760
          %2254 = vmatpush1.msra.mxu0 %v2253
          %2255 = vmatprep.subr.mxu0 0.0
          %v2256 = vand.u32 %v2095, 4294901760
          %v2257 = vsub.f32 %v2095, %v2256
          %v2258 = vand.u32 %v2257, 4294901760
          %v2259 = vsub.f32 %v2257, %v2258
          %v2260 = vand.u32 %v2259, 4294901760
          %2261 = vmatpush1.msra.mxu0 %v2260
          %2262 = vmatprep.subr.mxu0 0.0
          %v2263 = vand.u32 %v2096, 4294901760
          %v2264 = vsub.f32 %v2096, %v2263
          %v2265 = vand.u32 %v2264, 4294901760
          %v2266 = vsub.f32 %v2264, %v2265
          %v2267 = vand.u32 %v2266, 4294901760
          %2268 = vmatpush1.msra.mxu0 %v2267
          %2269 = vmatprep.subr.mxu0 0.0
          %v2270 = vand.u32 %v2097, 4294901760
          %v2271 = vsub.f32 %v2097, %v2270
          %v2272 = vand.u32 %v2271, 4294901760
          %v2273 = vsub.f32 %v2271, %v2272
          %v2274 = vand.u32 %v2273, 4294901760
          %2275 = vmatpush1.msra.mxu0 %v2274
          %2276 = vmatprep.subr.mxu0 0.0
          %v2277 = vand.u32 %v2098, 4294901760
          %v2278 = vsub.f32 %v2098, %v2277
          %v2279 = vand.u32 %v2278, 4294901760
          %v2280 = vsub.f32 %v2278, %v2279
          %v2281 = vand.u32 %v2280, 4294901760
          %2282 = vmatpush1.msra.mxu0 %v2281
          %2283 = vmatprep.subr.mxu0 0.0
          %v2284 = vand.u32 %v2099, 4294901760
          %v2285 = vsub.f32 %v2099, %v2284
          %v2286 = vand.u32 %v2285, 4294901760
          %v2287 = vsub.f32 %v2285, %v2286
          %v2288 = vand.u32 %v2287, 4294901760
          %2289 = vmatpush1.msra.mxu0 %v2288
          %2290 = vmatprep.subr.mxu0 0.0
          %v2291 = vand.u32 %v2100, 4294901760
          %v2292 = vsub.f32 %v2100, %v2291
          %v2293 = vand.u32 %v2292, 4294901760
          %v2294 = vsub.f32 %v2292, %v2293
          %v2295 = vand.u32 %v2294, 4294901760
          %2296 = vmatpush1.msra.mxu0 %v2295
          %2297 = vmatprep.subr.mxu0 0.0
          %v2298 = vand.u32 %v2101, 4294901760
          %v2299 = vsub.f32 %v2101, %v2298
          %v2300 = vand.u32 %v2299, 4294901760
          %v2301 = vsub.f32 %v2299, %v2300
          %v2302 = vand.u32 %v2301, 4294901760
          %2303 = vmatpush1.msra.mxu0 %v2302
          %2304 = vmatprep.subr.mxu0 0.0
          %v2305 = vand.u32 %v2102, 4294901760
          %v2306 = vsub.f32 %v2102, %v2305
          %v2307 = vand.u32 %v2306, 4294901760
          %v2308 = vsub.f32 %v2306, %v2307
          %v2309 = vand.u32 %v2308, 4294901760
          %2310 = vmatpush1.msra.mxu0 %v2309
          %2311 = vmatprep.subr.mxu0 0.0
          %v2312 = vand.u32 %v2103, 4294901760
          %v2313 = vsub.f32 %v2103, %v2312
          %v2314 = vand.u32 %v2313, 4294901760
          %v2315 = vsub.f32 %v2313, %v2314
          %v2316 = vand.u32 %v2315, 4294901760
          %2317 = vmatpush1.msra.mxu0 %v2316
          %2318 = vmatprep.subr.mxu0 0.0
          %v2319 = vand.u32 %v2104, 4294901760
          %v2320 = vsub.f32 %v2104, %v2319
          %v2321 = vand.u32 %v2320, 4294901760
          %v2322 = vsub.f32 %v2320, %v2321
          %v2323 = vand.u32 %v2322, 4294901760
          %2324 = vmatpush1.msra.mxu0 %v2323
          %2325 = vmatprep.subr.mxu0 0.0
          %2326 = vmatpush1.msra.mxu0 0.0
          %2327 = vmatprep.subr.mxu0 0.0
          %2328 = vmatpush1.msra.mxu0 0.0
          %2329 = vmatprep.subr.mxu0 0.0
          %2330 = vmatpush1.msra.mxu0 0.0
          %2331 = vmatprep.subr.mxu0 0.0
          %2332 = vmatpush1.msra.mxu0 0.0
          %2333 = vmatprep.subr.mxu0 0.0
          %2334 = vmatpush1.msra.mxu0 0.0
          %2335 = vmatprep.subr.mxu0 0.0
          %2336 = vmatpush1.msra.mxu0 0.0
          %2337 = vmatprep.subr.mxu0 0.0
          %2338 = vmatpush1.msra.mxu0 0.0
          %2339 = vmatprep.subr.mxu0 0.0
          %2340 = vmatpush1.msra.mxu0 0.0
          %2341 = vmatprep.subr.mxu0 0.0
          %2342 = vmatpush1.msra.mxu0 0.0
          %2343 = vmatprep.subr.mxu0 0.0
          %2344 = vmatpush1.msra.mxu0 0.0
          %2345 = vmatprep.subr.mxu0 0.0
          %2346 = vmatpush1.msra.mxu0 0.0
          %2347 = vmatprep.subr.mxu0 0.0
          %2348 = vmatpush1.msra.mxu0 0.0
          %2349 = vmatprep.subr.mxu0 0.0
          %2350 = vmatpush1.msra.mxu0 0.0
          %2351 = vmatprep.subr.mxu0 0.0
          %2352 = vmatpush1.msra.mxu0 0.0
          %2353 = vmatprep.subr.mxu0 0.0
          %2354 = vmatpush1.msra.mxu0 0.0
          %2355 = vmatprep.subr.mxu0 0.0
          %2356 = vmatpush1.msra.mxu0 0.0
          %2357 = vmatprep.mubr.f32.mxu0 0.0
          %v2358 = vand.u32 %v667, 4294901760
          %2359 = vmatmul.mubr.f32.gmra.mrb[0].mxu0 %v2358
          %v2360 = vpop.f32.mrb[0].mxu0
          %v2361 = vadd.f32 %v2200, %v2360
          %v2362 = vpop.f32.mrb[0].mxu0
          %2363 = vmatprep.mubr.f32.mxu0 0.0
          %v2364 = vand.u32 %v668, 4294901760
          %2365 = vmatmul.mubr.f32.gmra.mrb[0].mxu0 %v2364
          %v2366 = vpop.f32.mrb[0].mxu0
          %v2367 = vadd.f32 %v2210, %v2366
          %v2368 = vpop.f32.mrb[0].mxu0
          %2369 = vdwg.mxu0
          %2370 = vmatprep.subr.mxu0 0.0
          %v2371 = vand.u32 %v2089, 4294901760
          %v2372 = vsub.f32 %v2089, %v2371
          %2373 = vmatpush1.msra.mxu0 %v2372
          %2374 = vmatprep.subr.mxu0 0.0
          %v2375 = vand.u32 %v2090, 4294901760
          %v2376 = vsub.f32 %v2090, %v2375
          %2377 = vmatpush1.msra.mxu0 %v2376
          %2378 = vmatprep.subr.mxu0 0.0
          %v2379 = vand.u32 %v2091, 4294901760
          %v2380 = vsub.f32 %v2091, %v2379
          %2381 = vmatpush1.msra.mxu0 %v2380
          %2382 = vmatprep.subr.mxu0 0.0
          %v2383 = vand.u32 %v2092, 4294901760
          %v2384 = vsub.f32 %v2092, %v2383
          %2385 = vmatpush1.msra.mxu0 %v2384
          %2386 = vmatprep.subr.mxu0 0.0
          %v2387 = vand.u32 %v2093, 4294901760
          %v2388 = vsub.f32 %v2093, %v2387
          %2389 = vmatpush1.msra.mxu0 %v2388
          %2390 = vmatprep.subr.mxu0 0.0
          %v2391 = vand.u32 %v2094, 4294901760
          %v2392 = vsub.f32 %v2094, %v2391
          %2393 = vmatpush1.msra.mxu0 %v2392
          %2394 = vmatprep.subr.mxu0 0.0
          %v2395 = vand.u32 %v2095, 4294901760
          %v2396 = vsub.f32 %v2095, %v2395
          %2397 = vmatpush1.msra.mxu0 %v2396
          %2398 = vmatprep.subr.mxu0 0.0
          %v2399 = vand.u32 %v2096, 4294901760
          %v2400 = vsub.f32 %v2096, %v2399
          %2401 = vmatpush1.msra.mxu0 %v2400
          %2402 = vmatprep.subr.mxu0 0.0
          %v2403 = vand.u32 %v2097, 4294901760
          %v2404 = vsub.f32 %v2097, %v2403
          %2405 = vmatpush1.msra.mxu0 %v2404
          %2406 = vmatprep.subr.mxu0 0.0
          %v2407 = vand.u32 %v2098, 4294901760
          %v2408 = vsub.f32 %v2098, %v2407
          %2409 = vmatpush1.msra.mxu0 %v2408
          %2410 = vmatprep.subr.mxu0 0.0
          %v2411 = vand.u32 %v2099, 4294901760
          %v2412 = vsub.f32 %v2099, %v2411
          %2413 = vmatpush1.msra.mxu0 %v2412
          %2414 = vmatprep.subr.mxu0 0.0
          %v2415 = vand.u32 %v2100, 4294901760
          %v2416 = vsub.f32 %v2100, %v2415
          %2417 = vmatpush1.msra.mxu0 %v2416
          %2418 = vmatprep.subr.mxu0 0.0
          %v2419 = vand.u32 %v2101, 4294901760
          %v2420 = vsub.f32 %v2101, %v2419
          %2421 = vmatpush1.msra.mxu0 %v2420
          %2422 = vmatprep.subr.mxu0 0.0
          %v2423 = vand.u32 %v2102, 4294901760
          %v2424 = vsub.f32 %v2102, %v2423
          %2425 = vmatpush1.msra.mxu0 %v2424
          %2426 = vmatprep.subr.mxu0 0.0
          %v2427 = vand.u32 %v2103, 4294901760
          %v2428 = vsub.f32 %v2103, %v2427
          %2429 = vmatpush1.msra.mxu0 %v2428
          %2430 = vmatprep.subr.mxu0 0.0
          %v2431 = vand.u32 %v2104, 4294901760
          %v2432 = vsub.f32 %v2104, %v2431
          %2433 = vmatpush1.msra.mxu0 %v2432
          %2434 = vmatprep.subr.mxu0 0.0
          %2435 = vmatpush1.msra.mxu0 0.0
          %2436 = vmatprep.subr.mxu0 0.0
          %2437 = vmatpush1.msra.mxu0 0.0
          %2438 = vmatprep.subr.mxu0 0.0
          %2439 = vmatpush1.msra.mxu0 0.0
          %2440 = vmatprep.subr.mxu0 0.0
          %2441 = vmatpush1.msra.mxu0 0.0
          %2442 = vmatprep.subr.mxu0 0.0
          %2443 = vmatpush1.msra.mxu0 0.0
          %2444 = vmatprep.subr.mxu0 0.0
          %2445 = vmatpush1.msra.mxu0 0.0
          %2446 = vmatprep.subr.mxu0 0.0
          %2447 = vmatpush1.msra.mxu0 0.0
          %2448 = vmatprep.subr.mxu0 0.0
          %2449 = vmatpush1.msra.mxu0 0.0
          %2450 = vmatprep.subr.mxu0 0.0
          %2451 = vmatpush1.msra.mxu0 0.0
          %2452 = vmatprep.subr.mxu0 0.0
          %2453 = vmatpush1.msra.mxu0 0.0
          %2454 = vmatprep.subr.mxu0 0.0
          %2455 = vmatpush1.msra.mxu0 0.0
          %2456 = vmatprep.subr.mxu0 0.0
          %2457 = vmatpush1.msra.mxu0 0.0
          %2458 = vmatprep.subr.mxu0 0.0
          %2459 = vmatpush1.msra.mxu0 0.0
          %2460 = vmatprep.subr.mxu0 0.0
          %2461 = vmatpush1.msra.mxu0 0.0
          %2462 = vmatprep.subr.mxu0 0.0
          %2463 = vmatpush1.msra.mxu0 0.0
          %2464 = vmatprep.subr.mxu0 0.0
          %2465 = vmatpush1.msra.mxu0 0.0
          %2466 = vmatprep.mubr.f32.mxu0 0.0
          %v2467 = vand.u32 %v667, 4294901760
          %v2468 = vsub.f32 %v667, %v2467
          %2469 = vmatmul.mubr.f32.gmra.mrb[0].mxu0 %v2468
          %v2470 = vpop.f32.mrb[0].mxu0
          %v2471 = vadd.f32 %v2361, %v2470
          %v2472 = vpop.f32.mrb[0].mxu0
          %2473 = vmatprep.mubr.f32.mxu0 0.0
          %v2474 = vand.u32 %v668, 4294901760
          %v2475 = vsub.f32 %v668, %v2474
          %2476 = vmatmul.mubr.f32.gmra.mrb[0].mxu0 %v2475
          %v2477 = vpop.f32.mrb[0].mxu0
          %v2478 = vadd.f32 %v2367, %v2477
          %v2479 = vpop.f32.mrb[0].mxu0
          %2480 = vdwg.mxu0
          %2481 = vmatprep.subr.mxu0 0.0
          %v2482 = vand.u32 %v2089, 4294901760
          %2483 = vmatpush1.msra.mxu0 %v2482
          %2484 = vmatprep.subr.mxu0 0.0
          %v2485 = vand.u32 %v2090, 4294901760
          %2486 = vmatpush1.msra.mxu0 %v2485
          %2487 = vmatprep.subr.mxu0 0.0
          %v2488 = vand.u32 %v2091, 4294901760
          %2489 = vmatpush1.msra.mxu0 %v2488
          %2490 = vmatprep.subr.mxu0 0.0
          %v2491 = vand.u32 %v2092, 4294901760
          %2492 = vmatpush1.msra.mxu0 %v2491
          %2493 = vmatprep.subr.mxu0 0.0
          %v2494 = vand.u32 %v2093, 4294901760
          %2495 = vmatpush1.msra.mxu0 %v2494
          %2496 = vmatprep.subr.mxu0 0.0
          %v2497 = vand.u32 %v2094, 4294901760
          %2498 = vmatpush1.msra.mxu0 %v2497
          %2499 = vmatprep.subr.mxu0 0.0
          %v2500 = vand.u32 %v2095, 4294901760
          %2501 = vmatpush1.msra.mxu0 %v2500
          %2502 = vmatprep.subr.mxu0 0.0
          %v2503 = vand.u32 %v2096, 4294901760
          %2504 = vmatpush1.msra.mxu0 %v2503
          %2505 = vmatprep.subr.mxu0 0.0
          %v2506 = vand.u32 %v2097, 4294901760
          %2507 = vmatpush1.msra.mxu0 %v2506
          %2508 = vmatprep.subr.mxu0 0.0
          %v2509 = vand.u32 %v2098, 4294901760
          %2510 = vmatpush1.msra.mxu0 %v2509
          %2511 = vmatprep.subr.mxu0 0.0
          %v2512 = vand.u32 %v2099, 4294901760
          %2513 = vmatpush1.msra.mxu0 %v2512
          %2514 = vmatprep.subr.mxu0 0.0
          %v2515 = vand.u32 %v2100, 4294901760
          %2516 = vmatpush1.msra.mxu0 %v2515
          %2517 = vmatprep.subr.mxu0 0.0
          %v2518 = vand.u32 %v2101, 4294901760
          %2519 = vmatpush1.msra.mxu0 %v2518
          %2520 = vmatprep.subr.mxu0 0.0
          %v2521 = vand.u32 %v2102, 4294901760
          %2522 = vmatpush1.msra.mxu0 %v2521
          %2523 = vmatprep.subr.mxu0 0.0
          %v2524 = vand.u32 %v2103, 4294901760
          %2525 = vmatpush1.msra.mxu0 %v2524
          %2526 = vmatprep.subr.mxu0 0.0
          %v2527 = vand.u32 %v2104, 4294901760
          %2528 = vmatpush1.msra.mxu0 %v2527
          %2529 = vmatprep.subr.mxu0 0.0
          %2530 = vmatpush1.msra.mxu0 0.0
          %2531 = vmatprep.subr.mxu0 0.0
          %2532 = vmatpush1.msra.mxu0 0.0
          %2533 = vmatprep.subr.mxu0 0.0
          %2534 = vmatpush1.msra.mxu0 0.0
          %2535 = vmatprep.subr.mxu0 0.0
          %2536 = vmatpush1.msra.mxu0 0.0
          %2537 = vmatprep.subr.mxu0 0.0
          %2538 = vmatpush1.msra.mxu0 0.0
          %2539 = vmatprep.subr.mxu0 0.0
          %2540 = vmatpush1.msra.mxu0 0.0
          %2541 = vmatprep.subr.mxu0 0.0
          %2542 = vmatpush1.msra.mxu0 0.0
          %2543 = vmatprep.subr.mxu0 0.0
          %2544 = vmatpush1.msra.mxu0 0.0
          %2545 = vmatprep.subr.mxu0 0.0
          %2546 = vmatpush1.msra.mxu0 0.0
          %2547 = vmatprep.subr.mxu0 0.0
          %2548 = vmatpush1.msra.mxu0 0.0
          %2549 = vmatprep.subr.mxu0 0.0
          %2550 = vmatpush1.msra.mxu0 0.0
          %2551 = vmatprep.subr.mxu0 0.0
          %2552 = vmatpush1.msra.mxu0 0.0
          %2553 = vmatprep.subr.mxu0 0.0
          %2554 = vmatpush1.msra.mxu0 0.0
          %2555 = vmatprep.subr.mxu0 0.0
          %2556 = vmatpush1.msra.mxu0 0.0
          %2557 = vmatprep.subr.mxu0 0.0
          %2558 = vmatpush1.msra.mxu0 0.0
          %2559 = vmatprep.subr.mxu0 0.0
          %2560 = vmatpush1.msra.mxu0 0.0
          %2561 = vmatprep.mubr.f32.mxu0 0.0
          %v2562 = vand.u32 %v667, 4294901760
          %v2563 = vsub.f32 %v667, %v2562
          %v2564 = vand.u32 %v2563, 4294901760
          %2565 = vmatmul.mubr.f32.gmra.mrb[0].mxu0 %v2564
          %v2566 = vpop.f32.mrb[0].mxu0
          %v2567 = vadd.f32 %v2471, %v2566
          %v2568 = vpop.f32.mrb[0].mxu0
          %2569 = vmatprep.mubr.f32.mxu0 0.0
          %v2570 = vand.u32 %v668, 4294901760
          %v2571 = vsub.f32 %v668, %v2570
          %v2572 = vand.u32 %v2571, 4294901760
          %2573 = vmatmul.mubr.f32.gmra.mrb[0].mxu0 %v2572
          %v2574 = vpop.f32.mrb[0].mxu0
          %v2575 = vadd.f32 %v2478, %v2574
          %v2576 = vpop.f32.mrb[0].mxu0
          %2577 = vdwg.mxu0
          %2578 = vmatprep.subr.mxu0 0.0
          %v2579 = vand.u32 %v2089, 4294901760
          %v2580 = vsub.f32 %v2089, %v2579
          %v2581 = vand.u32 %v2580, 4294901760
          %2582 = vmatpush1.msra.mxu0 %v2581
          %2583 = vmatprep.subr.mxu0 0.0
          %v2584 = vand.u32 %v2090, 4294901760
          %v2585 = vsub.f32 %v2090, %v2584
          %v2586 = vand.u32 %v2585, 4294901760
          %2587 = vmatpush1.msra.mxu0 %v2586
          %2588 = vmatprep.subr.mxu0 0.0
          %v2589 = vand.u32 %v2091, 4294901760
          %v2590 = vsub.f32 %v2091, %v2589
          %v2591 = vand.u32 %v2590, 4294901760
          %2592 = vmatpush1.msra.mxu0 %v2591
          %2593 = vmatprep.subr.mxu0 0.0
          %v2594 = vand.u32 %v2092, 4294901760
          %v2595 = vsub.f32 %v2092, %v2594
          %v2596 = vand.u32 %v2595, 4294901760
          %2597 = vmatpush1.msra.mxu0 %v2596
          %2598 = vmatprep.subr.mxu0 0.0
          %v2599 = vand.u32 %v2093, 4294901760
          %v2600 = vsub.f32 %v2093, %v2599
          %v2601 = vand.u32 %v2600, 4294901760
          %2602 = vmatpush1.msra.mxu0 %v2601
          %2603 = vmatprep.subr.mxu0 0.0
          %v2604 = vand.u32 %v2094, 4294901760
          %v2605 = vsub.f32 %v2094, %v2604
          %v2606 = vand.u32 %v2605, 4294901760
          %2607 = vmatpush1.msra.mxu0 %v2606
          %2608 = vmatprep.subr.mxu0 0.0
          %v2609 = vand.u32 %v2095, 4294901760
          %v2610 = vsub.f32 %v2095, %v2609
          %v2611 = vand.u32 %v2610, 4294901760
          %2612 = vmatpush1.msra.mxu0 %v2611
          %2613 = vmatprep.subr.mxu0 0.0
          %v2614 = vand.u32 %v2096, 4294901760
          %v2615 = vsub.f32 %v2096, %v2614
          %v2616 = vand.u32 %v2615, 4294901760
          %2617 = vmatpush1.msra.mxu0 %v2616
          %2618 = vmatprep.subr.mxu0 0.0
          %v2619 = vand.u32 %v2097, 4294901760
          %v2620 = vsub.f32 %v2097, %v2619
          %v2621 = vand.u32 %v2620, 4294901760
          %2622 = vmatpush1.msra.mxu0 %v2621
          %2623 = vmatprep.subr.mxu0 0.0
          %v2624 = vand.u32 %v2098, 4294901760
          %v2625 = vsub.f32 %v2098, %v2624
          %v2626 = vand.u32 %v2625, 4294901760
          %2627 = vmatpush1.msra.mxu0 %v2626
          %2628 = vmatprep.subr.mxu0 0.0
          %v2629 = vand.u32 %v2099, 4294901760
          %v2630 = vsub.f32 %v2099, %v2629
          %v2631 = vand.u32 %v2630, 4294901760
          %2632 = vmatpush1.msra.mxu0 %v2631
          %2633 = vmatprep.subr.mxu0 0.0
          %v2634 = vand.u32 %v2100, 4294901760
          %v2635 = vsub.f32 %v2100, %v2634
          %v2636 = vand.u32 %v2635, 4294901760
          %2637 = vmatpush1.msra.mxu0 %v2636
          %2638 = vmatprep.subr.mxu0 0.0
          %v2639 = vand.u32 %v2101, 4294901760
          %v2640 = vsub.f32 %v2101, %v2639
          %v2641 = vand.u32 %v2640, 4294901760
          %2642 = vmatpush1.msra.mxu0 %v2641
          %2643 = vmatprep.subr.mxu0 0.0
          %v2644 = vand.u32 %v2102, 4294901760
          %v2645 = vsub.f32 %v2102, %v2644
          %v2646 = vand.u32 %v2645, 4294901760
          %2647 = vmatpush1.msra.mxu0 %v2646
          %2648 = vmatprep.subr.mxu0 0.0
          %v2649 = vand.u32 %v2103, 4294901760
          %v2650 = vsub.f32 %v2103, %v2649
          %v2651 = vand.u32 %v2650, 4294901760
          %2652 = vmatpush1.msra.mxu0 %v2651
          %2653 = vmatprep.subr.mxu0 0.0
          %v2654 = vand.u32 %v2104, 4294901760
          %v2655 = vsub.f32 %v2104, %v2654
          %v2656 = vand.u32 %v2655, 4294901760
          %2657 = vmatpush1.msra.mxu0 %v2656
          %2658 = vmatprep.subr.mxu0 0.0
          %2659 = vmatpush1.msra.mxu0 0.0
          %2660 = vmatprep.subr.mxu0 0.0
          %2661 = vmatpush1.msra.mxu0 0.0
          %2662 = vmatprep.subr.mxu0 0.0
          %2663 = vmatpush1.msra.mxu0 0.0
          %2664 = vmatprep.subr.mxu0 0.0
          %2665 = vmatpush1.msra.mxu0 0.0
          %2666 = vmatprep.subr.mxu0 0.0
          %2667 = vmatpush1.msra.mxu0 0.0
          %2668 = vmatprep.subr.mxu0 0.0
          %2669 = vmatpush1.msra.mxu0 0.0
          %2670 = vmatprep.subr.mxu0 0.0
          %2671 = vmatpush1.msra.mxu0 0.0
          %2672 = vmatprep.subr.mxu0 0.0
          %2673 = vmatpush1.msra.mxu0 0.0
          %2674 = vmatprep.subr.mxu0 0.0
          %2675 = vmatpush1.msra.mxu0 0.0
          %2676 = vmatprep.subr.mxu0 0.0
          %2677 = vmatpush1.msra.mxu0 0.0
          %2678 = vmatprep.subr.mxu0 0.0
          %2679 = vmatpush1.msra.mxu0 0.0
          %2680 = vmatprep.subr.mxu0 0.0
          %2681 = vmatpush1.msra.mxu0 0.0
          %2682 = vmatprep.subr.mxu0 0.0
          %2683 = vmatpush1.msra.mxu0 0.0
          %2684 = vmatprep.subr.mxu0 0.0
          %2685 = vmatpush1.msra.mxu0 0.0
          %2686 = vmatprep.subr.mxu0 0.0
          %2687 = vmatpush1.msra.mxu0 0.0
          %2688 = vmatprep.subr.mxu0 0.0
          %2689 = vmatpush1.msra.mxu0 0.0
          %2690 = vmatprep.mubr.f32.mxu0 0.0
          %v2691 = vand.u32 %v667, 4294901760
          %2692 = vmatmul.mubr.f32.gmra.mrb[0].mxu0 %v2691
          %v2693 = vpop.f32.mrb[0].mxu0
          %v2694 = vadd.f32 %v2567, %v2693
          %v2695 = vpop.f32.mrb[0].mxu0
          %2696 = vmatprep.mubr.f32.mxu0 0.0
          %v2697 = vand.u32 %v668, 4294901760
          %2698 = vmatmul.mubr.f32.gmra.mrb[0].mxu0 %v2697
          %v2699 = vpop.f32.mrb[0].mxu0
          %v2700 = vadd.f32 %v2575, %v2699
          %v2701 = vpop.f32.mrb[0].mxu0
          %2702 = vdwg.mxu0
          %2703 = vmatprep.subr.mxu0 0.0
          %v2704 = vand.u32 %v2089, 4294901760
          %2705 = vmatpush1.msra.mxu0 %v2704
          %2706 = vmatprep.subr.mxu0 0.0
          %v2707 = vand.u32 %v2090, 4294901760
          %2708 = vmatpush1.msra.mxu0 %v2707
          %2709 = vmatprep.subr.mxu0 0.0
          %v2710 = vand.u32 %v2091, 4294901760
          %2711 = vmatpush1.msra.mxu0 %v2710
          %2712 = vmatprep.subr.mxu0 0.0
          %v2713 = vand.u32 %v2092, 4294901760
          %2714 = vmatpush1.msra.mxu0 %v2713
          %2715 = vmatprep.subr.mxu0 0.0
          %v2716 = vand.u32 %v2093, 4294901760
          %2717 = vmatpush1.msra.mxu0 %v2716
          %2718 = vmatprep.subr.mxu0 0.0
          %v2719 = vand.u32 %v2094, 4294901760
          %2720 = vmatpush1.msra.mxu0 %v2719
          %2721 = vmatprep.subr.mxu0 0.0
          %v2722 = vand.u32 %v2095, 4294901760
          %2723 = vmatpush1.msra.mxu0 %v2722
          %2724 = vmatprep.subr.mxu0 0.0
          %v2725 = vand.u32 %v2096, 4294901760
          %2726 = vmatpush1.msra.mxu0 %v2725
          %2727 = vmatprep.subr.mxu0 0.0
          %v2728 = vand.u32 %v2097, 4294901760
          %2729 = vmatpush1.msra.mxu0 %v2728
          %2730 = vmatprep.subr.mxu0 0.0
          %v2731 = vand.u32 %v2098, 4294901760
          %2732 = vmatpush1.msra.mxu0 %v2731
          %2733 = vmatprep.subr.mxu0 0.0
          %v2734 = vand.u32 %v2099, 4294901760
          %2735 = vmatpush1.msra.mxu0 %v2734
          %2736 = vmatprep.subr.mxu0 0.0
          %v2737 = vand.u32 %v2100, 4294901760
          %2738 = vmatpush1.msra.mxu0 %v2737
          %2739 = vmatprep.subr.mxu0 0.0
          %v2740 = vand.u32 %v2101, 4294901760
          %2741 = vmatpush1.msra.mxu0 %v2740
          %2742 = vmatprep.subr.mxu0 0.0
          %v2743 = vand.u32 %v2102, 4294901760
          %2744 = vmatpush1.msra.mxu0 %v2743
          %2745 = vmatprep.subr.mxu0 0.0
          %v2746 = vand.u32 %v2103, 4294901760
          %2747 = vmatpush1.msra.mxu0 %v2746
          %2748 = vmatprep.subr.mxu0 0.0
          %v2749 = vand.u32 %v2104, 4294901760
          %2750 = vmatpush1.msra.mxu0 %v2749
          %2751 = vmatprep.subr.mxu0 0.0
          %2752 = vmatpush1.msra.mxu0 0.0
          %2753 = vmatprep.subr.mxu0 0.0
          %2754 = vmatpush1.msra.mxu0 0.0
          %2755 = vmatprep.subr.mxu0 0.0
          %2756 = vmatpush1.msra.mxu0 0.0
          %2757 = vmatprep.subr.mxu0 0.0
          %2758 = vmatpush1.msra.mxu0 0.0
          %2759 = vmatprep.subr.mxu0 0.0
          %2760 = vmatpush1.msra.mxu0 0.0
          %2761 = vmatprep.subr.mxu0 0.0
          %2762 = vmatpush1.msra.mxu0 0.0
          %2763 = vmatprep.subr.mxu0 0.0
          %2764 = vmatpush1.msra.mxu0 0.0
          %2765 = vmatprep.subr.mxu0 0.0
          %2766 = vmatpush1.msra.mxu0 0.0
          %2767 = vmatprep.subr.mxu0 0.0
          %2768 = vmatpush1.msra.mxu0 0.0
          %2769 = vmatprep.subr.mxu0 0.0
          %2770 = vmatpush1.msra.mxu0 0.0
          %2771 = vmatprep.subr.mxu0 0.0
          %2772 = vmatpush1.msra.mxu0 0.0
          %2773 = vmatprep.subr.mxu0 0.0
          %2774 = vmatpush1.msra.mxu0 0.0
          %2775 = vmatprep.subr.mxu0 0.0
          %2776 = vmatpush1.msra.mxu0 0.0
          %2777 = vmatprep.subr.mxu0 0.0
          %2778 = vmatpush1.msra.mxu0 0.0
          %2779 = vmatprep.subr.mxu0 0.0
          %2780 = vmatpush1.msra.mxu0 0.0
          %2781 = vmatprep.subr.mxu0 0.0
          %2782 = vmatpush1.msra.mxu0 0.0
          %2783 = vmatprep.mubr.f32.mxu0 0.0
          %v2784 = vand.u32 %v667, 4294901760
          %2785 = vmatmul.mubr.f32.gmra.mrb[0].mxu0 %v2784
          %v2786 = vpop.f32.mrb[0].mxu0
          %v2787 = vadd.f32 %v2694, %v2786
          %v2788 = vpop.f32.mrb[0].mxu0
          %2789 = vmatprep.mubr.f32.mxu0 0.0
          %v2790 = vand.u32 %v668, 4294901760
          %2791 = vmatmul.mubr.f32.gmra.mrb[0].mxu0 %v2790
          %v2792 = vpop.f32.mrb[0].mxu0
          %v2793 = vadd.f32 %v2700, %v2792
          %v2794 = vpop.f32.mrb[0].mxu0
          %2795 = vdwg.mxu0
          %2796 = vst [vmem:[#allocation4] sm:$0xff] %v2787
          %2797 = vst [vmem:[#allocation4 + $0x8] sm:$0xff] %v2793
        $region88: #{hgn_forward.3} parent=83 // pred_fallthru
          _
        %v2798 = vld [vmem:[%s630] sm:$0xff]
        %v2799 = vld [vmem:[%s630 + $0x8] sm:$0xff]
        %v2800 = vld [vmem:[%s650] sm:$0xff]
        %v2801 = vld [vmem:[%s650 + $0x8] sm:$0xff]
        %v2802 = vld [vmem:[%s5] sm:$0xff]
        %v2803 = vld [vmem:[%s5 + $0x8] sm:$0xff]
        %v2804 = vld [vmem:[%s5 + $0x10] sm:$0xff]
        %v2805 = vld [vmem:[%s5 + $0x18] sm:$0xff]
        %v2806 = vld [vmem:[%s5 + $0x20] sm:$0xff]
        %v2807 = vld [vmem:[%s5 + $0x28] sm:$0xff]
        %v2808 = vld [vmem:[%s5 + $0x30] sm:$0xff]
        %v2809 = vld [vmem:[%s5 + $0x38] sm:$0xff]
        %v2810 = vld [vmem:[%s5 + $0x40] sm:$0xff]
        %v2811 = vld [vmem:[%s5 + $0x48] sm:$0xff]
        %v2812 = vld [vmem:[%s5 + $0x50] sm:$0xff]
        %v2813 = vld [vmem:[%s5 + $0x58] sm:$0xff]
        %v2814 = vld [vmem:[%s5 + $0x60] sm:$0xff]
        %v2815 = vld [vmem:[%s5 + $0x68] sm:$0xff]
        %v2816 = vld [vmem:[%s5 + $0x70] sm:$0xff]
        %v2817 = vld [vmem:[%s5 + $0x78] sm:$0xff]
        %v2818 = vld [vmem:[%s6] sm:$0x1]
        %v2820 = vlaneseq
        %v2821 = vshrl.u32 %v2820, 7
        %v2822 = vsub.s32 0, %v2821
        %v2823 = vrot.slane %v2818, %v2822
        %2825 = vmatprep.subr.mxu0 0.0
        %v2826 = vand.u32 %v2802, 4294901760
        %2827 = vmatpush1.msra.mxu0 %v2826
        %2828 = vmatprep.subr.mxu0 0.0
        %v2829 = vand.u32 %v2803, 4294901760
        %2830 = vmatpush1.msra.mxu0 %v2829
        %2831 = vmatprep.subr.mxu0 0.0
        %v2832 = vand.u32 %v2804, 4294901760
        %2833 = vmatpush1.msra.mxu0 %v2832
        %2834 = vmatprep.subr.mxu0 0.0
        %v2835 = vand.u32 %v2805, 4294901760
        %2836 = vmatpush1.msra.mxu0 %v2835
        %2837 = vmatprep.subr.mxu0 0.0
        %v2838 = vand.u32 %v2806, 4294901760
        %2839 = vmatpush1.msra.mxu0 %v2838
        %2840 = vmatprep.subr.mxu0 0.0
        %v2841 = vand.u32 %v2807, 4294901760
        %2842 = vmatpush1.msra.mxu0 %v2841
        %2843 = vmatprep.subr.mxu0 0.0
        %v2844 = vand.u32 %v2808, 4294901760
        %2845 = vmatpush1.msra.mxu0 %v2844
        %2846 = vmatprep.subr.mxu0 0.0
        %v2847 = vand.u32 %v2809, 4294901760
        %2848 = vmatpush1.msra.mxu0 %v2847
        %2849 = vmatprep.subr.mxu0 0.0
        %v2850 = vand.u32 %v2810, 4294901760
        %2851 = vmatpush1.msra.mxu0 %v2850
        %2852 = vmatprep.subr.mxu0 0.0
        %v2853 = vand.u32 %v2811, 4294901760
        %2854 = vmatpush1.msra.mxu0 %v2853
        %2855 = vmatprep.subr.mxu0 0.0
        %v2856 = vand.u32 %v2812, 4294901760
        %2857 = vmatpush1.msra.mxu0 %v2856
        %2858 = vmatprep.subr.mxu0 0.0
        %v2859 = vand.u32 %v2813, 4294901760
        %2860 = vmatpush1.msra.mxu0 %v2859
        %2861 = vmatprep.subr.mxu0 0.0
        %v2862 = vand.u32 %v2814, 4294901760
        %2863 = vmatpush1.msra.mxu0 %v2862
        %2864 = vmatprep.subr.mxu0 0.0
        %v2865 = vand.u32 %v2815, 4294901760
        %2866 = vmatpush1.msra.mxu0 %v2865
        %2867 = vmatprep.subr.mxu0 0.0
        %v2868 = vand.u32 %v2816, 4294901760
        %2869 = vmatpush1.msra.mxu0 %v2868
        %2870 = vmatprep.subr.mxu0 0.0
        %v2871 = vand.u32 %v2817, 4294901760
        %2872 = vmatpush1.msra.mxu0 %v2871
        %2873 = vmatprep.subr.mxu0 0.0
        %2874 = vmatpush1.msra.mxu0 0.0
        %2875 = vmatprep.subr.mxu0 0.0
        %2876 = vmatpush1.msra.mxu0 0.0
        %2877 = vmatprep.subr.mxu0 0.0
        %2878 = vmatpush1.msra.mxu0 0.0
        %2879 = vmatprep.subr.mxu0 0.0
        %2880 = vmatpush1.msra.mxu0 0.0
        %2881 = vmatprep.subr.mxu0 0.0
        %2882 = vmatpush1.msra.mxu0 0.0
        %2883 = vmatprep.subr.mxu0 0.0
        %2884 = vmatpush1.msra.mxu0 0.0
        %2885 = vmatprep.subr.mxu0 0.0
        %2886 = vmatpush1.msra.mxu0 0.0
        %2887 = vmatprep.subr.mxu0 0.0
        %2888 = vmatpush1.msra.mxu0 0.0
        %2889 = vmatprep.subr.mxu0 0.0
        %2890 = vmatpush1.msra.mxu0 0.0
        %2891 = vmatprep.subr.mxu0 0.0
        %2892 = vmatpush1.msra.mxu0 0.0
        %2893 = vmatprep.subr.mxu0 0.0
        %2894 = vmatpush1.msra.mxu0 0.0
        %2895 = vmatprep.subr.mxu0 0.0
        %2896 = vmatpush1.msra.mxu0 0.0
        %2897 = vmatprep.subr.mxu0 0.0
        %2898 = vmatpush1.msra.mxu0 0.0
        %2899 = vmatprep.subr.mxu0 0.0
        %2900 = vmatpush1.msra.mxu0 0.0
        %2901 = vmatprep.subr.mxu0 0.0
        %2902 = vmatpush1.msra.mxu0 0.0
        %2903 = vmatprep.subr.mxu0 0.0
        %2904 = vmatpush1.msra.mxu0 0.0
        %2905 = vmatprep.mubr.f32.mxu0 0.0
        %v2906 = vand.u32 %v2798, 4294901760
        %v2907 = vsub.f32 %v2798, %v2906
        %v2908 = vand.u32 %v2907, 4294901760
        %v2909 = vsub.f32 %v2907, %v2908
        %v2910 = vand.u32 %v2909, 4294901760
        %2911 = vmatmul.mubr.f32.gmra.mrb[0].mxu0 %v2910
        %v2912 = vpop.f32.mrb[0].mxu0
        %v2913 = vadd.f32 %v2823, %v2912
        %v2914 = vpop.f32.mrb[0].mxu0
        %2915 = vmatprep.mubr.f32.mxu0 0.0
        %v2916 = vand.u32 %v2799, 4294901760
        %v2917 = vsub.f32 %v2799, %v2916
        %v2918 = vand.u32 %v2917, 4294901760
        %v2919 = vsub.f32 %v2917, %v2918
        %v2920 = vand.u32 %v2919, 4294901760
        %2921 = vmatmul.mubr.f32.gmra.mrb[0].mxu0 %v2920
        %v2922 = vpop.f32.mrb[0].mxu0
        %v2923 = vadd.f32 %v2823, %v2922
        %v2924 = vpop.f32.mrb[0].mxu0
        %2925 = vdwg.mxu0
        %2926 = vmatprep.subr.mxu0 0.0
        %v2927 = vand.u32 %v2802, 4294901760
        %v2928 = vsub.f32 %v2802, %v2927
        %v2929 = vand.u32 %v2928, 4294901760
        %v2930 = vsub.f32 %v2928, %v2929
        %v2931 = vand.u32 %v2930, 4294901760
        %2932 = vmatpush1.msra.mxu0 %v2931
        %2933 = vmatprep.subr.mxu0 0.0
        %v2934 = vand.u32 %v2803, 4294901760
        %v2935 = vsub.f32 %v2803, %v2934
        %v2936 = vand.u32 %v2935, 4294901760
        %v2937 = vsub.f32 %v2935, %v2936
        %v2938 = vand.u32 %v2937, 4294901760
        %2939 = vmatpush1.msra.mxu0 %v2938
        %2940 = vmatprep.subr.mxu0 0.0
        %v2941 = vand.u32 %v2804, 4294901760
        %v2942 = vsub.f32 %v2804, %v2941
        %v2943 = vand.u32 %v2942, 4294901760
        %v2944 = vsub.f32 %v2942, %v2943
        %v2945 = vand.u32 %v2944, 4294901760
        %2946 = vmatpush1.msra.mxu0 %v2945
        %2947 = vmatprep.subr.mxu0 0.0
        %v2948 = vand.u32 %v2805, 4294901760
        %v2949 = vsub.f32 %v2805, %v2948
        %v2950 = vand.u32 %v2949, 4294901760
        %v2951 = vsub.f32 %v2949, %v2950
        %v2952 = vand.u32 %v2951, 4294901760
        %2953 = vmatpush1.msra.mxu0 %v2952
        %2954 = vmatprep.subr.mxu0 0.0
        %v2955 = vand.u32 %v2806, 4294901760
        %v2956 = vsub.f32 %v2806, %v2955
        %v2957 = vand.u32 %v2956, 4294901760
        %v2958 = vsub.f32 %v2956, %v2957
        %v2959 = vand.u32 %v2958, 4294901760
        %2960 = vmatpush1.msra.mxu0 %v2959
        %2961 = vmatprep.subr.mxu0 0.0
        %v2962 = vand.u32 %v2807, 4294901760
        %v2963 = vsub.f32 %v2807, %v2962
        %v2964 = vand.u32 %v2963, 4294901760
        %v2965 = vsub.f32 %v2963, %v2964
        %v2966 = vand.u32 %v2965, 4294901760
        %2967 = vmatpush1.msra.mxu0 %v2966
        %2968 = vmatprep.subr.mxu0 0.0
        %v2969 = vand.u32 %v2808, 4294901760
        %v2970 = vsub.f32 %v2808, %v2969
        %v2971 = vand.u32 %v2970, 4294901760
        %v2972 = vsub.f32 %v2970, %v2971
        %v2973 = vand.u32 %v2972, 4294901760
        %2974 = vmatpush1.msra.mxu0 %v2973
        %2975 = vmatprep.subr.mxu0 0.0
        %v2976 = vand.u32 %v2809, 4294901760
        %v2977 = vsub.f32 %v2809, %v2976
        %v2978 = vand.u32 %v2977, 4294901760
        %v2979 = vsub.f32 %v2977, %v2978
        %v2980 = vand.u32 %v2979, 4294901760
        %2981 = vmatpush1.msra.mxu0 %v2980
        %2982 = vmatprep.subr.mxu0 0.0
        %v2983 = vand.u32 %v2810, 4294901760
        %v2984 = vsub.f32 %v2810, %v2983
        %v2985 = vand.u32 %v2984, 4294901760
        %v2986 = vsub.f32 %v2984, %v2985
        %v2987 = vand.u32 %v2986, 4294901760
        %2988 = vmatpush1.msra.mxu0 %v2987
        %2989 = vmatprep.subr.mxu0 0.0
        %v2990 = vand.u32 %v2811, 4294901760
        %v2991 = vsub.f32 %v2811, %v2990
        %v2992 = vand.u32 %v2991, 4294901760
        %v2993 = vsub.f32 %v2991, %v2992
        %v2994 = vand.u32 %v2993, 4294901760
        %2995 = vmatpush1.msra.mxu0 %v2994
        %2996 = vmatprep.subr.mxu0 0.0
        %v2997 = vand.u32 %v2812, 4294901760
        %v2998 = vsub.f32 %v2812, %v2997
        %v2999 = vand.u32 %v2998, 4294901760
        %v3000 = vsub.f32 %v2998, %v2999
        %v3001 = vand.u32 %v3000, 4294901760
        %3002 = vmatpush1.msra.mxu0 %v3001
        %3003 = vmatprep.subr.mxu0 0.0
        %v3004 = vand.u32 %v2813, 4294901760
        %v3005 = vsub.f32 %v2813, %v3004
        %v3006 = vand.u32 %v3005, 4294901760
        %v3007 = vsub.f32 %v3005, %v3006
        %v3008 = vand.u32 %v3007, 4294901760
        %3009 = vmatpush1.msra.mxu0 %v3008
        %3010 = vmatprep.subr.mxu0 0.0
        %v3011 = vand.u32 %v2814, 4294901760
        %v3012 = vsub.f32 %v2814, %v3011
        %v3013 = vand.u32 %v3012, 4294901760
        %v3014 = vsub.f32 %v3012, %v3013
        %v3015 = vand.u32 %v3014, 4294901760
        %3016 = vmatpush1.msra.mxu0 %v3015
        %3017 = vmatprep.subr.mxu0 0.0
        %v3018 = vand.u32 %v2815, 4294901760
        %v3019 = vsub.f32 %v2815, %v3018
        %v3020 = vand.u32 %v3019, 4294901760
        %v3021 = vsub.f32 %v3019, %v3020
        %v3022 = vand.u32 %v3021, 4294901760
        %3023 = vmatpush1.msra.mxu0 %v3022
        %3024 = vmatprep.subr.mxu0 0.0
        %v3025 = vand.u32 %v2816, 4294901760
        %v3026 = vsub.f32 %v2816, %v3025
        %v3027 = vand.u32 %v3026, 4294901760
        %v3028 = vsub.f32 %v3026, %v3027
        %v3029 = vand.u32 %v3028, 4294901760
        %3030 = vmatpush1.msra.mxu0 %v3029
        %3031 = vmatprep.subr.mxu0 0.0
        %v3032 = vand.u32 %v2817, 4294901760
        %v3033 = vsub.f32 %v2817, %v3032
        %v3034 = vand.u32 %v3033, 4294901760
        %v3035 = vsub.f32 %v3033, %v3034
        %v3036 = vand.u32 %v3035, 4294901760
        %3037 = vmatpush1.msra.mxu0 %v3036
        %3038 = vmatprep.subr.mxu0 0.0
        %3039 = vmatpush1.msra.mxu0 0.0
        %3040 = vmatprep.subr.mxu0 0.0
        %3041 = vmatpush1.msra.mxu0 0.0
        %3042 = vmatprep.subr.mxu0 0.0
        %3043 = vmatpush1.msra.mxu0 0.0
        %3044 = vmatprep.subr.mxu0 0.0
        %3045 = vmatpush1.msra.mxu0 0.0
        %3046 = vmatprep.subr.mxu0 0.0
        %3047 = vmatpush1.msra.mxu0 0.0
        %3048 = vmatprep.subr.mxu0 0.0
        %3049 = vmatpush1.msra.mxu0 0.0
        %3050 = vmatprep.subr.mxu0 0.0
        %3051 = vmatpush1.msra.mxu0 0.0
        %3052 = vmatprep.subr.mxu0 0.0
        %3053 = vmatpush1.msra.mxu0 0.0
        %3054 = vmatprep.subr.mxu0 0.0
        %3055 = vmatpush1.msra.mxu0 0.0
        %3056 = vmatprep.subr.mxu0 0.0
        %3057 = vmatpush1.msra.mxu0 0.0
        %3058 = vmatprep.subr.mxu0 0.0
        %3059 = vmatpush1.msra.mxu0 0.0
        %3060 = vmatprep.subr.mxu0 0.0
        %3061 = vmatpush1.msra.mxu0 0.0
        %3062 = vmatprep.subr.mxu0 0.0
        %3063 = vmatpush1.msra.mxu0 0.0
        %3064 = vmatprep.subr.mxu0 0.0
        %3065 = vmatpush1.msra.mxu0 0.0
        %3066 = vmatprep.subr.mxu0 0.0
        %3067 = vmatpush1.msra.mxu0 0.0
        %3068 = vmatprep.subr.mxu0 0.0
        %3069 = vmatpush1.msra.mxu0 0.0
        %3070 = vmatprep.mubr.f32.mxu0 0.0
        %v3071 = vand.u32 %v2798, 4294901760
        %3072 = vmatmul.mubr.f32.gmra.mrb[0].mxu0 %v3071
        %v3073 = vpop.f32.mrb[0].mxu0
        %v3074 = vadd.f32 %v2913, %v3073
        %v3075 = vpop.f32.mrb[0].mxu0
        %3076 = vmatprep.mubr.f32.mxu0 0.0
        %v3077 = vand.u32 %v2799, 4294901760
        %3078 = vmatmul.mubr.f32.gmra.mrb[0].mxu0 %v3077
        %v3079 = vpop.f32.mrb[0].mxu0
        %v3080 = vadd.f32 %v2923, %v3079
        %v3081 = vpop.f32.mrb[0].mxu0
        %3082 = vdwg.mxu0
        %3083 = vmatprep.subr.mxu0 0.0
        %v3084 = vand.u32 %v2802, 4294901760
        %v3085 = vsub.f32 %v2802, %v3084
        %3086 = vmatpush1.msra.mxu0 %v3085
        %3087 = vmatprep.subr.mxu0 0.0
        %v3088 = vand.u32 %v2803, 4294901760
        %v3089 = vsub.f32 %v2803, %v3088
        %3090 = vmatpush1.msra.mxu0 %v3089
        %3091 = vmatprep.subr.mxu0 0.0
        %v3092 = vand.u32 %v2804, 4294901760
        %v3093 = vsub.f32 %v2804, %v3092
        %3094 = vmatpush1.msra.mxu0 %v3093
        %3095 = vmatprep.subr.mxu0 0.0
        %v3096 = vand.u32 %v2805, 4294901760
        %v3097 = vsub.f32 %v2805, %v3096
        %3098 = vmatpush1.msra.mxu0 %v3097
        %3099 = vmatprep.subr.mxu0 0.0
        %v3100 = vand.u32 %v2806, 4294901760
        %v3101 = vsub.f32 %v2806, %v3100
        %3102 = vmatpush1.msra.mxu0 %v3101
        %3103 = vmatprep.subr.mxu0 0.0
        %v3104 = vand.u32 %v2807, 4294901760
        %v3105 = vsub.f32 %v2807, %v3104
        %3106 = vmatpush1.msra.mxu0 %v3105
        %3107 = vmatprep.subr.mxu0 0.0
        %v3108 = vand.u32 %v2808, 4294901760
        %v3109 = vsub.f32 %v2808, %v3108
        %3110 = vmatpush1.msra.mxu0 %v3109
        %3111 = vmatprep.subr.mxu0 0.0
        %v3112 = vand.u32 %v2809, 4294901760
        %v3113 = vsub.f32 %v2809, %v3112
        %3114 = vmatpush1.msra.mxu0 %v3113
        %3115 = vmatprep.subr.mxu0 0.0
        %v3116 = vand.u32 %v2810, 4294901760
        %v3117 = vsub.f32 %v2810, %v3116
        %3118 = vmatpush1.msra.mxu0 %v3117
        %3119 = vmatprep.subr.mxu0 0.0
        %v3120 = vand.u32 %v2811, 4294901760
        %v3121 = vsub.f32 %v2811, %v3120
        %3122 = vmatpush1.msra.mxu0 %v3121
        %3123 = vmatprep.subr.mxu0 0.0
        %v3124 = vand.u32 %v2812, 4294901760
        %v3125 = vsub.f32 %v2812, %v3124
        %3126 = vmatpush1.msra.mxu0 %v3125
        %3127 = vmatprep.subr.mxu0 0.0
        %v3128 = vand.u32 %v2813, 4294901760
        %v3129 = vsub.f32 %v2813, %v3128
        %3130 = vmatpush1.msra.mxu0 %v3129
        %3131 = vmatprep.subr.mxu0 0.0
        %v3132 = vand.u32 %v2814, 4294901760
        %v3133 = vsub.f32 %v2814, %v3132
        %3134 = vmatpush1.msra.mxu0 %v3133
        %3135 = vmatprep.subr.mxu0 0.0
        %v3136 = vand.u32 %v2815, 4294901760
        %v3137 = vsub.f32 %v2815, %v3136
        %3138 = vmatpush1.msra.mxu0 %v3137
        %3139 = vmatprep.subr.mxu0 0.0
        %v3140 = vand.u32 %v2816, 4294901760
        %v3141 = vsub.f32 %v2816, %v3140
        %3142 = vmatpush1.msra.mxu0 %v3141
        %3143 = vmatprep.subr.mxu0 0.0
        %v3144 = vand.u32 %v2817, 4294901760
        %v3145 = vsub.f32 %v2817, %v3144
        %3146 = vmatpush1.msra.mxu0 %v3145
        %3147 = vmatprep.subr.mxu0 0.0
        %3148 = vmatpush1.msra.mxu0 0.0
        %3149 = vmatprep.subr.mxu0 0.0
        %3150 = vmatpush1.msra.mxu0 0.0
        %3151 = vmatprep.subr.mxu0 0.0
        %3152 = vmatpush1.msra.mxu0 0.0
        %3153 = vmatprep.subr.mxu0 0.0
        %3154 = vmatpush1.msra.mxu0 0.0
        %3155 = vmatprep.subr.mxu0 0.0
        %3156 = vmatpush1.msra.mxu0 0.0
        %3157 = vmatprep.subr.mxu0 0.0
        %3158 = vmatpush1.msra.mxu0 0.0
        %3159 = vmatprep.subr.mxu0 0.0
        %3160 = vmatpush1.msra.mxu0 0.0
        %3161 = vmatprep.subr.mxu0 0.0
        %3162 = vmatpush1.msra.mxu0 0.0
        %3163 = vmatprep.subr.mxu0 0.0
        %3164 = vmatpush1.msra.mxu0 0.0
        %3165 = vmatprep.subr.mxu0 0.0
        %3166 = vmatpush1.msra.mxu0 0.0
        %3167 = vmatprep.subr.mxu0 0.0
        %3168 = vmatpush1.msra.mxu0 0.0
        %3169 = vmatprep.subr.mxu0 0.0
        %3170 = vmatpush1.msra.mxu0 0.0
        %3171 = vmatprep.subr.mxu0 0.0
        %3172 = vmatpush1.msra.mxu0 0.0
        %3173 = vmatprep.subr.mxu0 0.0
        %3174 = vmatpush1.msra.mxu0 0.0
        %3175 = vmatprep.subr.mxu0 0.0
        %3176 = vmatpush1.msra.mxu0 0.0
        %3177 = vmatprep.subr.mxu0 0.0
        %3178 = vmatpush1.msra.mxu0 0.0
        %3179 = vmatprep.mubr.f32.mxu0 0.0
        %v3180 = vand.u32 %v2798, 4294901760
        %v3181 = vsub.f32 %v2798, %v3180
        %3182 = vmatmul.mubr.f32.gmra.mrb[0].mxu0 %v3181
        %v3183 = vpop.f32.mrb[0].mxu0
        %v3184 = vadd.f32 %v3074, %v3183
        %v3185 = vpop.f32.mrb[0].mxu0
        %3186 = vmatprep.mubr.f32.mxu0 0.0
        %v3187 = vand.u32 %v2799, 4294901760
        %v3188 = vsub.f32 %v2799, %v3187
        %3189 = vmatmul.mubr.f32.gmra.mrb[0].mxu0 %v3188
        %v3190 = vpop.f32.mrb[0].mxu0
        %v3191 = vadd.f32 %v3080, %v3190
        %v3192 = vpop.f32.mrb[0].mxu0
        %3193 = vdwg.mxu0
        %3194 = vmatprep.subr.mxu0 0.0
        %v3195 = vand.u32 %v2802, 4294901760
        %3196 = vmatpush1.msra.mxu0 %v3195
        %3197 = vmatprep.subr.mxu0 0.0
        %v3198 = vand.u32 %v2803, 4294901760
        %3199 = vmatpush1.msra.mxu0 %v3198
        %3200 = vmatprep.subr.mxu0 0.0
        %v3201 = vand.u32 %v2804, 4294901760
        %3202 = vmatpush1.msra.mxu0 %v3201
        %3203 = vmatprep.subr.mxu0 0.0
        %v3204 = vand.u32 %v2805, 4294901760
        %3205 = vmatpush1.msra.mxu0 %v3204
        %3206 = vmatprep.subr.mxu0 0.0
        %v3207 = vand.u32 %v2806, 4294901760
        %3208 = vmatpush1.msra.mxu0 %v3207
        %3209 = vmatprep.subr.mxu0 0.0
        %v3210 = vand.u32 %v2807, 4294901760
        %3211 = vmatpush1.msra.mxu0 %v3210
        %3212 = vmatprep.subr.mxu0 0.0
        %v3213 = vand.u32 %v2808, 4294901760
        %3214 = vmatpush1.msra.mxu0 %v3213
        %3215 = vmatprep.subr.mxu0 0.0
        %v3216 = vand.u32 %v2809, 4294901760
        %3217 = vmatpush1.msra.mxu0 %v3216
        %3218 = vmatprep.subr.mxu0 0.0
        %v3219 = vand.u32 %v2810, 4294901760
        %3220 = vmatpush1.msra.mxu0 %v3219
        %3221 = vmatprep.subr.mxu0 0.0
        %v3222 = vand.u32 %v2811, 4294901760
        %3223 = vmatpush1.msra.mxu0 %v3222
        %3224 = vmatprep.subr.mxu0 0.0
        %v3225 = vand.u32 %v2812, 4294901760
        %3226 = vmatpush1.msra.mxu0 %v3225
        %3227 = vmatprep.subr.mxu0 0.0
        %v3228 = vand.u32 %v2813, 4294901760
        %3229 = vmatpush1.msra.mxu0 %v3228
        %3230 = vmatprep.subr.mxu0 0.0
        %v3231 = vand.u32 %v2814, 4294901760
        %3232 = vmatpush1.msra.mxu0 %v3231
        %3233 = vmatprep.subr.mxu0 0.0
        %v3234 = vand.u32 %v2815, 4294901760
        %3235 = vmatpush1.msra.mxu0 %v3234
        %3236 = vmatprep.subr.mxu0 0.0
        %v3237 = vand.u32 %v2816, 4294901760
        %3238 = vmatpush1.msra.mxu0 %v3237
        %3239 = vmatprep.subr.mxu0 0.0
        %v3240 = vand.u32 %v2817, 4294901760
        %3241 = vmatpush1.msra.mxu0 %v3240
        %3242 = vmatprep.subr.mxu0 0.0
        %3243 = vmatpush1.msra.mxu0 0.0
        %3244 = vmatprep.subr.mxu0 0.0
        %3245 = vmatpush1.msra.mxu0 0.0
        %3246 = vmatprep.subr.mxu0 0.0
        %3247 = vmatpush1.msra.mxu0 0.0
        %3248 = vmatprep.subr.mxu0 0.0
        %3249 = vmatpush1.msra.mxu0 0.0
        %3250 = vmatprep.subr.mxu0 0.0
        %3251 = vmatpush1.msra.mxu0 0.0
        %3252 = vmatprep.subr.mxu0 0.0
        %3253 = vmatpush1.msra.mxu0 0.0
        %3254 = vmatprep.subr.mxu0 0.0
        %3255 = vmatpush1.msra.mxu0 0.0
        %3256 = vmatprep.subr.mxu0 0.0
        %3257 = vmatpush1.msra.mxu0 0.0
        %3258 = vmatprep.subr.mxu0 0.0
        %3259 = vmatpush1.msra.mxu0 0.0
        %3260 = vmatprep.subr.mxu0 0.0
        %3261 = vmatpush1.msra.mxu0 0.0
        %3262 = vmatprep.subr.mxu0 0.0
        %3263 = vmatpush1.msra.mxu0 0.0
        %3264 = vmatprep.subr.mxu0 0.0
        %3265 = vmatpush1.msra.mxu0 0.0
        %3266 = vmatprep.subr.mxu0 0.0
        %3267 = vmatpush1.msra.mxu0 0.0
        %3268 = vmatprep.subr.mxu0 0.0
        %3269 = vmatpush1.msra.mxu0 0.0
        %3270 = vmatprep.subr.mxu0 0.0
        %3271 = vmatpush1.msra.mxu0 0.0
        %3272 = vmatprep.subr.mxu0 0.0
        %3273 = vmatpush1.msra.mxu0 0.0
        %3274 = vmatprep.mubr.f32.mxu0 0.0
        %v3275 = vand.u32 %v2798, 4294901760
        %v3276 = vsub.f32 %v2798, %v3275
        %v3277 = vand.u32 %v3276, 4294901760
        %3278 = vmatmul.mubr.f32.gmra.mrb[0].mxu0 %v3277
        %v3279 = vpop.f32.mrb[0].mxu0
        %v3280 = vadd.f32 %v3184, %v3279
        %v3281 = vpop.f32.mrb[0].mxu0
        %3282 = vmatprep.mubr.f32.mxu0 0.0
        %v3283 = vand.u32 %v2799, 4294901760
        %v3284 = vsub.f32 %v2799, %v3283
        %v3285 = vand.u32 %v3284, 4294901760
        %3286 = vmatmul.mubr.f32.gmra.mrb[0].mxu0 %v3285
        %v3287 = vpop.f32.mrb[0].mxu0
        %v3288 = vadd.f32 %v3191, %v3287
        %v3289 = vpop.f32.mrb[0].mxu0
        %3290 = vdwg.mxu0
        %3291 = vmatprep.subr.mxu0 0.0
        %v3292 = vand.u32 %v2802, 4294901760
        %v3293 = vsub.f32 %v2802, %v3292
        %v3294 = vand.u32 %v3293, 4294901760
        %3295 = vmatpush1.msra.mxu0 %v3294
        %3296 = vmatprep.subr.mxu0 0.0
        %v3297 = vand.u32 %v2803, 4294901760
        %v3298 = vsub.f32 %v2803, %v3297
        %v3299 = vand.u32 %v3298, 4294901760
        %3300 = vmatpush1.msra.mxu0 %v3299
        %3301 = vmatprep.subr.mxu0 0.0
        %v3302 = vand.u32 %v2804, 4294901760
        %v3303 = vsub.f32 %v2804, %v3302
        %v3304 = vand.u32 %v3303, 4294901760
        %3305 = vmatpush1.msra.mxu0 %v3304
        %3306 = vmatprep.subr.mxu0 0.0
        %v3307 = vand.u32 %v2805, 4294901760
        %v3308 = vsub.f32 %v2805, %v3307
        %v3309 = vand.u32 %v3308, 4294901760
        %3310 = vmatpush1.msra.mxu0 %v3309
        %3311 = vmatprep.subr.mxu0 0.0
        %v3312 = vand.u32 %v2806, 4294901760
        %v3313 = vsub.f32 %v2806, %v3312
        %v3314 = vand.u32 %v3313, 4294901760
        %3315 = vmatpush1.msra.mxu0 %v3314
        %3316 = vmatprep.subr.mxu0 0.0
        %v3317 = vand.u32 %v2807, 4294901760
        %v3318 = vsub.f32 %v2807, %v3317
        %v3319 = vand.u32 %v3318, 4294901760
        %3320 = vmatpush1.msra.mxu0 %v3319
        %3321 = vmatprep.subr.mxu0 0.0
        %v3322 = vand.u32 %v2808, 4294901760
        %v3323 = vsub.f32 %v2808, %v3322
        %v3324 = vand.u32 %v3323, 4294901760
        %3325 = vmatpush1.msra.mxu0 %v3324
        %3326 = vmatprep.subr.mxu0 0.0
        %v3327 = vand.u32 %v2809, 4294901760
        %v3328 = vsub.f32 %v2809, %v3327
        %v3329 = vand.u32 %v3328, 4294901760
        %3330 = vmatpush1.msra.mxu0 %v3329
        %3331 = vmatprep.subr.mxu0 0.0
        %v3332 = vand.u32 %v2810, 4294901760
        %v3333 = vsub.f32 %v2810, %v3332
        %v3334 = vand.u32 %v3333, 4294901760
        %3335 = vmatpush1.msra.mxu0 %v3334
        %3336 = vmatprep.subr.mxu0 0.0
        %v3337 = vand.u32 %v2811, 4294901760
        %v3338 = vsub.f32 %v2811, %v3337
        %v3339 = vand.u32 %v3338, 4294901760
        %3340 = vmatpush1.msra.mxu0 %v3339
        %3341 = vmatprep.subr.mxu0 0.0
        %v3342 = vand.u32 %v2812, 4294901760
        %v3343 = vsub.f32 %v2812, %v3342
        %v3344 = vand.u32 %v3343, 4294901760
        %3345 = vmatpush1.msra.mxu0 %v3344
        %3346 = vmatprep.subr.mxu0 0.0
        %v3347 = vand.u32 %v2813, 4294901760
        %v3348 = vsub.f32 %v2813, %v3347
        %v3349 = vand.u32 %v3348, 4294901760
        %3350 = vmatpush1.msra.mxu0 %v3349
        %3351 = vmatprep.subr.mxu0 0.0
        %v3352 = vand.u32 %v2814, 4294901760
        %v3353 = vsub.f32 %v2814, %v3352
        %v3354 = vand.u32 %v3353, 4294901760
        %3355 = vmatpush1.msra.mxu0 %v3354
        %3356 = vmatprep.subr.mxu0 0.0
        %v3357 = vand.u32 %v2815, 4294901760
        %v3358 = vsub.f32 %v2815, %v3357
        %v3359 = vand.u32 %v3358, 4294901760
        %3360 = vmatpush1.msra.mxu0 %v3359
        %3361 = vmatprep.subr.mxu0 0.0
        %v3362 = vand.u32 %v2816, 4294901760
        %v3363 = vsub.f32 %v2816, %v3362
        %v3364 = vand.u32 %v3363, 4294901760
        %3365 = vmatpush1.msra.mxu0 %v3364
        %3366 = vmatprep.subr.mxu0 0.0
        %v3367 = vand.u32 %v2817, 4294901760
        %v3368 = vsub.f32 %v2817, %v3367
        %v3369 = vand.u32 %v3368, 4294901760
        %3370 = vmatpush1.msra.mxu0 %v3369
        %3371 = vmatprep.subr.mxu0 0.0
        %3372 = vmatpush1.msra.mxu0 0.0
        %3373 = vmatprep.subr.mxu0 0.0
        %3374 = vmatpush1.msra.mxu0 0.0
        %3375 = vmatprep.subr.mxu0 0.0
        %3376 = vmatpush1.msra.mxu0 0.0
        %3377 = vmatprep.subr.mxu0 0.0
        %3378 = vmatpush1.msra.mxu0 0.0
        %3379 = vmatprep.subr.mxu0 0.0
        %3380 = vmatpush1.msra.mxu0 0.0
        %3381 = vmatprep.subr.mxu0 0.0
        %3382 = vmatpush1.msra.mxu0 0.0
        %3383 = vmatprep.subr.mxu0 0.0
        %3384 = vmatpush1.msra.mxu0 0.0
        %3385 = vmatprep.subr.mxu0 0.0
        %3386 = vmatpush1.msra.mxu0 0.0
        %3387 = vmatprep.subr.mxu0 0.0
        %3388 = vmatpush1.msra.mxu0 0.0
        %3389 = vmatprep.subr.mxu0 0.0
        %3390 = vmatpush1.msra.mxu0 0.0
        %3391 = vmatprep.subr.mxu0 0.0
        %3392 = vmatpush1.msra.mxu0 0.0
        %3393 = vmatprep.subr.mxu0 0.0
        %3394 = vmatpush1.msra.mxu0 0.0
        %3395 = vmatprep.subr.mxu0 0.0
        %3396 = vmatpush1.msra.mxu0 0.0
        %3397 = vmatprep.subr.mxu0 0.0
        %3398 = vmatpush1.msra.mxu0 0.0
        %3399 = vmatprep.subr.mxu0 0.0
        %3400 = vmatpush1.msra.mxu0 0.0
        %3401 = vmatprep.subr.mxu0 0.0
        %3402 = vmatpush1.msra.mxu0 0.0
        %3403 = vmatprep.mubr.f32.mxu0 0.0
        %v3404 = vand.u32 %v2798, 4294901760
        %3405 = vmatmul.mubr.f32.gmra.mrb[0].mxu0 %v3404
        %v3406 = vpop.f32.mrb[0].mxu0
        %v3407 = vadd.f32 %v3280, %v3406
        %v3408 = vpop.f32.mrb[0].mxu0
        %3409 = vmatprep.mubr.f32.mxu0 0.0
        %v3410 = vand.u32 %v2799, 4294901760
        %3411 = vmatmul.mubr.f32.gmra.mrb[0].mxu0 %v3410
        %v3412 = vpop.f32.mrb[0].mxu0
        %v3413 = vadd.f32 %v3288, %v3412
        %v3414 = vpop.f32.mrb[0].mxu0
        %3415 = vdwg.mxu0
        %3416 = vmatprep.subr.mxu0 0.0
        %v3417 = vand.u32 %v2802, 4294901760
        %3418 = vmatpush1.msra.mxu0 %v3417
        %3419 = vmatprep.subr.mxu0 0.0
        %v3420 = vand.u32 %v2803, 4294901760
        %3421 = vmatpush1.msra.mxu0 %v3420
        %3422 = vmatprep.subr.mxu0 0.0
        %v3423 = vand.u32 %v2804, 4294901760
        %3424 = vmatpush1.msra.mxu0 %v3423
        %3425 = vmatprep.subr.mxu0 0.0
        %v3426 = vand.u32 %v2805, 4294901760
        %3427 = vmatpush1.msra.mxu0 %v3426
        %3428 = vmatprep.subr.mxu0 0.0
        %v3429 = vand.u32 %v2806, 4294901760
        %3430 = vmatpush1.msra.mxu0 %v3429
        %3431 = vmatprep.subr.mxu0 0.0
        %v3432 = vand.u32 %v2807, 4294901760
        %3433 = vmatpush1.msra.mxu0 %v3432
        %3434 = vmatprep.subr.mxu0 0.0
        %v3435 = vand.u32 %v2808, 4294901760
        %3436 = vmatpush1.msra.mxu0 %v3435
        %3437 = vmatprep.subr.mxu0 0.0
        %v3438 = vand.u32 %v2809, 4294901760
        %3439 = vmatpush1.msra.mxu0 %v3438
        %3440 = vmatprep.subr.mxu0 0.0
        %v3441 = vand.u32 %v2810, 4294901760
        %3442 = vmatpush1.msra.mxu0 %v3441
        %3443 = vmatprep.subr.mxu0 0.0
        %v3444 = vand.u32 %v2811, 4294901760
        %3445 = vmatpush1.msra.mxu0 %v3444
        %3446 = vmatprep.subr.mxu0 0.0
        %v3447 = vand.u32 %v2812, 4294901760
        %3448 = vmatpush1.msra.mxu0 %v3447
        %3449 = vmatprep.subr.mxu0 0.0
        %v3450 = vand.u32 %v2813, 4294901760
        %3451 = vmatpush1.msra.mxu0 %v3450
        %3452 = vmatprep.subr.mxu0 0.0
        %v3453 = vand.u32 %v2814, 4294901760
        %3454 = vmatpush1.msra.mxu0 %v3453
        %3455 = vmatprep.subr.mxu0 0.0
        %v3456 = vand.u32 %v2815, 4294901760
        %3457 = vmatpush1.msra.mxu0 %v3456
        %3458 = vmatprep.subr.mxu0 0.0
        %v3459 = vand.u32 %v2816, 4294901760
        %3460 = vmatpush1.msra.mxu0 %v3459
        %3461 = vmatprep.subr.mxu0 0.0
        %v3462 = vand.u32 %v2817, 4294901760
        %3463 = vmatpush1.msra.mxu0 %v3462
        %3464 = vmatprep.subr.mxu0 0.0
        %3465 = vmatpush1.msra.mxu0 0.0
        %3466 = vmatprep.subr.mxu0 0.0
        %3467 = vmatpush1.msra.mxu0 0.0
        %3468 = vmatprep.subr.mxu0 0.0
        %3469 = vmatpush1.msra.mxu0 0.0
        %3470 = vmatprep.subr.mxu0 0.0
        %3471 = vmatpush1.msra.mxu0 0.0
        %3472 = vmatprep.subr.mxu0 0.0
        %3473 = vmatpush1.msra.mxu0 0.0
        %3474 = vmatprep.subr.mxu0 0.0
        %3475 = vmatpush1.msra.mxu0 0.0
        %3476 = vmatprep.subr.mxu0 0.0
        %3477 = vmatpush1.msra.mxu0 0.0
        %3478 = vmatprep.subr.mxu0 0.0
        %3479 = vmatpush1.msra.mxu0 0.0
        %3480 = vmatprep.subr.mxu0 0.0
        %3481 = vmatpush1.msra.mxu0 0.0
        %3482 = vmatprep.subr.mxu0 0.0
        %3483 = vmatpush1.msra.mxu0 0.0
        %3484 = vmatprep.subr.mxu0 0.0
        %3485 = vmatpush1.msra.mxu0 0.0
        %3486 = vmatprep.subr.mxu0 0.0
        %3487 = vmatpush1.msra.mxu0 0.0
        %3488 = vmatprep.subr.mxu0 0.0
        %3489 = vmatpush1.msra.mxu0 0.0
        %3490 = vmatprep.subr.mxu0 0.0
        %3491 = vmatpush1.msra.mxu0 0.0
        %3492 = vmatprep.subr.mxu0 0.0
        %3493 = vmatpush1.msra.mxu0 0.0
        %3494 = vmatprep.subr.mxu0 0.0
        %3495 = vmatpush1.msra.mxu0 0.0
        %3496 = vmatprep.mubr.f32.mxu0 0.0
        %v3497 = vand.u32 %v2798, 4294901760
        %3498 = vmatmul.mubr.f32.gmra.mrb[0].mxu0 %v3497
        %v3499 = vpop.f32.mrb[0].mxu0
        %v3500 = vadd.f32 %v3407, %v3499
        %v3501 = vpop.f32.mrb[0].mxu0
        %3502 = vmatprep.mubr.f32.mxu0 0.0
        %v3503 = vand.u32 %v2799, 4294901760
        %3504 = vmatmul.mubr.f32.gmra.mrb[0].mxu0 %v3503
        %v3505 = vpop.f32.mrb[0].mxu0
        %v3506 = vadd.f32 %v3413, %v3505
        %v3507 = vpop.f32.mrb[0].mxu0
        %3508 = vdwg.mxu0
        %v3509 = vld [vmem:[#allocation2] sm:$0xff]
        %v3510 = vld [vmem:[#allocation2 + $0x8] sm:$0xff]
        %vm3511 = vcmask 523264
        %v3513 = vsel %vm3511, %v3500, 0
        %v3516 = vsel %vm3511, %v3506, 0
        %v3519 = vsel %vm3511, %v3509, 0
        %v3522 = vsel %vm3511, %v3510, 0
        %3524 = vmatprep.subr.mxu0 0.0
        %v3525 = vand.u32 %v3519, 4294901760
        %3526 = vmatpush1.xpose.msra.mxu0 %v3525
        %3527 = vmatprep.subr.mxu0 0.0
        %v3528 = vand.u32 %v3522, 4294901760
        %3529 = vmatpush1.xpose.msra.mxu0 %v3528
        %3530 = vmatprep.subr.mxu0 0.0
        %3531 = vmatpush1.xpose.msra.mxu0 0.0
        %3532 = vmatprep.subr.mxu0 0.0
        %3533 = vmatpush1.xpose.msra.mxu0 0.0
        %3534 = vmatprep.subr.mxu0 0.0
        %3535 = vmatpush1.xpose.msra.mxu0 0.0
        %3536 = vmatprep.subr.mxu0 0.0
        %3537 = vmatpush1.xpose.msra.mxu0 0.0
        %3538 = vmatprep.subr.mxu0 0.0
        %3539 = vmatpush1.xpose.msra.mxu0 0.0
        %3540 = vmatprep.subr.mxu0 0.0
        %3541 = vmatpush1.xpose.msra.mxu0 0.0
        %3542 = vmatprep.subr.mxu0 0.0
        %3543 = vmatpush1.xpose.msra.mxu0 0.0
        %3544 = vmatprep.subr.mxu0 0.0
        %3545 = vmatpush1.xpose.msra.mxu0 0.0
        %3546 = vmatprep.subr.mxu0 0.0
        %3547 = vmatpush1.xpose.msra.mxu0 0.0
        %3548 = vmatprep.subr.mxu0 0.0
        %3549 = vmatpush1.xpose.msra.mxu0 0.0
        %3550 = vmatprep.subr.mxu0 0.0
        %3551 = vmatpush1.xpose.msra.mxu0 0.0
        %3552 = vmatprep.subr.mxu0 0.0
        %3553 = vmatpush1.xpose.msra.mxu0 0.0
        %3554 = vmatprep.subr.mxu0 0.0
        %3555 = vmatpush1.xpose.msra.mxu0 0.0
        %3556 = vmatprep.subr.mxu0 0.0
        %3557 = vmatpush1.xpose.msra.mxu0 0.0
        %3558 = vmatprep.subr.mxu0 0.0
        %3559 = vmatpush1.xpose.msra.mxu0 0.0
        %3560 = vmatprep.subr.mxu0 0.0
        %3561 = vmatpush1.xpose.msra.mxu0 0.0
        %3562 = vmatprep.subr.mxu0 0.0
        %3563 = vmatpush1.xpose.msra.mxu0 0.0
        %3564 = vmatprep.subr.mxu0 0.0
        %3565 = vmatpush1.xpose.msra.mxu0 0.0
        %3566 = vmatprep.subr.mxu0 0.0
        %3567 = vmatpush1.xpose.msra.mxu0 0.0
        %3568 = vmatprep.subr.mxu0 0.0
        %3569 = vmatpush1.xpose.msra.mxu0 0.0
        %3570 = vmatprep.subr.mxu0 0.0
        %3571 = vmatpush1.xpose.msra.mxu0 0.0
        %3572 = vmatprep.subr.mxu0 0.0
        %3573 = vmatpush1.xpose.msra.mxu0 0.0
        %3574 = vmatprep.subr.mxu0 0.0
        %3575 = vmatpush1.xpose.msra.mxu0 0.0
        %3576 = vmatprep.subr.mxu0 0.0
        %3577 = vmatpush1.xpose.msra.mxu0 0.0
        %3578 = vmatprep.subr.mxu0 0.0
        %3579 = vmatpush1.xpose.msra.mxu0 0.0
        %3580 = vmatprep.subr.mxu0 0.0
        %3581 = vmatpush1.xpose.msra.mxu0 0.0
        %3582 = vmatprep.subr.mxu0 0.0
        %3583 = vmatpush1.xpose.msra.mxu0 0.0
        %3584 = vmatprep.subr.mxu0 0.0
        %3585 = vmatpush1.xpose.msra.mxu0 0.0
        %3586 = vmatprep.subr.mxu0 0.0
        %3587 = vmatpush1.xpose.msra.mxu0 0.0
        %3588 = vmatprep.subr.mxu0 0.0
        %3589 = vmatpush1.xpose.msra.mxu0 0.0
        %3590 = vmatprep.mubr.f32.mxu0 0.0
        %v3591 = vand.u32 %v3513, 4294901760
        %v3592 = vsub.f32 %v3513, %v3591
        %v3593 = vand.u32 %v3592, 4294901760
        %v3594 = vsub.f32 %v3592, %v3593
        %v3595 = vand.u32 %v3594, 4294901760
        %3596 = vmatmul.mubr.f32.gmra.mrb[0].mxu0 %v3595
        %v3597 = vpop.f32.mrb[0].mxu0
        %v3598 = vadd.f32 0.0, %v3597
        %v3599 = vpop.f32.mrb[0].mxu0
        %3600 = vmatprep.mubr.f32.mxu0 0.0
        %v3601 = vand.u32 %v3516, 4294901760
        %v3602 = vsub.f32 %v3516, %v3601
        %v3603 = vand.u32 %v3602, 4294901760
        %v3604 = vsub.f32 %v3602, %v3603
        %v3605 = vand.u32 %v3604, 4294901760
        %3606 = vmatmul.mubr.f32.gmra.mrb[0].mxu0 %v3605
        %v3607 = vpop.f32.mrb[0].mxu0
        %v3608 = vadd.f32 0.0, %v3607
        %v3609 = vpop.f32.mrb[0].mxu0
        %3610 = vdwg.mxu0
        %3611 = vmatprep.subr.mxu0 0.0
        %v3612 = vand.u32 %v3519, 4294901760
        %v3613 = vsub.f32 %v3519, %v3612
        %v3614 = vand.u32 %v3613, 4294901760
        %v3615 = vsub.f32 %v3613, %v3614
        %v3616 = vand.u32 %v3615, 4294901760
        %3617 = vmatpush1.xpose.msra.mxu0 %v3616
        %3618 = vmatprep.subr.mxu0 0.0
        %v3619 = vand.u32 %v3522, 4294901760
        %v3620 = vsub.f32 %v3522, %v3619
        %v3621 = vand.u32 %v3620, 4294901760
        %v3622 = vsub.f32 %v3620, %v3621
        %v3623 = vand.u32 %v3622, 4294901760
        %3624 = vmatpush1.xpose.msra.mxu0 %v3623
        %3625 = vmatprep.subr.mxu0 0.0
        %3626 = vmatpush1.xpose.msra.mxu0 0.0
        %3627 = vmatprep.subr.mxu0 0.0
        %3628 = vmatpush1.xpose.msra.mxu0 0.0
        %3629 = vmatprep.subr.mxu0 0.0
        %3630 = vmatpush1.xpose.msra.mxu0 0.0
        %3631 = vmatprep.subr.mxu0 0.0
        %3632 = vmatpush1.xpose.msra.mxu0 0.0
        %3633 = vmatprep.subr.mxu0 0.0
        %3634 = vmatpush1.xpose.msra.mxu0 0.0
        %3635 = vmatprep.subr.mxu0 0.0
        %3636 = vmatpush1.xpose.msra.mxu0 0.0
        %3637 = vmatprep.subr.mxu0 0.0
        %3638 = vmatpush1.xpose.msra.mxu0 0.0
        %3639 = vmatprep.subr.mxu0 0.0
        %3640 = vmatpush1.xpose.msra.mxu0 0.0
        %3641 = vmatprep.subr.mxu0 0.0
        %3642 = vmatpush1.xpose.msra.mxu0 0.0
        %3643 = vmatprep.subr.mxu0 0.0
        %3644 = vmatpush1.xpose.msra.mxu0 0.0
        %3645 = vmatprep.subr.mxu0 0.0
        %3646 = vmatpush1.xpose.msra.mxu0 0.0
        %3647 = vmatprep.subr.mxu0 0.0
        %3648 = vmatpush1.xpose.msra.mxu0 0.0
        %3649 = vmatprep.subr.mxu0 0.0
        %3650 = vmatpush1.xpose.msra.mxu0 0.0
        %3651 = vmatprep.subr.mxu0 0.0
        %3652 = vmatpush1.xpose.msra.mxu0 0.0
        %3653 = vmatprep.subr.mxu0 0.0
        %3654 = vmatpush1.xpose.msra.mxu0 0.0
        %3655 = vmatprep.subr.mxu0 0.0
        %3656 = vmatpush1.xpose.msra.mxu0 0.0
        %3657 = vmatprep.subr.mxu0 0.0
        %3658 = vmatpush1.xpose.msra.mxu0 0.0
        %3659 = vmatprep.subr.mxu0 0.0
        %3660 = vmatpush1.xpose.msra.mxu0 0.0
        %3661 = vmatprep.subr.mxu0 0.0
        %3662 = vmatpush1.xpose.msra.mxu0 0.0
        %3663 = vmatprep.subr.mxu0 0.0
        %3664 = vmatpush1.xpose.msra.mxu0 0.0
        %3665 = vmatprep.subr.mxu0 0.0
        %3666 = vmatpush1.xpose.msra.mxu0 0.0
        %3667 = vmatprep.subr.mxu0 0.0
        %3668 = vmatpush1.xpose.msra.mxu0 0.0
        %3669 = vmatprep.subr.mxu0 0.0
        %3670 = vmatpush1.xpose.msra.mxu0 0.0
        %3671 = vmatprep.subr.mxu0 0.0
        %3672 = vmatpush1.xpose.msra.mxu0 0.0
        %3673 = vmatprep.subr.mxu0 0.0
        %3674 = vmatpush1.xpose.msra.mxu0 0.0
        %3675 = vmatprep.subr.mxu0 0.0
        %3676 = vmatpush1.xpose.msra.mxu0 0.0
        %3677 = vmatprep.subr.mxu0 0.0
        %3678 = vmatpush1.xpose.msra.mxu0 0.0
        %3679 = vmatprep.subr.mxu0 0.0
        %3680 = vmatpush1.xpose.msra.mxu0 0.0
        %3681 = vmatprep.subr.mxu0 0.0
        %3682 = vmatpush1.xpose.msra.mxu0 0.0
        %3683 = vmatprep.subr.mxu0 0.0
        %3684 = vmatpush1.xpose.msra.mxu0 0.0
        %3685 = vmatprep.mubr.f32.mxu0 0.0
        %v3686 = vand.u32 %v3513, 4294901760
        %3687 = vmatmul.mubr.f32.gmra.mrb[0].mxu0 %v3686
        %v3688 = vpop.f32.mrb[0].mxu0
        %v3689 = vadd.f32 %v3598, %v3688
        %v3690 = vpop.f32.mrb[0].mxu0
        %3691 = vmatprep.mubr.f32.mxu0 0.0
        %v3692 = vand.u32 %v3516, 4294901760
        %3693 = vmatmul.mubr.f32.gmra.mrb[0].mxu0 %v3692
        %v3694 = vpop.f32.mrb[0].mxu0
        %v3695 = vadd.f32 %v3608, %v3694
        %v3696 = vpop.f32.mrb[0].mxu0
        %3697 = vdwg.mxu0
        %3698 = vmatprep.subr.mxu0 0.0
        %v3699 = vand.u32 %v3519, 4294901760
        %v3700 = vsub.f32 %v3519, %v3699
        %3701 = vmatpush1.xpose.msra.mxu0 %v3700
        %3702 = vmatprep.subr.mxu0 0.0
        %v3703 = vand.u32 %v3522, 4294901760
        %v3704 = vsub.f32 %v3522, %v3703
        %3705 = vmatpush1.xpose.msra.mxu0 %v3704
        %3706 = vmatprep.subr.mxu0 0.0
        %3707 = vmatpush1.xpose.msra.mxu0 0.0
        %3708 = vmatprep.subr.mxu0 0.0
        %3709 = vmatpush1.xpose.msra.mxu0 0.0
        %3710 = vmatprep.subr.mxu0 0.0
        %3711 = vmatpush1.xpose.msra.mxu0 0.0
        %3712 = vmatprep.subr.mxu0 0.0
        %3713 = vmatpush1.xpose.msra.mxu0 0.0
        %3714 = vmatprep.subr.mxu0 0.0
        %3715 = vmatpush1.xpose.msra.mxu0 0.0
        %3716 = vmatprep.subr.mxu0 0.0
        %3717 = vmatpush1.xpose.msra.mxu0 0.0
        %3718 = vmatprep.subr.mxu0 0.0
        %3719 = vmatpush1.xpose.msra.mxu0 0.0
        %3720 = vmatprep.subr.mxu0 0.0
        %3721 = vmatpush1.xpose.msra.mxu0 0.0
        %3722 = vmatprep.subr.mxu0 0.0
        %3723 = vmatpush1.xpose.msra.mxu0 0.0
        %3724 = vmatprep.subr.mxu0 0.0
        %3725 = vmatpush1.xpose.msra.mxu0 0.0
        %3726 = vmatprep.subr.mxu0 0.0
        %3727 = vmatpush1.xpose.msra.mxu0 0.0
        %3728 = vmatprep.subr.mxu0 0.0
        %3729 = vmatpush1.xpose.msra.mxu0 0.0
        %3730 = vmatprep.subr.mxu0 0.0
        %3731 = vmatpush1.xpose.msra.mxu0 0.0
        %3732 = vmatprep.subr.mxu0 0.0
        %3733 = vmatpush1.xpose.msra.mxu0 0.0
        %3734 = vmatprep.subr.mxu0 0.0
        %3735 = vmatpush1.xpose.msra.mxu0 0.0
        %3736 = vmatprep.subr.mxu0 0.0
        %3737 = vmatpush1.xpose.msra.mxu0 0.0
        %3738 = vmatprep.subr.mxu0 0.0
        %3739 = vmatpush1.xpose.msra.mxu0 0.0
        %3740 = vmatprep.subr.mxu0 0.0
        %3741 = vmatpush1.xpose.msra.mxu0 0.0
        %3742 = vmatprep.subr.mxu0 0.0
        %3743 = vmatpush1.xpose.msra.mxu0 0.0
        %3744 = vmatprep.subr.mxu0 0.0
        %3745 = vmatpush1.xpose.msra.mxu0 0.0
        %3746 = vmatprep.subr.mxu0 0.0
        %3747 = vmatpush1.xpose.msra.mxu0 0.0
        %3748 = vmatprep.subr.mxu0 0.0
        %3749 = vmatpush1.xpose.msra.mxu0 0.0
        %3750 = vmatprep.subr.mxu0 0.0
        %3751 = vmatpush1.xpose.msra.mxu0 0.0
        %3752 = vmatprep.subr.mxu0 0.0
        %3753 = vmatpush1.xpose.msra.mxu0 0.0
        %3754 = vmatprep.subr.mxu0 0.0
        %3755 = vmatpush1.xpose.msra.mxu0 0.0
        %3756 = vmatprep.subr.mxu0 0.0
        %3757 = vmatpush1.xpose.msra.mxu0 0.0
        %3758 = vmatprep.subr.mxu0 0.0
        %3759 = vmatpush1.xpose.msra.mxu0 0.0
        %3760 = vmatprep.subr.mxu0 0.0
        %3761 = vmatpush1.xpose.msra.mxu0 0.0
        %3762 = vmatprep.subr.mxu0 0.0
        %3763 = vmatpush1.xpose.msra.mxu0 0.0
        %3764 = vmatprep.subr.mxu0 0.0
        %3765 = vmatpush1.xpose.msra.mxu0 0.0
        %3766 = vmatprep.mubr.f32.mxu0 0.0
        %v3767 = vand.u32 %v3513, 4294901760
        %v3768 = vsub.f32 %v3513, %v3767
        %3769 = vmatmul.mubr.f32.gmra.mrb[0].mxu0 %v3768
        %v3770 = vpop.f32.mrb[0].mxu0
        %v3771 = vadd.f32 %v3689, %v3770
        %v3772 = vpop.f32.mrb[0].mxu0
        %3773 = vmatprep.mubr.f32.mxu0 0.0
        %v3774 = vand.u32 %v3516, 4294901760
        %v3775 = vsub.f32 %v3516, %v3774
        %3776 = vmatmul.mubr.f32.gmra.mrb[0].mxu0 %v3775
        %v3777 = vpop.f32.mrb[0].mxu0
        %v3778 = vadd.f32 %v3695, %v3777
        %v3779 = vpop.f32.mrb[0].mxu0
        %3780 = vdwg.mxu0
        %3781 = vmatprep.subr.mxu0 0.0
        %v3782 = vand.u32 %v3519, 4294901760
        %3783 = vmatpush1.xpose.msra.mxu0 %v3782
        %3784 = vmatprep.subr.mxu0 0.0
        %v3785 = vand.u32 %v3522, 4294901760
        %3786 = vmatpush1.xpose.msra.mxu0 %v3785
        %3787 = vmatprep.subr.mxu0 0.0
        %3788 = vmatpush1.xpose.msra.mxu0 0.0
        %3789 = vmatprep.subr.mxu0 0.0
        %3790 = vmatpush1.xpose.msra.mxu0 0.0
        %3791 = vmatprep.subr.mxu0 0.0
        %3792 = vmatpush1.xpose.msra.mxu0 0.0
        %3793 = vmatprep.subr.mxu0 0.0
        %3794 = vmatpush1.xpose.msra.mxu0 0.0
        %3795 = vmatprep.subr.mxu0 0.0
        %3796 = vmatpush1.xpose.msra.mxu0 0.0
        %3797 = vmatprep.subr.mxu0 0.0
        %3798 = vmatpush1.xpose.msra.mxu0 0.0
        %3799 = vmatprep.subr.mxu0 0.0
        %3800 = vmatpush1.xpose.msra.mxu0 0.0
        %3801 = vmatprep.subr.mxu0 0.0
        %3802 = vmatpush1.xpose.msra.mxu0 0.0
        %3803 = vmatprep.subr.mxu0 0.0
        %3804 = vmatpush1.xpose.msra.mxu0 0.0
        %3805 = vmatprep.subr.mxu0 0.0
        %3806 = vmatpush1.xpose.msra.mxu0 0.0
        %3807 = vmatprep.subr.mxu0 0.0
        %3808 = vmatpush1.xpose.msra.mxu0 0.0
        %3809 = vmatprep.subr.mxu0 0.0
        %3810 = vmatpush1.xpose.msra.mxu0 0.0
        %3811 = vmatprep.subr.mxu0 0.0
        %3812 = vmatpush1.xpose.msra.mxu0 0.0
        %3813 = vmatprep.subr.mxu0 0.0
        %3814 = vmatpush1.xpose.msra.mxu0 0.0
        %3815 = vmatprep.subr.mxu0 0.0
        %3816 = vmatpush1.xpose.msra.mxu0 0.0
        %3817 = vmatprep.subr.mxu0 0.0
        %3818 = vmatpush1.xpose.msra.mxu0 0.0
        %3819 = vmatprep.subr.mxu0 0.0
        %3820 = vmatpush1.xpose.msra.mxu0 0.0
        %3821 = vmatprep.subr.mxu0 0.0
        %3822 = vmatpush1.xpose.msra.mxu0 0.0
        %3823 = vmatprep.subr.mxu0 0.0
        %3824 = vmatpush1.xpose.msra.mxu0 0.0
        %3825 = vmatprep.subr.mxu0 0.0
        %3826 = vmatpush1.xpose.msra.mxu0 0.0
        %3827 = vmatprep.subr.mxu0 0.0
        %3828 = vmatpush1.xpose.msra.mxu0 0.0
        %3829 = vmatprep.subr.mxu0 0.0
        %3830 = vmatpush1.xpose.msra.mxu0 0.0
        %3831 = vmatprep.subr.mxu0 0.0
        %3832 = vmatpush1.xpose.msra.mxu0 0.0
        %3833 = vmatprep.subr.mxu0 0.0
        %3834 = vmatpush1.xpose.msra.mxu0 0.0
        %3835 = vmatprep.subr.mxu0 0.0
        %3836 = vmatpush1.xpose.msra.mxu0 0.0
        %3837 = vmatprep.subr.mxu0 0.0
        %3838 = vmatpush1.xpose.msra.mxu0 0.0
        %3839 = vmatprep.subr.mxu0 0.0
        %3840 = vmatpush1.xpose.msra.mxu0 0.0
        %3841 = vmatprep.subr.mxu0 0.0
        %3842 = vmatpush1.xpose.msra.mxu0 0.0
        %3843 = vmatprep.subr.mxu0 0.0
        %3844 = vmatpush1.xpose.msra.mxu0 0.0
        %3845 = vmatprep.subr.mxu0 0.0
        %3846 = vmatpush1.xpose.msra.mxu0 0.0
        %3847 = vmatprep.mubr.f32.mxu0 0.0
        %v3848 = vand.u32 %v3513, 4294901760
        %v3849 = vsub.f32 %v3513, %v3848
        %v3850 = vand.u32 %v3849, 4294901760
        %3851 = vmatmul.mubr.f32.gmra.mrb[0].mxu0 %v3850
        %v3852 = vpop.f32.mrb[0].mxu0
        %v3853 = vadd.f32 %v3771, %v3852
        %v3854 = vpop.f32.mrb[0].mxu0
        %3855 = vmatprep.mubr.f32.mxu0 0.0
        %v3856 = vand.u32 %v3516, 4294901760
        %v3857 = vsub.f32 %v3516, %v3856
        %v3858 = vand.u32 %v3857, 4294901760
        %3859 = vmatmul.mubr.f32.gmra.mrb[0].mxu0 %v3858
        %v3860 = vpop.f32.mrb[0].mxu0
        %v3861 = vadd.f32 %v3778, %v3860
        %v3862 = vpop.f32.mrb[0].mxu0
        %3863 = vdwg.mxu0
        %3864 = vmatprep.subr.mxu0 0.0
        %v3865 = vand.u32 %v3519, 4294901760
        %v3866 = vsub.f32 %v3519, %v3865
        %v3867 = vand.u32 %v3866, 4294901760
        %3868 = vmatpush1.xpose.msra.mxu0 %v3867
        %3869 = vmatprep.subr.mxu0 0.0
        %v3870 = vand.u32 %v3522, 4294901760
        %v3871 = vsub.f32 %v3522, %v3870
        %v3872 = vand.u32 %v3871, 4294901760
        %3873 = vmatpush1.xpose.msra.mxu0 %v3872
        %3874 = vmatprep.subr.mxu0 0.0
        %3875 = vmatpush1.xpose.msra.mxu0 0.0
        %3876 = vmatprep.subr.mxu0 0.0
        %3877 = vmatpush1.xpose.msra.mxu0 0.0
        %3878 = vmatprep.subr.mxu0 0.0
        %3879 = vmatpush1.xpose.msra.mxu0 0.0
        %3880 = vmatprep.subr.mxu0 0.0
        %3881 = vmatpush1.xpose.msra.mxu0 0.0
        %3882 = vmatprep.subr.mxu0 0.0
        %3883 = vmatpush1.xpose.msra.mxu0 0.0
        %3884 = vmatprep.subr.mxu0 0.0
        %3885 = vmatpush1.xpose.msra.mxu0 0.0
        %3886 = vmatprep.subr.mxu0 0.0
        %3887 = vmatpush1.xpose.msra.mxu0 0.0
        %3888 = vmatprep.subr.mxu0 0.0
        %3889 = vmatpush1.xpose.msra.mxu0 0.0
        %3890 = vmatprep.subr.mxu0 0.0
        %3891 = vmatpush1.xpose.msra.mxu0 0.0
        %3892 = vmatprep.subr.mxu0 0.0
        %3893 = vmatpush1.xpose.msra.mxu0 0.0
        %3894 = vmatprep.subr.mxu0 0.0
        %3895 = vmatpush1.xpose.msra.mxu0 0.0
        %3896 = vmatprep.subr.mxu0 0.0
        %3897 = vmatpush1.xpose.msra.mxu0 0.0
        %3898 = vmatprep.subr.mxu0 0.0
        %3899 = vmatpush1.xpose.msra.mxu0 0.0
        %3900 = vmatprep.subr.mxu0 0.0
        %3901 = vmatpush1.xpose.msra.mxu0 0.0
        %3902 = vmatprep.subr.mxu0 0.0
        %3903 = vmatpush1.xpose.msra.mxu0 0.0
        %3904 = vmatprep.subr.mxu0 0.0
        %3905 = vmatpush1.xpose.msra.mxu0 0.0
        %3906 = vmatprep.subr.mxu0 0.0
        %3907 = vmatpush1.xpose.msra.mxu0 0.0
        %3908 = vmatprep.subr.mxu0 0.0
        %3909 = vmatpush1.xpose.msra.mxu0 0.0
        %3910 = vmatprep.subr.mxu0 0.0
        %3911 = vmatpush1.xpose.msra.mxu0 0.0
        %3912 = vmatprep.subr.mxu0 0.0
        %3913 = vmatpush1.xpose.msra.mxu0 0.0
        %3914 = vmatprep.subr.mxu0 0.0
        %3915 = vmatpush1.xpose.msra.mxu0 0.0
        %3916 = vmatprep.subr.mxu0 0.0
        %3917 = vmatpush1.xpose.msra.mxu0 0.0
        %3918 = vmatprep.subr.mxu0 0.0
        %3919 = vmatpush1.xpose.msra.mxu0 0.0
        %3920 = vmatprep.subr.mxu0 0.0
        %3921 = vmatpush1.xpose.msra.mxu0 0.0
        %3922 = vmatprep.subr.mxu0 0.0
        %3923 = vmatpush1.xpose.msra.mxu0 0.0
        %3924 = vmatprep.subr.mxu0 0.0
        %3925 = vmatpush1.xpose.msra.mxu0 0.0
        %3926 = vmatprep.subr.mxu0 0.0
        %3927 = vmatpush1.xpose.msra.mxu0 0.0
        %3928 = vmatprep.subr.mxu0 0.0
        %3929 = vmatpush1.xpose.msra.mxu0 0.0
        %3930 = vmatprep.subr.mxu0 0.0
        %3931 = vmatpush1.xpose.msra.mxu0 0.0
        %3932 = vmatprep.subr.mxu0 0.0
        %3933 = vmatpush1.xpose.msra.mxu0 0.0
        %3934 = vmatprep.mubr.f32.mxu0 0.0
        %v3935 = vand.u32 %v3513, 4294901760
        %3936 = vmatmul.mubr.f32.gmra.mrb[0].mxu0 %v3935
        %v3937 = vpop.f32.mrb[0].mxu0
        %v3938 = vadd.f32 %v3853, %v3937
        %v3939 = vpop.f32.mrb[0].mxu0
        %3940 = vmatprep.mubr.f32.mxu0 0.0
        %v3941 = vand.u32 %v3516, 4294901760
        %3942 = vmatmul.mubr.f32.gmra.mrb[0].mxu0 %v3941
        %v3943 = vpop.f32.mrb[0].mxu0
        %v3944 = vadd.f32 %v3861, %v3943
        %v3945 = vpop.f32.mrb[0].mxu0
        %3946 = vdwg.mxu0
        %3947 = vmatprep.subr.mxu0 0.0
        %v3948 = vand.u32 %v3519, 4294901760
        %3949 = vmatpush1.xpose.msra.mxu0 %v3948
        %3950 = vmatprep.subr.mxu0 0.0
        %v3951 = vand.u32 %v3522, 4294901760
        %3952 = vmatpush1.xpose.msra.mxu0 %v3951
        %3953 = vmatprep.subr.mxu0 0.0
        %3954 = vmatpush1.xpose.msra.mxu0 0.0
        %3955 = vmatprep.subr.mxu0 0.0
        %3956 = vmatpush1.xpose.msra.mxu0 0.0
        %3957 = vmatprep.subr.mxu0 0.0
        %3958 = vmatpush1.xpose.msra.mxu0 0.0
        %3959 = vmatprep.subr.mxu0 0.0
        %3960 = vmatpush1.xpose.msra.mxu0 0.0
        %3961 = vmatprep.subr.mxu0 0.0
        %3962 = vmatpush1.xpose.msra.mxu0 0.0
        %3963 = vmatprep.subr.mxu0 0.0
        %3964 = vmatpush1.xpose.msra.mxu0 0.0
        %3965 = vmatprep.subr.mxu0 0.0
        %3966 = vmatpush1.xpose.msra.mxu0 0.0
        %3967 = vmatprep.subr.mxu0 0.0
        %3968 = vmatpush1.xpose.msra.mxu0 0.0
        %3969 = vmatprep.subr.mxu0 0.0
        %3970 = vmatpush1.xpose.msra.mxu0 0.0
        %3971 = vmatprep.subr.mxu0 0.0
        %3972 = vmatpush1.xpose.msra.mxu0 0.0
        %3973 = vmatprep.subr.mxu0 0.0
        %3974 = vmatpush1.xpose.msra.mxu0 0.0
        %3975 = vmatprep.subr.mxu0 0.0
        %3976 = vmatpush1.xpose.msra.mxu0 0.0
        %3977 = vmatprep.subr.mxu0 0.0
        %3978 = vmatpush1.xpose.msra.mxu0 0.0
        %3979 = vmatprep.subr.mxu0 0.0
        %3980 = vmatpush1.xpose.msra.mxu0 0.0
        %3981 = vmatprep.subr.mxu0 0.0
        %3982 = vmatpush1.xpose.msra.mxu0 0.0
        %3983 = vmatprep.subr.mxu0 0.0
        %3984 = vmatpush1.xpose.msra.mxu0 0.0
        %3985 = vmatprep.subr.mxu0 0.0
        %3986 = vmatpush1.xpose.msra.mxu0 0.0
        %3987 = vmatprep.subr.mxu0 0.0
        %3988 = vmatpush1.xpose.msra.mxu0 0.0
        %3989 = vmatprep.subr.mxu0 0.0
        %3990 = vmatpush1.xpose.msra.mxu0 0.0
        %3991 = vmatprep.subr.mxu0 0.0
        %3992 = vmatpush1.xpose.msra.mxu0 0.0
        %3993 = vmatprep.subr.mxu0 0.0
        %3994 = vmatpush1.xpose.msra.mxu0 0.0
        %3995 = vmatprep.subr.mxu0 0.0
        %3996 = vmatpush1.xpose.msra.mxu0 0.0
        %3997 = vmatprep.subr.mxu0 0.0
        %3998 = vmatpush1.xpose.msra.mxu0 0.0
        %3999 = vmatprep.subr.mxu0 0.0
        %4000 = vmatpush1.xpose.msra.mxu0 0.0
        %4001 = vmatprep.subr.mxu0 0.0
        %4002 = vmatpush1.xpose.msra.mxu0 0.0
        %4003 = vmatprep.subr.mxu0 0.0
        %4004 = vmatpush1.xpose.msra.mxu0 0.0
        %4005 = vmatprep.subr.mxu0 0.0
        %4006 = vmatpush1.xpose.msra.mxu0 0.0
        %4007 = vmatprep.subr.mxu0 0.0
        %4008 = vmatpush1.xpose.msra.mxu0 0.0
        %4009 = vmatprep.subr.mxu0 0.0
        %4010 = vmatpush1.xpose.msra.mxu0 0.0
        %4011 = vmatprep.subr.mxu0 0.0
        %4012 = vmatpush1.xpose.msra.mxu0 0.0
        %4013 = vmatprep.mubr.f32.mxu0 0.0
        %v4014 = vand.u32 %v3513, 4294901760
        %4015 = vmatmul.mubr.f32.gmra.mrb[0].mxu0 %v4014
        %v4016 = vpop.f32.mrb[0].mxu0
        %v4017 = vadd.f32 %v3938, %v4016
        %v4018 = vpop.f32.mrb[0].mxu0
        %4019 = vmatprep.mubr.f32.mxu0 0.0
        %v4020 = vand.u32 %v3516, 4294901760
        %4021 = vmatmul.mubr.f32.gmra.mrb[0].mxu0 %v4020
        %v4022 = vpop.f32.mrb[0].mxu0
        %v4023 = vadd.f32 %v3944, %v4022
        %v4024 = vpop.f32.mrb[0].mxu0
        %4025 = vdwg.mxu0
        %v4026 = vmul.f32 %v4017, %v2800
        %v4027 = vmul.f32 %v4023, %v2801
        %vm4028 = vcmask 130048
        %v4029 = vsel %vm4028, %v4026, -inf
        %4030 = vmax.xlane.f32.xlu0 %v4029
        %v4031 = vpop.xlane.xlu0 %4030
        %v4032 = vsel %vm4028, %v4027, -inf
        %4033 = vmax.xlane.f32.xlu0 %v4032
        %v4034 = vpop.xlane.xlu0 %4033
        %v4035 = vsub.f32 %v4026, %v4031
        %v4036 = vsub.f32 %v4027, %v4034
        %v4037 = vmul.f32 %v4035, 1.442695
        %v4038 = vpow.pop %v4037
        %v4039 = vmul.f32 %v4036, 1.442695
        %v4040 = vpow.pop %v4039
        %v4041 = vsel %vm4028, %v4038, 0.0
        %4042 = vadd.xlane.f32.xlu0 %v4041
        %v4043 = vpop.xlane.xlu0 %4042
        %v4044 = vsel %vm4028, %v4040, 0.0
        %4045 = vadd.xlane.f32.xlu0 %v4044
        %v4046 = vpop.xlane.xlu0 %4045
        %v4047 = vld [vmem:[#allocation4] sm:$0xff]
        %v4048 = vld [vmem:[#allocation4 + $0x8] sm:$0xff]
        %v4050 = vsel %vm4028, %v4038, 0
        %v4053 = vsel %vm4028, %v4040, 0
        %4055 = vmatprep.subr.mxu0 0.0
        %v4056 = vand.u32 %v4047, 4294901760
        %4057 = vmatpush1.msra.mxu0 %v4056
        %4058 = vmatprep.subr.mxu0 0.0
        %v4059 = vand.u32 %v4048, 4294901760
        %4060 = vmatpush1.msra.mxu0 %v4059
        %4061 = vmatprep.subr.mxu0 0.0
        %4062 = vmatpush1.msra.mxu0 0.0
        %4063 = vmatprep.subr.mxu0 0.0
        %4064 = vmatpush1.msra.mxu0 0.0
        %4065 = vmatprep.subr.mxu0 0.0
        %4066 = vmatpush1.msra.mxu0 0.0
        %4067 = vmatprep.subr.mxu0 0.0
        %4068 = vmatpush1.msra.mxu0 0.0
        %4069 = vmatprep.subr.mxu0 0.0
        %4070 = vmatpush1.msra.mxu0 0.0
        %4071 = vmatprep.subr.mxu0 0.0
        %4072 = vmatpush1.msra.mxu0 0.0
        %4073 = vmatprep.subr.mxu0 0.0
        %4074 = vmatpush1.msra.mxu0 0.0
        %4075 = vmatprep.subr.mxu0 0.0
        %4076 = vmatpush1.msra.mxu0 0.0
        %4077 = vmatprep.subr.mxu0 0.0
        %4078 = vmatpush1.msra.mxu0 0.0
        %4079 = vmatprep.subr.mxu0 0.0
        %4080 = vmatpush1.msra.mxu0 0.0
        %4081 = vmatprep.subr.mxu0 0.0
        %4082 = vmatpush1.msra.mxu0 0.0
        %4083 = vmatprep.subr.mxu0 0.0
        %4084 = vmatpush1.msra.mxu0 0.0
        %4085 = vmatprep.subr.mxu0 0.0
        %4086 = vmatpush1.msra.mxu0 0.0
        %4087 = vmatprep.subr.mxu0 0.0
        %4088 = vmatpush1.msra.mxu0 0.0
        %4089 = vmatprep.subr.mxu0 0.0
        %4090 = vmatpush1.msra.mxu0 0.0
        %4091 = vmatprep.subr.mxu0 0.0
        %4092 = vmatpush1.msra.mxu0 0.0
        %4093 = vmatprep.subr.mxu0 0.0
        %4094 = vmatpush1.msra.mxu0 0.0
        %4095 = vmatprep.subr.mxu0 0.0
        %4096 = vmatpush1.msra.mxu0 0.0
        %4097 = vmatprep.subr.mxu0 0.0
        %4098 = vmatpush1.msra.mxu0 0.0
        %4099 = vmatprep.subr.mxu0 0.0
        %4100 = vmatpush1.msra.mxu0 0.0
        %4101 = vmatprep.subr.mxu0 0.0
        %4102 = vmatpush1.msra.mxu0 0.0
        %4103 = vmatprep.subr.mxu0 0.0
        %4104 = vmatpush1.msra.mxu0 0.0
        %4105 = vmatprep.subr.mxu0 0.0
        %4106 = vmatpush1.msra.mxu0 0.0
        %4107 = vmatprep.subr.mxu0 0.0
        %4108 = vmatpush1.msra.mxu0 0.0
        %4109 = vmatprep.subr.mxu0 0.0
        %4110 = vmatpush1.msra.mxu0 0.0
        %4111 = vmatprep.subr.mxu0 0.0
        %4112 = vmatpush1.msra.mxu0 0.0
        %4113 = vmatprep.subr.mxu0 0.0
        %4114 = vmatpush1.msra.mxu0 0.0
        %4115 = vmatprep.subr.mxu0 0.0
        %4116 = vmatpush1.msra.mxu0 0.0
        %4117 = vmatprep.subr.mxu0 0.0
        %4118 = vmatpush1.msra.mxu0 0.0
        %4119 = vmatprep.subr.mxu0 0.0
        %4120 = vmatpush1.msra.mxu0 0.0
        %4121 = vmatprep.mubr.f32.mxu0 0.0
        %v4122 = vand.u32 %v4050, 4294901760
        %v4123 = vsub.f32 %v4050, %v4122
        %v4124 = vand.u32 %v4123, 4294901760
        %v4125 = vsub.f32 %v4123, %v4124
        %v4126 = vand.u32 %v4125, 4294901760
        %4127 = vmatmul.mubr.f32.gmra.mrb[0].mxu0 %v4126
        %v4128 = vpop.f32.mrb[0].mxu0
        %v4129 = vadd.f32 0.0, %v4128
        %v4130 = vpop.f32.mrb[0].mxu0
        %4131 = vmatprep.mubr.f32.mxu0 0.0
        %v4132 = vand.u32 %v4053, 4294901760
        %v4133 = vsub.f32 %v4053, %v4132
        %v4134 = vand.u32 %v4133, 4294901760
        %v4135 = vsub.f32 %v4133, %v4134
        %v4136 = vand.u32 %v4135, 4294901760
        %4137 = vmatmul.mubr.f32.gmra.mrb[0].mxu0 %v4136
        %v4138 = vpop.f32.mrb[0].mxu0
        %v4139 = vadd.f32 0.0, %v4138
        %v4140 = vpop.f32.mrb[0].mxu0
        %4141 = vdwg.mxu0
        %4142 = vmatprep.subr.mxu0 0.0
        %v4143 = vand.u32 %v4047, 4294901760
        %v4144 = vsub.f32 %v4047, %v4143
        %v4145 = vand.u32 %v4144, 4294901760
        %v4146 = vsub.f32 %v4144, %v4145
        %v4147 = vand.u32 %v4146, 4294901760
        %4148 = vmatpush1.msra.mxu0 %v4147
        %4149 = vmatprep.subr.mxu0 0.0
        %v4150 = vand.u32 %v4048, 4294901760
        %v4151 = vsub.f32 %v4048, %v4150
        %v4152 = vand.u32 %v4151, 4294901760
        %v4153 = vsub.f32 %v4151, %v4152
        %v4154 = vand.u32 %v4153, 4294901760
        %4155 = vmatpush1.msra.mxu0 %v4154
        %4156 = vmatprep.subr.mxu0 0.0
        %4157 = vmatpush1.msra.mxu0 0.0
        %4158 = vmatprep.subr.mxu0 0.0
        %4159 = vmatpush1.msra.mxu0 0.0
        %4160 = vmatprep.subr.mxu0 0.0
        %4161 = vmatpush1.msra.mxu0 0.0
        %4162 = vmatprep.subr.mxu0 0.0
        %4163 = vmatpush1.msra.mxu0 0.0
        %4164 = vmatprep.subr.mxu0 0.0
        %4165 = vmatpush1.msra.mxu0 0.0
        %4166 = vmatprep.subr.mxu0 0.0
        %4167 = vmatpush1.msra.mxu0 0.0
        %4168 = vmatprep.subr.mxu0 0.0
        %4169 = vmatpush1.msra.mxu0 0.0
        %4170 = vmatprep.subr.mxu0 0.0
        %4171 = vmatpush1.msra.mxu0 0.0
        %4172 = vmatprep.subr.mxu0 0.0
        %4173 = vmatpush1.msra.mxu0 0.0
        %4174 = vmatprep.subr.mxu0 0.0
        %4175 = vmatpush1.msra.mxu0 0.0
        %4176 = vmatprep.subr.mxu0 0.0
        %4177 = vmatpush1.msra.mxu0 0.0
        %4178 = vmatprep.subr.mxu0 0.0
        %4179 = vmatpush1.msra.mxu0 0.0
        %4180 = vmatprep.subr.mxu0 0.0
        %4181 = vmatpush1.msra.mxu0 0.0
        %4182 = vmatprep.subr.mxu0 0.0
        %4183 = vmatpush1.msra.mxu0 0.0
        %4184 = vmatprep.subr.mxu0 0.0
        %4185 = vmatpush1.msra.mxu0 0.0
        %4186 = vmatprep.subr.mxu0 0.0
        %4187 = vmatpush1.msra.mxu0 0.0
        %4188 = vmatprep.subr.mxu0 0.0
        %4189 = vmatpush1.msra.mxu0 0.0
        %4190 = vmatprep.subr.mxu0 0.0
        %4191 = vmatpush1.msra.mxu0 0.0
        %4192 = vmatprep.subr.mxu0 0.0
        %4193 = vmatpush1.msra.mxu0 0.0
        %4194 = vmatprep.subr.mxu0 0.0
        %4195 = vmatpush1.msra.mxu0 0.0
        %4196 = vmatprep.subr.mxu0 0.0
        %4197 = vmatpush1.msra.mxu0 0.0
        %4198 = vmatprep.subr.mxu0 0.0
        %4199 = vmatpush1.msra.mxu0 0.0
        %4200 = vmatprep.subr.mxu0 0.0
        %4201 = vmatpush1.msra.mxu0 0.0
        %4202 = vmatprep.subr.mxu0 0.0
        %4203 = vmatpush1.msra.mxu0 0.0
        %4204 = vmatprep.subr.mxu0 0.0
        %4205 = vmatpush1.msra.mxu0 0.0
        %4206 = vmatprep.subr.mxu0 0.0
        %4207 = vmatpush1.msra.mxu0 0.0
        %4208 = vmatprep.subr.mxu0 0.0
        %4209 = vmatpush1.msra.mxu0 0.0
        %4210 = vmatprep.subr.mxu0 0.0
        %4211 = vmatpush1.msra.mxu0 0.0
        %4212 = vmatprep.subr.mxu0 0.0
        %4213 = vmatpush1.msra.mxu0 0.0
        %4214 = vmatprep.subr.mxu0 0.0
        %4215 = vmatpush1.msra.mxu0 0.0
        %4216 = vmatprep.mubr.f32.mxu0 0.0
        %v4217 = vand.u32 %v4050, 4294901760
        %4218 = vmatmul.mubr.f32.gmra.mrb[0].mxu0 %v4217
        %v4219 = vpop.f32.mrb[0].mxu0
        %v4220 = vadd.f32 %v4129, %v4219
        %v4221 = vpop.f32.mrb[0].mxu0
        %4222 = vmatprep.mubr.f32.mxu0 0.0
        %v4223 = vand.u32 %v4053, 4294901760
        %4224 = vmatmul.mubr.f32.gmra.mrb[0].mxu0 %v4223
        %v4225 = vpop.f32.mrb[0].mxu0
        %v4226 = vadd.f32 %v4139, %v4225
        %v4227 = vpop.f32.mrb[0].mxu0
        %4228 = vdwg.mxu0
        %4229 = vmatprep.subr.mxu0 0.0
        %v4230 = vand.u32 %v4047, 4294901760
        %v4231 = vsub.f32 %v4047, %v4230
        %4232 = vmatpush1.msra.mxu0 %v4231
        %4233 = vmatprep.subr.mxu0 0.0
        %v4234 = vand.u32 %v4048, 4294901760
        %v4235 = vsub.f32 %v4048, %v4234
        %4236 = vmatpush1.msra.mxu0 %v4235
        %4237 = vmatprep.subr.mxu0 0.0
        %4238 = vmatpush1.msra.mxu0 0.0
        %4239 = vmatprep.subr.mxu0 0.0
        %4240 = vmatpush1.msra.mxu0 0.0
        %4241 = vmatprep.subr.mxu0 0.0
        %4242 = vmatpush1.msra.mxu0 0.0
        %4243 = vmatprep.subr.mxu0 0.0
        %4244 = vmatpush1.msra.mxu0 0.0
        %4245 = vmatprep.subr.mxu0 0.0
        %4246 = vmatpush1.msra.mxu0 0.0
        %4247 = vmatprep.subr.mxu0 0.0
        %4248 = vmatpush1.msra.mxu0 0.0
        %4249 = vmatprep.subr.mxu0 0.0
        %4250 = vmatpush1.msra.mxu0 0.0
        %4251 = vmatprep.subr.mxu0 0.0
        %4252 = vmatpush1.msra.mxu0 0.0
        %4253 = vmatprep.subr.mxu0 0.0
        %4254 = vmatpush1.msra.mxu0 0.0
        %4255 = vmatprep.subr.mxu0 0.0
        %4256 = vmatpush1.msra.mxu0 0.0
        %4257 = vmatprep.subr.mxu0 0.0
        %4258 = vmatpush1.msra.mxu0 0.0
        %4259 = vmatprep.subr.mxu0 0.0
        %4260 = vmatpush1.msra.mxu0 0.0
        %4261 = vmatprep.subr.mxu0 0.0
        %4262 = vmatpush1.msra.mxu0 0.0
        %4263 = vmatprep.subr.mxu0 0.0
        %4264 = vmatpush1.msra.mxu0 0.0
        %4265 = vmatprep.subr.mxu0 0.0
        %4266 = vmatpush1.msra.mxu0 0.0
        %4267 = vmatprep.subr.mxu0 0.0
        %4268 = vmatpush1.msra.mxu0 0.0
        %4269 = vmatprep.subr.mxu0 0.0
        %4270 = vmatpush1.msra.mxu0 0.0
        %4271 = vmatprep.subr.mxu0 0.0
        %4272 = vmatpush1.msra.mxu0 0.0
        %4273 = vmatprep.subr.mxu0 0.0
        %4274 = vmatpush1.msra.mxu0 0.0
        %4275 = vmatprep.subr.mxu0 0.0
        %4276 = vmatpush1.msra.mxu0 0.0
        %4277 = vmatprep.subr.mxu0 0.0
        %4278 = vmatpush1.msra.mxu0 0.0
        %4279 = vmatprep.subr.mxu0 0.0
        %4280 = vmatpush1.msra.mxu0 0.0
        %4281 = vmatprep.subr.mxu0 0.0
        %4282 = vmatpush1.msra.mxu0 0.0
        %4283 = vmatprep.subr.mxu0 0.0
        %4284 = vmatpush1.msra.mxu0 0.0
        %4285 = vmatprep.subr.mxu0 0.0
        %4286 = vmatpush1.msra.mxu0 0.0
        %4287 = vmatprep.subr.mxu0 0.0
        %4288 = vmatpush1.msra.mxu0 0.0
        %4289 = vmatprep.subr.mxu0 0.0
        %4290 = vmatpush1.msra.mxu0 0.0
        %4291 = vmatprep.subr.mxu0 0.0
        %4292 = vmatpush1.msra.mxu0 0.0
        %4293 = vmatprep.subr.mxu0 0.0
        %4294 = vmatpush1.msra.mxu0 0.0
        %4295 = vmatprep.subr.mxu0 0.0
        %4296 = vmatpush1.msra.mxu0 0.0
        %4297 = vmatprep.mubr.f32.mxu0 0.0
        %v4298 = vand.u32 %v4050, 4294901760
        %v4299 = vsub.f32 %v4050, %v4298
        %4300 = vmatmul.mubr.f32.gmra.mrb[0].mxu0 %v4299
        %v4301 = vpop.f32.mrb[0].mxu0
        %v4302 = vadd.f32 %v4220, %v4301
        %v4303 = vpop.f32.mrb[0].mxu0
        %4304 = vmatprep.mubr.f32.mxu0 0.0
        %v4305 = vand.u32 %v4053, 4294901760
        %v4306 = vsub.f32 %v4053, %v4305
        %4307 = vmatmul.mubr.f32.gmra.mrb[0].mxu0 %v4306
        %v4308 = vpop.f32.mrb[0].mxu0
        %v4309 = vadd.f32 %v4226, %v4308
        %v4310 = vpop.f32.mrb[0].mxu0
        %4311 = vdwg.mxu0
        %4312 = vmatprep.subr.mxu0 0.0
        %v4313 = vand.u32 %v4047, 4294901760
        %4314 = vmatpush1.msra.mxu0 %v4313
        %4315 = vmatprep.subr.mxu0 0.0
        %v4316 = vand.u32 %v4048, 4294901760
        %4317 = vmatpush1.msra.mxu0 %v4316
        %4318 = vmatprep.subr.mxu0 0.0
        %4319 = vmatpush1.msra.mxu0 0.0
        %4320 = vmatprep.subr.mxu0 0.0
        %4321 = vmatpush1.msra.mxu0 0.0
        %4322 = vmatprep.subr.mxu0 0.0
        %4323 = vmatpush1.msra.mxu0 0.0
        %4324 = vmatprep.subr.mxu0 0.0
        %4325 = vmatpush1.msra.mxu0 0.0
        %4326 = vmatprep.subr.mxu0 0.0
        %4327 = vmatpush1.msra.mxu0 0.0
        %4328 = vmatprep.subr.mxu0 0.0
        %4329 = vmatpush1.msra.mxu0 0.0
        %4330 = vmatprep.subr.mxu0 0.0
        %4331 = vmatpush1.msra.mxu0 0.0
        %4332 = vmatprep.subr.mxu0 0.0
        %4333 = vmatpush1.msra.mxu0 0.0
        %4334 = vmatprep.subr.mxu0 0.0
        %4335 = vmatpush1.msra.mxu0 0.0
        %4336 = vmatprep.subr.mxu0 0.0
        %4337 = vmatpush1.msra.mxu0 0.0
        %4338 = vmatprep.subr.mxu0 0.0
        %4339 = vmatpush1.msra.mxu0 0.0
        %4340 = vmatprep.subr.mxu0 0.0
        %4341 = vmatpush1.msra.mxu0 0.0
        %4342 = vmatprep.subr.mxu0 0.0
        %4343 = vmatpush1.msra.mxu0 0.0
        %4344 = vmatprep.subr.mxu0 0.0
        %4345 = vmatpush1.msra.mxu0 0.0
        %4346 = vmatprep.subr.mxu0 0.0
        %4347 = vmatpush1.msra.mxu0 0.0
        %4348 = vmatprep.subr.mxu0 0.0
        %4349 = vmatpush1.msra.mxu0 0.0
        %4350 = vmatprep.subr.mxu0 0.0
        %4351 = vmatpush1.msra.mxu0 0.0
        %4352 = vmatprep.subr.mxu0 0.0
        %4353 = vmatpush1.msra.mxu0 0.0
        %4354 = vmatprep.subr.mxu0 0.0
        %4355 = vmatpush1.msra.mxu0 0.0
        %4356 = vmatprep.subr.mxu0 0.0
        %4357 = vmatpush1.msra.mxu0 0.0
        %4358 = vmatprep.subr.mxu0 0.0
        %4359 = vmatpush1.msra.mxu0 0.0
        %4360 = vmatprep.subr.mxu0 0.0
        %4361 = vmatpush1.msra.mxu0 0.0
        %4362 = vmatprep.subr.mxu0 0.0
        %4363 = vmatpush1.msra.mxu0 0.0
        %4364 = vmatprep.subr.mxu0 0.0
        %4365 = vmatpush1.msra.mxu0 0.0
        %4366 = vmatprep.subr.mxu0 0.0
        %4367 = vmatpush1.msra.mxu0 0.0
        %4368 = vmatprep.subr.mxu0 0.0
        %4369 = vmatpush1.msra.mxu0 0.0
        %4370 = vmatprep.subr.mxu0 0.0
        %4371 = vmatpush1.msra.mxu0 0.0
        %4372 = vmatprep.subr.mxu0 0.0
        %4373 = vmatpush1.msra.mxu0 0.0
        %4374 = vmatprep.subr.mxu0 0.0
        %4375 = vmatpush1.msra.mxu0 0.0
        %4376 = vmatprep.subr.mxu0 0.0
        %4377 = vmatpush1.msra.mxu0 0.0
        %4378 = vmatprep.mubr.f32.mxu0 0.0
        %v4379 = vand.u32 %v4050, 4294901760
        %v4380 = vsub.f32 %v4050, %v4379
        %v4381 = vand.u32 %v4380, 4294901760
        %4382 = vmatmul.mubr.f32.gmra.mrb[0].mxu0 %v4381
        %v4383 = vpop.f32.mrb[0].mxu0
        %v4384 = vadd.f32 %v4302, %v4383
        %v4385 = vpop.f32.mrb[0].mxu0
        %4386 = vmatprep.mubr.f32.mxu0 0.0
        %v4387 = vand.u32 %v4053, 4294901760
        %v4388 = vsub.f32 %v4053, %v4387
        %v4389 = vand.u32 %v4388, 4294901760
        %4390 = vmatmul.mubr.f32.gmra.mrb[0].mxu0 %v4389
        %v4391 = vpop.f32.mrb[0].mxu0
        %v4392 = vadd.f32 %v4309, %v4391
        %v4393 = vpop.f32.mrb[0].mxu0
        %4394 = vdwg.mxu0
        %4395 = vmatprep.subr.mxu0 0.0
        %v4396 = vand.u32 %v4047, 4294901760
        %v4397 = vsub.f32 %v4047, %v4396
        %v4398 = vand.u32 %v4397, 4294901760
        %4399 = vmatpush1.msra.mxu0 %v4398
        %4400 = vmatprep.subr.mxu0 0.0
        %v4401 = vand.u32 %v4048, 4294901760
        %v4402 = vsub.f32 %v4048, %v4401
        %v4403 = vand.u32 %v4402, 4294901760
        %4404 = vmatpush1.msra.mxu0 %v4403
        %4405 = vmatprep.subr.mxu0 0.0
        %4406 = vmatpush1.msra.mxu0 0.0
        %4407 = vmatprep.subr.mxu0 0.0
        %4408 = vmatpush1.msra.mxu0 0.0
        %4409 = vmatprep.subr.mxu0 0.0
        %4410 = vmatpush1.msra.mxu0 0.0
        %4411 = vmatprep.subr.mxu0 0.0
        %4412 = vmatpush1.msra.mxu0 0.0
        %4413 = vmatprep.subr.mxu0 0.0
        %4414 = vmatpush1.msra.mxu0 0.0
        %4415 = vmatprep.subr.mxu0 0.0
        %4416 = vmatpush1.msra.mxu0 0.0
        %4417 = vmatprep.subr.mxu0 0.0
        %4418 = vmatpush1.msra.mxu0 0.0
        %4419 = vmatprep.subr.mxu0 0.0
        %4420 = vmatpush1.msra.mxu0 0.0
        %4421 = vmatprep.subr.mxu0 0.0
        %4422 = vmatpush1.msra.mxu0 0.0
        %4423 = vmatprep.subr.mxu0 0.0
        %4424 = vmatpush1.msra.mxu0 0.0
        %4425 = vmatprep.subr.mxu0 0.0
        %4426 = vmatpush1.msra.mxu0 0.0
        %4427 = vmatprep.subr.mxu0 0.0
        %4428 = vmatpush1.msra.mxu0 0.0
        %4429 = vmatprep.subr.mxu0 0.0
        %4430 = vmatpush1.msra.mxu0 0.0
        %4431 = vmatprep.subr.mxu0 0.0
        %4432 = vmatpush1.msra.mxu0 0.0
        %4433 = vmatprep.subr.mxu0 0.0
        %4434 = vmatpush1.msra.mxu0 0.0
        %4435 = vmatprep.subr.mxu0 0.0
        %4436 = vmatpush1.msra.mxu0 0.0
        %4437 = vmatprep.subr.mxu0 0.0
        %4438 = vmatpush1.msra.mxu0 0.0
        %4439 = vmatprep.subr.mxu0 0.0
        %4440 = vmatpush1.msra.mxu0 0.0
        %4441 = vmatprep.subr.mxu0 0.0
        %4442 = vmatpush1.msra.mxu0 0.0
        %4443 = vmatprep.subr.mxu0 0.0
        %4444 = vmatpush1.msra.mxu0 0.0
        %4445 = vmatprep.subr.mxu0 0.0
        %4446 = vmatpush1.msra.mxu0 0.0
        %4447 = vmatprep.subr.mxu0 0.0
        %4448 = vmatpush1.msra.mxu0 0.0
        %4449 = vmatprep.subr.mxu0 0.0
        %4450 = vmatpush1.msra.mxu0 0.0
        %4451 = vmatprep.subr.mxu0 0.0
        %4452 = vmatpush1.msra.mxu0 0.0
        %4453 = vmatprep.subr.mxu0 0.0
        %4454 = vmatpush1.msra.mxu0 0.0
        %4455 = vmatprep.subr.mxu0 0.0
        %4456 = vmatpush1.msra.mxu0 0.0
        %4457 = vmatprep.subr.mxu0 0.0
        %4458 = vmatpush1.msra.mxu0 0.0
        %4459 = vmatprep.subr.mxu0 0.0
        %4460 = vmatpush1.msra.mxu0 0.0
        %4461 = vmatprep.subr.mxu0 0.0
        %4462 = vmatpush1.msra.mxu0 0.0
        %4463 = vmatprep.subr.mxu0 0.0
        %4464 = vmatpush1.msra.mxu0 0.0
        %4465 = vmatprep.mubr.f32.mxu0 0.0
        %v4466 = vand.u32 %v4050, 4294901760
        %4467 = vmatmul.mubr.f32.gmra.mrb[0].mxu0 %v4466
        %v4468 = vpop.f32.mrb[0].mxu0
        %v4469 = vadd.f32 %v4384, %v4468
        %v4470 = vpop.f32.mrb[0].mxu0
        %4471 = vmatprep.mubr.f32.mxu0 0.0
        %v4472 = vand.u32 %v4053, 4294901760
        %4473 = vmatmul.mubr.f32.gmra.mrb[0].mxu0 %v4472
        %v4474 = vpop.f32.mrb[0].mxu0
        %v4475 = vadd.f32 %v4392, %v4474
        %v4476 = vpop.f32.mrb[0].mxu0
        %4477 = vdwg.mxu0
        %4478 = vmatprep.subr.mxu0 0.0
        %v4479 = vand.u32 %v4047, 4294901760
        %4480 = vmatpush1.msra.mxu0 %v4479
        %4481 = vmatprep.subr.mxu0 0.0
        %v4482 = vand.u32 %v4048, 4294901760
        %4483 = vmatpush1.msra.mxu0 %v4482
        %4484 = vmatprep.subr.mxu0 0.0
        %4485 = vmatpush1.msra.mxu0 0.0
        %4486 = vmatprep.subr.mxu0 0.0
        %4487 = vmatpush1.msra.mxu0 0.0
        %4488 = vmatprep.subr.mxu0 0.0
        %4489 = vmatpush1.msra.mxu0 0.0
        %4490 = vmatprep.subr.mxu0 0.0
        %4491 = vmatpush1.msra.mxu0 0.0
        %4492 = vmatprep.subr.mxu0 0.0
        %4493 = vmatpush1.msra.mxu0 0.0
        %4494 = vmatprep.subr.mxu0 0.0
        %4495 = vmatpush1.msra.mxu0 0.0
        %4496 = vmatprep.subr.mxu0 0.0
        %4497 = vmatpush1.msra.mxu0 0.0
        %4498 = vmatprep.subr.mxu0 0.0
        %4499 = vmatpush1.msra.mxu0 0.0
        %4500 = vmatprep.subr.mxu0 0.0
        %4501 = vmatpush1.msra.mxu0 0.0
        %4502 = vmatprep.subr.mxu0 0.0
        %4503 = vmatpush1.msra.mxu0 0.0
        %4504 = vmatprep.subr.mxu0 0.0
        %4505 = vmatpush1.msra.mxu0 0.0
        %4506 = vmatprep.subr.mxu0 0.0
        %4507 = vmatpush1.msra.mxu0 0.0
        %4508 = vmatprep.subr.mxu0 0.0
        %4509 = vmatpush1.msra.mxu0 0.0
        %4510 = vmatprep.subr.mxu0 0.0
        %4511 = vmatpush1.msra.mxu0 0.0
        %4512 = vmatprep.subr.mxu0 0.0
        %4513 = vmatpush1.msra.mxu0 0.0
        %4514 = vmatprep.subr.mxu0 0.0
        %4515 = vmatpush1.msra.mxu0 0.0
        %4516 = vmatprep.subr.mxu0 0.0
        %4517 = vmatpush1.msra.mxu0 0.0
        %4518 = vmatprep.subr.mxu0 0.0
        %4519 = vmatpush1.msra.mxu0 0.0
        %4520 = vmatprep.subr.mxu0 0.0
        %4521 = vmatpush1.msra.mxu0 0.0
        %4522 = vmatprep.subr.mxu0 0.0
        %4523 = vmatpush1.msra.mxu0 0.0
        %4524 = vmatprep.subr.mxu0 0.0
        %4525 = vmatpush1.msra.mxu0 0.0
        %4526 = vmatprep.subr.mxu0 0.0
        %4527 = vmatpush1.msra.mxu0 0.0
        %4528 = vmatprep.subr.mxu0 0.0
        %4529 = vmatpush1.msra.mxu0 0.0
        %4530 = vmatprep.subr.mxu0 0.0
        %4531 = vmatpush1.msra.mxu0 0.0
        %4532 = vmatprep.subr.mxu0 0.0
        %4533 = vmatpush1.msra.mxu0 0.0
        %4534 = vmatprep.subr.mxu0 0.0
        %4535 = vmatpush1.msra.mxu0 0.0
        %4536 = vmatprep.subr.mxu0 0.0
        %4537 = vmatpush1.msra.mxu0 0.0
        %4538 = vmatprep.subr.mxu0 0.0
        %4539 = vmatpush1.msra.mxu0 0.0
        %4540 = vmatprep.subr.mxu0 0.0
        %4541 = vmatpush1.msra.mxu0 0.0
        %4542 = vmatprep.subr.mxu0 0.0
        %4543 = vmatpush1.msra.mxu0 0.0
        %4544 = vmatprep.mubr.f32.mxu0 0.0
        %v4545 = vand.u32 %v4050, 4294901760
        %4546 = vmatmul.mubr.f32.gmra.mrb[0].mxu0 %v4545
        %v4547 = vpop.f32.mrb[0].mxu0
        %v4548 = vadd.f32 %v4469, %v4547
        %v4549 = vpop.f32.mrb[0].mxu0
        %4550 = vmatprep.mubr.f32.mxu0 0.0
        %v4551 = vand.u32 %v4053, 4294901760
        %4552 = vmatmul.mubr.f32.gmra.mrb[0].mxu0 %v4551
        %v4553 = vpop.f32.mrb[0].mxu0
        %v4554 = vadd.f32 %v4475, %v4553
        %v4555 = vpop.f32.mrb[0].mxu0
        %4556 = vdwg.mxu0
        %v4557 = vrcp.pop %v4043
        %v4558 = vmul.f32 1.0, %v4557
        %v4559 = vrcp.pop %v4046
        %v4560 = vmul.f32 1.0, %v4559
        %v4561 = vmul.f32 %v4548, %v4558
        %v4562 = vmul.f32 %v4554, %v4560
        %4563 = vst.msk [vmem:[#allocation5] sm:$0xff] %vm3511, %v4561
        %4564 = vst.msk [vmem:[#allocation5 + $0x8] sm:$0xff] %vm3511, %v4562
        %v4565 = vld [vmem:[#allocation2] sm:$0xff]
        %v4566 = vld [vmem:[#allocation2 + $0x8] sm:$0xff]
        %4567 = vrot.lane.b32.xlu0 %v3500, 64
        %v4568 = vpop.permute.xlu0 %4567
        %4569 = vrot.lane.b32.xlu0 %v3506, 64
        %v4570 = vpop.permute.xlu0 %4569
        %4573 = vrot.lane.b32.xlu0 %v4565, 64
        %v4574 = vpop.permute.xlu0 %4573
        %4575 = vrot.lane.b32.xlu0 %v4566, 64
        %v4576 = vpop.permute.xlu0 %4575
        %v4577 = vsel %vm3511, %v4568, 0
        %v4579 = vsel %vm3511, %v4570, 0
        %v4581 = vsel %vm3511, %v4574, 0
        %v4583 = vsel %vm3511, %v4576, 0
        %4585 = vmatprep.subr.mxu0 0.0
        %v4586 = vand.u32 %v4581, 4294901760
        %4587 = vmatpush1.xpose.msra.mxu0 %v4586
        %4588 = vmatprep.subr.mxu0 0.0
        %v4589 = vand.u32 %v4583, 4294901760
        %4590 = vmatpush1.xpose.msra.mxu0 %v4589
        %4591 = vmatprep.subr.mxu0 0.0
        %4592 = vmatpush1.xpose.msra.mxu0 0.0
        %4593 = vmatprep.subr.mxu0 0.0
        %4594 = vmatpush1.xpose.msra.mxu0 0.0
        %4595 = vmatprep.subr.mxu0 0.0
        %4596 = vmatpush1.xpose.msra.mxu0 0.0
        %4597 = vmatprep.subr.mxu0 0.0
        %4598 = vmatpush1.xpose.msra.mxu0 0.0
        %4599 = vmatprep.subr.mxu0 0.0
        %4600 = vmatpush1.xpose.msra.mxu0 0.0
        %4601 = vmatprep.subr.mxu0 0.0
        %4602 = vmatpush1.xpose.msra.mxu0 0.0
        %4603 = vmatprep.subr.mxu0 0.0
        %4604 = vmatpush1.xpose.msra.mxu0 0.0
        %4605 = vmatprep.subr.mxu0 0.0
        %4606 = vmatpush1.xpose.msra.mxu0 0.0
        %4607 = vmatprep.subr.mxu0 0.0
        %4608 = vmatpush1.xpose.msra.mxu0 0.0
        %4609 = vmatprep.subr.mxu0 0.0
        %4610 = vmatpush1.xpose.msra.mxu0 0.0
        %4611 = vmatprep.subr.mxu0 0.0
        %4612 = vmatpush1.xpose.msra.mxu0 0.0
        %4613 = vmatprep.subr.mxu0 0.0
        %4614 = vmatpush1.xpose.msra.mxu0 0.0
        %4615 = vmatprep.subr.mxu0 0.0
        %4616 = vmatpush1.xpose.msra.mxu0 0.0
        %4617 = vmatprep.subr.mxu0 0.0
        %4618 = vmatpush1.xpose.msra.mxu0 0.0
        %4619 = vmatprep.subr.mxu0 0.0
        %4620 = vmatpush1.xpose.msra.mxu0 0.0
        %4621 = vmatprep.subr.mxu0 0.0
        %4622 = vmatpush1.xpose.msra.mxu0 0.0
        %4623 = vmatprep.subr.mxu0 0.0
        %4624 = vmatpush1.xpose.msra.mxu0 0.0
        %4625 = vmatprep.subr.mxu0 0.0
        %4626 = vmatpush1.xpose.msra.mxu0 0.0
        %4627 = vmatprep.subr.mxu0 0.0
        %4628 = vmatpush1.xpose.msra.mxu0 0.0
        %4629 = vmatprep.subr.mxu0 0.0
        %4630 = vmatpush1.xpose.msra.mxu0 0.0
        %4631 = vmatprep.subr.mxu0 0.0
        %4632 = vmatpush1.xpose.msra.mxu0 0.0
        %4633 = vmatprep.subr.mxu0 0.0
        %4634 = vmatpush1.xpose.msra.mxu0 0.0
        %4635 = vmatprep.subr.mxu0 0.0
        %4636 = vmatpush1.xpose.msra.mxu0 0.0
        %4637 = vmatprep.subr.mxu0 0.0
        %4638 = vmatpush1.xpose.msra.mxu0 0.0
        %4639 = vmatprep.subr.mxu0 0.0
        %4640 = vmatpush1.xpose.msra.mxu0 0.0
        %4641 = vmatprep.subr.mxu0 0.0
        %4642 = vmatpush1.xpose.msra.mxu0 0.0
        %4643 = vmatprep.subr.mxu0 0.0
        %4644 = vmatpush1.xpose.msra.mxu0 0.0
        %4645 = vmatprep.subr.mxu0 0.0
        %4646 = vmatpush1.xpose.msra.mxu0 0.0
        %4647 = vmatprep.subr.mxu0 0.0
        %4648 = vmatpush1.xpose.msra.mxu0 0.0
        %4649 = vmatprep.subr.mxu0 0.0
        %4650 = vmatpush1.xpose.msra.mxu0 0.0
        %4651 = vmatprep.mubr.f32.mxu0 0.0
        %v4652 = vand.u32 %v4577, 4294901760
        %v4653 = vsub.f32 %v4577, %v4652
        %v4654 = vand.u32 %v4653, 4294901760
        %v4655 = vsub.f32 %v4653, %v4654
        %v4656 = vand.u32 %v4655, 4294901760
        %4657 = vmatmul.mubr.f32.gmra.mrb[0].mxu0 %v4656
        %v4658 = vpop.f32.mrb[0].mxu0
        %v4659 = vadd.f32 0.0, %v4658
        %v4660 = vpop.f32.mrb[0].mxu0
        %4661 = vmatprep.mubr.f32.mxu0 0.0
        %v4662 = vand.u32 %v4579, 4294901760
        %v4663 = vsub.f32 %v4579, %v4662
        %v4664 = vand.u32 %v4663, 4294901760
        %v4665 = vsub.f32 %v4663, %v4664
        %v4666 = vand.u32 %v4665, 4294901760
        %4667 = vmatmul.mubr.f32.gmra.mrb[0].mxu0 %v4666
        %v4668 = vpop.f32.mrb[0].mxu0
        %v4669 = vadd.f32 0.0, %v4668
        %v4670 = vpop.f32.mrb[0].mxu0
        %4671 = vdwg.mxu0
        %4672 = vmatprep.subr.mxu0 0.0
        %v4673 = vand.u32 %v4581, 4294901760
        %v4674 = vsub.f32 %v4581, %v4673
        %v4675 = vand.u32 %v4674, 4294901760
        %v4676 = vsub.f32 %v4674, %v4675
        %v4677 = vand.u32 %v4676, 4294901760
        %4678 = vmatpush1.xpose.msra.mxu0 %v4677
        %4679 = vmatprep.subr.mxu0 0.0
        %v4680 = vand.u32 %v4583, 4294901760
        %v4681 = vsub.f32 %v4583, %v4680
        %v4682 = vand.u32 %v4681, 4294901760
        %v4683 = vsub.f32 %v4681, %v4682
        %v4684 = vand.u32 %v4683, 4294901760
        %4685 = vmatpush1.xpose.msra.mxu0 %v4684
        %4686 = vmatprep.subr.mxu0 0.0
        %4687 = vmatpush1.xpose.msra.mxu0 0.0
        %4688 = vmatprep.subr.mxu0 0.0
        %4689 = vmatpush1.xpose.msra.mxu0 0.0
        %4690 = vmatprep.subr.mxu0 0.0
        %4691 = vmatpush1.xpose.msra.mxu0 0.0
        %4692 = vmatprep.subr.mxu0 0.0
        %4693 = vmatpush1.xpose.msra.mxu0 0.0
        %4694 = vmatprep.subr.mxu0 0.0
        %4695 = vmatpush1.xpose.msra.mxu0 0.0
        %4696 = vmatprep.subr.mxu0 0.0
        %4697 = vmatpush1.xpose.msra.mxu0 0.0
        %4698 = vmatprep.subr.mxu0 0.0
        %4699 = vmatpush1.xpose.msra.mxu0 0.0
        %4700 = vmatprep.subr.mxu0 0.0
        %4701 = vmatpush1.xpose.msra.mxu0 0.0
        %4702 = vmatprep.subr.mxu0 0.0
        %4703 = vmatpush1.xpose.msra.mxu0 0.0
        %4704 = vmatprep.subr.mxu0 0.0
        %4705 = vmatpush1.xpose.msra.mxu0 0.0
        %4706 = vmatprep.subr.mxu0 0.0
        %4707 = vmatpush1.xpose.msra.mxu0 0.0
        %4708 = vmatprep.subr.mxu0 0.0
        %4709 = vmatpush1.xpose.msra.mxu0 0.0
        %4710 = vmatprep.subr.mxu0 0.0
        %4711 = vmatpush1.xpose.msra.mxu0 0.0
        %4712 = vmatprep.subr.mxu0 0.0
        %4713 = vmatpush1.xpose.msra.mxu0 0.0
        %4714 = vmatprep.subr.mxu0 0.0
        %4715 = vmatpush1.xpose.msra.mxu0 0.0
        %4716 = vmatprep.subr.mxu0 0.0
        %4717 = vmatpush1.xpose.msra.mxu0 0.0
        %4718 = vmatprep.subr.mxu0 0.0
        %4719 = vmatpush1.xpose.msra.mxu0 0.0
        %4720 = vmatprep.subr.mxu0 0.0
        %4721 = vmatpush1.xpose.msra.mxu0 0.0
        %4722 = vmatprep.subr.mxu0 0.0
        %4723 = vmatpush1.xpose.msra.mxu0 0.0
        %4724 = vmatprep.subr.mxu0 0.0
        %4725 = vmatpush1.xpose.msra.mxu0 0.0
        %4726 = vmatprep.subr.mxu0 0.0
        %4727 = vmatpush1.xpose.msra.mxu0 0.0
        %4728 = vmatprep.subr.mxu0 0.0
        %4729 = vmatpush1.xpose.msra.mxu0 0.0
        %4730 = vmatprep.subr.mxu0 0.0
        %4731 = vmatpush1.xpose.msra.mxu0 0.0
        %4732 = vmatprep.subr.mxu0 0.0
        %4733 = vmatpush1.xpose.msra.mxu0 0.0
        %4734 = vmatprep.subr.mxu0 0.0
        %4735 = vmatpush1.xpose.msra.mxu0 0.0
        %4736 = vmatprep.subr.mxu0 0.0
        %4737 = vmatpush1.xpose.msra.mxu0 0.0
        %4738 = vmatprep.subr.mxu0 0.0
        %4739 = vmatpush1.xpose.msra.mxu0 0.0
        %4740 = vmatprep.subr.mxu0 0.0
        %4741 = vmatpush1.xpose.msra.mxu0 0.0
        %4742 = vmatprep.subr.mxu0 0.0
        %4743 = vmatpush1.xpose.msra.mxu0 0.0
        %4744 = vmatprep.subr.mxu0 0.0
        %4745 = vmatpush1.xpose.msra.mxu0 0.0
        %4746 = vmatprep.mubr.f32.mxu0 0.0
        %v4747 = vand.u32 %v4577, 4294901760
        %4748 = vmatmul.mubr.f32.gmra.mrb[0].mxu0 %v4747
        %v4749 = vpop.f32.mrb[0].mxu0
        %v4750 = vadd.f32 %v4659, %v4749
        %v4751 = vpop.f32.mrb[0].mxu0
        %4752 = vmatprep.mubr.f32.mxu0 0.0
        %v4753 = vand.u32 %v4579, 4294901760
        %4754 = vmatmul.mubr.f32.gmra.mrb[0].mxu0 %v4753
        %v4755 = vpop.f32.mrb[0].mxu0
        %v4756 = vadd.f32 %v4669, %v4755
        %v4757 = vpop.f32.mrb[0].mxu0
        %4758 = vdwg.mxu0
        %4759 = vmatprep.subr.mxu0 0.0
        %v4760 = vand.u32 %v4581, 4294901760
        %v4761 = vsub.f32 %v4581, %v4760
        %4762 = vmatpush1.xpose.msra.mxu0 %v4761
        %4763 = vmatprep.subr.mxu0 0.0
        %v4764 = vand.u32 %v4583, 4294901760
        %v4765 = vsub.f32 %v4583, %v4764
        %4766 = vmatpush1.xpose.msra.mxu0 %v4765
        %4767 = vmatprep.subr.mxu0 0.0
        %4768 = vmatpush1.xpose.msra.mxu0 0.0
        %4769 = vmatprep.subr.mxu0 0.0
        %4770 = vmatpush1.xpose.msra.mxu0 0.0
        %4771 = vmatprep.subr.mxu0 0.0
        %4772 = vmatpush1.xpose.msra.mxu0 0.0
        %4773 = vmatprep.subr.mxu0 0.0
        %4774 = vmatpush1.xpose.msra.mxu0 0.0
        %4775 = vmatprep.subr.mxu0 0.0
        %4776 = vmatpush1.xpose.msra.mxu0 0.0
        %4777 = vmatprep.subr.mxu0 0.0
        %4778 = vmatpush1.xpose.msra.mxu0 0.0
        %4779 = vmatprep.subr.mxu0 0.0
        %4780 = vmatpush1.xpose.msra.mxu0 0.0
        %4781 = vmatprep.subr.mxu0 0.0
        %4782 = vmatpush1.xpose.msra.mxu0 0.0
        %4783 = vmatprep.subr.mxu0 0.0
        %4784 = vmatpush1.xpose.msra.mxu0 0.0
        %4785 = vmatprep.subr.mxu0 0.0
        %4786 = vmatpush1.xpose.msra.mxu0 0.0
        %4787 = vmatprep.subr.mxu0 0.0
        %4788 = vmatpush1.xpose.msra.mxu0 0.0
        %4789 = vmatprep.subr.mxu0 0.0
        %4790 = vmatpush1.xpose.msra.mxu0 0.0
        %4791 = vmatprep.subr.mxu0 0.0
        %4792 = vmatpush1.xpose.msra.mxu0 0.0
        %4793 = vmatprep.subr.mxu0 0.0
        %4794 = vmatpush1.xpose.msra.mxu0 0.0
        %4795 = vmatprep.subr.mxu0 0.0
        %4796 = vmatpush1.xpose.msra.mxu0 0.0
        %4797 = vmatprep.subr.mxu0 0.0
        %4798 = vmatpush1.xpose.msra.mxu0 0.0
        %4799 = vmatprep.subr.mxu0 0.0
        %4800 = vmatpush1.xpose.msra.mxu0 0.0
        %4801 = vmatprep.subr.mxu0 0.0
        %4802 = vmatpush1.xpose.msra.mxu0 0.0
        %4803 = vmatprep.subr.mxu0 0.0
        %4804 = vmatpush1.xpose.msra.mxu0 0.0
        %4805 = vmatprep.subr.mxu0 0.0
        %4806 = vmatpush1.xpose.msra.mxu0 0.0
        %4807 = vmatprep.subr.mxu0 0.0
        %4808 = vmatpush1.xpose.msra.mxu0 0.0
        %4809 = vmatprep.subr.mxu0 0.0
        %4810 = vmatpush1.xpose.msra.mxu0 0.0
        %4811 = vmatprep.subr.mxu0 0.0
        %4812 = vmatpush1.xpose.msra.mxu0 0.0
        %4813 = vmatprep.subr.mxu0 0.0
        %4814 = vmatpush1.xpose.msra.mxu0 0.0
        %4815 = vmatprep.subr.mxu0 0.0
        %4816 = vmatpush1.xpose.msra.mxu0 0.0
        %4817 = vmatprep.subr.mxu0 0.0
        %4818 = vmatpush1.xpose.msra.mxu0 0.0
        %4819 = vmatprep.subr.mxu0 0.0
        %4820 = vmatpush1.xpose.msra.mxu0 0.0
        %4821 = vmatprep.subr.mxu0 0.0
        %4822 = vmatpush1.xpose.msra.mxu0 0.0
        %4823 = vmatprep.subr.mxu0 0.0
        %4824 = vmatpush1.xpose.msra.mxu0 0.0
        %4825 = vmatprep.subr.mxu0 0.0
        %4826 = vmatpush1.xpose.msra.mxu0 0.0
        %4827 = vmatprep.mubr.f32.mxu0 0.0
        %v4828 = vand.u32 %v4577, 4294901760
        %v4829 = vsub.f32 %v4577, %v4828
        %4830 = vmatmul.mubr.f32.gmra.mrb[0].mxu0 %v4829
        %v4831 = vpop.f32.mrb[0].mxu0
        %v4832 = vadd.f32 %v4750, %v4831
        %v4833 = vpop.f32.mrb[0].mxu0
        %4834 = vmatprep.mubr.f32.mxu0 0.0
        %v4835 = vand.u32 %v4579, 4294901760
        %v4836 = vsub.f32 %v4579, %v4835
        %4837 = vmatmul.mubr.f32.gmra.mrb[0].mxu0 %v4836
        %v4838 = vpop.f32.mrb[0].mxu0
        %v4839 = vadd.f32 %v4756, %v4838
        %v4840 = vpop.f32.mrb[0].mxu0
        %4841 = vdwg.mxu0
        %4842 = vmatprep.subr.mxu0 0.0
        %v4843 = vand.u32 %v4581, 4294901760
        %4844 = vmatpush1.xpose.msra.mxu0 %v4843
        %4845 = vmatprep.subr.mxu0 0.0
        %v4846 = vand.u32 %v4583, 4294901760
        %4847 = vmatpush1.xpose.msra.mxu0 %v4846
        %4848 = vmatprep.subr.mxu0 0.0
        %4849 = vmatpush1.xpose.msra.mxu0 0.0
        %4850 = vmatprep.subr.mxu0 0.0
        %4851 = vmatpush1.xpose.msra.mxu0 0.0
        %4852 = vmatprep.subr.mxu0 0.0
        %4853 = vmatpush1.xpose.msra.mxu0 0.0
        %4854 = vmatprep.subr.mxu0 0.0
        %4855 = vmatpush1.xpose.msra.mxu0 0.0
        %4856 = vmatprep.subr.mxu0 0.0
        %4857 = vmatpush1.xpose.msra.mxu0 0.0
        %4858 = vmatprep.subr.mxu0 0.0
        %4859 = vmatpush1.xpose.msra.mxu0 0.0
        %4860 = vmatprep.subr.mxu0 0.0
        %4861 = vmatpush1.xpose.msra.mxu0 0.0
        %4862 = vmatprep.subr.mxu0 0.0
        %4863 = vmatpush1.xpose.msra.mxu0 0.0
        %4864 = vmatprep.subr.mxu0 0.0
        %4865 = vmatpush1.xpose.msra.mxu0 0.0
        %4866 = vmatprep.subr.mxu0 0.0
        %4867 = vmatpush1.xpose.msra.mxu0 0.0
        %4868 = vmatprep.subr.mxu0 0.0
        %4869 = vmatpush1.xpose.msra.mxu0 0.0
        %4870 = vmatprep.subr.mxu0 0.0
        %4871 = vmatpush1.xpose.msra.mxu0 0.0
        %4872 = vmatprep.subr.mxu0 0.0
        %4873 = vmatpush1.xpose.msra.mxu0 0.0
        %4874 = vmatprep.subr.mxu0 0.0
        %4875 = vmatpush1.xpose.msra.mxu0 0.0
        %4876 = vmatprep.subr.mxu0 0.0
        %4877 = vmatpush1.xpose.msra.mxu0 0.0
        %4878 = vmatprep.subr.mxu0 0.0
        %4879 = vmatpush1.xpose.msra.mxu0 0.0
        %4880 = vmatprep.subr.mxu0 0.0
        %4881 = vmatpush1.xpose.msra.mxu0 0.0
        %4882 = vmatprep.subr.mxu0 0.0
        %4883 = vmatpush1.xpose.msra.mxu0 0.0
        %4884 = vmatprep.subr.mxu0 0.0
        %4885 = vmatpush1.xpose.msra.mxu0 0.0
        %4886 = vmatprep.subr.mxu0 0.0
        %4887 = vmatpush1.xpose.msra.mxu0 0.0
        %4888 = vmatprep.subr.mxu0 0.0
        %4889 = vmatpush1.xpose.msra.mxu0 0.0
        %4890 = vmatprep.subr.mxu0 0.0
        %4891 = vmatpush1.xpose.msra.mxu0 0.0
        %4892 = vmatprep.subr.mxu0 0.0
        %4893 = vmatpush1.xpose.msra.mxu0 0.0
        %4894 = vmatprep.subr.mxu0 0.0
        %4895 = vmatpush1.xpose.msra.mxu0 0.0
        %4896 = vmatprep.subr.mxu0 0.0
        %4897 = vmatpush1.xpose.msra.mxu0 0.0
        %4898 = vmatprep.subr.mxu0 0.0
        %4899 = vmatpush1.xpose.msra.mxu0 0.0
        %4900 = vmatprep.subr.mxu0 0.0
        %4901 = vmatpush1.xpose.msra.mxu0 0.0
        %4902 = vmatprep.subr.mxu0 0.0
        %4903 = vmatpush1.xpose.msra.mxu0 0.0
        %4904 = vmatprep.subr.mxu0 0.0
        %4905 = vmatpush1.xpose.msra.mxu0 0.0
        %4906 = vmatprep.subr.mxu0 0.0
        %4907 = vmatpush1.xpose.msra.mxu0 0.0
        %4908 = vmatprep.mubr.f32.mxu0 0.0
        %v4909 = vand.u32 %v4577, 4294901760
        %v4910 = vsub.f32 %v4577, %v4909
        %v4911 = vand.u32 %v4910, 4294901760
        %4912 = vmatmul.mubr.f32.gmra.mrb[0].mxu0 %v4911
        %v4913 = vpop.f32.mrb[0].mxu0
        %v4914 = vadd.f32 %v4832, %v4913
        %v4915 = vpop.f32.mrb[0].mxu0
        %4916 = vmatprep.mubr.f32.mxu0 0.0
        %v4917 = vand.u32 %v4579, 4294901760
        %v4918 = vsub.f32 %v4579, %v4917
        %v4919 = vand.u32 %v4918, 4294901760
        %4920 = vmatmul.mubr.f32.gmra.mrb[0].mxu0 %v4919
        %v4921 = vpop.f32.mrb[0].mxu0
        %v4922 = vadd.f32 %v4839, %v4921
        %v4923 = vpop.f32.mrb[0].mxu0
        %4924 = vdwg.mxu0
        %4925 = vmatprep.subr.mxu0 0.0
        %v4926 = vand.u32 %v4581, 4294901760
        %v4927 = vsub.f32 %v4581, %v4926
        %v4928 = vand.u32 %v4927, 4294901760
        %4929 = vmatpush1.xpose.msra.mxu0 %v4928
        %4930 = vmatprep.subr.mxu0 0.0
        %v4931 = vand.u32 %v4583, 4294901760
        %v4932 = vsub.f32 %v4583, %v4931
        %v4933 = vand.u32 %v4932, 4294901760
        %4934 = vmatpush1.xpose.msra.mxu0 %v4933
        %4935 = vmatprep.subr.mxu0 0.0
        %4936 = vmatpush1.xpose.msra.mxu0 0.0
        %4937 = vmatprep.subr.mxu0 0.0
        %4938 = vmatpush1.xpose.msra.mxu0 0.0
        %4939 = vmatprep.subr.mxu0 0.0
        %4940 = vmatpush1.xpose.msra.mxu0 0.0
        %4941 = vmatprep.subr.mxu0 0.0
        %4942 = vmatpush1.xpose.msra.mxu0 0.0
        %4943 = vmatprep.subr.mxu0 0.0
        %4944 = vmatpush1.xpose.msra.mxu0 0.0
        %4945 = vmatprep.subr.mxu0 0.0
        %4946 = vmatpush1.xpose.msra.mxu0 0.0
        %4947 = vmatprep.subr.mxu0 0.0
        %4948 = vmatpush1.xpose.msra.mxu0 0.0
        %4949 = vmatprep.subr.mxu0 0.0
        %4950 = vmatpush1.xpose.msra.mxu0 0.0
        %4951 = vmatprep.subr.mxu0 0.0
        %4952 = vmatpush1.xpose.msra.mxu0 0.0
        %4953 = vmatprep.subr.mxu0 0.0
        %4954 = vmatpush1.xpose.msra.mxu0 0.0
        %4955 = vmatprep.subr.mxu0 0.0
        %4956 = vmatpush1.xpose.msra.mxu0 0.0
        %4957 = vmatprep.subr.mxu0 0.0
        %4958 = vmatpush1.xpose.msra.mxu0 0.0
        %4959 = vmatprep.subr.mxu0 0.0
        %4960 = vmatpush1.xpose.msra.mxu0 0.0
        %4961 = vmatprep.subr.mxu0 0.0
        %4962 = vmatpush1.xpose.msra.mxu0 0.0
        %4963 = vmatprep.subr.mxu0 0.0
        %4964 = vmatpush1.xpose.msra.mxu0 0.0
        %4965 = vmatprep.subr.mxu0 0.0
        %4966 = vmatpush1.xpose.msra.mxu0 0.0
        %4967 = vmatprep.subr.mxu0 0.0
        %4968 = vmatpush1.xpose.msra.mxu0 0.0
        %4969 = vmatprep.subr.mxu0 0.0
        %4970 = vmatpush1.xpose.msra.mxu0 0.0
        %4971 = vmatprep.subr.mxu0 0.0
        %4972 = vmatpush1.xpose.msra.mxu0 0.0
        %4973 = vmatprep.subr.mxu0 0.0
        %4974 = vmatpush1.xpose.msra.mxu0 0.0
        %4975 = vmatprep.subr.mxu0 0.0
        %4976 = vmatpush1.xpose.msra.mxu0 0.0
        %4977 = vmatprep.subr.mxu0 0.0
        %4978 = vmatpush1.xpose.msra.mxu0 0.0
        %4979 = vmatprep.subr.mxu0 0.0
        %4980 = vmatpush1.xpose.msra.mxu0 0.0
        %4981 = vmatprep.subr.mxu0 0.0
        %4982 = vmatpush1.xpose.msra.mxu0 0.0
        %4983 = vmatprep.subr.mxu0 0.0
        %4984 = vmatpush1.xpose.msra.mxu0 0.0
        %4985 = vmatprep.subr.mxu0 0.0
        %4986 = vmatpush1.xpose.msra.mxu0 0.0
        %4987 = vmatprep.subr.mxu0 0.0
        %4988 = vmatpush1.xpose.msra.mxu0 0.0
        %4989 = vmatprep.subr.mxu0 0.0
        %4990 = vmatpush1.xpose.msra.mxu0 0.0
        %4991 = vmatprep.subr.mxu0 0.0
        %4992 = vmatpush1.xpose.msra.mxu0 0.0
        %4993 = vmatprep.subr.mxu0 0.0
        %4994 = vmatpush1.xpose.msra.mxu0 0.0
        %4995 = vmatprep.mubr.f32.mxu0 0.0
        %v4996 = vand.u32 %v4577, 4294901760
        %4997 = vmatmul.mubr.f32.gmra.mrb[0].mxu0 %v4996
        %v4998 = vpop.f32.mrb[0].mxu0
        %v4999 = vadd.f32 %v4914, %v4998
        %v5000 = vpop.f32.mrb[0].mxu0
        %5001 = vmatprep.mubr.f32.mxu0 0.0
        %v5002 = vand.u32 %v4579, 4294901760
        %5003 = vmatmul.mubr.f32.gmra.mrb[0].mxu0 %v5002
        %v5004 = vpop.f32.mrb[0].mxu0
        %v5005 = vadd.f32 %v4922, %v5004
        %v5006 = vpop.f32.mrb[0].mxu0
        %5007 = vdwg.mxu0
        %5008 = vmatprep.subr.mxu0 0.0
        %v5009 = vand.u32 %v4581, 4294901760
        %5010 = vmatpush1.xpose.msra.mxu0 %v5009
        %5011 = vmatprep.subr.mxu0 0.0
        %v5012 = vand.u32 %v4583, 4294901760
        %5013 = vmatpush1.xpose.msra.mxu0 %v5012
        %5014 = vmatprep.subr.mxu0 0.0
        %5015 = vmatpush1.xpose.msra.mxu0 0.0
        %5016 = vmatprep.subr.mxu0 0.0
        %5017 = vmatpush1.xpose.msra.mxu0 0.0
        %5018 = vmatprep.subr.mxu0 0.0
        %5019 = vmatpush1.xpose.msra.mxu0 0.0
        %5020 = vmatprep.subr.mxu0 0.0
        %5021 = vmatpush1.xpose.msra.mxu0 0.0
        %5022 = vmatprep.subr.mxu0 0.0
        %5023 = vmatpush1.xpose.msra.mxu0 0.0
        %5024 = vmatprep.subr.mxu0 0.0
        %5025 = vmatpush1.xpose.msra.mxu0 0.0
        %5026 = vmatprep.subr.mxu0 0.0
        %5027 = vmatpush1.xpose.msra.mxu0 0.0
        %5028 = vmatprep.subr.mxu0 0.0
        %5029 = vmatpush1.xpose.msra.mxu0 0.0
        %5030 = vmatprep.subr.mxu0 0.0
        %5031 = vmatpush1.xpose.msra.mxu0 0.0
        %5032 = vmatprep.subr.mxu0 0.0
        %5033 = vmatpush1.xpose.msra.mxu0 0.0
        %5034 = vmatprep.subr.mxu0 0.0
        %5035 = vmatpush1.xpose.msra.mxu0 0.0
        %5036 = vmatprep.subr.mxu0 0.0
        %5037 = vmatpush1.xpose.msra.mxu0 0.0
        %5038 = vmatprep.subr.mxu0 0.0
        %5039 = vmatpush1.xpose.msra.mxu0 0.0
        %5040 = vmatprep.subr.mxu0 0.0
        %5041 = vmatpush1.xpose.msra.mxu0 0.0
        %5042 = vmatprep.subr.mxu0 0.0
        %5043 = vmatpush1.xpose.msra.mxu0 0.0
        %5044 = vmatprep.subr.mxu0 0.0
        %5045 = vmatpush1.xpose.msra.mxu0 0.0
        %5046 = vmatprep.subr.mxu0 0.0
        %5047 = vmatpush1.xpose.msra.mxu0 0.0
        %5048 = vmatprep.subr.mxu0 0.0
        %5049 = vmatpush1.xpose.msra.mxu0 0.0
        %5050 = vmatprep.subr.mxu0 0.0
        %5051 = vmatpush1.xpose.msra.mxu0 0.0
        %5052 = vmatprep.subr.mxu0 0.0
        %5053 = vmatpush1.xpose.msra.mxu0 0.0
        %5054 = vmatprep.subr.mxu0 0.0
        %5055 = vmatpush1.xpose.msra.mxu0 0.0
        %5056 = vmatprep.subr.mxu0 0.0
        %5057 = vmatpush1.xpose.msra.mxu0 0.0
        %5058 = vmatprep.subr.mxu0 0.0
        %5059 = vmatpush1.xpose.msra.mxu0 0.0
        %5060 = vmatprep.subr.mxu0 0.0
        %5061 = vmatpush1.xpose.msra.mxu0 0.0
        %5062 = vmatprep.subr.mxu0 0.0
        %5063 = vmatpush1.xpose.msra.mxu0 0.0
        %5064 = vmatprep.subr.mxu0 0.0
        %5065 = vmatpush1.xpose.msra.mxu0 0.0
        %5066 = vmatprep.subr.mxu0 0.0
        %5067 = vmatpush1.xpose.msra.mxu0 0.0
        %5068 = vmatprep.subr.mxu0 0.0
        %5069 = vmatpush1.xpose.msra.mxu0 0.0
        %5070 = vmatprep.subr.mxu0 0.0
        %5071 = vmatpush1.xpose.msra.mxu0 0.0
        %5072 = vmatprep.subr.mxu0 0.0
        %5073 = vmatpush1.xpose.msra.mxu0 0.0
        %5074 = vmatprep.mubr.f32.mxu0 0.0
        %v5075 = vand.u32 %v4577, 4294901760
        %5076 = vmatmul.mubr.f32.gmra.mrb[0].mxu0 %v5075
        %v5077 = vpop.f32.mrb[0].mxu0
        %v5078 = vadd.f32 %v4999, %v5077
        %v5079 = vpop.f32.mrb[0].mxu0
        %5080 = vmatprep.mubr.f32.mxu0 0.0
        %v5081 = vand.u32 %v4579, 4294901760
        %5082 = vmatmul.mubr.f32.gmra.mrb[0].mxu0 %v5081
        %v5083 = vpop.f32.mrb[0].mxu0
        %v5084 = vadd.f32 %v5005, %v5083
        %v5085 = vpop.f32.mrb[0].mxu0
        %5086 = vdwg.mxu0
        %v5087 = vmul.f32 %v5078, %v2800
        %v5088 = vmul.f32 %v5084, %v2801
        %v5089 = vsel %vm4028, %v5087, -inf
        %5090 = vmax.xlane.f32.xlu0 %v5089
        %v5091 = vpop.xlane.xlu0 %5090
        %v5092 = vsel %vm4028, %v5088, -inf
        %5093 = vmax.xlane.f32.xlu0 %v5092
        %v5094 = vpop.xlane.xlu0 %5093
        %v5095 = vsub.f32 %v5087, %v5091
        %v5096 = vsub.f32 %v5088, %v5094
        %v5097 = vmul.f32 %v5095, 1.442695
        %v5098 = vpow.pop %v5097
        %v5099 = vmul.f32 %v5096, 1.442695
        %v5100 = vpow.pop %v5099
        %v5101 = vsel %vm4028, %v5098, 0.0
        %5102 = vadd.xlane.f32.xlu0 %v5101
        %v5103 = vpop.xlane.xlu0 %5102
        %v5104 = vsel %vm4028, %v5100, 0.0
        %5105 = vadd.xlane.f32.xlu0 %v5104
        %v5106 = vpop.xlane.xlu0 %5105
        %v5107 = vld [vmem:[#allocation4] sm:$0xff]
        %v5108 = vld [vmem:[#allocation4 + $0x8] sm:$0xff]
        %5111 = vrot.lane.b32.xlu0 %v5107, 64
        %v5112 = vpop.permute.xlu0 %5111
        %5113 = vrot.lane.b32.xlu0 %v5108, 64
        %v5114 = vpop.permute.xlu0 %5113
        %v5118 = vsel %vm4028, %v5098, 0
        %v5121 = vsel %vm4028, %v5100, 0
        %5123 = vmatprep.subr.mxu0 0.0
        %v5124 = vand.u32 %v5112, 4294901760
        %5125 = vmatpush1.msra.mxu0 %v5124
        %5126 = vmatprep.subr.mxu0 0.0
        %v5127 = vand.u32 %v5114, 4294901760
        %5128 = vmatpush1.msra.mxu0 %v5127
        %5129 = vmatprep.subr.mxu0 0.0
        %5130 = vmatpush1.msra.mxu0 0.0
        %5131 = vmatprep.subr.mxu0 0.0
        %5132 = vmatpush1.msra.mxu0 0.0
        %5133 = vmatprep.subr.mxu0 0.0
        %5134 = vmatpush1.msra.mxu0 0.0
        %5135 = vmatprep.subr.mxu0 0.0
        %5136 = vmatpush1.msra.mxu0 0.0
        %5137 = vmatprep.subr.mxu0 0.0
        %5138 = vmatpush1.msra.mxu0 0.0
        %5139 = vmatprep.subr.mxu0 0.0
        %5140 = vmatpush1.msra.mxu0 0.0
        %5141 = vmatprep.subr.mxu0 0.0
        %5142 = vmatpush1.msra.mxu0 0.0
        %5143 = vmatprep.subr.mxu0 0.0
        %5144 = vmatpush1.msra.mxu0 0.0
        %5145 = vmatprep.subr.mxu0 0.0
        %5146 = vmatpush1.msra.mxu0 0.0
        %5147 = vmatprep.subr.mxu0 0.0
        %5148 = vmatpush1.msra.mxu0 0.0
        %5149 = vmatprep.subr.mxu0 0.0
        %5150 = vmatpush1.msra.mxu0 0.0
        %5151 = vmatprep.subr.mxu0 0.0
        %5152 = vmatpush1.msra.mxu0 0.0
        %5153 = vmatprep.subr.mxu0 0.0
        %5154 = vmatpush1.msra.mxu0 0.0
        %5155 = vmatprep.subr.mxu0 0.0
        %5156 = vmatpush1.msra.mxu0 0.0
        %5157 = vmatprep.subr.mxu0 0.0
        %5158 = vmatpush1.msra.mxu0 0.0
        %5159 = vmatprep.subr.mxu0 0.0
        %5160 = vmatpush1.msra.mxu0 0.0
        %5161 = vmatprep.subr.mxu0 0.0
        %5162 = vmatpush1.msra.mxu0 0.0
        %5163 = vmatprep.subr.mxu0 0.0
        %5164 = vmatpush1.msra.mxu0 0.0
        %5165 = vmatprep.subr.mxu0 0.0
        %5166 = vmatpush1.msra.mxu0 0.0
        %5167 = vmatprep.subr.mxu0 0.0
        %5168 = vmatpush1.msra.mxu0 0.0
        %5169 = vmatprep.subr.mxu0 0.0
        %5170 = vmatpush1.msra.mxu0 0.0
        %5171 = vmatprep.subr.mxu0 0.0
        %5172 = vmatpush1.msra.mxu0 0.0
        %5173 = vmatprep.subr.mxu0 0.0
        %5174 = vmatpush1.msra.mxu0 0.0
        %5175 = vmatprep.subr.mxu0 0.0
        %5176 = vmatpush1.msra.mxu0 0.0
        %5177 = vmatprep.subr.mxu0 0.0
        %5178 = vmatpush1.msra.mxu0 0.0
        %5179 = vmatprep.subr.mxu0 0.0
        %5180 = vmatpush1.msra.mxu0 0.0
        %5181 = vmatprep.subr.mxu0 0.0
        %5182 = vmatpush1.msra.mxu0 0.0
        %5183 = vmatprep.subr.mxu0 0.0
        %5184 = vmatpush1.msra.mxu0 0.0
        %5185 = vmatprep.subr.mxu0 0.0
        %5186 = vmatpush1.msra.mxu0 0.0
        %5187 = vmatprep.subr.mxu0 0.0
        %5188 = vmatpush1.msra.mxu0 0.0
        %5189 = vmatprep.mubr.f32.mxu0 0.0
        %v5190 = vand.u32 %v5118, 4294901760
        %v5191 = vsub.f32 %v5118, %v5190
        %v5192 = vand.u32 %v5191, 4294901760
        %v5193 = vsub.f32 %v5191, %v5192
        %v5194 = vand.u32 %v5193, 4294901760
        %5195 = vmatmul.mubr.f32.gmra.mrb[0].mxu0 %v5194
        %v5196 = vpop.f32.mrb[0].mxu0
        %v5197 = vadd.f32 0.0, %v5196
        %v5198 = vpop.f32.mrb[0].mxu0
        %5199 = vmatprep.mubr.f32.mxu0 0.0
        %v5200 = vand.u32 %v5121, 4294901760
        %v5201 = vsub.f32 %v5121, %v5200
        %v5202 = vand.u32 %v5201, 4294901760
        %v5203 = vsub.f32 %v5201, %v5202
        %v5204 = vand.u32 %v5203, 4294901760
        %5205 = vmatmul.mubr.f32.gmra.mrb[0].mxu0 %v5204
        %v5206 = vpop.f32.mrb[0].mxu0
        %v5207 = vadd.f32 0.0, %v5206
        %v5208 = vpop.f32.mrb[0].mxu0
        %5209 = vdwg.mxu0
        %5210 = vmatprep.subr.mxu0 0.0
        %v5211 = vand.u32 %v5112, 4294901760
        %v5212 = vsub.f32 %v5112, %v5211
        %v5213 = vand.u32 %v5212, 4294901760
        %v5214 = vsub.f32 %v5212, %v5213
        %v5215 = vand.u32 %v5214, 4294901760
        %5216 = vmatpush1.msra.mxu0 %v5215
        %5217 = vmatprep.subr.mxu0 0.0
        %v5218 = vand.u32 %v5114, 4294901760
        %v5219 = vsub.f32 %v5114, %v5218
        %v5220 = vand.u32 %v5219, 4294901760
        %v5221 = vsub.f32 %v5219, %v5220
        %v5222 = vand.u32 %v5221, 4294901760
        %5223 = vmatpush1.msra.mxu0 %v5222
        %5224 = vmatprep.subr.mxu0 0.0
        %5225 = vmatpush1.msra.mxu0 0.0
        %5226 = vmatprep.subr.mxu0 0.0
        %5227 = vmatpush1.msra.mxu0 0.0
        %5228 = vmatprep.subr.mxu0 0.0
        %5229 = vmatpush1.msra.mxu0 0.0
        %5230 = vmatprep.subr.mxu0 0.0
        %5231 = vmatpush1.msra.mxu0 0.0
        %5232 = vmatprep.subr.mxu0 0.0
        %5233 = vmatpush1.msra.mxu0 0.0
        %5234 = vmatprep.subr.mxu0 0.0
        %5235 = vmatpush1.msra.mxu0 0.0
        %5236 = vmatprep.subr.mxu0 0.0
        %5237 = vmatpush1.msra.mxu0 0.0
        %5238 = vmatprep.subr.mxu0 0.0
        %5239 = vmatpush1.msra.mxu0 0.0
        %5240 = vmatprep.subr.mxu0 0.0
        %5241 = vmatpush1.msra.mxu0 0.0
        %5242 = vmatprep.subr.mxu0 0.0
        %5243 = vmatpush1.msra.mxu0 0.0
        %5244 = vmatprep.subr.mxu0 0.0
        %5245 = vmatpush1.msra.mxu0 0.0
        %5246 = vmatprep.subr.mxu0 0.0
        %5247 = vmatpush1.msra.mxu0 0.0
        %5248 = vmatprep.subr.mxu0 0.0
        %5249 = vmatpush1.msra.mxu0 0.0
        %5250 = vmatprep.subr.mxu0 0.0
        %5251 = vmatpush1.msra.mxu0 0.0
        %5252 = vmatprep.subr.mxu0 0.0
        %5253 = vmatpush1.msra.mxu0 0.0
        %5254 = vmatprep.subr.mxu0 0.0
        %5255 = vmatpush1.msra.mxu0 0.0
        %5256 = vmatprep.subr.mxu0 0.0
        %5257 = vmatpush1.msra.mxu0 0.0
        %5258 = vmatprep.subr.mxu0 0.0
        %5259 = vmatpush1.msra.mxu0 0.0
        %5260 = vmatprep.subr.mxu0 0.0
        %5261 = vmatpush1.msra.mxu0 0.0
        %5262 = vmatprep.subr.mxu0 0.0
        %5263 = vmatpush1.msra.mxu0 0.0
        %5264 = vmatprep.subr.mxu0 0.0
        %5265 = vmatpush1.msra.mxu0 0.0
        %5266 = vmatprep.subr.mxu0 0.0
        %5267 = vmatpush1.msra.mxu0 0.0
        %5268 = vmatprep.subr.mxu0 0.0
        %5269 = vmatpush1.msra.mxu0 0.0
        %5270 = vmatprep.subr.mxu0 0.0
        %5271 = vmatpush1.msra.mxu0 0.0
        %5272 = vmatprep.subr.mxu0 0.0
        %5273 = vmatpush1.msra.mxu0 0.0
        %5274 = vmatprep.subr.mxu0 0.0
        %5275 = vmatpush1.msra.mxu0 0.0
        %5276 = vmatprep.subr.mxu0 0.0
        %5277 = vmatpush1.msra.mxu0 0.0
        %5278 = vmatprep.subr.mxu0 0.0
        %5279 = vmatpush1.msra.mxu0 0.0
        %5280 = vmatprep.subr.mxu0 0.0
        %5281 = vmatpush1.msra.mxu0 0.0
        %5282 = vmatprep.subr.mxu0 0.0
        %5283 = vmatpush1.msra.mxu0 0.0
        %5284 = vmatprep.mubr.f32.mxu0 0.0
        %v5285 = vand.u32 %v5118, 4294901760
        %5286 = vmatmul.mubr.f32.gmra.mrb[0].mxu0 %v5285
        %v5287 = vpop.f32.mrb[0].mxu0
        %v5288 = vadd.f32 %v5197, %v5287
        %v5289 = vpop.f32.mrb[0].mxu0
        %5290 = vmatprep.mubr.f32.mxu0 0.0
        %v5291 = vand.u32 %v5121, 4294901760
        %5292 = vmatmul.mubr.f32.gmra.mrb[0].mxu0 %v5291
        %v5293 = vpop.f32.mrb[0].mxu0
        %v5294 = vadd.f32 %v5207, %v5293
        %v5295 = vpop.f32.mrb[0].mxu0
        %5296 = vdwg.mxu0
        %5297 = vmatprep.subr.mxu0 0.0
        %v5298 = vand.u32 %v5112, 4294901760
        %v5299 = vsub.f32 %v5112, %v5298
        %5300 = vmatpush1.msra.mxu0 %v5299
        %5301 = vmatprep.subr.mxu0 0.0
        %v5302 = vand.u32 %v5114, 4294901760
        %v5303 = vsub.f32 %v5114, %v5302
        %5304 = vmatpush1.msra.mxu0 %v5303
        %5305 = vmatprep.subr.mxu0 0.0
        %5306 = vmatpush1.msra.mxu0 0.0
        %5307 = vmatprep.subr.mxu0 0.0
        %5308 = vmatpush1.msra.mxu0 0.0
        %5309 = vmatprep.subr.mxu0 0.0
        %5310 = vmatpush1.msra.mxu0 0.0
        %5311 = vmatprep.subr.mxu0 0.0
        %5312 = vmatpush1.msra.mxu0 0.0
        %5313 = vmatprep.subr.mxu0 0.0
        %5314 = vmatpush1.msra.mxu0 0.0
        %5315 = vmatprep.subr.mxu0 0.0
        %5316 = vmatpush1.msra.mxu0 0.0
        %5317 = vmatprep.subr.mxu0 0.0
        %5318 = vmatpush1.msra.mxu0 0.0
        %5319 = vmatprep.subr.mxu0 0.0
        %5320 = vmatpush1.msra.mxu0 0.0
        %5321 = vmatprep.subr.mxu0 0.0
        %5322 = vmatpush1.msra.mxu0 0.0
        %5323 = vmatprep.subr.mxu0 0.0
        %5324 = vmatpush1.msra.mxu0 0.0
        %5325 = vmatprep.subr.mxu0 0.0
        %5326 = vmatpush1.msra.mxu0 0.0
        %5327 = vmatprep.subr.mxu0 0.0
        %5328 = vmatpush1.msra.mxu0 0.0
        %5329 = vmatprep.subr.mxu0 0.0
        %5330 = vmatpush1.msra.mxu0 0.0
        %5331 = vmatprep.subr.mxu0 0.0
        %5332 = vmatpush1.msra.mxu0 0.0
        %5333 = vmatprep.subr.mxu0 0.0
        %5334 = vmatpush1.msra.mxu0 0.0
        %5335 = vmatprep.subr.mxu0 0.0
        %5336 = vmatpush1.msra.mxu0 0.0
        %5337 = vmatprep.subr.mxu0 0.0
        %5338 = vmatpush1.msra.mxu0 0.0
        %5339 = vmatprep.subr.mxu0 0.0
        %5340 = vmatpush1.msra.mxu0 0.0
        %5341 = vmatprep.subr.mxu0 0.0
        %5342 = vmatpush1.msra.mxu0 0.0
        %5343 = vmatprep.subr.mxu0 0.0
        %5344 = vmatpush1.msra.mxu0 0.0
        %5345 = vmatprep.subr.mxu0 0.0
        %5346 = vmatpush1.msra.mxu0 0.0
        %5347 = vmatprep.subr.mxu0 0.0
        %5348 = vmatpush1.msra.mxu0 0.0
        %5349 = vmatprep.subr.mxu0 0.0
        %5350 = vmatpush1.msra.mxu0 0.0
        %5351 = vmatprep.subr.mxu0 0.0
        %5352 = vmatpush1.msra.mxu0 0.0
        %5353 = vmatprep.subr.mxu0 0.0
        %5354 = vmatpush1.msra.mxu0 0.0
        %5355 = vmatprep.subr.mxu0 0.0
        %5356 = vmatpush1.msra.mxu0 0.0
        %5357 = vmatprep.subr.mxu0 0.0
        %5358 = vmatpush1.msra.mxu0 0.0
        %5359 = vmatprep.subr.mxu0 0.0
        %5360 = vmatpush1.msra.mxu0 0.0
        %5361 = vmatprep.subr.mxu0 0.0
        %5362 = vmatpush1.msra.mxu0 0.0
        %5363 = vmatprep.subr.mxu0 0.0
        %5364 = vmatpush1.msra.mxu0 0.0
        %5365 = vmatprep.mubr.f32.mxu0 0.0
        %v5366 = vand.u32 %v5118, 4294901760
        %v5367 = vsub.f32 %v5118, %v5366
        %5368 = vmatmul.mubr.f32.gmra.mrb[0].mxu0 %v5367
        %v5369 = vpop.f32.mrb[0].mxu0
        %v5370 = vadd.f32 %v5288, %v5369
        %v5371 = vpop.f32.mrb[0].mxu0
        %5372 = vmatprep.mubr.f32.mxu0 0.0
        %v5373 = vand.u32 %v5121, 4294901760
        %v5374 = vsub.f32 %v5121, %v5373
        %5375 = vmatmul.mubr.f32.gmra.mrb[0].mxu0 %v5374
        %v5376 = vpop.f32.mrb[0].mxu0
        %v5377 = vadd.f32 %v5294, %v5376
        %v5378 = vpop.f32.mrb[0].mxu0
        %5379 = vdwg.mxu0
        %5380 = vmatprep.subr.mxu0 0.0
        %v5381 = vand.u32 %v5112, 4294901760
        %5382 = vmatpush1.msra.mxu0 %v5381
        %5383 = vmatprep.subr.mxu0 0.0
        %v5384 = vand.u32 %v5114, 4294901760
        %5385 = vmatpush1.msra.mxu0 %v5384
        %5386 = vmatprep.subr.mxu0 0.0
        %5387 = vmatpush1.msra.mxu0 0.0
        %5388 = vmatprep.subr.mxu0 0.0
        %5389 = vmatpush1.msra.mxu0 0.0
        %5390 = vmatprep.subr.mxu0 0.0
        %5391 = vmatpush1.msra.mxu0 0.0
        %5392 = vmatprep.subr.mxu0 0.0
        %5393 = vmatpush1.msra.mxu0 0.0
        %5394 = vmatprep.subr.mxu0 0.0
        %5395 = vmatpush1.msra.mxu0 0.0
        %5396 = vmatprep.subr.mxu0 0.0
        %5397 = vmatpush1.msra.mxu0 0.0
        %5398 = vmatprep.subr.mxu0 0.0
        %5399 = vmatpush1.msra.mxu0 0.0
        %5400 = vmatprep.subr.mxu0 0.0
        %5401 = vmatpush1.msra.mxu0 0.0
        %5402 = vmatprep.subr.mxu0 0.0
        %5403 = vmatpush1.msra.mxu0 0.0
        %5404 = vmatprep.subr.mxu0 0.0
        %5405 = vmatpush1.msra.mxu0 0.0
        %5406 = vmatprep.subr.mxu0 0.0
        %5407 = vmatpush1.msra.mxu0 0.0
        %5408 = vmatprep.subr.mxu0 0.0
        %5409 = vmatpush1.msra.mxu0 0.0
        %5410 = vmatprep.subr.mxu0 0.0
        %5411 = vmatpush1.msra.mxu0 0.0
        %5412 = vmatprep.subr.mxu0 0.0
        %5413 = vmatpush1.msra.mxu0 0.0
        %5414 = vmatprep.subr.mxu0 0.0
        %5415 = vmatpush1.msra.mxu0 0.0
        %5416 = vmatprep.subr.mxu0 0.0
        %5417 = vmatpush1.msra.mxu0 0.0
        %5418 = vmatprep.subr.mxu0 0.0
        %5419 = vmatpush1.msra.mxu0 0.0
        %5420 = vmatprep.subr.mxu0 0.0
        %5421 = vmatpush1.msra.mxu0 0.0
        %5422 = vmatprep.subr.mxu0 0.0
        %5423 = vmatpush1.msra.mxu0 0.0
        %5424 = vmatprep.subr.mxu0 0.0
        %5425 = vmatpush1.msra.mxu0 0.0
        %5426 = vmatprep.subr.mxu0 0.0
        %5427 = vmatpush1.msra.mxu0 0.0
        %5428 = vmatprep.subr.mxu0 0.0
        %5429 = vmatpush1.msra.mxu0 0.0
        %5430 = vmatprep.subr.mxu0 0.0
        %5431 = vmatpush1.msra.mxu0 0.0
        %5432 = vmatprep.subr.mxu0 0.0
        %5433 = vmatpush1.msra.mxu0 0.0
        %5434 = vmatprep.subr.mxu0 0.0
        %5435 = vmatpush1.msra.mxu0 0.0
        %5436 = vmatprep.subr.mxu0 0.0
        %5437 = vmatpush1.msra.mxu0 0.0
        %5438 = vmatprep.subr.mxu0 0.0
        %5439 = vmatpush1.msra.mxu0 0.0
        %5440 = vmatprep.subr.mxu0 0.0
        %5441 = vmatpush1.msra.mxu0 0.0
        %5442 = vmatprep.subr.mxu0 0.0
        %5443 = vmatpush1.msra.mxu0 0.0
        %5444 = vmatprep.subr.mxu0 0.0
        %5445 = vmatpush1.msra.mxu0 0.0
        %5446 = vmatprep.mubr.f32.mxu0 0.0
        %v5447 = vand.u32 %v5118, 4294901760
        %v5448 = vsub.f32 %v5118, %v5447
        %v5449 = vand.u32 %v5448, 4294901760
        %5450 = vmatmul.mubr.f32.gmra.mrb[0].mxu0 %v5449
        %v5451 = vpop.f32.mrb[0].mxu0
        %v5452 = vadd.f32 %v5370, %v5451
        %v5453 = vpop.f32.mrb[0].mxu0
        %5454 = vmatprep.mubr.f32.mxu0 0.0
        %v5455 = vand.u32 %v5121, 4294901760
        %v5456 = vsub.f32 %v5121, %v5455
        %v5457 = vand.u32 %v5456, 4294901760
        %5458 = vmatmul.mubr.f32.gmra.mrb[0].mxu0 %v5457
        %v5459 = vpop.f32.mrb[0].mxu0
        %v5460 = vadd.f32 %v5377, %v5459
        %v5461 = vpop.f32.mrb[0].mxu0
        %5462 = vdwg.mxu0
        %5463 = vmatprep.subr.mxu0 0.0
        %v5464 = vand.u32 %v5112, 4294901760
        %v5465 = vsub.f32 %v5112, %v5464
        %v5466 = vand.u32 %v5465, 4294901760
        %5467 = vmatpush1.msra.mxu0 %v5466
        %5468 = vmatprep.subr.mxu0 0.0
        %v5469 = vand.u32 %v5114, 4294901760
        %v5470 = vsub.f32 %v5114, %v5469
        %v5471 = vand.u32 %v5470, 4294901760
        %5472 = vmatpush1.msra.mxu0 %v5471
        %5473 = vmatprep.subr.mxu0 0.0
        %5474 = vmatpush1.msra.mxu0 0.0
        %5475 = vmatprep.subr.mxu0 0.0
        %5476 = vmatpush1.msra.mxu0 0.0
        %5477 = vmatprep.subr.mxu0 0.0
        %5478 = vmatpush1.msra.mxu0 0.0
        %5479 = vmatprep.subr.mxu0 0.0
        %5480 = vmatpush1.msra.mxu0 0.0
        %5481 = vmatprep.subr.mxu0 0.0
        %5482 = vmatpush1.msra.mxu0 0.0
        %5483 = vmatprep.subr.mxu0 0.0
        %5484 = vmatpush1.msra.mxu0 0.0
        %5485 = vmatprep.subr.mxu0 0.0
        %5486 = vmatpush1.msra.mxu0 0.0
        %5487 = vmatprep.subr.mxu0 0.0
        %5488 = vmatpush1.msra.mxu0 0.0
        %5489 = vmatprep.subr.mxu0 0.0
        %5490 = vmatpush1.msra.mxu0 0.0
        %5491 = vmatprep.subr.mxu0 0.0
        %5492 = vmatpush1.msra.mxu0 0.0
        %5493 = vmatprep.subr.mxu0 0.0
        %5494 = vmatpush1.msra.mxu0 0.0
        %5495 = vmatprep.subr.mxu0 0.0
        %5496 = vmatpush1.msra.mxu0 0.0
        %5497 = vmatprep.subr.mxu0 0.0
        %5498 = vmatpush1.msra.mxu0 0.0
        %5499 = vmatprep.subr.mxu0 0.0
        %5500 = vmatpush1.msra.mxu0 0.0
        %5501 = vmatprep.subr.mxu0 0.0
        %5502 = vmatpush1.msra.mxu0 0.0
        %5503 = vmatprep.subr.mxu0 0.0
        %5504 = vmatpush1.msra.mxu0 0.0
        %5505 = vmatprep.subr.mxu0 0.0
        %5506 = vmatpush1.msra.mxu0 0.0
        %5507 = vmatprep.subr.mxu0 0.0
        %5508 = vmatpush1.msra.mxu0 0.0
        %5509 = vmatprep.subr.mxu0 0.0
        %5510 = vmatpush1.msra.mxu0 0.0
        %5511 = vmatprep.subr.mxu0 0.0
        %5512 = vmatpush1.msra.mxu0 0.0
        %5513 = vmatprep.subr.mxu0 0.0
        %5514 = vmatpush1.msra.mxu0 0.0
        %5515 = vmatprep.subr.mxu0 0.0
        %5516 = vmatpush1.msra.mxu0 0.0
        %5517 = vmatprep.subr.mxu0 0.0
        %5518 = vmatpush1.msra.mxu0 0.0
        %5519 = vmatprep.subr.mxu0 0.0
        %5520 = vmatpush1.msra.mxu0 0.0
        %5521 = vmatprep.subr.mxu0 0.0
        %5522 = vmatpush1.msra.mxu0 0.0
        %5523 = vmatprep.subr.mxu0 0.0
        %5524 = vmatpush1.msra.mxu0 0.0
        %5525 = vmatprep.subr.mxu0 0.0
        %5526 = vmatpush1.msra.mxu0 0.0
        %5527 = vmatprep.subr.mxu0 0.0
        %5528 = vmatpush1.msra.mxu0 0.0
        %5529 = vmatprep.subr.mxu0 0.0
        %5530 = vmatpush1.msra.mxu0 0.0
        %5531 = vmatprep.subr.mxu0 0.0
        %5532 = vmatpush1.msra.mxu0 0.0
        %5533 = vmatprep.mubr.f32.mxu0 0.0
        %v5534 = vand.u32 %v5118, 4294901760
        %5535 = vmatmul.mubr.f32.gmra.mrb[0].mxu0 %v5534
        %v5536 = vpop.f32.mrb[0].mxu0
        %v5537 = vadd.f32 %v5452, %v5536
        %v5538 = vpop.f32.mrb[0].mxu0
        %5539 = vmatprep.mubr.f32.mxu0 0.0
        %v5540 = vand.u32 %v5121, 4294901760
        %5541 = vmatmul.mubr.f32.gmra.mrb[0].mxu0 %v5540
        %v5542 = vpop.f32.mrb[0].mxu0
        %v5543 = vadd.f32 %v5460, %v5542
        %v5544 = vpop.f32.mrb[0].mxu0
        %5545 = vdwg.mxu0
        %5546 = vmatprep.subr.mxu0 0.0
        %v5547 = vand.u32 %v5112, 4294901760
        %5548 = vmatpush1.msra.mxu0 %v5547
        %5549 = vmatprep.subr.mxu0 0.0
        %v5550 = vand.u32 %v5114, 4294901760
        %5551 = vmatpush1.msra.mxu0 %v5550
        %5552 = vmatprep.subr.mxu0 0.0
        %5553 = vmatpush1.msra.mxu0 0.0
        %5554 = vmatprep.subr.mxu0 0.0
        %5555 = vmatpush1.msra.mxu0 0.0
        %5556 = vmatprep.subr.mxu0 0.0
        %5557 = vmatpush1.msra.mxu0 0.0
        %5558 = vmatprep.subr.mxu0 0.0
        %5559 = vmatpush1.msra.mxu0 0.0
        %5560 = vmatprep.subr.mxu0 0.0
        %5561 = vmatpush1.msra.mxu0 0.0
        %5562 = vmatprep.subr.mxu0 0.0
        %5563 = vmatpush1.msra.mxu0 0.0
        %5564 = vmatprep.subr.mxu0 0.0
        %5565 = vmatpush1.msra.mxu0 0.0
        %5566 = vmatprep.subr.mxu0 0.0
        %5567 = vmatpush1.msra.mxu0 0.0
        %5568 = vmatprep.subr.mxu0 0.0
        %5569 = vmatpush1.msra.mxu0 0.0
        %5570 = vmatprep.subr.mxu0 0.0
        %5571 = vmatpush1.msra.mxu0 0.0
        %5572 = vmatprep.subr.mxu0 0.0
        %5573 = vmatpush1.msra.mxu0 0.0
        %5574 = vmatprep.subr.mxu0 0.0
        %5575 = vmatpush1.msra.mxu0 0.0
        %5576 = vmatprep.subr.mxu0 0.0
        %5577 = vmatpush1.msra.mxu0 0.0
        %5578 = vmatprep.subr.mxu0 0.0
        %5579 = vmatpush1.msra.mxu0 0.0
        %5580 = vmatprep.subr.mxu0 0.0
        %5581 = vmatpush1.msra.mxu0 0.0
        %5582 = vmatprep.subr.mxu0 0.0
        %5583 = vmatpush1.msra.mxu0 0.0
        %5584 = vmatprep.subr.mxu0 0.0
        %5585 = vmatpush1.msra.mxu0 0.0
        %5586 = vmatprep.subr.mxu0 0.0
        %5587 = vmatpush1.msra.mxu0 0.0
        %5588 = vmatprep.subr.mxu0 0.0
        %5589 = vmatpush1.msra.mxu0 0.0
        %5590 = vmatprep.subr.mxu0 0.0
        %5591 = vmatpush1.msra.mxu0 0.0
        %5592 = vmatprep.subr.mxu0 0.0
        %5593 = vmatpush1.msra.mxu0 0.0
        %5594 = vmatprep.subr.mxu0 0.0
        %5595 = vmatpush1.msra.mxu0 0.0
        %5596 = vmatprep.subr.mxu0 0.0
        %5597 = vmatpush1.msra.mxu0 0.0
        %5598 = vmatprep.subr.mxu0 0.0
        %5599 = vmatpush1.msra.mxu0 0.0
        %5600 = vmatprep.subr.mxu0 0.0
        %5601 = vmatpush1.msra.mxu0 0.0
        %5602 = vmatprep.subr.mxu0 0.0
        %5603 = vmatpush1.msra.mxu0 0.0
        %5604 = vmatprep.subr.mxu0 0.0
        %5605 = vmatpush1.msra.mxu0 0.0
        %5606 = vmatprep.subr.mxu0 0.0
        %5607 = vmatpush1.msra.mxu0 0.0
        %5608 = vmatprep.subr.mxu0 0.0
        %5609 = vmatpush1.msra.mxu0 0.0
        %5610 = vmatprep.subr.mxu0 0.0
        %5611 = vmatpush1.msra.mxu0 0.0
        %5612 = vmatprep.mubr.f32.mxu0 0.0
        %v5613 = vand.u32 %v5118, 4294901760
        %5614 = vmatmul.mubr.f32.gmra.mrb[0].mxu0 %v5613
        %v5615 = vpop.f32.mrb[0].mxu0
        %v5616 = vadd.f32 %v5537, %v5615
        %v5617 = vpop.f32.mrb[0].mxu0
        %5618 = vmatprep.mubr.f32.mxu0 0.0
        %v5619 = vand.u32 %v5121, 4294901760
        %5620 = vmatmul.mubr.f32.gmra.mrb[0].mxu0 %v5619
        %v5621 = vpop.f32.mrb[0].mxu0
        %v5622 = vadd.f32 %v5543, %v5621
        %v5623 = vpop.f32.mrb[0].mxu0
        %5624 = vdwg.mxu0
        %v5625 = vrcp.pop %v5103
        %v5626 = vmul.f32 1.0, %v5625
        %v5627 = vrcp.pop %v5106
        %v5628 = vmul.f32 1.0, %v5627
        %v5629 = vmul.f32 %v5616, %v5626
        %v5630 = vmul.f32 %v5622, %v5628
        %5633 = vrot.lane.b32.xlu0 %v5629, 64
        %v5634 = vpop.permute.xlu0 %5633
        %5635 = vrot.lane.b32.xlu0 %v5630, 64
        %v5636 = vpop.permute.xlu0 %5635
        %vm5639 = vcmask 1048064
        %5640 = vst.msk [vmem:[#allocation5] sm:$0xff] %vm5639, %v5634
        %5641 = vst.msk [vmem:[#allocation5 + $0x8] sm:$0xff] %vm5639, %v5636
        %v5642 = vld [vmem:[#allocation5] sm:$0xff]
        %v5643 = vld [vmem:[#allocation5 + $0x8] sm:$0xff]
        %v5644 = vld [vmem:[%s13] sm:$0xff]
        %v5645 = vld [vmem:[%s13 + $0x8] sm:$0xff]
        %v5646 = vld [vmem:[%s13 + $0x10] sm:$0xff]
        %v5647 = vld [vmem:[%s13 + $0x18] sm:$0xff]
        %v5648 = vld [vmem:[%s13 + $0x20] sm:$0xff]
        %v5649 = vld [vmem:[%s13 + $0x28] sm:$0xff]
        %v5650 = vld [vmem:[%s13 + $0x30] sm:$0xff]
        %v5651 = vld [vmem:[%s13 + $0x38] sm:$0xff]
        %v5652 = vld [vmem:[%s13 + $0x40] sm:$0xff]
        %v5653 = vld [vmem:[%s13 + $0x48] sm:$0xff]
        %v5654 = vld [vmem:[%s13 + $0x50] sm:$0xff]
        %v5655 = vld [vmem:[%s13 + $0x58] sm:$0xff]
        %v5656 = vld [vmem:[%s13 + $0x60] sm:$0xff]
        %v5657 = vld [vmem:[%s13 + $0x68] sm:$0xff]
        %v5658 = vld [vmem:[%s13 + $0x70] sm:$0xff]
        %v5659 = vld [vmem:[%s13 + $0x78] sm:$0xff]
        %v5660 = vld [vmem:[%s14] sm:$0x1]
        %v5662 = vlaneseq
        %v5663 = vshrl.u32 %v5662, 7
        %v5664 = vsub.s32 0, %v5663
        %v5665 = vrot.slane %v5660, %v5664
        %5667 = vmatprep.subr.mxu0 0.0
        %v5668 = vand.u32 %v5644, 4294901760
        %5669 = vmatpush1.msra.mxu0 %v5668
        %5670 = vmatprep.subr.mxu0 0.0
        %v5671 = vand.u32 %v5645, 4294901760
        %5672 = vmatpush1.msra.mxu0 %v5671
        %5673 = vmatprep.subr.mxu0 0.0
        %v5674 = vand.u32 %v5646, 4294901760
        %5675 = vmatpush1.msra.mxu0 %v5674
        %5676 = vmatprep.subr.mxu0 0.0
        %v5677 = vand.u32 %v5647, 4294901760
        %5678 = vmatpush1.msra.mxu0 %v5677
        %5679 = vmatprep.subr.mxu0 0.0
        %v5680 = vand.u32 %v5648, 4294901760
        %5681 = vmatpush1.msra.mxu0 %v5680
        %5682 = vmatprep.subr.mxu0 0.0
        %v5683 = vand.u32 %v5649, 4294901760
        %5684 = vmatpush1.msra.mxu0 %v5683
        %5685 = vmatprep.subr.mxu0 0.0
        %v5686 = vand.u32 %v5650, 4294901760
        %5687 = vmatpush1.msra.mxu0 %v5686
        %5688 = vmatprep.subr.mxu0 0.0
        %v5689 = vand.u32 %v5651, 4294901760
        %5690 = vmatpush1.msra.mxu0 %v5689
        %5691 = vmatprep.subr.mxu0 0.0
        %v5692 = vand.u32 %v5652, 4294901760
        %5693 = vmatpush1.msra.mxu0 %v5692
        %5694 = vmatprep.subr.mxu0 0.0
        %v5695 = vand.u32 %v5653, 4294901760
        %5696 = vmatpush1.msra.mxu0 %v5695
        %5697 = vmatprep.subr.mxu0 0.0
        %v5698 = vand.u32 %v5654, 4294901760
        %5699 = vmatpush1.msra.mxu0 %v5698
        %5700 = vmatprep.subr.mxu0 0.0
        %v5701 = vand.u32 %v5655, 4294901760
        %5702 = vmatpush1.msra.mxu0 %v5701
        %5703 = vmatprep.subr.mxu0 0.0
        %v5704 = vand.u32 %v5656, 4294901760
        %5705 = vmatpush1.msra.mxu0 %v5704
        %5706 = vmatprep.subr.mxu0 0.0
        %v5707 = vand.u32 %v5657, 4294901760
        %5708 = vmatpush1.msra.mxu0 %v5707
        %5709 = vmatprep.subr.mxu0 0.0
        %v5710 = vand.u32 %v5658, 4294901760
        %5711 = vmatpush1.msra.mxu0 %v5710
        %5712 = vmatprep.subr.mxu0 0.0
        %v5713 = vand.u32 %v5659, 4294901760
        %5714 = vmatpush1.msra.mxu0 %v5713
        %5715 = vmatprep.subr.mxu0 0.0
        %5716 = vmatpush1.msra.mxu0 0.0
        %5717 = vmatprep.subr.mxu0 0.0
        %5718 = vmatpush1.msra.mxu0 0.0
        %5719 = vmatprep.subr.mxu0 0.0
        %5720 = vmatpush1.msra.mxu0 0.0
        %5721 = vmatprep.subr.mxu0 0.0
        %5722 = vmatpush1.msra.mxu0 0.0
        %5723 = vmatprep.subr.mxu0 0.0
        %5724 = vmatpush1.msra.mxu0 0.0
        %5725 = vmatprep.subr.mxu0 0.0
        %5726 = vmatpush1.msra.mxu0 0.0
        %5727 = vmatprep.subr.mxu0 0.0
        %5728 = vmatpush1.msra.mxu0 0.0
        %5729 = vmatprep.subr.mxu0 0.0
        %5730 = vmatpush1.msra.mxu0 0.0
        %5731 = vmatprep.subr.mxu0 0.0
        %5732 = vmatpush1.msra.mxu0 0.0
        %5733 = vmatprep.subr.mxu0 0.0
        %5734 = vmatpush1.msra.mxu0 0.0
        %5735 = vmatprep.subr.mxu0 0.0
        %5736 = vmatpush1.msra.mxu0 0.0
        %5737 = vmatprep.subr.mxu0 0.0
        %5738 = vmatpush1.msra.mxu0 0.0
        %5739 = vmatprep.subr.mxu0 0.0
        %5740 = vmatpush1.msra.mxu0 0.0
        %5741 = vmatprep.subr.mxu0 0.0
        %5742 = vmatpush1.msra.mxu0 0.0
        %5743 = vmatprep.subr.mxu0 0.0
        %5744 = vmatpush1.msra.mxu0 0.0
        %5745 = vmatprep.subr.mxu0 0.0
        %5746 = vmatpush1.msra.mxu0 0.0
        %5747 = vmatprep.mubr.f32.mxu0 0.0
        %v5748 = vand.u32 %v5642, 4294901760
        %v5749 = vsub.f32 %v5642, %v5748
        %v5750 = vand.u32 %v5749, 4294901760
        %v5751 = vsub.f32 %v5749, %v5750
        %v5752 = vand.u32 %v5751, 4294901760
        %5753 = vmatmul.mubr.f32.gmra.mrb[0].mxu0 %v5752
        %v5754 = vpop.f32.mrb[0].mxu0
        %v5755 = vadd.f32 %v5665, %v5754
        %v5756 = vpop.f32.mrb[0].mxu0
        %5757 = vmatprep.mubr.f32.mxu0 0.0
        %v5758 = vand.u32 %v5643, 4294901760
        %v5759 = vsub.f32 %v5643, %v5758
        %v5760 = vand.u32 %v5759, 4294901760
        %v5761 = vsub.f32 %v5759, %v5760
        %v5762 = vand.u32 %v5761, 4294901760
        %5763 = vmatmul.mubr.f32.gmra.mrb[0].mxu0 %v5762
        %v5764 = vpop.f32.mrb[0].mxu0
        %v5765 = vadd.f32 %v5665, %v5764
        %v5766 = vpop.f32.mrb[0].mxu0
        %5767 = vdwg.mxu0
        %5768 = vmatprep.subr.mxu0 0.0
        %v5769 = vand.u32 %v5644, 4294901760
        %v5770 = vsub.f32 %v5644, %v5769
        %v5771 = vand.u32 %v5770, 4294901760
        %v5772 = vsub.f32 %v5770, %v5771
        %v5773 = vand.u32 %v5772, 4294901760
        %5774 = vmatpush1.msra.mxu0 %v5773
        %5775 = vmatprep.subr.mxu0 0.0
        %v5776 = vand.u32 %v5645, 4294901760
        %v5777 = vsub.f32 %v5645, %v5776
        %v5778 = vand.u32 %v5777, 4294901760
        %v5779 = vsub.f32 %v5777, %v5778
        %v5780 = vand.u32 %v5779, 4294901760
        %5781 = vmatpush1.msra.mxu0 %v5780
        %5782 = vmatprep.subr.mxu0 0.0
        %v5783 = vand.u32 %v5646, 4294901760
        %v5784 = vsub.f32 %v5646, %v5783
        %v5785 = vand.u32 %v5784, 4294901760
        %v5786 = vsub.f32 %v5784, %v5785
        %v5787 = vand.u32 %v5786, 4294901760
        %5788 = vmatpush1.msra.mxu0 %v5787
        %5789 = vmatprep.subr.mxu0 0.0
        %v5790 = vand.u32 %v5647, 4294901760
        %v5791 = vsub.f32 %v5647, %v5790
        %v5792 = vand.u32 %v5791, 4294901760
        %v5793 = vsub.f32 %v5791, %v5792
        %v5794 = vand.u32 %v5793, 4294901760
        %5795 = vmatpush1.msra.mxu0 %v5794
        %5796 = vmatprep.subr.mxu0 0.0
        %v5797 = vand.u32 %v5648, 4294901760
        %v5798 = vsub.f32 %v5648, %v5797
        %v5799 = vand.u32 %v5798, 4294901760
        %v5800 = vsub.f32 %v5798, %v5799
        %v5801 = vand.u32 %v5800, 4294901760
        %5802 = vmatpush1.msra.mxu0 %v5801
        %5803 = vmatprep.subr.mxu0 0.0
        %v5804 = vand.u32 %v5649, 4294901760
        %v5805 = vsub.f32 %v5649, %v5804
        %v5806 = vand.u32 %v5805, 4294901760
        %v5807 = vsub.f32 %v5805, %v5806
        %v5808 = vand.u32 %v5807, 4294901760
        %5809 = vmatpush1.msra.mxu0 %v5808
        %5810 = vmatprep.subr.mxu0 0.0
        %v5811 = vand.u32 %v5650, 4294901760
        %v5812 = vsub.f32 %v5650, %v5811
        %v5813 = vand.u32 %v5812, 4294901760
        %v5814 = vsub.f32 %v5812, %v5813
        %v5815 = vand.u32 %v5814, 4294901760
        %5816 = vmatpush1.msra.mxu0 %v5815
        %5817 = vmatprep.subr.mxu0 0.0
        %v5818 = vand.u32 %v5651, 4294901760
        %v5819 = vsub.f32 %v5651, %v5818
        %v5820 = vand.u32 %v5819, 4294901760
        %v5821 = vsub.f32 %v5819, %v5820
        %v5822 = vand.u32 %v5821, 4294901760
        %5823 = vmatpush1.msra.mxu0 %v5822
        %5824 = vmatprep.subr.mxu0 0.0
        %v5825 = vand.u32 %v5652, 4294901760
        %v5826 = vsub.f32 %v5652, %v5825
        %v5827 = vand.u32 %v5826, 4294901760
        %v5828 = vsub.f32 %v5826, %v5827
        %v5829 = vand.u32 %v5828, 4294901760
        %5830 = vmatpush1.msra.mxu0 %v5829
        %5831 = vmatprep.subr.mxu0 0.0
        %v5832 = vand.u32 %v5653, 4294901760
        %v5833 = vsub.f32 %v5653, %v5832
        %v5834 = vand.u32 %v5833, 4294901760
        %v5835 = vsub.f32 %v5833, %v5834
        %v5836 = vand.u32 %v5835, 4294901760
        %5837 = vmatpush1.msra.mxu0 %v5836
        %5838 = vmatprep.subr.mxu0 0.0
        %v5839 = vand.u32 %v5654, 4294901760
        %v5840 = vsub.f32 %v5654, %v5839
        %v5841 = vand.u32 %v5840, 4294901760
        %v5842 = vsub.f32 %v5840, %v5841
        %v5843 = vand.u32 %v5842, 4294901760
        %5844 = vmatpush1.msra.mxu0 %v5843
        %5845 = vmatprep.subr.mxu0 0.0
        %v5846 = vand.u32 %v5655, 4294901760
        %v5847 = vsub.f32 %v5655, %v5846
        %v5848 = vand.u32 %v5847, 4294901760
        %v5849 = vsub.f32 %v5847, %v5848
        %v5850 = vand.u32 %v5849, 4294901760
        %5851 = vmatpush1.msra.mxu0 %v5850
        %5852 = vmatprep.subr.mxu0 0.0
        %v5853 = vand.u32 %v5656, 4294901760
        %v5854 = vsub.f32 %v5656, %v5853
        %v5855 = vand.u32 %v5854, 4294901760
        %v5856 = vsub.f32 %v5854, %v5855
        %v5857 = vand.u32 %v5856, 4294901760
        %5858 = vmatpush1.msra.mxu0 %v5857
        %5859 = vmatprep.subr.mxu0 0.0
        %v5860 = vand.u32 %v5657, 4294901760
        %v5861 = vsub.f32 %v5657, %v5860
        %v5862 = vand.u32 %v5861, 4294901760
        %v5863 = vsub.f32 %v5861, %v5862
        %v5864 = vand.u32 %v5863, 4294901760
        %5865 = vmatpush1.msra.mxu0 %v5864
        %5866 = vmatprep.subr.mxu0 0.0
        %v5867 = vand.u32 %v5658, 4294901760
        %v5868 = vsub.f32 %v5658, %v5867
        %v5869 = vand.u32 %v5868, 4294901760
        %v5870 = vsub.f32 %v5868, %v5869
        %v5871 = vand.u32 %v5870, 4294901760
        %5872 = vmatpush1.msra.mxu0 %v5871
        %5873 = vmatprep.subr.mxu0 0.0
        %v5874 = vand.u32 %v5659, 4294901760
        %v5875 = vsub.f32 %v5659, %v5874
        %v5876 = vand.u32 %v5875, 4294901760
        %v5877 = vsub.f32 %v5875, %v5876
        %v5878 = vand.u32 %v5877, 4294901760
        %5879 = vmatpush1.msra.mxu0 %v5878
        %5880 = vmatprep.subr.mxu0 0.0
        %5881 = vmatpush1.msra.mxu0 0.0
        %5882 = vmatprep.subr.mxu0 0.0
        %5883 = vmatpush1.msra.mxu0 0.0
        %5884 = vmatprep.subr.mxu0 0.0
        %5885 = vmatpush1.msra.mxu0 0.0
        %5886 = vmatprep.subr.mxu0 0.0
        %5887 = vmatpush1.msra.mxu0 0.0
        %5888 = vmatprep.subr.mxu0 0.0
        %5889 = vmatpush1.msra.mxu0 0.0
        %5890 = vmatprep.subr.mxu0 0.0
        %5891 = vmatpush1.msra.mxu0 0.0
        %5892 = vmatprep.subr.mxu0 0.0
        %5893 = vmatpush1.msra.mxu0 0.0
        %5894 = vmatprep.subr.mxu0 0.0
        %5895 = vmatpush1.msra.mxu0 0.0
        %5896 = vmatprep.subr.mxu0 0.0
        %5897 = vmatpush1.msra.mxu0 0.0
        %5898 = vmatprep.subr.mxu0 0.0
        %5899 = vmatpush1.msra.mxu0 0.0
        %5900 = vmatprep.subr.mxu0 0.0
        %5901 = vmatpush1.msra.mxu0 0.0
        %5902 = vmatprep.subr.mxu0 0.0
        %5903 = vmatpush1.msra.mxu0 0.0
        %5904 = vmatprep.subr.mxu0 0.0
        %5905 = vmatpush1.msra.mxu0 0.0
        %5906 = vmatprep.subr.mxu0 0.0
        %5907 = vmatpush1.msra.mxu0 0.0
        %5908 = vmatprep.subr.mxu0 0.0
        %5909 = vmatpush1.msra.mxu0 0.0
        %5910 = vmatprep.subr.mxu0 0.0
        %5911 = vmatpush1.msra.mxu0 0.0
        %5912 = vmatprep.mubr.f32.mxu0 0.0
        %v5913 = vand.u32 %v5642, 4294901760
        %5914 = vmatmul.mubr.f32.gmra.mrb[0].mxu0 %v5913
        %v5915 = vpop.f32.mrb[0].mxu0
        %v5916 = vadd.f32 %v5755, %v5915
        %v5917 = vpop.f32.mrb[0].mxu0
        %5918 = vmatprep.mubr.f32.mxu0 0.0
        %v5919 = vand.u32 %v5643, 4294901760
        %5920 = vmatmul.mubr.f32.gmra.mrb[0].mxu0 %v5919
        %v5921 = vpop.f32.mrb[0].mxu0
        %v5922 = vadd.f32 %v5765, %v5921
        %v5923 = vpop.f32.mrb[0].mxu0
        %5924 = vdwg.mxu0
        %5925 = vmatprep.subr.mxu0 0.0
        %v5926 = vand.u32 %v5644, 4294901760
        %v5927 = vsub.f32 %v5644, %v5926
        %5928 = vmatpush1.msra.mxu0 %v5927
        %5929 = vmatprep.subr.mxu0 0.0
        %v5930 = vand.u32 %v5645, 4294901760
        %v5931 = vsub.f32 %v5645, %v5930
        %5932 = vmatpush1.msra.mxu0 %v5931
        %5933 = vmatprep.subr.mxu0 0.0
        %v5934 = vand.u32 %v5646, 4294901760
        %v5935 = vsub.f32 %v5646, %v5934
        %5936 = vmatpush1.msra.mxu0 %v5935
        %5937 = vmatprep.subr.mxu0 0.0
        %v5938 = vand.u32 %v5647, 4294901760
        %v5939 = vsub.f32 %v5647, %v5938
        %5940 = vmatpush1.msra.mxu0 %v5939
        %5941 = vmatprep.subr.mxu0 0.0
        %v5942 = vand.u32 %v5648, 4294901760
        %v5943 = vsub.f32 %v5648, %v5942
        %5944 = vmatpush1.msra.mxu0 %v5943
        %5945 = vmatprep.subr.mxu0 0.0
        %v5946 = vand.u32 %v5649, 4294901760
        %v5947 = vsub.f32 %v5649, %v5946
        %5948 = vmatpush1.msra.mxu0 %v5947
        %5949 = vmatprep.subr.mxu0 0.0
        %v5950 = vand.u32 %v5650, 4294901760
        %v5951 = vsub.f32 %v5650, %v5950
        %5952 = vmatpush1.msra.mxu0 %v5951
        %5953 = vmatprep.subr.mxu0 0.0
        %v5954 = vand.u32 %v5651, 4294901760
        %v5955 = vsub.f32 %v5651, %v5954
        %5956 = vmatpush1.msra.mxu0 %v5955
        %5957 = vmatprep.subr.mxu0 0.0
        %v5958 = vand.u32 %v5652, 4294901760
        %v5959 = vsub.f32 %v5652, %v5958
        %5960 = vmatpush1.msra.mxu0 %v5959
        %5961 = vmatprep.subr.mxu0 0.0
        %v5962 = vand.u32 %v5653, 4294901760
        %v5963 = vsub.f32 %v5653, %v5962
        %5964 = vmatpush1.msra.mxu0 %v5963
        %5965 = vmatprep.subr.mxu0 0.0
        %v5966 = vand.u32 %v5654, 4294901760
        %v5967 = vsub.f32 %v5654, %v5966
        %5968 = vmatpush1.msra.mxu0 %v5967
        %5969 = vmatprep.subr.mxu0 0.0
        %v5970 = vand.u32 %v5655, 4294901760
        %v5971 = vsub.f32 %v5655, %v5970
        %5972 = vmatpush1.msra.mxu0 %v5971
        %5973 = vmatprep.subr.mxu0 0.0
        %v5974 = vand.u32 %v5656, 4294901760
        %v5975 = vsub.f32 %v5656, %v5974
        %5976 = vmatpush1.msra.mxu0 %v5975
        %5977 = vmatprep.subr.mxu0 0.0
        %v5978 = vand.u32 %v5657, 4294901760
        %v5979 = vsub.f32 %v5657, %v5978
        %5980 = vmatpush1.msra.mxu0 %v5979
        %5981 = vmatprep.subr.mxu0 0.0
        %v5982 = vand.u32 %v5658, 4294901760
        %v5983 = vsub.f32 %v5658, %v5982
        %5984 = vmatpush1.msra.mxu0 %v5983
        %5985 = vmatprep.subr.mxu0 0.0
        %v5986 = vand.u32 %v5659, 4294901760
        %v5987 = vsub.f32 %v5659, %v5986
        %5988 = vmatpush1.msra.mxu0 %v5987
        %5989 = vmatprep.subr.mxu0 0.0
        %5990 = vmatpush1.msra.mxu0 0.0
        %5991 = vmatprep.subr.mxu0 0.0
        %5992 = vmatpush1.msra.mxu0 0.0
        %5993 = vmatprep.subr.mxu0 0.0
        %5994 = vmatpush1.msra.mxu0 0.0
        %5995 = vmatprep.subr.mxu0 0.0
        %5996 = vmatpush1.msra.mxu0 0.0
        %5997 = vmatprep.subr.mxu0 0.0
        %5998 = vmatpush1.msra.mxu0 0.0
        %5999 = vmatprep.subr.mxu0 0.0
        %6000 = vmatpush1.msra.mxu0 0.0
        %6001 = vmatprep.subr.mxu0 0.0
        %6002 = vmatpush1.msra.mxu0 0.0
        %6003 = vmatprep.subr.mxu0 0.0
        %6004 = vmatpush1.msra.mxu0 0.0
        %6005 = vmatprep.subr.mxu0 0.0
        %6006 = vmatpush1.msra.mxu0 0.0
        %6007 = vmatprep.subr.mxu0 0.0
        %6008 = vmatpush1.msra.mxu0 0.0
        %6009 = vmatprep.subr.mxu0 0.0
        %6010 = vmatpush1.msra.mxu0 0.0
        %6011 = vmatprep.subr.mxu0 0.0
        %6012 = vmatpush1.msra.mxu0 0.0
        %6013 = vmatprep.subr.mxu0 0.0
        %6014 = vmatpush1.msra.mxu0 0.0
        %6015 = vmatprep.subr.mxu0 0.0
        %6016 = vmatpush1.msra.mxu0 0.0
        %6017 = vmatprep.subr.mxu0 0.0
        %6018 = vmatpush1.msra.mxu0 0.0
        %6019 = vmatprep.subr.mxu0 0.0
        %6020 = vmatpush1.msra.mxu0 0.0
        %6021 = vmatprep.mubr.f32.mxu0 0.0
        %v6022 = vand.u32 %v5642, 4294901760
        %v6023 = vsub.f32 %v5642, %v6022
        %6024 = vmatmul.mubr.f32.gmra.mrb[0].mxu0 %v6023
        %v6025 = vpop.f32.mrb[0].mxu0
        %v6026 = vadd.f32 %v5916, %v6025
        %v6027 = vpop.f32.mrb[0].mxu0
        %6028 = vmatprep.mubr.f32.mxu0 0.0
        %v6029 = vand.u32 %v5643, 4294901760
        %v6030 = vsub.f32 %v5643, %v6029
        %6031 = vmatmul.mubr.f32.gmra.mrb[0].mxu0 %v6030
        %v6032 = vpop.f32.mrb[0].mxu0
        %v6033 = vadd.f32 %v5922, %v6032
        %v6034 = vpop.f32.mrb[0].mxu0
        %6035 = vdwg.mxu0
        %6036 = vmatprep.subr.mxu0 0.0
        %v6037 = vand.u32 %v5644, 4294901760
        %6038 = vmatpush1.msra.mxu0 %v6037
        %6039 = vmatprep.subr.mxu0 0.0
        %v6040 = vand.u32 %v5645, 4294901760
        %6041 = vmatpush1.msra.mxu0 %v6040
        %6042 = vmatprep.subr.mxu0 0.0
        %v6043 = vand.u32 %v5646, 4294901760
        %6044 = vmatpush1.msra.mxu0 %v6043
        %6045 = vmatprep.subr.mxu0 0.0
        %v6046 = vand.u32 %v5647, 4294901760
        %6047 = vmatpush1.msra.mxu0 %v6046
        %6048 = vmatprep.subr.mxu0 0.0
        %v6049 = vand.u32 %v5648, 4294901760
        %6050 = vmatpush1.msra.mxu0 %v6049
        %6051 = vmatprep.subr.mxu0 0.0
        %v6052 = vand.u32 %v5649, 4294901760
        %6053 = vmatpush1.msra.mxu0 %v6052
        %6054 = vmatprep.subr.mxu0 0.0
        %v6055 = vand.u32 %v5650, 4294901760
        %6056 = vmatpush1.msra.mxu0 %v6055
        %6057 = vmatprep.subr.mxu0 0.0
        %v6058 = vand.u32 %v5651, 4294901760
        %6059 = vmatpush1.msra.mxu0 %v6058
        %6060 = vmatprep.subr.mxu0 0.0
        %v6061 = vand.u32 %v5652, 4294901760
        %6062 = vmatpush1.msra.mxu0 %v6061
        %6063 = vmatprep.subr.mxu0 0.0
        %v6064 = vand.u32 %v5653, 4294901760
        %6065 = vmatpush1.msra.mxu0 %v6064
        %6066 = vmatprep.subr.mxu0 0.0
        %v6067 = vand.u32 %v5654, 4294901760
        %6068 = vmatpush1.msra.mxu0 %v6067
        %6069 = vmatprep.subr.mxu0 0.0
        %v6070 = vand.u32 %v5655, 4294901760
        %6071 = vmatpush1.msra.mxu0 %v6070
        %6072 = vmatprep.subr.mxu0 0.0
        %v6073 = vand.u32 %v5656, 4294901760
        %6074 = vmatpush1.msra.mxu0 %v6073
        %6075 = vmatprep.subr.mxu0 0.0
        %v6076 = vand.u32 %v5657, 4294901760
        %6077 = vmatpush1.msra.mxu0 %v6076
        %6078 = vmatprep.subr.mxu0 0.0
        %v6079 = vand.u32 %v5658, 4294901760
        %6080 = vmatpush1.msra.mxu0 %v6079
        %6081 = vmatprep.subr.mxu0 0.0
        %v6082 = vand.u32 %v5659, 4294901760
        %6083 = vmatpush1.msra.mxu0 %v6082
        %6084 = vmatprep.subr.mxu0 0.0
        %6085 = vmatpush1.msra.mxu0 0.0
        %6086 = vmatprep.subr.mxu0 0.0
        %6087 = vmatpush1.msra.mxu0 0.0
        %6088 = vmatprep.subr.mxu0 0.0
        %6089 = vmatpush1.msra.mxu0 0.0
        %6090 = vmatprep.subr.mxu0 0.0
        %6091 = vmatpush1.msra.mxu0 0.0
        %6092 = vmatprep.subr.mxu0 0.0
        %6093 = vmatpush1.msra.mxu0 0.0
        %6094 = vmatprep.subr.mxu0 0.0
        %6095 = vmatpush1.msra.mxu0 0.0
        %6096 = vmatprep.subr.mxu0 0.0
        %6097 = vmatpush1.msra.mxu0 0.0
        %6098 = vmatprep.subr.mxu0 0.0
        %6099 = vmatpush1.msra.mxu0 0.0
        %6100 = vmatprep.subr.mxu0 0.0
        %6101 = vmatpush1.msra.mxu0 0.0
        %6102 = vmatprep.subr.mxu0 0.0
        %6103 = vmatpush1.msra.mxu0 0.0
        %6104 = vmatprep.subr.mxu0 0.0
        %6105 = vmatpush1.msra.mxu0 0.0
        %6106 = vmatprep.subr.mxu0 0.0
        %6107 = vmatpush1.msra.mxu0 0.0
        %6108 = vmatprep.subr.mxu0 0.0
        %6109 = vmatpush1.msra.mxu0 0.0
        %6110 = vmatprep.subr.mxu0 0.0
        %6111 = vmatpush1.msra.mxu0 0.0
        %6112 = vmatprep.subr.mxu0 0.0
        %6113 = vmatpush1.msra.mxu0 0.0
        %6114 = vmatprep.subr.mxu0 0.0
        %6115 = vmatpush1.msra.mxu0 0.0
        %6116 = vmatprep.mubr.f32.mxu0 0.0
        %v6117 = vand.u32 %v5642, 4294901760
        %v6118 = vsub.f32 %v5642, %v6117
        %v6119 = vand.u32 %v6118, 4294901760
        %6120 = vmatmul.mubr.f32.gmra.mrb[0].mxu0 %v6119
        %v6121 = vpop.f32.mrb[0].mxu0
        %v6122 = vadd.f32 %v6026, %v6121
        %v6123 = vpop.f32.mrb[0].mxu0
        %6124 = vmatprep.mubr.f32.mxu0 0.0
        %v6125 = vand.u32 %v5643, 4294901760
        %v6126 = vsub.f32 %v5643, %v6125
        %v6127 = vand.u32 %v6126, 4294901760
        %6128 = vmatmul.mubr.f32.gmra.mrb[0].mxu0 %v6127
        %v6129 = vpop.f32.mrb[0].mxu0
        %v6130 = vadd.f32 %v6033, %v6129
        %v6131 = vpop.f32.mrb[0].mxu0
        %6132 = vdwg.mxu0
        %6133 = vmatprep.subr.mxu0 0.0
        %v6134 = vand.u32 %v5644, 4294901760
        %v6135 = vsub.f32 %v5644, %v6134
        %v6136 = vand.u32 %v6135, 4294901760
        %6137 = vmatpush1.msra.mxu0 %v6136
        %6138 = vmatprep.subr.mxu0 0.0
        %v6139 = vand.u32 %v5645, 4294901760
        %v6140 = vsub.f32 %v5645, %v6139
        %v6141 = vand.u32 %v6140, 4294901760
        %6142 = vmatpush1.msra.mxu0 %v6141
        %6143 = vmatprep.subr.mxu0 0.0
        %v6144 = vand.u32 %v5646, 4294901760
        %v6145 = vsub.f32 %v5646, %v6144
        %v6146 = vand.u32 %v6145, 4294901760
        %6147 = vmatpush1.msra.mxu0 %v6146
        %6148 = vmatprep.subr.mxu0 0.0
        %v6149 = vand.u32 %v5647, 4294901760
        %v6150 = vsub.f32 %v5647, %v6149
        %v6151 = vand.u32 %v6150, 4294901760
        %6152 = vmatpush1.msra.mxu0 %v6151
        %6153 = vmatprep.subr.mxu0 0.0
        %v6154 = vand.u32 %v5648, 4294901760
        %v6155 = vsub.f32 %v5648, %v6154
        %v6156 = vand.u32 %v6155, 4294901760
        %6157 = vmatpush1.msra.mxu0 %v6156
        %6158 = vmatprep.subr.mxu0 0.0
        %v6159 = vand.u32 %v5649, 4294901760
        %v6160 = vsub.f32 %v5649, %v6159
        %v6161 = vand.u32 %v6160, 4294901760
        %6162 = vmatpush1.msra.mxu0 %v6161
        %6163 = vmatprep.subr.mxu0 0.0
        %v6164 = vand.u32 %v5650, 4294901760
        %v6165 = vsub.f32 %v5650, %v6164
        %v6166 = vand.u32 %v6165, 4294901760
        %6167 = vmatpush1.msra.mxu0 %v6166
        %6168 = vmatprep.subr.mxu0 0.0
        %v6169 = vand.u32 %v5651, 4294901760
        %v6170 = vsub.f32 %v5651, %v6169
        %v6171 = vand.u32 %v6170, 4294901760
        %6172 = vmatpush1.msra.mxu0 %v6171
        %6173 = vmatprep.subr.mxu0 0.0
        %v6174 = vand.u32 %v5652, 4294901760
        %v6175 = vsub.f32 %v5652, %v6174
        %v6176 = vand.u32 %v6175, 4294901760
        %6177 = vmatpush1.msra.mxu0 %v6176
        %6178 = vmatprep.subr.mxu0 0.0
        %v6179 = vand.u32 %v5653, 4294901760
        %v6180 = vsub.f32 %v5653, %v6179
        %v6181 = vand.u32 %v6180, 4294901760
        %6182 = vmatpush1.msra.mxu0 %v6181
        %6183 = vmatprep.subr.mxu0 0.0
        %v6184 = vand.u32 %v5654, 4294901760
        %v6185 = vsub.f32 %v5654, %v6184
        %v6186 = vand.u32 %v6185, 4294901760
        %6187 = vmatpush1.msra.mxu0 %v6186
        %6188 = vmatprep.subr.mxu0 0.0
        %v6189 = vand.u32 %v5655, 4294901760
        %v6190 = vsub.f32 %v5655, %v6189
        %v6191 = vand.u32 %v6190, 4294901760
        %6192 = vmatpush1.msra.mxu0 %v6191
        %6193 = vmatprep.subr.mxu0 0.0
        %v6194 = vand.u32 %v5656, 4294901760
        %v6195 = vsub.f32 %v5656, %v6194
        %v6196 = vand.u32 %v6195, 4294901760
        %6197 = vmatpush1.msra.mxu0 %v6196
        %6198 = vmatprep.subr.mxu0 0.0
        %v6199 = vand.u32 %v5657, 4294901760
        %v6200 = vsub.f32 %v5657, %v6199
        %v6201 = vand.u32 %v6200, 4294901760
        %6202 = vmatpush1.msra.mxu0 %v6201
        %6203 = vmatprep.subr.mxu0 0.0
        %v6204 = vand.u32 %v5658, 4294901760
        %v6205 = vsub.f32 %v5658, %v6204
        %v6206 = vand.u32 %v6205, 4294901760
        %6207 = vmatpush1.msra.mxu0 %v6206
        %6208 = vmatprep.subr.mxu0 0.0
        %v6209 = vand.u32 %v5659, 4294901760
        %v6210 = vsub.f32 %v5659, %v6209
        %v6211 = vand.u32 %v6210, 4294901760
        %6212 = vmatpush1.msra.mxu0 %v6211
        %6213 = vmatprep.subr.mxu0 0.0
        %6214 = vmatpush1.msra.mxu0 0.0
        %6215 = vmatprep.subr.mxu0 0.0
        %6216 = vmatpush1.msra.mxu0 0.0
        %6217 = vmatprep.subr.mxu0 0.0
        %6218 = vmatpush1.msra.mxu0 0.0
        %6219 = vmatprep.subr.mxu0 0.0
        %6220 = vmatpush1.msra.mxu0 0.0
        %6221 = vmatprep.subr.mxu0 0.0
        %6222 = vmatpush1.msra.mxu0 0.0
        %6223 = vmatprep.subr.mxu0 0.0
        %6224 = vmatpush1.msra.mxu0 0.0
        %6225 = vmatprep.subr.mxu0 0.0
        %6226 = vmatpush1.msra.mxu0 0.0
        %6227 = vmatprep.subr.mxu0 0.0
        %6228 = vmatpush1.msra.mxu0 0.0
        %6229 = vmatprep.subr.mxu0 0.0
        %6230 = vmatpush1.msra.mxu0 0.0
        %6231 = vmatprep.subr.mxu0 0.0
        %6232 = vmatpush1.msra.mxu0 0.0
        %6233 = vmatprep.subr.mxu0 0.0
        %6234 = vmatpush1.msra.mxu0 0.0
        %6235 = vmatprep.subr.mxu0 0.0
        %6236 = vmatpush1.msra.mxu0 0.0
        %6237 = vmatprep.subr.mxu0 0.0
        %6238 = vmatpush1.msra.mxu0 0.0
        %6239 = vmatprep.subr.mxu0 0.0
        %6240 = vmatpush1.msra.mxu0 0.0
        %6241 = vmatprep.subr.mxu0 0.0
        %6242 = vmatpush1.msra.mxu0 0.0
        %6243 = vmatprep.subr.mxu0 0.0
        %6244 = vmatpush1.msra.mxu0 0.0
        %6245 = vmatprep.mubr.f32.mxu0 0.0
        %v6246 = vand.u32 %v5642, 4294901760
        %6247 = vmatmul.mubr.f32.gmra.mrb[0].mxu0 %v6246
        %v6248 = vpop.f32.mrb[0].mxu0
        %v6249 = vadd.f32 %v6122, %v6248
        %v6250 = vpop.f32.mrb[0].mxu0
        %6251 = vmatprep.mubr.f32.mxu0 0.0
        %v6252 = vand.u32 %v5643, 4294901760
        %6253 = vmatmul.mubr.f32.gmra.mrb[0].mxu0 %v6252
        %v6254 = vpop.f32.mrb[0].mxu0
        %v6255 = vadd.f32 %v6130, %v6254
        %v6256 = vpop.f32.mrb[0].mxu0
        %6257 = vdwg.mxu0
        %6258 = vmatprep.subr.mxu0 0.0
        %v6259 = vand.u32 %v5644, 4294901760
        %6260 = vmatpush1.msra.mxu0 %v6259
        %6261 = vmatprep.subr.mxu0 0.0
        %v6262 = vand.u32 %v5645, 4294901760
        %6263 = vmatpush1.msra.mxu0 %v6262
        %6264 = vmatprep.subr.mxu0 0.0
        %v6265 = vand.u32 %v5646, 4294901760
        %6266 = vmatpush1.msra.mxu0 %v6265
        %6267 = vmatprep.subr.mxu0 0.0
        %v6268 = vand.u32 %v5647, 4294901760
        %6269 = vmatpush1.msra.mxu0 %v6268
        %6270 = vmatprep.subr.mxu0 0.0
        %v6271 = vand.u32 %v5648, 4294901760
        %6272 = vmatpush1.msra.mxu0 %v6271
        %6273 = vmatprep.subr.mxu0 0.0
        %v6274 = vand.u32 %v5649, 4294901760
        %6275 = vmatpush1.msra.mxu0 %v6274
        %6276 = vmatprep.subr.mxu0 0.0
        %v6277 = vand.u32 %v5650, 4294901760
        %6278 = vmatpush1.msra.mxu0 %v6277
        %6279 = vmatprep.subr.mxu0 0.0
        %v6280 = vand.u32 %v5651, 4294901760
        %6281 = vmatpush1.msra.mxu0 %v6280
        %6282 = vmatprep.subr.mxu0 0.0
        %v6283 = vand.u32 %v5652, 4294901760
        %6284 = vmatpush1.msra.mxu0 %v6283
        %6285 = vmatprep.subr.mxu0 0.0
        %v6286 = vand.u32 %v5653, 4294901760
        %6287 = vmatpush1.msra.mxu0 %v6286
        %6288 = vmatprep.subr.mxu0 0.0
        %v6289 = vand.u32 %v5654, 4294901760
        %6290 = vmatpush1.msra.mxu0 %v6289
        %6291 = vmatprep.subr.mxu0 0.0
        %v6292 = vand.u32 %v5655, 4294901760
        %6293 = vmatpush1.msra.mxu0 %v6292
        %6294 = vmatprep.subr.mxu0 0.0
        %v6295 = vand.u32 %v5656, 4294901760
        %6296 = vmatpush1.msra.mxu0 %v6295
        %6297 = vmatprep.subr.mxu0 0.0
        %v6298 = vand.u32 %v5657, 4294901760
        %6299 = vmatpush1.msra.mxu0 %v6298
        %6300 = vmatprep.subr.mxu0 0.0
        %v6301 = vand.u32 %v5658, 4294901760
        %6302 = vmatpush1.msra.mxu0 %v6301
        %6303 = vmatprep.subr.mxu0 0.0
        %v6304 = vand.u32 %v5659, 4294901760
        %6305 = vmatpush1.msra.mxu0 %v6304
        %6306 = vmatprep.subr.mxu0 0.0
        %6307 = vmatpush1.msra.mxu0 0.0
        %6308 = vmatprep.subr.mxu0 0.0
        %6309 = vmatpush1.msra.mxu0 0.0
        %6310 = vmatprep.subr.mxu0 0.0
        %6311 = vmatpush1.msra.mxu0 0.0
        %6312 = vmatprep.subr.mxu0 0.0
        %6313 = vmatpush1.msra.mxu0 0.0
        %6314 = vmatprep.subr.mxu0 0.0
        %6315 = vmatpush1.msra.mxu0 0.0
        %6316 = vmatprep.subr.mxu0 0.0
        %6317 = vmatpush1.msra.mxu0 0.0
        %6318 = vmatprep.subr.mxu0 0.0
        %6319 = vmatpush1.msra.mxu0 0.0
        %6320 = vmatprep.subr.mxu0 0.0
        %6321 = vmatpush1.msra.mxu0 0.0
        %6322 = vmatprep.subr.mxu0 0.0
        %6323 = vmatpush1.msra.mxu0 0.0
        %6324 = vmatprep.subr.mxu0 0.0
        %6325 = vmatpush1.msra.mxu0 0.0
        %6326 = vmatprep.subr.mxu0 0.0
        %6327 = vmatpush1.msra.mxu0 0.0
        %6328 = vmatprep.subr.mxu0 0.0
        %6329 = vmatpush1.msra.mxu0 0.0
        %6330 = vmatprep.subr.mxu0 0.0
        %6331 = vmatpush1.msra.mxu0 0.0
        %6332 = vmatprep.subr.mxu0 0.0
        %6333 = vmatpush1.msra.mxu0 0.0
        %6334 = vmatprep.subr.mxu0 0.0
        %6335 = vmatpush1.msra.mxu0 0.0
        %6336 = vmatprep.subr.mxu0 0.0
        %6337 = vmatpush1.msra.mxu0 0.0
        %6338 = vmatprep.mubr.f32.mxu0 0.0
        %v6339 = vand.u32 %v5642, 4294901760
        %6340 = vmatmul.mubr.f32.gmra.mrb[0].mxu0 %v6339
        %v6341 = vpop.f32.mrb[0].mxu0
        %v6342 = vadd.f32 %v6249, %v6341
        %v6343 = vpop.f32.mrb[0].mxu0
        %6344 = vmatprep.mubr.f32.mxu0 0.0
        %v6345 = vand.u32 %v5643, 4294901760
        %6346 = vmatmul.mubr.f32.gmra.mrb[0].mxu0 %v6345
        %v6347 = vpop.f32.mrb[0].mxu0
        %v6348 = vadd.f32 %v6255, %v6347
        %v6349 = vpop.f32.mrb[0].mxu0
        %6350 = vdwg.mxu0
        %v6351 = vmax.f32 %v6342, 0.0
        %v6352 = vmax.f32 %v6348, 0.0
        %v6353 = vld [vmem:[%s15] sm:$0x1]
        %v6355 = vlaneseq
        %v6356 = vshrl.u32 %v6355, 7
        %v6357 = vsub.s32 0, %v6356
        %v6358 = vrot.slane %v6353, %v6357
        %v6360 = vadd.f32 %v6351, %v6358
        %v6361 = vadd.f32 %v6352, %v6358
        %v6362 = vld [vmem:[%s660] sm:$0xff]
        %v6363 = vld [vmem:[%s660 + $0x8] sm:$0xff]
        %v6364 = vld [vmem:[%s7] sm:$0xff]
        %v6365 = vld [vmem:[%s7 + $0x8] sm:$0xff]
        %v6366 = vld [vmem:[%s7 + $0x10] sm:$0xff]
        %v6367 = vld [vmem:[%s7 + $0x18] sm:$0xff]
        %v6368 = vld [vmem:[%s7 + $0x20] sm:$0xff]
        %v6369 = vld [vmem:[%s7 + $0x28] sm:$0xff]
        %v6370 = vld [vmem:[%s7 + $0x30] sm:$0xff]
        %v6371 = vld [vmem:[%s7 + $0x38] sm:$0xff]
        %v6372 = vld [vmem:[%s7 + $0x40] sm:$0xff]
        %v6373 = vld [vmem:[%s7 + $0x48] sm:$0xff]
        %v6374 = vld [vmem:[%s7 + $0x50] sm:$0xff]
        %v6375 = vld [vmem:[%s7 + $0x58] sm:$0xff]
        %v6376 = vld [vmem:[%s7 + $0x60] sm:$0xff]
        %v6377 = vld [vmem:[%s7 + $0x68] sm:$0xff]
        %v6378 = vld [vmem:[%s7 + $0x70] sm:$0xff]
        %v6379 = vld [vmem:[%s7 + $0x78] sm:$0xff]
        %v6380 = vld [vmem:[%s8] sm:$0x1]
        %v6382 = vlaneseq
        %v6383 = vshrl.u32 %v6382, 7
        %v6384 = vsub.s32 0, %v6383
        %v6385 = vrot.slane %v6380, %v6384
        %6387 = vmatprep.subr.mxu0 0.0
        %v6388 = vand.u32 %v6364, 4294901760
        %6389 = vmatpush1.msra.mxu0 %v6388
        %6390 = vmatprep.subr.mxu0 0.0
        %v6391 = vand.u32 %v6365, 4294901760
        %6392 = vmatpush1.msra.mxu0 %v6391
        %6393 = vmatprep.subr.mxu0 0.0
        %v6394 = vand.u32 %v6366, 4294901760
        %6395 = vmatpush1.msra.mxu0 %v6394
        %6396 = vmatprep.subr.mxu0 0.0
        %v6397 = vand.u32 %v6367, 4294901760
        %6398 = vmatpush1.msra.mxu0 %v6397
        %6399 = vmatprep.subr.mxu0 0.0
        %v6400 = vand.u32 %v6368, 4294901760
        %6401 = vmatpush1.msra.mxu0 %v6400
        %6402 = vmatprep.subr.mxu0 0.0
        %v6403 = vand.u32 %v6369, 4294901760
        %6404 = vmatpush1.msra.mxu0 %v6403
        %6405 = vmatprep.subr.mxu0 0.0
        %v6406 = vand.u32 %v6370, 4294901760
        %6407 = vmatpush1.msra.mxu0 %v6406
        %6408 = vmatprep.subr.mxu0 0.0
        %v6409 = vand.u32 %v6371, 4294901760
        %6410 = vmatpush1.msra.mxu0 %v6409
        %6411 = vmatprep.subr.mxu0 0.0
        %v6412 = vand.u32 %v6372, 4294901760
        %6413 = vmatpush1.msra.mxu0 %v6412
        %6414 = vmatprep.subr.mxu0 0.0
        %v6415 = vand.u32 %v6373, 4294901760
        %6416 = vmatpush1.msra.mxu0 %v6415
        %6417 = vmatprep.subr.mxu0 0.0
        %v6418 = vand.u32 %v6374, 4294901760
        %6419 = vmatpush1.msra.mxu0 %v6418
        %6420 = vmatprep.subr.mxu0 0.0
        %v6421 = vand.u32 %v6375, 4294901760
        %6422 = vmatpush1.msra.mxu0 %v6421
        %6423 = vmatprep.subr.mxu0 0.0
        %v6424 = vand.u32 %v6376, 4294901760
        %6425 = vmatpush1.msra.mxu0 %v6424
        %6426 = vmatprep.subr.mxu0 0.0
        %v6427 = vand.u32 %v6377, 4294901760
        %6428 = vmatpush1.msra.mxu0 %v6427
        %6429 = vmatprep.subr.mxu0 0.0
        %v6430 = vand.u32 %v6378, 4294901760
        %6431 = vmatpush1.msra.mxu0 %v6430
        %6432 = vmatprep.subr.mxu0 0.0
        %v6433 = vand.u32 %v6379, 4294901760
        %6434 = vmatpush1.msra.mxu0 %v6433
        %6435 = vmatprep.subr.mxu0 0.0
        %6436 = vmatpush1.msra.mxu0 0.0
        %6437 = vmatprep.subr.mxu0 0.0
        %6438 = vmatpush1.msra.mxu0 0.0
        %6439 = vmatprep.subr.mxu0 0.0
        %6440 = vmatpush1.msra.mxu0 0.0
        %6441 = vmatprep.subr.mxu0 0.0
        %6442 = vmatpush1.msra.mxu0 0.0
        %6443 = vmatprep.subr.mxu0 0.0
        %6444 = vmatpush1.msra.mxu0 0.0
        %6445 = vmatprep.subr.mxu0 0.0
        %6446 = vmatpush1.msra.mxu0 0.0
        %6447 = vmatprep.subr.mxu0 0.0
        %6448 = vmatpush1.msra.mxu0 0.0
        %6449 = vmatprep.subr.mxu0 0.0
        %6450 = vmatpush1.msra.mxu0 0.0
        %6451 = vmatprep.subr.mxu0 0.0
        %6452 = vmatpush1.msra.mxu0 0.0
        %6453 = vmatprep.subr.mxu0 0.0
        %6454 = vmatpush1.msra.mxu0 0.0
        %6455 = vmatprep.subr.mxu0 0.0
        %6456 = vmatpush1.msra.mxu0 0.0
        %6457 = vmatprep.subr.mxu0 0.0
        %6458 = vmatpush1.msra.mxu0 0.0
        %6459 = vmatprep.subr.mxu0 0.0
        %6460 = vmatpush1.msra.mxu0 0.0
        %6461 = vmatprep.subr.mxu0 0.0
        %6462 = vmatpush1.msra.mxu0 0.0
        %6463 = vmatprep.subr.mxu0 0.0
        %6464 = vmatpush1.msra.mxu0 0.0
        %6465 = vmatprep.subr.mxu0 0.0
        %6466 = vmatpush1.msra.mxu0 0.0
        %6467 = vmatprep.mubr.f32.mxu0 0.0
        %v6468 = vand.u32 %v2798, 4294901760
        %v6469 = vsub.f32 %v2798, %v6468
        %v6470 = vand.u32 %v6469, 4294901760
        %v6471 = vsub.f32 %v6469, %v6470
        %v6472 = vand.u32 %v6471, 4294901760
        %6473 = vmatmul.mubr.f32.gmra.mrb[0].mxu0 %v6472
        %v6474 = vpop.f32.mrb[0].mxu0
        %v6475 = vadd.f32 %v6385, %v6474
        %v6476 = vpop.f32.mrb[0].mxu0
        %6477 = vmatprep.mubr.f32.mxu0 0.0
        %v6478 = vand.u32 %v2799, 4294901760
        %v6479 = vsub.f32 %v2799, %v6478
        %v6480 = vand.u32 %v6479, 4294901760
        %v6481 = vsub.f32 %v6479, %v6480
        %v6482 = vand.u32 %v6481, 4294901760
        %6483 = vmatmul.mubr.f32.gmra.mrb[0].mxu0 %v6482
        %v6484 = vpop.f32.mrb[0].mxu0
        %v6485 = vadd.f32 %v6385, %v6484
        %v6486 = vpop.f32.mrb[0].mxu0
        %6487 = vdwg.mxu0
        %6488 = vmatprep.subr.mxu0 0.0
        %v6489 = vand.u32 %v6364, 4294901760
        %v6490 = vsub.f32 %v6364, %v6489
        %v6491 = vand.u32 %v6490, 4294901760
        %v6492 = vsub.f32 %v6490, %v6491
        %v6493 = vand.u32 %v6492, 4294901760
        %6494 = vmatpush1.msra.mxu0 %v6493
        %6495 = vmatprep.subr.mxu0 0.0
        %v6496 = vand.u32 %v6365, 4294901760
        %v6497 = vsub.f32 %v6365, %v6496
        %v6498 = vand.u32 %v6497, 4294901760
        %v6499 = vsub.f32 %v6497, %v6498
        %v6500 = vand.u32 %v6499, 4294901760
        %6501 = vmatpush1.msra.mxu0 %v6500
        %6502 = vmatprep.subr.mxu0 0.0
        %v6503 = vand.u32 %v6366, 4294901760
        %v6504 = vsub.f32 %v6366, %v6503
        %v6505 = vand.u32 %v6504, 4294901760
        %v6506 = vsub.f32 %v6504, %v6505
        %v6507 = vand.u32 %v6506, 4294901760
        %6508 = vmatpush1.msra.mxu0 %v6507
        %6509 = vmatprep.subr.mxu0 0.0
        %v6510 = vand.u32 %v6367, 4294901760
        %v6511 = vsub.f32 %v6367, %v6510
        %v6512 = vand.u32 %v6511, 4294901760
        %v6513 = vsub.f32 %v6511, %v6512
        %v6514 = vand.u32 %v6513, 4294901760
        %6515 = vmatpush1.msra.mxu0 %v6514
        %6516 = vmatprep.subr.mxu0 0.0
        %v6517 = vand.u32 %v6368, 4294901760
        %v6518 = vsub.f32 %v6368, %v6517
        %v6519 = vand.u32 %v6518, 4294901760
        %v6520 = vsub.f32 %v6518, %v6519
        %v6521 = vand.u32 %v6520, 4294901760
        %6522 = vmatpush1.msra.mxu0 %v6521
        %6523 = vmatprep.subr.mxu0 0.0
        %v6524 = vand.u32 %v6369, 4294901760
        %v6525 = vsub.f32 %v6369, %v6524
        %v6526 = vand.u32 %v6525, 4294901760
        %v6527 = vsub.f32 %v6525, %v6526
        %v6528 = vand.u32 %v6527, 4294901760
        %6529 = vmatpush1.msra.mxu0 %v6528
        %6530 = vmatprep.subr.mxu0 0.0
        %v6531 = vand.u32 %v6370, 4294901760
        %v6532 = vsub.f32 %v6370, %v6531
        %v6533 = vand.u32 %v6532, 4294901760
        %v6534 = vsub.f32 %v6532, %v6533
        %v6535 = vand.u32 %v6534, 4294901760
        %6536 = vmatpush1.msra.mxu0 %v6535
        %6537 = vmatprep.subr.mxu0 0.0
        %v6538 = vand.u32 %v6371, 4294901760
        %v6539 = vsub.f32 %v6371, %v6538
        %v6540 = vand.u32 %v6539, 4294901760
        %v6541 = vsub.f32 %v6539, %v6540
        %v6542 = vand.u32 %v6541, 4294901760
        %6543 = vmatpush1.msra.mxu0 %v6542
        %6544 = vmatprep.subr.mxu0 0.0
        %v6545 = vand.u32 %v6372, 4294901760
        %v6546 = vsub.f32 %v6372, %v6545
        %v6547 = vand.u32 %v6546, 4294901760
        %v6548 = vsub.f32 %v6546, %v6547
        %v6549 = vand.u32 %v6548, 4294901760
        %6550 = vmatpush1.msra.mxu0 %v6549
        %6551 = vmatprep.subr.mxu0 0.0
        %v6552 = vand.u32 %v6373, 4294901760
        %v6553 = vsub.f32 %v6373, %v6552
        %v6554 = vand.u32 %v6553, 4294901760
        %v6555 = vsub.f32 %v6553, %v6554
        %v6556 = vand.u32 %v6555, 4294901760
        %6557 = vmatpush1.msra.mxu0 %v6556
        %6558 = vmatprep.subr.mxu0 0.0
        %v6559 = vand.u32 %v6374, 4294901760
        %v6560 = vsub.f32 %v6374, %v6559
        %v6561 = vand.u32 %v6560, 4294901760
        %v6562 = vsub.f32 %v6560, %v6561
        %v6563 = vand.u32 %v6562, 4294901760
        %6564 = vmatpush1.msra.mxu0 %v6563
        %6565 = vmatprep.subr.mxu0 0.0
        %v6566 = vand.u32 %v6375, 4294901760
        %v6567 = vsub.f32 %v6375, %v6566
        %v6568 = vand.u32 %v6567, 4294901760
        %v6569 = vsub.f32 %v6567, %v6568
        %v6570 = vand.u32 %v6569, 4294901760
        %6571 = vmatpush1.msra.mxu0 %v6570
        %6572 = vmatprep.subr.mxu0 0.0
        %v6573 = vand.u32 %v6376, 4294901760
        %v6574 = vsub.f32 %v6376, %v6573
        %v6575 = vand.u32 %v6574, 4294901760
        %v6576 = vsub.f32 %v6574, %v6575
        %v6577 = vand.u32 %v6576, 4294901760
        %6578 = vmatpush1.msra.mxu0 %v6577
        %6579 = vmatprep.subr.mxu0 0.0
        %v6580 = vand.u32 %v6377, 4294901760
        %v6581 = vsub.f32 %v6377, %v6580
        %v6582 = vand.u32 %v6581, 4294901760
        %v6583 = vsub.f32 %v6581, %v6582
        %v6584 = vand.u32 %v6583, 4294901760
        %6585 = vmatpush1.msra.mxu0 %v6584
        %6586 = vmatprep.subr.mxu0 0.0
        %v6587 = vand.u32 %v6378, 4294901760
        %v6588 = vsub.f32 %v6378, %v6587
        %v6589 = vand.u32 %v6588, 4294901760
        %v6590 = vsub.f32 %v6588, %v6589
        %v6591 = vand.u32 %v6590, 4294901760
        %6592 = vmatpush1.msra.mxu0 %v6591
        %6593 = vmatprep.subr.mxu0 0.0
        %v6594 = vand.u32 %v6379, 4294901760
        %v6595 = vsub.f32 %v6379, %v6594
        %v6596 = vand.u32 %v6595, 4294901760
        %v6597 = vsub.f32 %v6595, %v6596
        %v6598 = vand.u32 %v6597, 4294901760
        %6599 = vmatpush1.msra.mxu0 %v6598
        %6600 = vmatprep.subr.mxu0 0.0
        %6601 = vmatpush1.msra.mxu0 0.0
        %6602 = vmatprep.subr.mxu0 0.0
        %6603 = vmatpush1.msra.mxu0 0.0
        %6604 = vmatprep.subr.mxu0 0.0
        %6605 = vmatpush1.msra.mxu0 0.0
        %6606 = vmatprep.subr.mxu0 0.0
        %6607 = vmatpush1.msra.mxu0 0.0
        %6608 = vmatprep.subr.mxu0 0.0
        %6609 = vmatpush1.msra.mxu0 0.0
        %6610 = vmatprep.subr.mxu0 0.0
        %6611 = vmatpush1.msra.mxu0 0.0
        %6612 = vmatprep.subr.mxu0 0.0
        %6613 = vmatpush1.msra.mxu0 0.0
        %6614 = vmatprep.subr.mxu0 0.0
        %6615 = vmatpush1.msra.mxu0 0.0
        %6616 = vmatprep.subr.mxu0 0.0
        %6617 = vmatpush1.msra.mxu0 0.0
        %6618 = vmatprep.subr.mxu0 0.0
        %6619 = vmatpush1.msra.mxu0 0.0
        %6620 = vmatprep.subr.mxu0 0.0
        %6621 = vmatpush1.msra.mxu0 0.0
        %6622 = vmatprep.subr.mxu0 0.0
        %6623 = vmatpush1.msra.mxu0 0.0
        %6624 = vmatprep.subr.mxu0 0.0
        %6625 = vmatpush1.msra.mxu0 0.0
        %6626 = vmatprep.subr.mxu0 0.0
        %6627 = vmatpush1.msra.mxu0 0.0
        %6628 = vmatprep.subr.mxu0 0.0
        %6629 = vmatpush1.msra.mxu0 0.0
        %6630 = vmatprep.subr.mxu0 0.0
        %6631 = vmatpush1.msra.mxu0 0.0
        %6632 = vmatprep.mubr.f32.mxu0 0.0
        %v6633 = vand.u32 %v2798, 4294901760
        %6634 = vmatmul.mubr.f32.gmra.mrb[0].mxu0 %v6633
        %v6635 = vpop.f32.mrb[0].mxu0
        %v6636 = vadd.f32 %v6475, %v6635
        %v6637 = vpop.f32.mrb[0].mxu0
        %6638 = vmatprep.mubr.f32.mxu0 0.0
        %v6639 = vand.u32 %v2799, 4294901760
        %6640 = vmatmul.mubr.f32.gmra.mrb[0].mxu0 %v6639
        %v6641 = vpop.f32.mrb[0].mxu0
        %v6642 = vadd.f32 %v6485, %v6641
        %v6643 = vpop.f32.mrb[0].mxu0
        %6644 = vdwg.mxu0
        %6645 = vmatprep.subr.mxu0 0.0
        %v6646 = vand.u32 %v6364, 4294901760
        %v6647 = vsub.f32 %v6364, %v6646
        %6648 = vmatpush1.msra.mxu0 %v6647
        %6649 = vmatprep.subr.mxu0 0.0
        %v6650 = vand.u32 %v6365, 4294901760
        %v6651 = vsub.f32 %v6365, %v6650
        %6652 = vmatpush1.msra.mxu0 %v6651
        %6653 = vmatprep.subr.mxu0 0.0
        %v6654 = vand.u32 %v6366, 4294901760
        %v6655 = vsub.f32 %v6366, %v6654
        %6656 = vmatpush1.msra.mxu0 %v6655
        %6657 = vmatprep.subr.mxu0 0.0
        %v6658 = vand.u32 %v6367, 4294901760
        %v6659 = vsub.f32 %v6367, %v6658
        %6660 = vmatpush1.msra.mxu0 %v6659
        %6661 = vmatprep.subr.mxu0 0.0
        %v6662 = vand.u32 %v6368, 4294901760
        %v6663 = vsub.f32 %v6368, %v6662
        %6664 = vmatpush1.msra.mxu0 %v6663
        %6665 = vmatprep.subr.mxu0 0.0
        %v6666 = vand.u32 %v6369, 4294901760
        %v6667 = vsub.f32 %v6369, %v6666
        %6668 = vmatpush1.msra.mxu0 %v6667
        %6669 = vmatprep.subr.mxu0 0.0
        %v6670 = vand.u32 %v6370, 4294901760
        %v6671 = vsub.f32 %v6370, %v6670
        %6672 = vmatpush1.msra.mxu0 %v6671
        %6673 = vmatprep.subr.mxu0 0.0
        %v6674 = vand.u32 %v6371, 4294901760
        %v6675 = vsub.f32 %v6371, %v6674
        %6676 = vmatpush1.msra.mxu0 %v6675
        %6677 = vmatprep.subr.mxu0 0.0
        %v6678 = vand.u32 %v6372, 4294901760
        %v6679 = vsub.f32 %v6372, %v6678
        %6680 = vmatpush1.msra.mxu0 %v6679
        %6681 = vmatprep.subr.mxu0 0.0
        %v6682 = vand.u32 %v6373, 4294901760
        %v6683 = vsub.f32 %v6373, %v6682
        %6684 = vmatpush1.msra.mxu0 %v6683
        %6685 = vmatprep.subr.mxu0 0.0
        %v6686 = vand.u32 %v6374, 4294901760
        %v6687 = vsub.f32 %v6374, %v6686
        %6688 = vmatpush1.msra.mxu0 %v6687
        %6689 = vmatprep.subr.mxu0 0.0
        %v6690 = vand.u32 %v6375, 4294901760
        %v6691 = vsub.f32 %v6375, %v6690
        %6692 = vmatpush1.msra.mxu0 %v6691
        %6693 = vmatprep.subr.mxu0 0.0
        %v6694 = vand.u32 %v6376, 4294901760
        %v6695 = vsub.f32 %v6376, %v6694
        %6696 = vmatpush1.msra.mxu0 %v6695
        %6697 = vmatprep.subr.mxu0 0.0
        %v6698 = vand.u32 %v6377, 4294901760
        %v6699 = vsub.f32 %v6377, %v6698
        %6700 = vmatpush1.msra.mxu0 %v6699
        %6701 = vmatprep.subr.mxu0 0.0
        %v6702 = vand.u32 %v6378, 4294901760
        %v6703 = vsub.f32 %v6378, %v6702
        %6704 = vmatpush1.msra.mxu0 %v6703
        %6705 = vmatprep.subr.mxu0 0.0
        %v6706 = vand.u32 %v6379, 4294901760
        %v6707 = vsub.f32 %v6379, %v6706
        %6708 = vmatpush1.msra.mxu0 %v6707
        %6709 = vmatprep.subr.mxu0 0.0
        %6710 = vmatpush1.msra.mxu0 0.0
        %6711 = vmatprep.subr.mxu0 0.0
        %6712 = vmatpush1.msra.mxu0 0.0
        %6713 = vmatprep.subr.mxu0 0.0
        %6714 = vmatpush1.msra.mxu0 0.0
        %6715 = vmatprep.subr.mxu0 0.0
        %6716 = vmatpush1.msra.mxu0 0.0
        %6717 = vmatprep.subr.mxu0 0.0
        %6718 = vmatpush1.msra.mxu0 0.0
        %6719 = vmatprep.subr.mxu0 0.0
        %6720 = vmatpush1.msra.mxu0 0.0
        %6721 = vmatprep.subr.mxu0 0.0
        %6722 = vmatpush1.msra.mxu0 0.0
        %6723 = vmatprep.subr.mxu0 0.0
        %6724 = vmatpush1.msra.mxu0 0.0
        %6725 = vmatprep.subr.mxu0 0.0
        %6726 = vmatpush1.msra.mxu0 0.0
        %6727 = vmatprep.subr.mxu0 0.0
        %6728 = vmatpush1.msra.mxu0 0.0
        %6729 = vmatprep.subr.mxu0 0.0
        %6730 = vmatpush1.msra.mxu0 0.0
        %6731 = vmatprep.subr.mxu0 0.0
        %6732 = vmatpush1.msra.mxu0 0.0
        %6733 = vmatprep.subr.mxu0 0.0
        %6734 = vmatpush1.msra.mxu0 0.0
        %6735 = vmatprep.subr.mxu0 0.0
        %6736 = vmatpush1.msra.mxu0 0.0
        %6737 = vmatprep.subr.mxu0 0.0
        %6738 = vmatpush1.msra.mxu0 0.0
        %6739 = vmatprep.subr.mxu0 0.0
        %6740 = vmatpush1.msra.mxu0 0.0
        %6741 = vmatprep.mubr.f32.mxu0 0.0
        %v6742 = vand.u32 %v2798, 4294901760
        %v6743 = vsub.f32 %v2798, %v6742
        %6744 = vmatmul.mubr.f32.gmra.mrb[0].mxu0 %v6743
        %v6745 = vpop.f32.mrb[0].mxu0
        %v6746 = vadd.f32 %v6636, %v6745
        %v6747 = vpop.f32.mrb[0].mxu0
        %6748 = vmatprep.mubr.f32.mxu0 0.0
        %v6749 = vand.u32 %v2799, 4294901760
        %v6750 = vsub.f32 %v2799, %v6749
        %6751 = vmatmul.mubr.f32.gmra.mrb[0].mxu0 %v6750
        %v6752 = vpop.f32.mrb[0].mxu0
        %v6753 = vadd.f32 %v6642, %v6752
        %v6754 = vpop.f32.mrb[0].mxu0
        %6755 = vdwg.mxu0
        %6756 = vmatprep.subr.mxu0 0.0
        %v6757 = vand.u32 %v6364, 4294901760
        %6758 = vmatpush1.msra.mxu0 %v6757
        %6759 = vmatprep.subr.mxu0 0.0
        %v6760 = vand.u32 %v6365, 4294901760
        %6761 = vmatpush1.msra.mxu0 %v6760
        %6762 = vmatprep.subr.mxu0 0.0
        %v6763 = vand.u32 %v6366, 4294901760
        %6764 = vmatpush1.msra.mxu0 %v6763
        %6765 = vmatprep.subr.mxu0 0.0
        %v6766 = vand.u32 %v6367, 4294901760
        %6767 = vmatpush1.msra.mxu0 %v6766
        %6768 = vmatprep.subr.mxu0 0.0
        %v6769 = vand.u32 %v6368, 4294901760
        %6770 = vmatpush1.msra.mxu0 %v6769
        %6771 = vmatprep.subr.mxu0 0.0
        %v6772 = vand.u32 %v6369, 4294901760
        %6773 = vmatpush1.msra.mxu0 %v6772
        %6774 = vmatprep.subr.mxu0 0.0
        %v6775 = vand.u32 %v6370, 4294901760
        %6776 = vmatpush1.msra.mxu0 %v6775
        %6777 = vmatprep.subr.mxu0 0.0
        %v6778 = vand.u32 %v6371, 4294901760
        %6779 = vmatpush1.msra.mxu0 %v6778
        %6780 = vmatprep.subr.mxu0 0.0
        %v6781 = vand.u32 %v6372, 4294901760
        %6782 = vmatpush1.msra.mxu0 %v6781
        %6783 = vmatprep.subr.mxu0 0.0
        %v6784 = vand.u32 %v6373, 4294901760
        %6785 = vmatpush1.msra.mxu0 %v6784
        %6786 = vmatprep.subr.mxu0 0.0
        %v6787 = vand.u32 %v6374, 4294901760
        %6788 = vmatpush1.msra.mxu0 %v6787
        %6789 = vmatprep.subr.mxu0 0.0
        %v6790 = vand.u32 %v6375, 4294901760
        %6791 = vmatpush1.msra.mxu0 %v6790
        %6792 = vmatprep.subr.mxu0 0.0
        %v6793 = vand.u32 %v6376, 4294901760
        %6794 = vmatpush1.msra.mxu0 %v6793
        %6795 = vmatprep.subr.mxu0 0.0
        %v6796 = vand.u32 %v6377, 4294901760
        %6797 = vmatpush1.msra.mxu0 %v6796
        %6798 = vmatprep.subr.mxu0 0.0
        %v6799 = vand.u32 %v6378, 4294901760
        %6800 = vmatpush1.msra.mxu0 %v6799
        %6801 = vmatprep.subr.mxu0 0.0
        %v6802 = vand.u32 %v6379, 4294901760
        %6803 = vmatpush1.msra.mxu0 %v6802
        %6804 = vmatprep.subr.mxu0 0.0
        %6805 = vmatpush1.msra.mxu0 0.0
        %6806 = vmatprep.subr.mxu0 0.0
        %6807 = vmatpush1.msra.mxu0 0.0
        %6808 = vmatprep.subr.mxu0 0.0
        %6809 = vmatpush1.msra.mxu0 0.0
        %6810 = vmatprep.subr.mxu0 0.0
        %6811 = vmatpush1.msra.mxu0 0.0
        %6812 = vmatprep.subr.mxu0 0.0
        %6813 = vmatpush1.msra.mxu0 0.0
        %6814 = vmatprep.subr.mxu0 0.0
        %6815 = vmatpush1.msra.mxu0 0.0
        %6816 = vmatprep.subr.mxu0 0.0
        %6817 = vmatpush1.msra.mxu0 0.0
        %6818 = vmatprep.subr.mxu0 0.0
        %6819 = vmatpush1.msra.mxu0 0.0
        %6820 = vmatprep.subr.mxu0 0.0
        %6821 = vmatpush1.msra.mxu0 0.0
        %6822 = vmatprep.subr.mxu0 0.0
        %6823 = vmatpush1.msra.mxu0 0.0
        %6824 = vmatprep.subr.mxu0 0.0
        %6825 = vmatpush1.msra.mxu0 0.0
        %6826 = vmatprep.subr.mxu0 0.0
        %6827 = vmatpush1.msra.mxu0 0.0
        %6828 = vmatprep.subr.mxu0 0.0
        %6829 = vmatpush1.msra.mxu0 0.0
        %6830 = vmatprep.subr.mxu0 0.0
        %6831 = vmatpush1.msra.mxu0 0.0
        %6832 = vmatprep.subr.mxu0 0.0
        %6833 = vmatpush1.msra.mxu0 0.0
        %6834 = vmatprep.subr.mxu0 0.0
        %6835 = vmatpush1.msra.mxu0 0.0
        %6836 = vmatprep.mubr.f32.mxu0 0.0
        %v6837 = vand.u32 %v2798, 4294901760
        %v6838 = vsub.f32 %v2798, %v6837
        %v6839 = vand.u32 %v6838, 4294901760
        %6840 = vmatmul.mubr.f32.gmra.mrb[0].mxu0 %v6839
        %v6841 = vpop.f32.mrb[0].mxu0
        %v6842 = vadd.f32 %v6746, %v6841
        %v6843 = vpop.f32.mrb[0].mxu0
        %6844 = vmatprep.mubr.f32.mxu0 0.0
        %v6845 = vand.u32 %v2799, 4294901760
        %v6846 = vsub.f32 %v2799, %v6845
        %v6847 = vand.u32 %v6846, 4294901760
        %6848 = vmatmul.mubr.f32.gmra.mrb[0].mxu0 %v6847
        %v6849 = vpop.f32.mrb[0].mxu0
        %v6850 = vadd.f32 %v6753, %v6849
        %v6851 = vpop.f32.mrb[0].mxu0
        %6852 = vdwg.mxu0
        %6853 = vmatprep.subr.mxu0 0.0
        %v6854 = vand.u32 %v6364, 4294901760
        %v6855 = vsub.f32 %v6364, %v6854
        %v6856 = vand.u32 %v6855, 4294901760
        %6857 = vmatpush1.msra.mxu0 %v6856
        %6858 = vmatprep.subr.mxu0 0.0
        %v6859 = vand.u32 %v6365, 4294901760
        %v6860 = vsub.f32 %v6365, %v6859
        %v6861 = vand.u32 %v6860, 4294901760
        %6862 = vmatpush1.msra.mxu0 %v6861
        %6863 = vmatprep.subr.mxu0 0.0
        %v6864 = vand.u32 %v6366, 4294901760
        %v6865 = vsub.f32 %v6366, %v6864
        %v6866 = vand.u32 %v6865, 4294901760
        %6867 = vmatpush1.msra.mxu0 %v6866
        %6868 = vmatprep.subr.mxu0 0.0
        %v6869 = vand.u32 %v6367, 4294901760
        %v6870 = vsub.f32 %v6367, %v6869
        %v6871 = vand.u32 %v6870, 4294901760
        %6872 = vmatpush1.msra.mxu0 %v6871
        %6873 = vmatprep.subr.mxu0 0.0
        %v6874 = vand.u32 %v6368, 4294901760
        %v6875 = vsub.f32 %v6368, %v6874
        %v6876 = vand.u32 %v6875, 4294901760
        %6877 = vmatpush1.msra.mxu0 %v6876
        %6878 = vmatprep.subr.mxu0 0.0
        %v6879 = vand.u32 %v6369, 4294901760
        %v6880 = vsub.f32 %v6369, %v6879
        %v6881 = vand.u32 %v6880, 4294901760
        %6882 = vmatpush1.msra.mxu0 %v6881
        %6883 = vmatprep.subr.mxu0 0.0
        %v6884 = vand.u32 %v6370, 4294901760
        %v6885 = vsub.f32 %v6370, %v6884
        %v6886 = vand.u32 %v6885, 4294901760
        %6887 = vmatpush1.msra.mxu0 %v6886
        %6888 = vmatprep.subr.mxu0 0.0
        %v6889 = vand.u32 %v6371, 4294901760
        %v6890 = vsub.f32 %v6371, %v6889
        %v6891 = vand.u32 %v6890, 4294901760
        %6892 = vmatpush1.msra.mxu0 %v6891
        %6893 = vmatprep.subr.mxu0 0.0
        %v6894 = vand.u32 %v6372, 4294901760
        %v6895 = vsub.f32 %v6372, %v6894
        %v6896 = vand.u32 %v6895, 4294901760
        %6897 = vmatpush1.msra.mxu0 %v6896
        %6898 = vmatprep.subr.mxu0 0.0
        %v6899 = vand.u32 %v6373, 4294901760
        %v6900 = vsub.f32 %v6373, %v6899
        %v6901 = vand.u32 %v6900, 4294901760
        %6902 = vmatpush1.msra.mxu0 %v6901
        %6903 = vmatprep.subr.mxu0 0.0
        %v6904 = vand.u32 %v6374, 4294901760
        %v6905 = vsub.f32 %v6374, %v6904
        %v6906 = vand.u32 %v6905, 4294901760
        %6907 = vmatpush1.msra.mxu0 %v6906
        %6908 = vmatprep.subr.mxu0 0.0
        %v6909 = vand.u32 %v6375, 4294901760
        %v6910 = vsub.f32 %v6375, %v6909
        %v6911 = vand.u32 %v6910, 4294901760
        %6912 = vmatpush1.msra.mxu0 %v6911
        %6913 = vmatprep.subr.mxu0 0.0
        %v6914 = vand.u32 %v6376, 4294901760
        %v6915 = vsub.f32 %v6376, %v6914
        %v6916 = vand.u32 %v6915, 4294901760
        %6917 = vmatpush1.msra.mxu0 %v6916
        %6918 = vmatprep.subr.mxu0 0.0
        %v6919 = vand.u32 %v6377, 4294901760
        %v6920 = vsub.f32 %v6377, %v6919
        %v6921 = vand.u32 %v6920, 4294901760
        %6922 = vmatpush1.msra.mxu0 %v6921
        %6923 = vmatprep.subr.mxu0 0.0
        %v6924 = vand.u32 %v6378, 4294901760
        %v6925 = vsub.f32 %v6378, %v6924
        %v6926 = vand.u32 %v6925, 4294901760
        %6927 = vmatpush1.msra.mxu0 %v6926
        %6928 = vmatprep.subr.mxu0 0.0
        %v6929 = vand.u32 %v6379, 4294901760
        %v6930 = vsub.f32 %v6379, %v6929
        %v6931 = vand.u32 %v6930, 4294901760
        %6932 = vmatpush1.msra.mxu0 %v6931
        %6933 = vmatprep.subr.mxu0 0.0
        %6934 = vmatpush1.msra.mxu0 0.0
        %6935 = vmatprep.subr.mxu0 0.0
        %6936 = vmatpush1.msra.mxu0 0.0
        %6937 = vmatprep.subr.mxu0 0.0
        %6938 = vmatpush1.msra.mxu0 0.0
        %6939 = vmatprep.subr.mxu0 0.0
        %6940 = vmatpush1.msra.mxu0 0.0
        %6941 = vmatprep.subr.mxu0 0.0
        %6942 = vmatpush1.msra.mxu0 0.0
        %6943 = vmatprep.subr.mxu0 0.0
        %6944 = vmatpush1.msra.mxu0 0.0
        %6945 = vmatprep.subr.mxu0 0.0
        %6946 = vmatpush1.msra.mxu0 0.0
        %6947 = vmatprep.subr.mxu0 0.0
        %6948 = vmatpush1.msra.mxu0 0.0
        %6949 = vmatprep.subr.mxu0 0.0
        %6950 = vmatpush1.msra.mxu0 0.0
        %6951 = vmatprep.subr.mxu0 0.0
        %6952 = vmatpush1.msra.mxu0 0.0
        %6953 = vmatprep.subr.mxu0 0.0
        %6954 = vmatpush1.msra.mxu0 0.0
        %6955 = vmatprep.subr.mxu0 0.0
        %6956 = vmatpush1.msra.mxu0 0.0
        %6957 = vmatprep.subr.mxu0 0.0
        %6958 = vmatpush1.msra.mxu0 0.0
        %6959 = vmatprep.subr.mxu0 0.0
        %6960 = vmatpush1.msra.mxu0 0.0
        %6961 = vmatprep.subr.mxu0 0.0
        %6962 = vmatpush1.msra.mxu0 0.0
        %6963 = vmatprep.subr.mxu0 0.0
        %6964 = vmatpush1.msra.mxu0 0.0
        %6965 = vmatprep.mubr.f32.mxu0 0.0
        %v6966 = vand.u32 %v2798, 4294901760
        %6967 = vmatmul.mubr.f32.gmra.mrb[0].mxu0 %v6966
        %v6968 = vpop.f32.mrb[0].mxu0
        %v6969 = vadd.f32 %v6842, %v6968
        %v6970 = vpop.f32.mrb[0].mxu0
        %6971 = vmatprep.mubr.f32.mxu0 0.0
        %v6972 = vand.u32 %v2799, 4294901760
        %6973 = vmatmul.mubr.f32.gmra.mrb[0].mxu0 %v6972
        %v6974 = vpop.f32.mrb[0].mxu0
        %v6975 = vadd.f32 %v6850, %v6974
        %v6976 = vpop.f32.mrb[0].mxu0
        %6977 = vdwg.mxu0
        %6978 = vmatprep.subr.mxu0 0.0
        %v6979 = vand.u32 %v6364, 4294901760
        %6980 = vmatpush1.msra.mxu0 %v6979
        %6981 = vmatprep.subr.mxu0 0.0
        %v6982 = vand.u32 %v6365, 4294901760
        %6983 = vmatpush1.msra.mxu0 %v6982
        %6984 = vmatprep.subr.mxu0 0.0
        %v6985 = vand.u32 %v6366, 4294901760
        %6986 = vmatpush1.msra.mxu0 %v6985
        %6987 = vmatprep.subr.mxu0 0.0
        %v6988 = vand.u32 %v6367, 4294901760
        %6989 = vmatpush1.msra.mxu0 %v6988
        %6990 = vmatprep.subr.mxu0 0.0
        %v6991 = vand.u32 %v6368, 4294901760
        %6992 = vmatpush1.msra.mxu0 %v6991
        %6993 = vmatprep.subr.mxu0 0.0
        %v6994 = vand.u32 %v6369, 4294901760
        %6995 = vmatpush1.msra.mxu0 %v6994
        %6996 = vmatprep.subr.mxu0 0.0
        %v6997 = vand.u32 %v6370, 4294901760
        %6998 = vmatpush1.msra.mxu0 %v6997
        %6999 = vmatprep.subr.mxu0 0.0
        %v7000 = vand.u32 %v6371, 4294901760
        %7001 = vmatpush1.msra.mxu0 %v7000
        %7002 = vmatprep.subr.mxu0 0.0
        %v7003 = vand.u32 %v6372, 4294901760
        %7004 = vmatpush1.msra.mxu0 %v7003
        %7005 = vmatprep.subr.mxu0 0.0
        %v7006 = vand.u32 %v6373, 4294901760
        %7007 = vmatpush1.msra.mxu0 %v7006
        %7008 = vmatprep.subr.mxu0 0.0
        %v7009 = vand.u32 %v6374, 4294901760
        %7010 = vmatpush1.msra.mxu0 %v7009
        %7011 = vmatprep.subr.mxu0 0.0
        %v7012 = vand.u32 %v6375, 4294901760
        %7013 = vmatpush1.msra.mxu0 %v7012
        %7014 = vmatprep.subr.mxu0 0.0
        %v7015 = vand.u32 %v6376, 4294901760
        %7016 = vmatpush1.msra.mxu0 %v7015
        %7017 = vmatprep.subr.mxu0 0.0
        %v7018 = vand.u32 %v6377, 4294901760
        %7019 = vmatpush1.msra.mxu0 %v7018
        %7020 = vmatprep.subr.mxu0 0.0
        %v7021 = vand.u32 %v6378, 4294901760
        %7022 = vmatpush1.msra.mxu0 %v7021
        %7023 = vmatprep.subr.mxu0 0.0
        %v7024 = vand.u32 %v6379, 4294901760
        %7025 = vmatpush1.msra.mxu0 %v7024
        %7026 = vmatprep.subr.mxu0 0.0
        %7027 = vmatpush1.msra.mxu0 0.0
        %7028 = vmatprep.subr.mxu0 0.0
        %7029 = vmatpush1.msra.mxu0 0.0
        %7030 = vmatprep.subr.mxu0 0.0
        %7031 = vmatpush1.msra.mxu0 0.0
        %7032 = vmatprep.subr.mxu0 0.0
        %7033 = vmatpush1.msra.mxu0 0.0
        %7034 = vmatprep.subr.mxu0 0.0
        %7035 = vmatpush1.msra.mxu0 0.0
        %7036 = vmatprep.subr.mxu0 0.0
        %7037 = vmatpush1.msra.mxu0 0.0
        %7038 = vmatprep.subr.mxu0 0.0
        %7039 = vmatpush1.msra.mxu0 0.0
        %7040 = vmatprep.subr.mxu0 0.0
        %7041 = vmatpush1.msra.mxu0 0.0
        %7042 = vmatprep.subr.mxu0 0.0
        %7043 = vmatpush1.msra.mxu0 0.0
        %7044 = vmatprep.subr.mxu0 0.0
        %7045 = vmatpush1.msra.mxu0 0.0
        %7046 = vmatprep.subr.mxu0 0.0
        %7047 = vmatpush1.msra.mxu0 0.0
        %7048 = vmatprep.subr.mxu0 0.0
        %7049 = vmatpush1.msra.mxu0 0.0
        %7050 = vmatprep.subr.mxu0 0.0
        %7051 = vmatpush1.msra.mxu0 0.0
        %7052 = vmatprep.subr.mxu0 0.0
        %7053 = vmatpush1.msra.mxu0 0.0
        %7054 = vmatprep.subr.mxu0 0.0
        %7055 = vmatpush1.msra.mxu0 0.0
        %7056 = vmatprep.subr.mxu0 0.0
        %7057 = vmatpush1.msra.mxu0 0.0
        %7058 = vmatprep.mubr.f32.mxu0 0.0
        %v7059 = vand.u32 %v2798, 4294901760
        %7060 = vmatmul.mubr.f32.gmra.mrb[0].mxu0 %v7059
        %v7061 = vpop.f32.mrb[0].mxu0
        %v7062 = vadd.f32 %v6969, %v7061
        %v7063 = vpop.f32.mrb[0].mxu0
        %7064 = vmatprep.mubr.f32.mxu0 0.0
        %v7065 = vand.u32 %v2799, 4294901760
        %7066 = vmatmul.mubr.f32.gmra.mrb[0].mxu0 %v7065
        %v7067 = vpop.f32.mrb[0].mxu0
        %v7068 = vadd.f32 %v6975, %v7067
        %v7069 = vpop.f32.mrb[0].mxu0
        %7070 = vdwg.mxu0
        %v7071 = vld [vmem:[#allocation3] sm:$0xff]
        %v7072 = vld [vmem:[#allocation3 + $0x8] sm:$0xff]
        %v7074 = vsel %vm3511, %v7062, 0
        %v7077 = vsel %vm3511, %v7068, 0
        %v7080 = vsel %vm3511, %v7071, 0
        %v7083 = vsel %vm3511, %v7072, 0
        %7085 = vmatprep.subr.mxu0 0.0
        %v7086 = vand.u32 %v7080, 4294901760
        %7087 = vmatpush1.xpose.msra.mxu0 %v7086
        %7088 = vmatprep.subr.mxu0 0.0
        %v7089 = vand.u32 %v7083, 4294901760
        %7090 = vmatpush1.xpose.msra.mxu0 %v7089
        %7091 = vmatprep.subr.mxu0 0.0
        %7092 = vmatpush1.xpose.msra.mxu0 0.0
        %7093 = vmatprep.subr.mxu0 0.0
        %7094 = vmatpush1.xpose.msra.mxu0 0.0
        %7095 = vmatprep.subr.mxu0 0.0
        %7096 = vmatpush1.xpose.msra.mxu0 0.0
        %7097 = vmatprep.subr.mxu0 0.0
        %7098 = vmatpush1.xpose.msra.mxu0 0.0
        %7099 = vmatprep.subr.mxu0 0.0
        %7100 = vmatpush1.xpose.msra.mxu0 0.0
        %7101 = vmatprep.subr.mxu0 0.0
        %7102 = vmatpush1.xpose.msra.mxu0 0.0
        %7103 = vmatprep.subr.mxu0 0.0
        %7104 = vmatpush1.xpose.msra.mxu0 0.0
        %7105 = vmatprep.subr.mxu0 0.0
        %7106 = vmatpush1.xpose.msra.mxu0 0.0
        %7107 = vmatprep.subr.mxu0 0.0
        %7108 = vmatpush1.xpose.msra.mxu0 0.0
        %7109 = vmatprep.subr.mxu0 0.0
        %7110 = vmatpush1.xpose.msra.mxu0 0.0
        %7111 = vmatprep.subr.mxu0 0.0
        %7112 = vmatpush1.xpose.msra.mxu0 0.0
        %7113 = vmatprep.subr.mxu0 0.0
        %7114 = vmatpush1.xpose.msra.mxu0 0.0
        %7115 = vmatprep.subr.mxu0 0.0
        %7116 = vmatpush1.xpose.msra.mxu0 0.0
        %7117 = vmatprep.subr.mxu0 0.0
        %7118 = vmatpush1.xpose.msra.mxu0 0.0
        %7119 = vmatprep.subr.mxu0 0.0
        %7120 = vmatpush1.xpose.msra.mxu0 0.0
        %7121 = vmatprep.subr.mxu0 0.0
        %7122 = vmatpush1.xpose.msra.mxu0 0.0
        %7123 = vmatprep.subr.mxu0 0.0
        %7124 = vmatpush1.xpose.msra.mxu0 0.0
        %7125 = vmatprep.subr.mxu0 0.0
        %7126 = vmatpush1.xpose.msra.mxu0 0.0
        %7127 = vmatprep.subr.mxu0 0.0
        %7128 = vmatpush1.xpose.msra.mxu0 0.0
        %7129 = vmatprep.subr.mxu0 0.0
        %7130 = vmatpush1.xpose.msra.mxu0 0.0
        %7131 = vmatprep.subr.mxu0 0.0
        %7132 = vmatpush1.xpose.msra.mxu0 0.0
        %7133 = vmatprep.subr.mxu0 0.0
        %7134 = vmatpush1.xpose.msra.mxu0 0.0
        %7135 = vmatprep.subr.mxu0 0.0
        %7136 = vmatpush1.xpose.msra.mxu0 0.0
        %7137 = vmatprep.subr.mxu0 0.0
        %7138 = vmatpush1.xpose.msra.mxu0 0.0
        %7139 = vmatprep.subr.mxu0 0.0
        %7140 = vmatpush1.xpose.msra.mxu0 0.0
        %7141 = vmatprep.subr.mxu0 0.0
        %7142 = vmatpush1.xpose.msra.mxu0 0.0
        %7143 = vmatprep.subr.mxu0 0.0
        %7144 = vmatpush1.xpose.msra.mxu0 0.0
        %7145 = vmatprep.subr.mxu0 0.0
        %7146 = vmatpush1.xpose.msra.mxu0 0.0
        %7147 = vmatprep.subr.mxu0 0.0
        %7148 = vmatpush1.xpose.msra.mxu0 0.0
        %7149 = vmatprep.subr.mxu0 0.0
        %7150 = vmatpush1.xpose.msra.mxu0 0.0
        %7151 = vmatprep.mubr.f32.mxu0 0.0
        %v7152 = vand.u32 %v7074, 4294901760
        %v7153 = vsub.f32 %v7074, %v7152
        %v7154 = vand.u32 %v7153, 4294901760
        %v7155 = vsub.f32 %v7153, %v7154
        %v7156 = vand.u32 %v7155, 4294901760
        %7157 = vmatmul.mubr.f32.gmra.mrb[0].mxu0 %v7156
        %v7158 = vpop.f32.mrb[0].mxu0
        %v7159 = vadd.f32 0.0, %v7158
        %v7160 = vpop.f32.mrb[0].mxu0
        %7161 = vmatprep.mubr.f32.mxu0 0.0
        %v7162 = vand.u32 %v7077, 4294901760
        %v7163 = vsub.f32 %v7077, %v7162
        %v7164 = vand.u32 %v7163, 4294901760
        %v7165 = vsub.f32 %v7163, %v7164
        %v7166 = vand.u32 %v7165, 4294901760
        %7167 = vmatmul.mubr.f32.gmra.mrb[0].mxu0 %v7166
        %v7168 = vpop.f32.mrb[0].mxu0
        %v7169 = vadd.f32 0.0, %v7168
        %v7170 = vpop.f32.mrb[0].mxu0
        %7171 = vdwg.mxu0
        %7172 = vmatprep.subr.mxu0 0.0
        %v7173 = vand.u32 %v7080, 4294901760
        %v7174 = vsub.f32 %v7080, %v7173
        %v7175 = vand.u32 %v7174, 4294901760
        %v7176 = vsub.f32 %v7174, %v7175
        %v7177 = vand.u32 %v7176, 4294901760
        %7178 = vmatpush1.xpose.msra.mxu0 %v7177
        %7179 = vmatprep.subr.mxu0 0.0
        %v7180 = vand.u32 %v7083, 4294901760
        %v7181 = vsub.f32 %v7083, %v7180
        %v7182 = vand.u32 %v7181, 4294901760
        %v7183 = vsub.f32 %v7181, %v7182
        %v7184 = vand.u32 %v7183, 4294901760
        %7185 = vmatpush1.xpose.msra.mxu0 %v7184
        %7186 = vmatprep.subr.mxu0 0.0
        %7187 = vmatpush1.xpose.msra.mxu0 0.0
        %7188 = vmatprep.subr.mxu0 0.0
        %7189 = vmatpush1.xpose.msra.mxu0 0.0
        %7190 = vmatprep.subr.mxu0 0.0
        %7191 = vmatpush1.xpose.msra.mxu0 0.0
        %7192 = vmatprep.subr.mxu0 0.0
        %7193 = vmatpush1.xpose.msra.mxu0 0.0
        %7194 = vmatprep.subr.mxu0 0.0
        %7195 = vmatpush1.xpose.msra.mxu0 0.0
        %7196 = vmatprep.subr.mxu0 0.0
        %7197 = vmatpush1.xpose.msra.mxu0 0.0
        %7198 = vmatprep.subr.mxu0 0.0
        %7199 = vmatpush1.xpose.msra.mxu0 0.0
        %7200 = vmatprep.subr.mxu0 0.0
        %7201 = vmatpush1.xpose.msra.mxu0 0.0
        %7202 = vmatprep.subr.mxu0 0.0
        %7203 = vmatpush1.xpose.msra.mxu0 0.0
        %7204 = vmatprep.subr.mxu0 0.0
        %7205 = vmatpush1.xpose.msra.mxu0 0.0
        %7206 = vmatprep.subr.mxu0 0.0
        %7207 = vmatpush1.xpose.msra.mxu0 0.0
        %7208 = vmatprep.subr.mxu0 0.0
        %7209 = vmatpush1.xpose.msra.mxu0 0.0
        %7210 = vmatprep.subr.mxu0 0.0
        %7211 = vmatpush1.xpose.msra.mxu0 0.0
        %7212 = vmatprep.subr.mxu0 0.0
        %7213 = vmatpush1.xpose.msra.mxu0 0.0
        %7214 = vmatprep.subr.mxu0 0.0
        %7215 = vmatpush1.xpose.msra.mxu0 0.0
        %7216 = vmatprep.subr.mxu0 0.0
        %7217 = vmatpush1.xpose.msra.mxu0 0.0
        %7218 = vmatprep.subr.mxu0 0.0
        %7219 = vmatpush1.xpose.msra.mxu0 0.0
        %7220 = vmatprep.subr.mxu0 0.0
        %7221 = vmatpush1.xpose.msra.mxu0 0.0
        %7222 = vmatprep.subr.mxu0 0.0
        %7223 = vmatpush1.xpose.msra.mxu0 0.0
        %7224 = vmatprep.subr.mxu0 0.0
        %7225 = vmatpush1.xpose.msra.mxu0 0.0
        %7226 = vmatprep.subr.mxu0 0.0
        %7227 = vmatpush1.xpose.msra.mxu0 0.0
        %7228 = vmatprep.subr.mxu0 0.0
        %7229 = vmatpush1.xpose.msra.mxu0 0.0
        %7230 = vmatprep.subr.mxu0 0.0
        %7231 = vmatpush1.xpose.msra.mxu0 0.0
        %7232 = vmatprep.subr.mxu0 0.0
        %7233 = vmatpush1.xpose.msra.mxu0 0.0
        %7234 = vmatprep.subr.mxu0 0.0
        %7235 = vmatpush1.xpose.msra.mxu0 0.0
        %7236 = vmatprep.subr.mxu0 0.0
        %7237 = vmatpush1.xpose.msra.mxu0 0.0
        %7238 = vmatprep.subr.mxu0 0.0
        %7239 = vmatpush1.xpose.msra.mxu0 0.0
        %7240 = vmatprep.subr.mxu0 0.0
        %7241 = vmatpush1.xpose.msra.mxu0 0.0
        %7242 = vmatprep.subr.mxu0 0.0
        %7243 = vmatpush1.xpose.msra.mxu0 0.0
        %7244 = vmatprep.subr.mxu0 0.0
        %7245 = vmatpush1.xpose.msra.mxu0 0.0
        %7246 = vmatprep.mubr.f32.mxu0 0.0
        %v7247 = vand.u32 %v7074, 4294901760
        %7248 = vmatmul.mubr.f32.gmra.mrb[0].mxu0 %v7247
        %v7249 = vpop.f32.mrb[0].mxu0
        %v7250 = vadd.f32 %v7159, %v7249
        %v7251 = vpop.f32.mrb[0].mxu0
        %7252 = vmatprep.mubr.f32.mxu0 0.0
        %v7253 = vand.u32 %v7077, 4294901760
        %7254 = vmatmul.mubr.f32.gmra.mrb[0].mxu0 %v7253
        %v7255 = vpop.f32.mrb[0].mxu0
        %v7256 = vadd.f32 %v7169, %v7255
        %v7257 = vpop.f32.mrb[0].mxu0
        %7258 = vdwg.mxu0
        %7259 = vmatprep.subr.mxu0 0.0
        %v7260 = vand.u32 %v7080, 4294901760
        %v7261 = vsub.f32 %v7080, %v7260
        %7262 = vmatpush1.xpose.msra.mxu0 %v7261
        %7263 = vmatprep.subr.mxu0 0.0
        %v7264 = vand.u32 %v7083, 4294901760
        %v7265 = vsub.f32 %v7083, %v7264
        %7266 = vmatpush1.xpose.msra.mxu0 %v7265
        %7267 = vmatprep.subr.mxu0 0.0
        %7268 = vmatpush1.xpose.msra.mxu0 0.0
        %7269 = vmatprep.subr.mxu0 0.0
        %7270 = vmatpush1.xpose.msra.mxu0 0.0
        %7271 = vmatprep.subr.mxu0 0.0
        %7272 = vmatpush1.xpose.msra.mxu0 0.0
        %7273 = vmatprep.subr.mxu0 0.0
        %7274 = vmatpush1.xpose.msra.mxu0 0.0
        %7275 = vmatprep.subr.mxu0 0.0
        %7276 = vmatpush1.xpose.msra.mxu0 0.0
        %7277 = vmatprep.subr.mxu0 0.0
        %7278 = vmatpush1.xpose.msra.mxu0 0.0
        %7279 = vmatprep.subr.mxu0 0.0
        %7280 = vmatpush1.xpose.msra.mxu0 0.0
        %7281 = vmatprep.subr.mxu0 0.0
        %7282 = vmatpush1.xpose.msra.mxu0 0.0
        %7283 = vmatprep.subr.mxu0 0.0
        %7284 = vmatpush1.xpose.msra.mxu0 0.0
        %7285 = vmatprep.subr.mxu0 0.0
        %7286 = vmatpush1.xpose.msra.mxu0 0.0
        %7287 = vmatprep.subr.mxu0 0.0
        %7288 = vmatpush1.xpose.msra.mxu0 0.0
        %7289 = vmatprep.subr.mxu0 0.0
        %7290 = vmatpush1.xpose.msra.mxu0 0.0
        %7291 = vmatprep.subr.mxu0 0.0
        %7292 = vmatpush1.xpose.msra.mxu0 0.0
        %7293 = vmatprep.subr.mxu0 0.0
        %7294 = vmatpush1.xpose.msra.mxu0 0.0
        %7295 = vmatprep.subr.mxu0 0.0
        %7296 = vmatpush1.xpose.msra.mxu0 0.0
        %7297 = vmatprep.subr.mxu0 0.0
        %7298 = vmatpush1.xpose.msra.mxu0 0.0
        %7299 = vmatprep.subr.mxu0 0.0
        %7300 = vmatpush1.xpose.msra.mxu0 0.0
        %7301 = vmatprep.subr.mxu0 0.0
        %7302 = vmatpush1.xpose.msra.mxu0 0.0
        %7303 = vmatprep.subr.mxu0 0.0
        %7304 = vmatpush1.xpose.msra.mxu0 0.0
        %7305 = vmatprep.subr.mxu0 0.0
        %7306 = vmatpush1.xpose.msra.mxu0 0.0
        %7307 = vmatprep.subr.mxu0 0.0
        %7308 = vmatpush1.xpose.msra.mxu0 0.0
        %7309 = vmatprep.subr.mxu0 0.0
        %7310 = vmatpush1.xpose.msra.mxu0 0.0
        %7311 = vmatprep.subr.mxu0 0.0
        %7312 = vmatpush1.xpose.msra.mxu0 0.0
        %7313 = vmatprep.subr.mxu0 0.0
        %7314 = vmatpush1.xpose.msra.mxu0 0.0
        %7315 = vmatprep.subr.mxu0 0.0
        %7316 = vmatpush1.xpose.msra.mxu0 0.0
        %7317 = vmatprep.subr.mxu0 0.0
        %7318 = vmatpush1.xpose.msra.mxu0 0.0
        %7319 = vmatprep.subr.mxu0 0.0
        %7320 = vmatpush1.xpose.msra.mxu0 0.0
        %7321 = vmatprep.subr.mxu0 0.0
        %7322 = vmatpush1.xpose.msra.mxu0 0.0
        %7323 = vmatprep.subr.mxu0 0.0
        %7324 = vmatpush1.xpose.msra.mxu0 0.0
        %7325 = vmatprep.subr.mxu0 0.0
        %7326 = vmatpush1.xpose.msra.mxu0 0.0
        %7327 = vmatprep.mubr.f32.mxu0 0.0
        %v7328 = vand.u32 %v7074, 4294901760
        %v7329 = vsub.f32 %v7074, %v7328
        %7330 = vmatmul.mubr.f32.gmra.mrb[0].mxu0 %v7329
        %v7331 = vpop.f32.mrb[0].mxu0
        %v7332 = vadd.f32 %v7250, %v7331
        %v7333 = vpop.f32.mrb[0].mxu0
        %7334 = vmatprep.mubr.f32.mxu0 0.0
        %v7335 = vand.u32 %v7077, 4294901760
        %v7336 = vsub.f32 %v7077, %v7335
        %7337 = vmatmul.mubr.f32.gmra.mrb[0].mxu0 %v7336
        %v7338 = vpop.f32.mrb[0].mxu0
        %v7339 = vadd.f32 %v7256, %v7338
        %v7340 = vpop.f32.mrb[0].mxu0
        %7341 = vdwg.mxu0
        %7342 = vmatprep.subr.mxu0 0.0
        %v7343 = vand.u32 %v7080, 4294901760
        %7344 = vmatpush1.xpose.msra.mxu0 %v7343
        %7345 = vmatprep.subr.mxu0 0.0
        %v7346 = vand.u32 %v7083, 4294901760
        %7347 = vmatpush1.xpose.msra.mxu0 %v7346
        %7348 = vmatprep.subr.mxu0 0.0
        %7349 = vmatpush1.xpose.msra.mxu0 0.0
        %7350 = vmatprep.subr.mxu0 0.0
        %7351 = vmatpush1.xpose.msra.mxu0 0.0
        %7352 = vmatprep.subr.mxu0 0.0
        %7353 = vmatpush1.xpose.msra.mxu0 0.0
        %7354 = vmatprep.subr.mxu0 0.0
        %7355 = vmatpush1.xpose.msra.mxu0 0.0
        %7356 = vmatprep.subr.mxu0 0.0
        %7357 = vmatpush1.xpose.msra.mxu0 0.0
        %7358 = vmatprep.subr.mxu0 0.0
        %7359 = vmatpush1.xpose.msra.mxu0 0.0
        %7360 = vmatprep.subr.mxu0 0.0
        %7361 = vmatpush1.xpose.msra.mxu0 0.0
        %7362 = vmatprep.subr.mxu0 0.0
        %7363 = vmatpush1.xpose.msra.mxu0 0.0
        %7364 = vmatprep.subr.mxu0 0.0
        %7365 = vmatpush1.xpose.msra.mxu0 0.0
        %7366 = vmatprep.subr.mxu0 0.0
        %7367 = vmatpush1.xpose.msra.mxu0 0.0
        %7368 = vmatprep.subr.mxu0 0.0
        %7369 = vmatpush1.xpose.msra.mxu0 0.0
        %7370 = vmatprep.subr.mxu0 0.0
        %7371 = vmatpush1.xpose.msra.mxu0 0.0
        %7372 = vmatprep.subr.mxu0 0.0
        %7373 = vmatpush1.xpose.msra.mxu0 0.0
        %7374 = vmatprep.subr.mxu0 0.0
        %7375 = vmatpush1.xpose.msra.mxu0 0.0
        %7376 = vmatprep.subr.mxu0 0.0
        %7377 = vmatpush1.xpose.msra.mxu0 0.0
        %7378 = vmatprep.subr.mxu0 0.0
        %7379 = vmatpush1.xpose.msra.mxu0 0.0
        %7380 = vmatprep.subr.mxu0 0.0
        %7381 = vmatpush1.xpose.msra.mxu0 0.0
        %7382 = vmatprep.subr.mxu0 0.0
        %7383 = vmatpush1.xpose.msra.mxu0 0.0
        %7384 = vmatprep.subr.mxu0 0.0
        %7385 = vmatpush1.xpose.msra.mxu0 0.0
        %7386 = vmatprep.subr.mxu0 0.0
        %7387 = vmatpush1.xpose.msra.mxu0 0.0
        %7388 = vmatprep.subr.mxu0 0.0
        %7389 = vmatpush1.xpose.msra.mxu0 0.0
        %7390 = vmatprep.subr.mxu0 0.0
        %7391 = vmatpush1.xpose.msra.mxu0 0.0
        %7392 = vmatprep.subr.mxu0 0.0
        %7393 = vmatpush1.xpose.msra.mxu0 0.0
        %7394 = vmatprep.subr.mxu0 0.0
        %7395 = vmatpush1.xpose.msra.mxu0 0.0
        %7396 = vmatprep.subr.mxu0 0.0
        %7397 = vmatpush1.xpose.msra.mxu0 0.0
        %7398 = vmatprep.subr.mxu0 0.0
        %7399 = vmatpush1.xpose.msra.mxu0 0.0
        %7400 = vmatprep.subr.mxu0 0.0
        %7401 = vmatpush1.xpose.msra.mxu0 0.0
        %7402 = vmatprep.subr.mxu0 0.0
        %7403 = vmatpush1.xpose.msra.mxu0 0.0
        %7404 = vmatprep.subr.mxu0 0.0
        %7405 = vmatpush1.xpose.msra.mxu0 0.0
        %7406 = vmatprep.subr.mxu0 0.0
        %7407 = vmatpush1.xpose.msra.mxu0 0.0
        %7408 = vmatprep.mubr.f32.mxu0 0.0
        %v7409 = vand.u32 %v7074, 4294901760
        %v7410 = vsub.f32 %v7074, %v7409
        %v7411 = vand.u32 %v7410, 4294901760
        %7412 = vmatmul.mubr.f32.gmra.mrb[0].mxu0 %v7411
        %v7413 = vpop.f32.mrb[0].mxu0
        %v7414 = vadd.f32 %v7332, %v7413
        %v7415 = vpop.f32.mrb[0].mxu0
        %7416 = vmatprep.mubr.f32.mxu0 0.0
        %v7417 = vand.u32 %v7077, 4294901760
        %v7418 = vsub.f32 %v7077, %v7417
        %v7419 = vand.u32 %v7418, 4294901760
        %7420 = vmatmul.mubr.f32.gmra.mrb[0].mxu0 %v7419
        %v7421 = vpop.f32.mrb[0].mxu0
        %v7422 = vadd.f32 %v7339, %v7421
        %v7423 = vpop.f32.mrb[0].mxu0
        %7424 = vdwg.mxu0
        %7425 = vmatprep.subr.mxu0 0.0
        %v7426 = vand.u32 %v7080, 4294901760
        %v7427 = vsub.f32 %v7080, %v7426
        %v7428 = vand.u32 %v7427, 4294901760
        %7429 = vmatpush1.xpose.msra.mxu0 %v7428
        %7430 = vmatprep.subr.mxu0 0.0
        %v7431 = vand.u32 %v7083, 4294901760
        %v7432 = vsub.f32 %v7083, %v7431
        %v7433 = vand.u32 %v7432, 4294901760
        %7434 = vmatpush1.xpose.msra.mxu0 %v7433
        %7435 = vmatprep.subr.mxu0 0.0
        %7436 = vmatpush1.xpose.msra.mxu0 0.0
        %7437 = vmatprep.subr.mxu0 0.0
        %7438 = vmatpush1.xpose.msra.mxu0 0.0
        %7439 = vmatprep.subr.mxu0 0.0
        %7440 = vmatpush1.xpose.msra.mxu0 0.0
        %7441 = vmatprep.subr.mxu0 0.0
        %7442 = vmatpush1.xpose.msra.mxu0 0.0
        %7443 = vmatprep.subr.mxu0 0.0
        %7444 = vmatpush1.xpose.msra.mxu0 0.0
        %7445 = vmatprep.subr.mxu0 0.0
        %7446 = vmatpush1.xpose.msra.mxu0 0.0
        %7447 = vmatprep.subr.mxu0 0.0
        %7448 = vmatpush1.xpose.msra.mxu0 0.0
        %7449 = vmatprep.subr.mxu0 0.0
        %7450 = vmatpush1.xpose.msra.mxu0 0.0
        %7451 = vmatprep.subr.mxu0 0.0
        %7452 = vmatpush1.xpose.msra.mxu0 0.0
        %7453 = vmatprep.subr.mxu0 0.0
        %7454 = vmatpush1.xpose.msra.mxu0 0.0
        %7455 = vmatprep.subr.mxu0 0.0
        %7456 = vmatpush1.xpose.msra.mxu0 0.0
        %7457 = vmatprep.subr.mxu0 0.0
        %7458 = vmatpush1.xpose.msra.mxu0 0.0
        %7459 = vmatprep.subr.mxu0 0.0
        %7460 = vmatpush1.xpose.msra.mxu0 0.0
        %7461 = vmatprep.subr.mxu0 0.0
        %7462 = vmatpush1.xpose.msra.mxu0 0.0
        %7463 = vmatprep.subr.mxu0 0.0
        %7464 = vmatpush1.xpose.msra.mxu0 0.0
        %7465 = vmatprep.subr.mxu0 0.0
        %7466 = vmatpush1.xpose.msra.mxu0 0.0
        %7467 = vmatprep.subr.mxu0 0.0
        %7468 = vmatpush1.xpose.msra.mxu0 0.0
        %7469 = vmatprep.subr.mxu0 0.0
        %7470 = vmatpush1.xpose.msra.mxu0 0.0
        %7471 = vmatprep.subr.mxu0 0.0
        %7472 = vmatpush1.xpose.msra.mxu0 0.0
        %7473 = vmatprep.subr.mxu0 0.0
        %7474 = vmatpush1.xpose.msra.mxu0 0.0
        %7475 = vmatprep.subr.mxu0 0.0
        %7476 = vmatpush1.xpose.msra.mxu0 0.0
        %7477 = vmatprep.subr.mxu0 0.0
        %7478 = vmatpush1.xpose.msra.mxu0 0.0
        %7479 = vmatprep.subr.mxu0 0.0
        %7480 = vmatpush1.xpose.msra.mxu0 0.0
        %7481 = vmatprep.subr.mxu0 0.0
        %7482 = vmatpush1.xpose.msra.mxu0 0.0
        %7483 = vmatprep.subr.mxu0 0.0
        %7484 = vmatpush1.xpose.msra.mxu0 0.0
        %7485 = vmatprep.subr.mxu0 0.0
        %7486 = vmatpush1.xpose.msra.mxu0 0.0
        %7487 = vmatprep.subr.mxu0 0.0
        %7488 = vmatpush1.xpose.msra.mxu0 0.0
        %7489 = vmatprep.subr.mxu0 0.0
        %7490 = vmatpush1.xpose.msra.mxu0 0.0
        %7491 = vmatprep.subr.mxu0 0.0
        %7492 = vmatpush1.xpose.msra.mxu0 0.0
        %7493 = vmatprep.subr.mxu0 0.0
        %7494 = vmatpush1.xpose.msra.mxu0 0.0
        %7495 = vmatprep.mubr.f32.mxu0 0.0
        %v7496 = vand.u32 %v7074, 4294901760
        %7497 = vmatmul.mubr.f32.gmra.mrb[0].mxu0 %v7496
        %v7498 = vpop.f32.mrb[0].mxu0
        %v7499 = vadd.f32 %v7414, %v7498
        %v7500 = vpop.f32.mrb[0].mxu0
        %7501 = vmatprep.mubr.f32.mxu0 0.0
        %v7502 = vand.u32 %v7077, 4294901760
        %7503 = vmatmul.mubr.f32.gmra.mrb[0].mxu0 %v7502
        %v7504 = vpop.f32.mrb[0].mxu0
        %v7505 = vadd.f32 %v7422, %v7504
        %v7506 = vpop.f32.mrb[0].mxu0
        %7507 = vdwg.mxu0
        %7508 = vmatprep.subr.mxu0 0.0
        %v7509 = vand.u32 %v7080, 4294901760
        %7510 = vmatpush1.xpose.msra.mxu0 %v7509
        %7511 = vmatprep.subr.mxu0 0.0
        %v7512 = vand.u32 %v7083, 4294901760
        %7513 = vmatpush1.xpose.msra.mxu0 %v7512
        %7514 = vmatprep.subr.mxu0 0.0
        %7515 = vmatpush1.xpose.msra.mxu0 0.0
        %7516 = vmatprep.subr.mxu0 0.0
        %7517 = vmatpush1.xpose.msra.mxu0 0.0
        %7518 = vmatprep.subr.mxu0 0.0
        %7519 = vmatpush1.xpose.msra.mxu0 0.0
        %7520 = vmatprep.subr.mxu0 0.0
        %7521 = vmatpush1.xpose.msra.mxu0 0.0
        %7522 = vmatprep.subr.mxu0 0.0
        %7523 = vmatpush1.xpose.msra.mxu0 0.0
        %7524 = vmatprep.subr.mxu0 0.0
        %7525 = vmatpush1.xpose.msra.mxu0 0.0
        %7526 = vmatprep.subr.mxu0 0.0
        %7527 = vmatpush1.xpose.msra.mxu0 0.0
        %7528 = vmatprep.subr.mxu0 0.0
        %7529 = vmatpush1.xpose.msra.mxu0 0.0
        %7530 = vmatprep.subr.mxu0 0.0
        %7531 = vmatpush1.xpose.msra.mxu0 0.0
        %7532 = vmatprep.subr.mxu0 0.0
        %7533 = vmatpush1.xpose.msra.mxu0 0.0
        %7534 = vmatprep.subr.mxu0 0.0
        %7535 = vmatpush1.xpose.msra.mxu0 0.0
        %7536 = vmatprep.subr.mxu0 0.0
        %7537 = vmatpush1.xpose.msra.mxu0 0.0
        %7538 = vmatprep.subr.mxu0 0.0
        %7539 = vmatpush1.xpose.msra.mxu0 0.0
        %7540 = vmatprep.subr.mxu0 0.0
        %7541 = vmatpush1.xpose.msra.mxu0 0.0
        %7542 = vmatprep.subr.mxu0 0.0
        %7543 = vmatpush1.xpose.msra.mxu0 0.0
        %7544 = vmatprep.subr.mxu0 0.0
        %7545 = vmatpush1.xpose.msra.mxu0 0.0
        %7546 = vmatprep.subr.mxu0 0.0
        %7547 = vmatpush1.xpose.msra.mxu0 0.0
        %7548 = vmatprep.subr.mxu0 0.0
        %7549 = vmatpush1.xpose.msra.mxu0 0.0
        %7550 = vmatprep.subr.mxu0 0.0
        %7551 = vmatpush1.xpose.msra.mxu0 0.0
        %7552 = vmatprep.subr.mxu0 0.0
        %7553 = vmatpush1.xpose.msra.mxu0 0.0
        %7554 = vmatprep.subr.mxu0 0.0
        %7555 = vmatpush1.xpose.msra.mxu0 0.0
        %7556 = vmatprep.subr.mxu0 0.0
        %7557 = vmatpush1.xpose.msra.mxu0 0.0
        %7558 = vmatprep.subr.mxu0 0.0
        %7559 = vmatpush1.xpose.msra.mxu0 0.0
        %7560 = vmatprep.subr.mxu0 0.0
        %7561 = vmatpush1.xpose.msra.mxu0 0.0
        %7562 = vmatprep.subr.mxu0 0.0
        %7563 = vmatpush1.xpose.msra.mxu0 0.0
        %7564 = vmatprep.subr.mxu0 0.0
        %7565 = vmatpush1.xpose.msra.mxu0 0.0
        %7566 = vmatprep.subr.mxu0 0.0
        %7567 = vmatpush1.xpose.msra.mxu0 0.0
        %7568 = vmatprep.subr.mxu0 0.0
        %7569 = vmatpush1.xpose.msra.mxu0 0.0
        %7570 = vmatprep.subr.mxu0 0.0
        %7571 = vmatpush1.xpose.msra.mxu0 0.0
        %7572 = vmatprep.subr.mxu0 0.0
        %7573 = vmatpush1.xpose.msra.mxu0 0.0
        %7574 = vmatprep.mubr.f32.mxu0 0.0
        %v7575 = vand.u32 %v7074, 4294901760
        %7576 = vmatmul.mubr.f32.gmra.mrb[0].mxu0 %v7575
        %v7577 = vpop.f32.mrb[0].mxu0
        %v7578 = vadd.f32 %v7499, %v7577
        %v7579 = vpop.f32.mrb[0].mxu0
        %7580 = vmatprep.mubr.f32.mxu0 0.0
        %v7581 = vand.u32 %v7077, 4294901760
        %7582 = vmatmul.mubr.f32.gmra.mrb[0].mxu0 %v7581
        %v7583 = vpop.f32.mrb[0].mxu0
        %v7584 = vadd.f32 %v7505, %v7583
        %v7585 = vpop.f32.mrb[0].mxu0
        %7586 = vdwg.mxu0
        %v7587 = vmul.f32 %v7578, %v6362
        %v7588 = vmul.f32 %v7584, %v6363
        %v7589 = vsel %vm4028, %v7587, -inf
        %7590 = vmax.xlane.f32.xlu0 %v7589
        %v7591 = vpop.xlane.xlu0 %7590
        %v7592 = vsel %vm4028, %v7588, -inf
        %7593 = vmax.xlane.f32.xlu0 %v7592
        %v7594 = vpop.xlane.xlu0 %7593
        %v7595 = vsub.f32 %v7587, %v7591
        %v7596 = vsub.f32 %v7588, %v7594
        %v7597 = vmul.f32 %v7595, 1.442695
        %v7598 = vpow.pop %v7597
        %v7599 = vmul.f32 %v7596, 1.442695
        %v7600 = vpow.pop %v7599
        %v7601 = vsel %vm4028, %v7598, 0.0
        %7602 = vadd.xlane.f32.xlu0 %v7601
        %v7603 = vpop.xlane.xlu0 %7602
        %v7604 = vsel %vm4028, %v7600, 0.0
        %7605 = vadd.xlane.f32.xlu0 %v7604
        %v7606 = vpop.xlane.xlu0 %7605
        %v7607 = vld [vmem:[#allocation4] sm:$0xff]
        %v7608 = vld [vmem:[#allocation4 + $0x8] sm:$0xff]
        %v7610 = vsel %vm4028, %v7598, 0
        %v7613 = vsel %vm4028, %v7600, 0
        %7615 = vmatprep.subr.mxu0 0.0
        %v7616 = vand.u32 %v7607, 4294901760
        %7617 = vmatpush1.msra.mxu0 %v7616
        %7618 = vmatprep.subr.mxu0 0.0
        %v7619 = vand.u32 %v7608, 4294901760
        %7620 = vmatpush1.msra.mxu0 %v7619
        %7621 = vmatprep.subr.mxu0 0.0
        %7622 = vmatpush1.msra.mxu0 0.0
        %7623 = vmatprep.subr.mxu0 0.0
        %7624 = vmatpush1.msra.mxu0 0.0
        %7625 = vmatprep.subr.mxu0 0.0
        %7626 = vmatpush1.msra.mxu0 0.0
        %7627 = vmatprep.subr.mxu0 0.0
        %7628 = vmatpush1.msra.mxu0 0.0
        %7629 = vmatprep.subr.mxu0 0.0
        %7630 = vmatpush1.msra.mxu0 0.0
        %7631 = vmatprep.subr.mxu0 0.0
        %7632 = vmatpush1.msra.mxu0 0.0
        %7633 = vmatprep.subr.mxu0 0.0
        %7634 = vmatpush1.msra.mxu0 0.0
        %7635 = vmatprep.subr.mxu0 0.0
        %7636 = vmatpush1.msra.mxu0 0.0
        %7637 = vmatprep.subr.mxu0 0.0
        %7638 = vmatpush1.msra.mxu0 0.0
        %7639 = vmatprep.subr.mxu0 0.0
        %7640 = vmatpush1.msra.mxu0 0.0
        %7641 = vmatprep.subr.mxu0 0.0
        %7642 = vmatpush1.msra.mxu0 0.0
        %7643 = vmatprep.subr.mxu0 0.0
        %7644 = vmatpush1.msra.mxu0 0.0
        %7645 = vmatprep.subr.mxu0 0.0
        %7646 = vmatpush1.msra.mxu0 0.0
        %7647 = vmatprep.subr.mxu0 0.0
        %7648 = vmatpush1.msra.mxu0 0.0
        %7649 = vmatprep.subr.mxu0 0.0
        %7650 = vmatpush1.msra.mxu0 0.0
        %7651 = vmatprep.subr.mxu0 0.0
        %7652 = vmatpush1.msra.mxu0 0.0
        %7653 = vmatprep.subr.mxu0 0.0
        %7654 = vmatpush1.msra.mxu0 0.0
        %7655 = vmatprep.subr.mxu0 0.0
        %7656 = vmatpush1.msra.mxu0 0.0
        %7657 = vmatprep.subr.mxu0 0.0
        %7658 = vmatpush1.msra.mxu0 0.0
        %7659 = vmatprep.subr.mxu0 0.0
        %7660 = vmatpush1.msra.mxu0 0.0
        %7661 = vmatprep.subr.mxu0 0.0
        %7662 = vmatpush1.msra.mxu0 0.0
        %7663 = vmatprep.subr.mxu0 0.0
        %7664 = vmatpush1.msra.mxu0 0.0
        %7665 = vmatprep.subr.mxu0 0.0
        %7666 = vmatpush1.msra.mxu0 0.0
        %7667 = vmatprep.subr.mxu0 0.0
        %7668 = vmatpush1.msra.mxu0 0.0
        %7669 = vmatprep.subr.mxu0 0.0
        %7670 = vmatpush1.msra.mxu0 0.0
        %7671 = vmatprep.subr.mxu0 0.0
        %7672 = vmatpush1.msra.mxu0 0.0
        %7673 = vmatprep.subr.mxu0 0.0
        %7674 = vmatpush1.msra.mxu0 0.0
        %7675 = vmatprep.subr.mxu0 0.0
        %7676 = vmatpush1.msra.mxu0 0.0
        %7677 = vmatprep.subr.mxu0 0.0
        %7678 = vmatpush1.msra.mxu0 0.0
        %7679 = vmatprep.subr.mxu0 0.0
        %7680 = vmatpush1.msra.mxu0 0.0
        %7681 = vmatprep.mubr.f32.mxu0 0.0
        %v7682 = vand.u32 %v7610, 4294901760
        %v7683 = vsub.f32 %v7610, %v7682
        %v7684 = vand.u32 %v7683, 4294901760
        %v7685 = vsub.f32 %v7683, %v7684
        %v7686 = vand.u32 %v7685, 4294901760
        %7687 = vmatmul.mubr.f32.gmra.mrb[0].mxu0 %v7686
        %v7688 = vpop.f32.mrb[0].mxu0
        %v7689 = vadd.f32 0.0, %v7688
        %v7690 = vpop.f32.mrb[0].mxu0
        %7691 = vmatprep.mubr.f32.mxu0 0.0
        %v7692 = vand.u32 %v7613, 4294901760
        %v7693 = vsub.f32 %v7613, %v7692
        %v7694 = vand.u32 %v7693, 4294901760
        %v7695 = vsub.f32 %v7693, %v7694
        %v7696 = vand.u32 %v7695, 4294901760
        %7697 = vmatmul.mubr.f32.gmra.mrb[0].mxu0 %v7696
        %v7698 = vpop.f32.mrb[0].mxu0
        %v7699 = vadd.f32 0.0, %v7698
        %v7700 = vpop.f32.mrb[0].mxu0
        %7701 = vdwg.mxu0
        %7702 = vmatprep.subr.mxu0 0.0
        %v7703 = vand.u32 %v7607, 4294901760
        %v7704 = vsub.f32 %v7607, %v7703
        %v7705 = vand.u32 %v7704, 4294901760
        %v7706 = vsub.f32 %v7704, %v7705
        %v7707 = vand.u32 %v7706, 4294901760
        %7708 = vmatpush1.msra.mxu0 %v7707
        %7709 = vmatprep.subr.mxu0 0.0
        %v7710 = vand.u32 %v7608, 4294901760
        %v7711 = vsub.f32 %v7608, %v7710
        %v7712 = vand.u32 %v7711, 4294901760
        %v7713 = vsub.f32 %v7711, %v7712
        %v7714 = vand.u32 %v7713, 4294901760
        %7715 = vmatpush1.msra.mxu0 %v7714
        %7716 = vmatprep.subr.mxu0 0.0
        %7717 = vmatpush1.msra.mxu0 0.0
        %7718 = vmatprep.subr.mxu0 0.0
        %7719 = vmatpush1.msra.mxu0 0.0
        %7720 = vmatprep.subr.mxu0 0.0
        %7721 = vmatpush1.msra.mxu0 0.0
        %7722 = vmatprep.subr.mxu0 0.0
        %7723 = vmatpush1.msra.mxu0 0.0
        %7724 = vmatprep.subr.mxu0 0.0
        %7725 = vmatpush1.msra.mxu0 0.0
        %7726 = vmatprep.subr.mxu0 0.0
        %7727 = vmatpush1.msra.mxu0 0.0
        %7728 = vmatprep.subr.mxu0 0.0
        %7729 = vmatpush1.msra.mxu0 0.0
        %7730 = vmatprep.subr.mxu0 0.0
        %7731 = vmatpush1.msra.mxu0 0.0
        %7732 = vmatprep.subr.mxu0 0.0
        %7733 = vmatpush1.msra.mxu0 0.0
        %7734 = vmatprep.subr.mxu0 0.0
        %7735 = vmatpush1.msra.mxu0 0.0
        %7736 = vmatprep.subr.mxu0 0.0
        %7737 = vmatpush1.msra.mxu0 0.0
        %7738 = vmatprep.subr.mxu0 0.0
        %7739 = vmatpush1.msra.mxu0 0.0
        %7740 = vmatprep.subr.mxu0 0.0
        %7741 = vmatpush1.msra.mxu0 0.0
        %7742 = vmatprep.subr.mxu0 0.0
        %7743 = vmatpush1.msra.mxu0 0.0
        %7744 = vmatprep.subr.mxu0 0.0
        %7745 = vmatpush1.msra.mxu0 0.0
        %7746 = vmatprep.subr.mxu0 0.0
        %7747 = vmatpush1.msra.mxu0 0.0
        %7748 = vmatprep.subr.mxu0 0.0
        %7749 = vmatpush1.msra.mxu0 0.0
        %7750 = vmatprep.subr.mxu0 0.0
        %7751 = vmatpush1.msra.mxu0 0.0
        %7752 = vmatprep.subr.mxu0 0.0
        %7753 = vmatpush1.msra.mxu0 0.0
        %7754 = vmatprep.subr.mxu0 0.0
        %7755 = vmatpush1.msra.mxu0 0.0
        %7756 = vmatprep.subr.mxu0 0.0
        %7757 = vmatpush1.msra.mxu0 0.0
        %7758 = vmatprep.subr.mxu0 0.0
        %7759 = vmatpush1.msra.mxu0 0.0
        %7760 = vmatprep.subr.mxu0 0.0
        %7761 = vmatpush1.msra.mxu0 0.0
        %7762 = vmatprep.subr.mxu0 0.0
        %7763 = vmatpush1.msra.mxu0 0.0
        %7764 = vmatprep.subr.mxu0 0.0
        %7765 = vmatpush1.msra.mxu0 0.0
        %7766 = vmatprep.subr.mxu0 0.0
        %7767 = vmatpush1.msra.mxu0 0.0
        %7768 = vmatprep.subr.mxu0 0.0
        %7769 = vmatpush1.msra.mxu0 0.0
        %7770 = vmatprep.subr.mxu0 0.0
        %7771 = vmatpush1.msra.mxu0 0.0
        %7772 = vmatprep.subr.mxu0 0.0
        %7773 = vmatpush1.msra.mxu0 0.0
        %7774 = vmatprep.subr.mxu0 0.0
        %7775 = vmatpush1.msra.mxu0 0.0
        %7776 = vmatprep.mubr.f32.mxu0 0.0
        %v7777 = vand.u32 %v7610, 4294901760
        %7778 = vmatmul.mubr.f32.gmra.mrb[0].mxu0 %v7777
        %v7779 = vpop.f32.mrb[0].mxu0
        %v7780 = vadd.f32 %v7689, %v7779
        %v7781 = vpop.f32.mrb[0].mxu0
        %7782 = vmatprep.mubr.f32.mxu0 0.0
        %v7783 = vand.u32 %v7613, 4294901760
        %7784 = vmatmul.mubr.f32.gmra.mrb[0].mxu0 %v7783
        %v7785 = vpop.f32.mrb[0].mxu0
        %v7786 = vadd.f32 %v7699, %v7785
        %v7787 = vpop.f32.mrb[0].mxu0
        %7788 = vdwg.mxu0
        %7789 = vmatprep.subr.mxu0 0.0
        %v7790 = vand.u32 %v7607, 4294901760
        %v7791 = vsub.f32 %v7607, %v7790
        %7792 = vmatpush1.msra.mxu0 %v7791
        %7793 = vmatprep.subr.mxu0 0.0
        %v7794 = vand.u32 %v7608, 4294901760
        %v7795 = vsub.f32 %v7608, %v7794
        %7796 = vmatpush1.msra.mxu0 %v7795
        %7797 = vmatprep.subr.mxu0 0.0
        %7798 = vmatpush1.msra.mxu0 0.0
        %7799 = vmatprep.subr.mxu0 0.0
        %7800 = vmatpush1.msra.mxu0 0.0
        %7801 = vmatprep.subr.mxu0 0.0
        %7802 = vmatpush1.msra.mxu0 0.0
        %7803 = vmatprep.subr.mxu0 0.0
        %7804 = vmatpush1.msra.mxu0 0.0
        %7805 = vmatprep.subr.mxu0 0.0
        %7806 = vmatpush1.msra.mxu0 0.0
        %7807 = vmatprep.subr.mxu0 0.0
        %7808 = vmatpush1.msra.mxu0 0.0
        %7809 = vmatprep.subr.mxu0 0.0
        %7810 = vmatpush1.msra.mxu0 0.0
        %7811 = vmatprep.subr.mxu0 0.0
        %7812 = vmatpush1.msra.mxu0 0.0
        %7813 = vmatprep.subr.mxu0 0.0
        %7814 = vmatpush1.msra.mxu0 0.0
        %7815 = vmatprep.subr.mxu0 0.0
        %7816 = vmatpush1.msra.mxu0 0.0
        %7817 = vmatprep.subr.mxu0 0.0
        %7818 = vmatpush1.msra.mxu0 0.0
        %7819 = vmatprep.subr.mxu0 0.0
        %7820 = vmatpush1.msra.mxu0 0.0
        %7821 = vmatprep.subr.mxu0 0.0
        %7822 = vmatpush1.msra.mxu0 0.0
        %7823 = vmatprep.subr.mxu0 0.0
        %7824 = vmatpush1.msra.mxu0 0.0
        %7825 = vmatprep.subr.mxu0 0.0
        %7826 = vmatpush1.msra.mxu0 0.0
        %7827 = vmatprep.subr.mxu0 0.0
        %7828 = vmatpush1.msra.mxu0 0.0
        %7829 = vmatprep.subr.mxu0 0.0
        %7830 = vmatpush1.msra.mxu0 0.0
        %7831 = vmatprep.subr.mxu0 0.0
        %7832 = vmatpush1.msra.mxu0 0.0
        %7833 = vmatprep.subr.mxu0 0.0
        %7834 = vmatpush1.msra.mxu0 0.0
        %7835 = vmatprep.subr.mxu0 0.0
        %7836 = vmatpush1.msra.mxu0 0.0
        %7837 = vmatprep.subr.mxu0 0.0
        %7838 = vmatpush1.msra.mxu0 0.0
        %7839 = vmatprep.subr.mxu0 0.0
        %7840 = vmatpush1.msra.mxu0 0.0
        %7841 = vmatprep.subr.mxu0 0.0
        %7842 = vmatpush1.msra.mxu0 0.0
        %7843 = vmatprep.subr.mxu0 0.0
        %7844 = vmatpush1.msra.mxu0 0.0
        %7845 = vmatprep.subr.mxu0 0.0
        %7846 = vmatpush1.msra.mxu0 0.0
        %7847 = vmatprep.subr.mxu0 0.0
        %7848 = vmatpush1.msra.mxu0 0.0
        %7849 = vmatprep.subr.mxu0 0.0
        %7850 = vmatpush1.msra.mxu0 0.0
        %7851 = vmatprep.subr.mxu0 0.0
        %7852 = vmatpush1.msra.mxu0 0.0
        %7853 = vmatprep.subr.mxu0 0.0
        %7854 = vmatpush1.msra.mxu0 0.0
        %7855 = vmatprep.subr.mxu0 0.0
        %7856 = vmatpush1.msra.mxu0 0.0
        %7857 = vmatprep.mubr.f32.mxu0 0.0
        %v7858 = vand.u32 %v7610, 4294901760
        %v7859 = vsub.f32 %v7610, %v7858
        %7860 = vmatmul.mubr.f32.gmra.mrb[0].mxu0 %v7859
        %v7861 = vpop.f32.mrb[0].mxu0
        %v7862 = vadd.f32 %v7780, %v7861
        %v7863 = vpop.f32.mrb[0].mxu0
        %7864 = vmatprep.mubr.f32.mxu0 0.0
        %v7865 = vand.u32 %v7613, 4294901760
        %v7866 = vsub.f32 %v7613, %v7865
        %7867 = vmatmul.mubr.f32.gmra.mrb[0].mxu0 %v7866
        %v7868 = vpop.f32.mrb[0].mxu0
        %v7869 = vadd.f32 %v7786, %v7868
        %v7870 = vpop.f32.mrb[0].mxu0
        %7871 = vdwg.mxu0
        %7872 = vmatprep.subr.mxu0 0.0
        %v7873 = vand.u32 %v7607, 4294901760
        %7874 = vmatpush1.msra.mxu0 %v7873
        %7875 = vmatprep.subr.mxu0 0.0
        %v7876 = vand.u32 %v7608, 4294901760
        %7877 = vmatpush1.msra.mxu0 %v7876
        %7878 = vmatprep.subr.mxu0 0.0
        %7879 = vmatpush1.msra.mxu0 0.0
        %7880 = vmatprep.subr.mxu0 0.0
        %7881 = vmatpush1.msra.mxu0 0.0
        %7882 = vmatprep.subr.mxu0 0.0
        %7883 = vmatpush1.msra.mxu0 0.0
        %7884 = vmatprep.subr.mxu0 0.0
        %7885 = vmatpush1.msra.mxu0 0.0
        %7886 = vmatprep.subr.mxu0 0.0
        %7887 = vmatpush1.msra.mxu0 0.0
        %7888 = vmatprep.subr.mxu0 0.0
        %7889 = vmatpush1.msra.mxu0 0.0
        %7890 = vmatprep.subr.mxu0 0.0
        %7891 = vmatpush1.msra.mxu0 0.0
        %7892 = vmatprep.subr.mxu0 0.0
        %7893 = vmatpush1.msra.mxu0 0.0
        %7894 = vmatprep.subr.mxu0 0.0
        %7895 = vmatpush1.msra.mxu0 0.0
        %7896 = vmatprep.subr.mxu0 0.0
        %7897 = vmatpush1.msra.mxu0 0.0
        %7898 = vmatprep.subr.mxu0 0.0
        %7899 = vmatpush1.msra.mxu0 0.0
        %7900 = vmatprep.subr.mxu0 0.0
        %7901 = vmatpush1.msra.mxu0 0.0
        %7902 = vmatprep.subr.mxu0 0.0
        %7903 = vmatpush1.msra.mxu0 0.0
        %7904 = vmatprep.subr.mxu0 0.0
        %7905 = vmatpush1.msra.mxu0 0.0
        %7906 = vmatprep.subr.mxu0 0.0
        %7907 = vmatpush1.msra.mxu0 0.0
        %7908 = vmatprep.subr.mxu0 0.0
        %7909 = vmatpush1.msra.mxu0 0.0
        %7910 = vmatprep.subr.mxu0 0.0
        %7911 = vmatpush1.msra.mxu0 0.0
        %7912 = vmatprep.subr.mxu0 0.0
        %7913 = vmatpush1.msra.mxu0 0.0
        %7914 = vmatprep.subr.mxu0 0.0
        %7915 = vmatpush1.msra.mxu0 0.0
        %7916 = vmatprep.subr.mxu0 0.0
        %7917 = vmatpush1.msra.mxu0 0.0
        %7918 = vmatprep.subr.mxu0 0.0
        %7919 = vmatpush1.msra.mxu0 0.0
        %7920 = vmatprep.subr.mxu0 0.0
        %7921 = vmatpush1.msra.mxu0 0.0
        %7922 = vmatprep.subr.mxu0 0.0
        %7923 = vmatpush1.msra.mxu0 0.0
        %7924 = vmatprep.subr.mxu0 0.0
        %7925 = vmatpush1.msra.mxu0 0.0
        %7926 = vmatprep.subr.mxu0 0.0
        %7927 = vmatpush1.msra.mxu0 0.0
        %7928 = vmatprep.subr.mxu0 0.0
        %7929 = vmatpush1.msra.mxu0 0.0
        %7930 = vmatprep.subr.mxu0 0.0
        %7931 = vmatpush1.msra.mxu0 0.0
        %7932 = vmatprep.subr.mxu0 0.0
        %7933 = vmatpush1.msra.mxu0 0.0
        %7934 = vmatprep.subr.mxu0 0.0
        %7935 = vmatpush1.msra.mxu0 0.0
        %7936 = vmatprep.subr.mxu0 0.0
        %7937 = vmatpush1.msra.mxu0 0.0
        %7938 = vmatprep.mubr.f32.mxu0 0.0
        %v7939 = vand.u32 %v7610, 4294901760
        %v7940 = vsub.f32 %v7610, %v7939
        %v7941 = vand.u32 %v7940, 4294901760
        %7942 = vmatmul.mubr.f32.gmra.mrb[0].mxu0 %v7941
        %v7943 = vpop.f32.mrb[0].mxu0
        %v7944 = vadd.f32 %v7862, %v7943
        %v7945 = vpop.f32.mrb[0].mxu0
        %7946 = vmatprep.mubr.f32.mxu0 0.0
        %v7947 = vand.u32 %v7613, 4294901760
        %v7948 = vsub.f32 %v7613, %v7947
        %v7949 = vand.u32 %v7948, 4294901760
        %7950 = vmatmul.mubr.f32.gmra.mrb[0].mxu0 %v7949
        %v7951 = vpop.f32.mrb[0].mxu0
        %v7952 = vadd.f32 %v7869, %v7951
        %v7953 = vpop.f32.mrb[0].mxu0
        %7954 = vdwg.mxu0
        %7955 = vmatprep.subr.mxu0 0.0
        %v7956 = vand.u32 %v7607, 4294901760
        %v7957 = vsub.f32 %v7607, %v7956
        %v7958 = vand.u32 %v7957, 4294901760
        %7959 = vmatpush1.msra.mxu0 %v7958
        %7960 = vmatprep.subr.mxu0 0.0
        %v7961 = vand.u32 %v7608, 4294901760
        %v7962 = vsub.f32 %v7608, %v7961
        %v7963 = vand.u32 %v7962, 4294901760
        %7964 = vmatpush1.msra.mxu0 %v7963
        %7965 = vmatprep.subr.mxu0 0.0
        %7966 = vmatpush1.msra.mxu0 0.0
        %7967 = vmatprep.subr.mxu0 0.0
        %7968 = vmatpush1.msra.mxu0 0.0
        %7969 = vmatprep.subr.mxu0 0.0
        %7970 = vmatpush1.msra.mxu0 0.0
        %7971 = vmatprep.subr.mxu0 0.0
        %7972 = vmatpush1.msra.mxu0 0.0
        %7973 = vmatprep.subr.mxu0 0.0
        %7974 = vmatpush1.msra.mxu0 0.0
        %7975 = vmatprep.subr.mxu0 0.0
        %7976 = vmatpush1.msra.mxu0 0.0
        %7977 = vmatprep.subr.mxu0 0.0
        %7978 = vmatpush1.msra.mxu0 0.0
        %7979 = vmatprep.subr.mxu0 0.0
        %7980 = vmatpush1.msra.mxu0 0.0
        %7981 = vmatprep.subr.mxu0 0.0
        %7982 = vmatpush1.msra.mxu0 0.0
        %7983 = vmatprep.subr.mxu0 0.0
        %7984 = vmatpush1.msra.mxu0 0.0
        %7985 = vmatprep.subr.mxu0 0.0
        %7986 = vmatpush1.msra.mxu0 0.0
        %7987 = vmatprep.subr.mxu0 0.0
        %7988 = vmatpush1.msra.mxu0 0.0
        %7989 = vmatprep.subr.mxu0 0.0
        %7990 = vmatpush1.msra.mxu0 0.0
        %7991 = vmatprep.subr.mxu0 0.0
        %7992 = vmatpush1.msra.mxu0 0.0
        %7993 = vmatprep.subr.mxu0 0.0
        %7994 = vmatpush1.msra.mxu0 0.0
        %7995 = vmatprep.subr.mxu0 0.0
        %7996 = vmatpush1.msra.mxu0 0.0
        %7997 = vmatprep.subr.mxu0 0.0
        %7998 = vmatpush1.msra.mxu0 0.0
        %7999 = vmatprep.subr.mxu0 0.0
        %8000 = vmatpush1.msra.mxu0 0.0
        %8001 = vmatprep.subr.mxu0 0.0
        %8002 = vmatpush1.msra.mxu0 0.0
        %8003 = vmatprep.subr.mxu0 0.0
        %8004 = vmatpush1.msra.mxu0 0.0
        %8005 = vmatprep.subr.mxu0 0.0
        %8006 = vmatpush1.msra.mxu0 0.0
        %8007 = vmatprep.subr.mxu0 0.0
        %8008 = vmatpush1.msra.mxu0 0.0
        %8009 = vmatprep.subr.mxu0 0.0
        %8010 = vmatpush1.msra.mxu0 0.0
        %8011 = vmatprep.subr.mxu0 0.0
        %8012 = vmatpush1.msra.mxu0 0.0
        %8013 = vmatprep.subr.mxu0 0.0
        %8014 = vmatpush1.msra.mxu0 0.0
        %8015 = vmatprep.subr.mxu0 0.0
        %8016 = vmatpush1.msra.mxu0 0.0
        %8017 = vmatprep.subr.mxu0 0.0
        %8018 = vmatpush1.msra.mxu0 0.0
        %8019 = vmatprep.subr.mxu0 0.0
        %8020 = vmatpush1.msra.mxu0 0.0
        %8021 = vmatprep.subr.mxu0 0.0
        %8022 = vmatpush1.msra.mxu0 0.0
        %8023 = vmatprep.subr.mxu0 0.0
        %8024 = vmatpush1.msra.mxu0 0.0
        %8025 = vmatprep.mubr.f32.mxu0 0.0
        %v8026 = vand.u32 %v7610, 4294901760
        %8027 = vmatmul.mubr.f32.gmra.mrb[0].mxu0 %v8026
        %v8028 = vpop.f32.mrb[0].mxu0
        %v8029 = vadd.f32 %v7944, %v8028
        %v8030 = vpop.f32.mrb[0].mxu0
        %8031 = vmatprep.mubr.f32.mxu0 0.0
        %v8032 = vand.u32 %v7613, 4294901760
        %8033 = vmatmul.mubr.f32.gmra.mrb[0].mxu0 %v8032
        %v8034 = vpop.f32.mrb[0].mxu0
        %v8035 = vadd.f32 %v7952, %v8034
        %v8036 = vpop.f32.mrb[0].mxu0
        %8037 = vdwg.mxu0
        %8038 = vmatprep.subr.mxu0 0.0
        %v8039 = vand.u32 %v7607, 4294901760
        %8040 = vmatpush1.msra.mxu0 %v8039
        %8041 = vmatprep.subr.mxu0 0.0
        %v8042 = vand.u32 %v7608, 4294901760
        %8043 = vmatpush1.msra.mxu0 %v8042
        %8044 = vmatprep.subr.mxu0 0.0
        %8045 = vmatpush1.msra.mxu0 0.0
        %8046 = vmatprep.subr.mxu0 0.0
        %8047 = vmatpush1.msra.mxu0 0.0
        %8048 = vmatprep.subr.mxu0 0.0
        %8049 = vmatpush1.msra.mxu0 0.0
        %8050 = vmatprep.subr.mxu0 0.0
        %8051 = vmatpush1.msra.mxu0 0.0
        %8052 = vmatprep.subr.mxu0 0.0
        %8053 = vmatpush1.msra.mxu0 0.0
        %8054 = vmatprep.subr.mxu0 0.0
        %8055 = vmatpush1.msra.mxu0 0.0
        %8056 = vmatprep.subr.mxu0 0.0
        %8057 = vmatpush1.msra.mxu0 0.0
        %8058 = vmatprep.subr.mxu0 0.0
        %8059 = vmatpush1.msra.mxu0 0.0
        %8060 = vmatprep.subr.mxu0 0.0
        %8061 = vmatpush1.msra.mxu0 0.0
        %8062 = vmatprep.subr.mxu0 0.0
        %8063 = vmatpush1.msra.mxu0 0.0
        %8064 = vmatprep.subr.mxu0 0.0
        %8065 = vmatpush1.msra.mxu0 0.0
        %8066 = vmatprep.subr.mxu0 0.0
        %8067 = vmatpush1.msra.mxu0 0.0
        %8068 = vmatprep.subr.mxu0 0.0
        %8069 = vmatpush1.msra.mxu0 0.0
        %8070 = vmatprep.subr.mxu0 0.0
        %8071 = vmatpush1.msra.mxu0 0.0
        %8072 = vmatprep.subr.mxu0 0.0
        %8073 = vmatpush1.msra.mxu0 0.0
        %8074 = vmatprep.subr.mxu0 0.0
        %8075 = vmatpush1.msra.mxu0 0.0
        %8076 = vmatprep.subr.mxu0 0.0
        %8077 = vmatpush1.msra.mxu0 0.0
        %8078 = vmatprep.subr.mxu0 0.0
        %8079 = vmatpush1.msra.mxu0 0.0
        %8080 = vmatprep.subr.mxu0 0.0
        %8081 = vmatpush1.msra.mxu0 0.0
        %8082 = vmatprep.subr.mxu0 0.0
        %8083 = vmatpush1.msra.mxu0 0.0
        %8084 = vmatprep.subr.mxu0 0.0
        %8085 = vmatpush1.msra.mxu0 0.0
        %8086 = vmatprep.subr.mxu0 0.0
        %8087 = vmatpush1.msra.mxu0 0.0
        %8088 = vmatprep.subr.mxu0 0.0
        %8089 = vmatpush1.msra.mxu0 0.0
        %8090 = vmatprep.subr.mxu0 0.0
        %8091 = vmatpush1.msra.mxu0 0.0
        %8092 = vmatprep.subr.mxu0 0.0
        %8093 = vmatpush1.msra.mxu0 0.0
        %8094 = vmatprep.subr.mxu0 0.0
        %8095 = vmatpush1.msra.mxu0 0.0
        %8096 = vmatprep.subr.mxu0 0.0
        %8097 = vmatpush1.msra.mxu0 0.0
        %8098 = vmatprep.subr.mxu0 0.0
        %8099 = vmatpush1.msra.mxu0 0.0
        %8100 = vmatprep.subr.mxu0 0.0
        %8101 = vmatpush1.msra.mxu0 0.0
        %8102 = vmatprep.subr.mxu0 0.0
        %8103 = vmatpush1.msra.mxu0 0.0
        %8104 = vmatprep.mubr.f32.mxu0 0.0
        %v8105 = vand.u32 %v7610, 4294901760
        %8106 = vmatmul.mubr.f32.gmra.mrb[0].mxu0 %v8105
        %v8107 = vpop.f32.mrb[0].mxu0
        %v8108 = vadd.f32 %v8029, %v8107
        %v8109 = vpop.f32.mrb[0].mxu0
        %8110 = vmatprep.mubr.f32.mxu0 0.0
        %v8111 = vand.u32 %v7613, 4294901760
        %8112 = vmatmul.mubr.f32.gmra.mrb[0].mxu0 %v8111
        %v8113 = vpop.f32.mrb[0].mxu0
        %v8114 = vadd.f32 %v8035, %v8113
        %v8115 = vpop.f32.mrb[0].mxu0
        %8116 = vdwg.mxu0
        %v8117 = vrcp.pop %v7603
        %v8118 = vmul.f32 1.0, %v8117
        %v8119 = vrcp.pop %v7606
        %v8120 = vmul.f32 1.0, %v8119
        %v8121 = vmul.f32 %v8108, %v8118
        %v8122 = vmul.f32 %v8114, %v8120
        %8123 = vst.msk [vmem:[#allocation5] sm:$0xff] %vm3511, %v8121
        %8124 = vst.msk [vmem:[#allocation5 + $0x8] sm:$0xff] %vm3511, %v8122
        %v8125 = vld [vmem:[#allocation3] sm:$0xff]
        %v8126 = vld [vmem:[#allocation3 + $0x8] sm:$0xff]
        %8127 = vrot.lane.b32.xlu0 %v7062, 64
        %v8128 = vpop.permute.xlu0 %8127
        %8129 = vrot.lane.b32.xlu0 %v7068, 64
        %v8130 = vpop.permute.xlu0 %8129
        %8133 = vrot.lane.b32.xlu0 %v8125, 64
        %v8134 = vpop.permute.xlu0 %8133
        %8135 = vrot.lane.b32.xlu0 %v8126, 64
        %v8136 = vpop.permute.xlu0 %8135
        %v8137 = vsel %vm3511, %v8128, 0
        %v8139 = vsel %vm3511, %v8130, 0
        %v8141 = vsel %vm3511, %v8134, 0
        %v8143 = vsel %vm3511, %v8136, 0
        %8145 = vmatprep.subr.mxu0 0.0
        %v8146 = vand.u32 %v8141, 4294901760
        %8147 = vmatpush1.xpose.msra.mxu0 %v8146
        %8148 = vmatprep.subr.mxu0 0.0
        %v8149 = vand.u32 %v8143, 4294901760
        %8150 = vmatpush1.xpose.msra.mxu0 %v8149
        %8151 = vmatprep.subr.mxu0 0.0
        %8152 = vmatpush1.xpose.msra.mxu0 0.0
        %8153 = vmatprep.subr.mxu0 0.0
        %8154 = vmatpush1.xpose.msra.mxu0 0.0
        %8155 = vmatprep.subr.mxu0 0.0
        %8156 = vmatpush1.xpose.msra.mxu0 0.0
        %8157 = vmatprep.subr.mxu0 0.0
        %8158 = vmatpush1.xpose.msra.mxu0 0.0
        %8159 = vmatprep.subr.mxu0 0.0
        %8160 = vmatpush1.xpose.msra.mxu0 0.0
        %8161 = vmatprep.subr.mxu0 0.0
        %8162 = vmatpush1.xpose.msra.mxu0 0.0
        %8163 = vmatprep.subr.mxu0 0.0
        %8164 = vmatpush1.xpose.msra.mxu0 0.0
        %8165 = vmatprep.subr.mxu0 0.0
        %8166 = vmatpush1.xpose.msra.mxu0 0.0
        %8167 = vmatprep.subr.mxu0 0.0
        %8168 = vmatpush1.xpose.msra.mxu0 0.0
        %8169 = vmatprep.subr.mxu0 0.0
        %8170 = vmatpush1.xpose.msra.mxu0 0.0
        %8171 = vmatprep.subr.mxu0 0.0
        %8172 = vmatpush1.xpose.msra.mxu0 0.0
        %8173 = vmatprep.subr.mxu0 0.0
        %8174 = vmatpush1.xpose.msra.mxu0 0.0
        %8175 = vmatprep.subr.mxu0 0.0
        %8176 = vmatpush1.xpose.msra.mxu0 0.0
        %8177 = vmatprep.subr.mxu0 0.0
        %8178 = vmatpush1.xpose.msra.mxu0 0.0
        %8179 = vmatprep.subr.mxu0 0.0
        %8180 = vmatpush1.xpose.msra.mxu0 0.0
        %8181 = vmatprep.subr.mxu0 0.0
        %8182 = vmatpush1.xpose.msra.mxu0 0.0
        %8183 = vmatprep.subr.mxu0 0.0
        %8184 = vmatpush1.xpose.msra.mxu0 0.0
        %8185 = vmatprep.subr.mxu0 0.0
        %8186 = vmatpush1.xpose.msra.mxu0 0.0
        %8187 = vmatprep.subr.mxu0 0.0
        %8188 = vmatpush1.xpose.msra.mxu0 0.0
        %8189 = vmatprep.subr.mxu0 0.0
        %8190 = vmatpush1.xpose.msra.mxu0 0.0
        %8191 = vmatprep.subr.mxu0 0.0
        %8192 = vmatpush1.xpose.msra.mxu0 0.0
        %8193 = vmatprep.subr.mxu0 0.0
        %8194 = vmatpush1.xpose.msra.mxu0 0.0
        %8195 = vmatprep.subr.mxu0 0.0
        %8196 = vmatpush1.xpose.msra.mxu0 0.0
        %8197 = vmatprep.subr.mxu0 0.0
        %8198 = vmatpush1.xpose.msra.mxu0 0.0
        %8199 = vmatprep.subr.mxu0 0.0
        %8200 = vmatpush1.xpose.msra.mxu0 0.0
        %8201 = vmatprep.subr.mxu0 0.0
        %8202 = vmatpush1.xpose.msra.mxu0 0.0
        %8203 = vmatprep.subr.mxu0 0.0
        %8204 = vmatpush1.xpose.msra.mxu0 0.0
        %8205 = vmatprep.subr.mxu0 0.0
        %8206 = vmatpush1.xpose.msra.mxu0 0.0
        %8207 = vmatprep.subr.mxu0 0.0
        %8208 = vmatpush1.xpose.msra.mxu0 0.0
        %8209 = vmatprep.subr.mxu0 0.0
        %8210 = vmatpush1.xpose.msra.mxu0 0.0
        %8211 = vmatprep.mubr.f32.mxu0 0.0
        %v8212 = vand.u32 %v8137, 4294901760
        %v8213 = vsub.f32 %v8137, %v8212
        %v8214 = vand.u32 %v8213, 4294901760
        %v8215 = vsub.f32 %v8213, %v8214
        %v8216 = vand.u32 %v8215, 4294901760
        %8217 = vmatmul.mubr.f32.gmra.mrb[0].mxu0 %v8216
        %v8218 = vpop.f32.mrb[0].mxu0
        %v8219 = vadd.f32 0.0, %v8218
        %v8220 = vpop.f32.mrb[0].mxu0
        %8221 = vmatprep.mubr.f32.mxu0 0.0
        %v8222 = vand.u32 %v8139, 4294901760
        %v8223 = vsub.f32 %v8139, %v8222
        %v8224 = vand.u32 %v8223, 4294901760
        %v8225 = vsub.f32 %v8223, %v8224
        %v8226 = vand.u32 %v8225, 4294901760
        %8227 = vmatmul.mubr.f32.gmra.mrb[0].mxu0 %v8226
        %v8228 = vpop.f32.mrb[0].mxu0
        %v8229 = vadd.f32 0.0, %v8228
        %v8230 = vpop.f32.mrb[0].mxu0
        %8231 = vdwg.mxu0
        %8232 = vmatprep.subr.mxu0 0.0
        %v8233 = vand.u32 %v8141, 4294901760
        %v8234 = vsub.f32 %v8141, %v8233
        %v8235 = vand.u32 %v8234, 4294901760
        %v8236 = vsub.f32 %v8234, %v8235
        %v8237 = vand.u32 %v8236, 4294901760
        %8238 = vmatpush1.xpose.msra.mxu0 %v8237
        %8239 = vmatprep.subr.mxu0 0.0
        %v8240 = vand.u32 %v8143, 4294901760
        %v8241 = vsub.f32 %v8143, %v8240
        %v8242 = vand.u32 %v8241, 4294901760
        %v8243 = vsub.f32 %v8241, %v8242
        %v8244 = vand.u32 %v8243, 4294901760
        %8245 = vmatpush1.xpose.msra.mxu0 %v8244
        %8246 = vmatprep.subr.mxu0 0.0
        %8247 = vmatpush1.xpose.msra.mxu0 0.0
        %8248 = vmatprep.subr.mxu0 0.0
        %8249 = vmatpush1.xpose.msra.mxu0 0.0
        %8250 = vmatprep.subr.mxu0 0.0
        %8251 = vmatpush1.xpose.msra.mxu0 0.0
        %8252 = vmatprep.subr.mxu0 0.0
        %8253 = vmatpush1.xpose.msra.mxu0 0.0
        %8254 = vmatprep.subr.mxu0 0.0
        %8255 = vmatpush1.xpose.msra.mxu0 0.0
        %8256 = vmatprep.subr.mxu0 0.0
        %8257 = vmatpush1.xpose.msra.mxu0 0.0
        %8258 = vmatprep.subr.mxu0 0.0
        %8259 = vmatpush1.xpose.msra.mxu0 0.0
        %8260 = vmatprep.subr.mxu0 0.0
        %8261 = vmatpush1.xpose.msra.mxu0 0.0
        %8262 = vmatprep.subr.mxu0 0.0
        %8263 = vmatpush1.xpose.msra.mxu0 0.0
        %8264 = vmatprep.subr.mxu0 0.0
        %8265 = vmatpush1.xpose.msra.mxu0 0.0
        %8266 = vmatprep.subr.mxu0 0.0
        %8267 = vmatpush1.xpose.msra.mxu0 0.0
        %8268 = vmatprep.subr.mxu0 0.0
        %8269 = vmatpush1.xpose.msra.mxu0 0.0
        %8270 = vmatprep.subr.mxu0 0.0
        %8271 = vmatpush1.xpose.msra.mxu0 0.0
        %8272 = vmatprep.subr.mxu0 0.0
        %8273 = vmatpush1.xpose.msra.mxu0 0.0
        %8274 = vmatprep.subr.mxu0 0.0
        %8275 = vmatpush1.xpose.msra.mxu0 0.0
        %8276 = vmatprep.subr.mxu0 0.0
        %8277 = vmatpush1.xpose.msra.mxu0 0.0
        %8278 = vmatprep.subr.mxu0 0.0
        %8279 = vmatpush1.xpose.msra.mxu0 0.0
        %8280 = vmatprep.subr.mxu0 0.0
        %8281 = vmatpush1.xpose.msra.mxu0 0.0
        %8282 = vmatprep.subr.mxu0 0.0
        %8283 = vmatpush1.xpose.msra.mxu0 0.0
        %8284 = vmatprep.subr.mxu0 0.0
        %8285 = vmatpush1.xpose.msra.mxu0 0.0
        %8286 = vmatprep.subr.mxu0 0.0
        %8287 = vmatpush1.xpose.msra.mxu0 0.0
        %8288 = vmatprep.subr.mxu0 0.0
        %8289 = vmatpush1.xpose.msra.mxu0 0.0
        %8290 = vmatprep.subr.mxu0 0.0
        %8291 = vmatpush1.xpose.msra.mxu0 0.0
        %8292 = vmatprep.subr.mxu0 0.0
        %8293 = vmatpush1.xpose.msra.mxu0 0.0
        %8294 = vmatprep.subr.mxu0 0.0
        %8295 = vmatpush1.xpose.msra.mxu0 0.0
        %8296 = vmatprep.subr.mxu0 0.0
        %8297 = vmatpush1.xpose.msra.mxu0 0.0
        %8298 = vmatprep.subr.mxu0 0.0
        %8299 = vmatpush1.xpose.msra.mxu0 0.0
        %8300 = vmatprep.subr.mxu0 0.0
        %8301 = vmatpush1.xpose.msra.mxu0 0.0
        %8302 = vmatprep.subr.mxu0 0.0
        %8303 = vmatpush1.xpose.msra.mxu0 0.0
        %8304 = vmatprep.subr.mxu0 0.0
        %8305 = vmatpush1.xpose.msra.mxu0 0.0
        %8306 = vmatprep.mubr.f32.mxu0 0.0
        %v8307 = vand.u32 %v8137, 4294901760
        %8308 = vmatmul.mubr.f32.gmra.mrb[0].mxu0 %v8307
        %v8309 = vpop.f32.mrb[0].mxu0
        %v8310 = vadd.f32 %v8219, %v8309
        %v8311 = vpop.f32.mrb[0].mxu0
        %8312 = vmatprep.mubr.f32.mxu0 0.0
        %v8313 = vand.u32 %v8139, 4294901760
        %8314 = vmatmul.mubr.f32.gmra.mrb[0].mxu0 %v8313
        %v8315 = vpop.f32.mrb[0].mxu0
        %v8316 = vadd.f32 %v8229, %v8315
        %v8317 = vpop.f32.mrb[0].mxu0
        %8318 = vdwg.mxu0
        %8319 = vmatprep.subr.mxu0 0.0
        %v8320 = vand.u32 %v8141, 4294901760
        %v8321 = vsub.f32 %v8141, %v8320
        %8322 = vmatpush1.xpose.msra.mxu0 %v8321
        %8323 = vmatprep.subr.mxu0 0.0
        %v8324 = vand.u32 %v8143, 4294901760
        %v8325 = vsub.f32 %v8143, %v8324
        %8326 = vmatpush1.xpose.msra.mxu0 %v8325
        %8327 = vmatprep.subr.mxu0 0.0
        %8328 = vmatpush1.xpose.msra.mxu0 0.0
        %8329 = vmatprep.subr.mxu0 0.0
        %8330 = vmatpush1.xpose.msra.mxu0 0.0
        %8331 = vmatprep.subr.mxu0 0.0
        %8332 = vmatpush1.xpose.msra.mxu0 0.0
        %8333 = vmatprep.subr.mxu0 0.0
        %8334 = vmatpush1.xpose.msra.mxu0 0.0
        %8335 = vmatprep.subr.mxu0 0.0
        %8336 = vmatpush1.xpose.msra.mxu0 0.0
        %8337 = vmatprep.subr.mxu0 0.0
        %8338 = vmatpush1.xpose.msra.mxu0 0.0
        %8339 = vmatprep.subr.mxu0 0.0
        %8340 = vmatpush1.xpose.msra.mxu0 0.0
        %8341 = vmatprep.subr.mxu0 0.0
        %8342 = vmatpush1.xpose.msra.mxu0 0.0
        %8343 = vmatprep.subr.mxu0 0.0
        %8344 = vmatpush1.xpose.msra.mxu0 0.0
        %8345 = vmatprep.subr.mxu0 0.0
        %8346 = vmatpush1.xpose.msra.mxu0 0.0
        %8347 = vmatprep.subr.mxu0 0.0
        %8348 = vmatpush1.xpose.msra.mxu0 0.0
        %8349 = vmatprep.subr.mxu0 0.0
        %8350 = vmatpush1.xpose.msra.mxu0 0.0
        %8351 = vmatprep.subr.mxu0 0.0
        %8352 = vmatpush1.xpose.msra.mxu0 0.0
        %8353 = vmatprep.subr.mxu0 0.0
        %8354 = vmatpush1.xpose.msra.mxu0 0.0
        %8355 = vmatprep.subr.mxu0 0.0
        %8356 = vmatpush1.xpose.msra.mxu0 0.0
        %8357 = vmatprep.subr.mxu0 0.0
        %8358 = vmatpush1.xpose.msra.mxu0 0.0
        %8359 = vmatprep.subr.mxu0 0.0
        %8360 = vmatpush1.xpose.msra.mxu0 0.0
        %8361 = vmatprep.subr.mxu0 0.0
        %8362 = vmatpush1.xpose.msra.mxu0 0.0
        %8363 = vmatprep.subr.mxu0 0.0
        %8364 = vmatpush1.xpose.msra.mxu0 0.0
        %8365 = vmatprep.subr.mxu0 0.0
        %8366 = vmatpush1.xpose.msra.mxu0 0.0
        %8367 = vmatprep.subr.mxu0 0.0
        %8368 = vmatpush1.xpose.msra.mxu0 0.0
        %8369 = vmatprep.subr.mxu0 0.0
        %8370 = vmatpush1.xpose.msra.mxu0 0.0
        %8371 = vmatprep.subr.mxu0 0.0
        %8372 = vmatpush1.xpose.msra.mxu0 0.0
        %8373 = vmatprep.subr.mxu0 0.0
        %8374 = vmatpush1.xpose.msra.mxu0 0.0
        %8375 = vmatprep.subr.mxu0 0.0
        %8376 = vmatpush1.xpose.msra.mxu0 0.0
        %8377 = vmatprep.subr.mxu0 0.0
        %8378 = vmatpush1.xpose.msra.mxu0 0.0
        %8379 = vmatprep.subr.mxu0 0.0
        %8380 = vmatpush1.xpose.msra.mxu0 0.0
        %8381 = vmatprep.subr.mxu0 0.0
        %8382 = vmatpush1.xpose.msra.mxu0 0.0
        %8383 = vmatprep.subr.mxu0 0.0
        %8384 = vmatpush1.xpose.msra.mxu0 0.0
        %8385 = vmatprep.subr.mxu0 0.0
        %8386 = vmatpush1.xpose.msra.mxu0 0.0
        %8387 = vmatprep.mubr.f32.mxu0 0.0
        %v8388 = vand.u32 %v8137, 4294901760
        %v8389 = vsub.f32 %v8137, %v8388
        %8390 = vmatmul.mubr.f32.gmra.mrb[0].mxu0 %v8389
        %v8391 = vpop.f32.mrb[0].mxu0
        %v8392 = vadd.f32 %v8310, %v8391
        %v8393 = vpop.f32.mrb[0].mxu0
        %8394 = vmatprep.mubr.f32.mxu0 0.0
        %v8395 = vand.u32 %v8139, 4294901760
        %v8396 = vsub.f32 %v8139, %v8395
        %8397 = vmatmul.mubr.f32.gmra.mrb[0].mxu0 %v8396
        %v8398 = vpop.f32.mrb[0].mxu0
        %v8399 = vadd.f32 %v8316, %v8398
        %v8400 = vpop.f32.mrb[0].mxu0
        %8401 = vdwg.mxu0
        %8402 = vmatprep.subr.mxu0 0.0
        %v8403 = vand.u32 %v8141, 4294901760
        %8404 = vmatpush1.xpose.msra.mxu0 %v8403
        %8405 = vmatprep.subr.mxu0 0.0
        %v8406 = vand.u32 %v8143, 4294901760
        %8407 = vmatpush1.xpose.msra.mxu0 %v8406
        %8408 = vmatprep.subr.mxu0 0.0
        %8409 = vmatpush1.xpose.msra.mxu0 0.0
        %8410 = vmatprep.subr.mxu0 0.0
        %8411 = vmatpush1.xpose.msra.mxu0 0.0
        %8412 = vmatprep.subr.mxu0 0.0
        %8413 = vmatpush1.xpose.msra.mxu0 0.0
        %8414 = vmatprep.subr.mxu0 0.0
        %8415 = vmatpush1.xpose.msra.mxu0 0.0
        %8416 = vmatprep.subr.mxu0 0.0
        %8417 = vmatpush1.xpose.msra.mxu0 0.0
        %8418 = vmatprep.subr.mxu0 0.0
        %8419 = vmatpush1.xpose.msra.mxu0 0.0
        %8420 = vmatprep.subr.mxu0 0.0
        %8421 = vmatpush1.xpose.msra.mxu0 0.0
        %8422 = vmatprep.subr.mxu0 0.0
        %8423 = vmatpush1.xpose.msra.mxu0 0.0
        %8424 = vmatprep.subr.mxu0 0.0
        %8425 = vmatpush1.xpose.msra.mxu0 0.0
        %8426 = vmatprep.subr.mxu0 0.0
        %8427 = vmatpush1.xpose.msra.mxu0 0.0
        %8428 = vmatprep.subr.mxu0 0.0
        %8429 = vmatpush1.xpose.msra.mxu0 0.0
        %8430 = vmatprep.subr.mxu0 0.0
        %8431 = vmatpush1.xpose.msra.mxu0 0.0
        %8432 = vmatprep.subr.mxu0 0.0
        %8433 = vmatpush1.xpose.msra.mxu0 0.0
        %8434 = vmatprep.subr.mxu0 0.0
        %8435 = vmatpush1.xpose.msra.mxu0 0.0
        %8436 = vmatprep.subr.mxu0 0.0
        %8437 = vmatpush1.xpose.msra.mxu0 0.0
        %8438 = vmatprep.subr.mxu0 0.0
        %8439 = vmatpush1.xpose.msra.mxu0 0.0
        %8440 = vmatprep.subr.mxu0 0.0
        %8441 = vmatpush1.xpose.msra.mxu0 0.0
        %8442 = vmatprep.subr.mxu0 0.0
        %8443 = vmatpush1.xpose.msra.mxu0 0.0
        %8444 = vmatprep.subr.mxu0 0.0
        %8445 = vmatpush1.xpose.msra.mxu0 0.0
        %8446 = vmatprep.subr.mxu0 0.0
        %8447 = vmatpush1.xpose.msra.mxu0 0.0
        %8448 = vmatprep.subr.mxu0 0.0
        %8449 = vmatpush1.xpose.msra.mxu0 0.0
        %8450 = vmatprep.subr.mxu0 0.0
        %8451 = vmatpush1.xpose.msra.mxu0 0.0
        %8452 = vmatprep.subr.mxu0 0.0
        %8453 = vmatpush1.xpose.msra.mxu0 0.0
        %8454 = vmatprep.subr.mxu0 0.0
        %8455 = vmatpush1.xpose.msra.mxu0 0.0
        %8456 = vmatprep.subr.mxu0 0.0
        %8457 = vmatpush1.xpose.msra.mxu0 0.0
        %8458 = vmatprep.subr.mxu0 0.0
        %8459 = vmatpush1.xpose.msra.mxu0 0.0
        %8460 = vmatprep.subr.mxu0 0.0
        %8461 = vmatpush1.xpose.msra.mxu0 0.0
        %8462 = vmatprep.subr.mxu0 0.0
        %8463 = vmatpush1.xpose.msra.mxu0 0.0
        %8464 = vmatprep.subr.mxu0 0.0
        %8465 = vmatpush1.xpose.msra.mxu0 0.0
        %8466 = vmatprep.subr.mxu0 0.0
        %8467 = vmatpush1.xpose.msra.mxu0 0.0
        %8468 = vmatprep.mubr.f32.mxu0 0.0
        %v8469 = vand.u32 %v8137, 4294901760
        %v8470 = vsub.f32 %v8137, %v8469
        %v8471 = vand.u32 %v8470, 4294901760
        %8472 = vmatmul.mubr.f32.gmra.mrb[0].mxu0 %v8471
        %v8473 = vpop.f32.mrb[0].mxu0
        %v8474 = vadd.f32 %v8392, %v8473
        %v8475 = vpop.f32.mrb[0].mxu0
        %8476 = vmatprep.mubr.f32.mxu0 0.0
        %v8477 = vand.u32 %v8139, 4294901760
        %v8478 = vsub.f32 %v8139, %v8477
        %v8479 = vand.u32 %v8478, 4294901760
        %8480 = vmatmul.mubr.f32.gmra.mrb[0].mxu0 %v8479
        %v8481 = vpop.f32.mrb[0].mxu0
        %v8482 = vadd.f32 %v8399, %v8481
        %v8483 = vpop.f32.mrb[0].mxu0
        %8484 = vdwg.mxu0
        %8485 = vmatprep.subr.mxu0 0.0
        %v8486 = vand.u32 %v8141, 4294901760
        %v8487 = vsub.f32 %v8141, %v8486
        %v8488 = vand.u32 %v8487, 4294901760
        %8489 = vmatpush1.xpose.msra.mxu0 %v8488
        %8490 = vmatprep.subr.mxu0 0.0
        %v8491 = vand.u32 %v8143, 4294901760
        %v8492 = vsub.f32 %v8143, %v8491
        %v8493 = vand.u32 %v8492, 4294901760
        %8494 = vmatpush1.xpose.msra.mxu0 %v8493
        %8495 = vmatprep.subr.mxu0 0.0
        %8496 = vmatpush1.xpose.msra.mxu0 0.0
        %8497 = vmatprep.subr.mxu0 0.0
        %8498 = vmatpush1.xpose.msra.mxu0 0.0
        %8499 = vmatprep.subr.mxu0 0.0
        %8500 = vmatpush1.xpose.msra.mxu0 0.0
        %8501 = vmatprep.subr.mxu0 0.0
        %8502 = vmatpush1.xpose.msra.mxu0 0.0
        %8503 = vmatprep.subr.mxu0 0.0
        %8504 = vmatpush1.xpose.msra.mxu0 0.0
        %8505 = vmatprep.subr.mxu0 0.0
        %8506 = vmatpush1.xpose.msra.mxu0 0.0
        %8507 = vmatprep.subr.mxu0 0.0
        %8508 = vmatpush1.xpose.msra.mxu0 0.0
        %8509 = vmatprep.subr.mxu0 0.0
        %8510 = vmatpush1.xpose.msra.mxu0 0.0
        %8511 = vmatprep.subr.mxu0 0.0
        %8512 = vmatpush1.xpose.msra.mxu0 0.0
        %8513 = vmatprep.subr.mxu0 0.0
        %8514 = vmatpush1.xpose.msra.mxu0 0.0
        %8515 = vmatprep.subr.mxu0 0.0
        %8516 = vmatpush1.xpose.msra.mxu0 0.0
        %8517 = vmatprep.subr.mxu0 0.0
        %8518 = vmatpush1.xpose.msra.mxu0 0.0
        %8519 = vmatprep.subr.mxu0 0.0
        %8520 = vmatpush1.xpose.msra.mxu0 0.0
        %8521 = vmatprep.subr.mxu0 0.0
        %8522 = vmatpush1.xpose.msra.mxu0 0.0
        %8523 = vmatprep.subr.mxu0 0.0
        %8524 = vmatpush1.xpose.msra.mxu0 0.0
        %8525 = vmatprep.subr.mxu0 0.0
        %8526 = vmatpush1.xpose.msra.mxu0 0.0
        %8527 = vmatprep.subr.mxu0 0.0
        %8528 = vmatpush1.xpose.msra.mxu0 0.0
        %8529 = vmatprep.subr.mxu0 0.0
        %8530 = vmatpush1.xpose.msra.mxu0 0.0
        %8531 = vmatprep.subr.mxu0 0.0
        %8532 = vmatpush1.xpose.msra.mxu0 0.0
        %8533 = vmatprep.subr.mxu0 0.0
        %8534 = vmatpush1.xpose.msra.mxu0 0.0
        %8535 = vmatprep.subr.mxu0 0.0
        %8536 = vmatpush1.xpose.msra.mxu0 0.0
        %8537 = vmatprep.subr.mxu0 0.0
        %8538 = vmatpush1.xpose.msra.mxu0 0.0
        %8539 = vmatprep.subr.mxu0 0.0
        %8540 = vmatpush1.xpose.msra.mxu0 0.0
        %8541 = vmatprep.subr.mxu0 0.0
        %8542 = vmatpush1.xpose.msra.mxu0 0.0
        %8543 = vmatprep.subr.mxu0 0.0
        %8544 = vmatpush1.xpose.msra.mxu0 0.0
        %8545 = vmatprep.subr.mxu0 0.0
        %8546 = vmatpush1.xpose.msra.mxu0 0.0
        %8547 = vmatprep.subr.mxu0 0.0
        %8548 = vmatpush1.xpose.msra.mxu0 0.0
        %8549 = vmatprep.subr.mxu0 0.0
        %8550 = vmatpush1.xpose.msra.mxu0 0.0
        %8551 = vmatprep.subr.mxu0 0.0
        %8552 = vmatpush1.xpose.msra.mxu0 0.0
        %8553 = vmatprep.subr.mxu0 0.0
        %8554 = vmatpush1.xpose.msra.mxu0 0.0
        %8555 = vmatprep.mubr.f32.mxu0 0.0
        %v8556 = vand.u32 %v8137, 4294901760
        %8557 = vmatmul.mubr.f32.gmra.mrb[0].mxu0 %v8556
        %v8558 = vpop.f32.mrb[0].mxu0
        %v8559 = vadd.f32 %v8474, %v8558
        %v8560 = vpop.f32.mrb[0].mxu0
        %8561 = vmatprep.mubr.f32.mxu0 0.0
        %v8562 = vand.u32 %v8139, 4294901760
        %8563 = vmatmul.mubr.f32.gmra.mrb[0].mxu0 %v8562
        %v8564 = vpop.f32.mrb[0].mxu0
        %v8565 = vadd.f32 %v8482, %v8564
        %v8566 = vpop.f32.mrb[0].mxu0
        %8567 = vdwg.mxu0
        %8568 = vmatprep.subr.mxu0 0.0
        %v8569 = vand.u32 %v8141, 4294901760
        %8570 = vmatpush1.xpose.msra.mxu0 %v8569
        %8571 = vmatprep.subr.mxu0 0.0
        %v8572 = vand.u32 %v8143, 4294901760
        %8573 = vmatpush1.xpose.msra.mxu0 %v8572
        %8574 = vmatprep.subr.mxu0 0.0
        %8575 = vmatpush1.xpose.msra.mxu0 0.0
        %8576 = vmatprep.subr.mxu0 0.0
        %8577 = vmatpush1.xpose.msra.mxu0 0.0
        %8578 = vmatprep.subr.mxu0 0.0
        %8579 = vmatpush1.xpose.msra.mxu0 0.0
        %8580 = vmatprep.subr.mxu0 0.0
        %8581 = vmatpush1.xpose.msra.mxu0 0.0
        %8582 = vmatprep.subr.mxu0 0.0
        %8583 = vmatpush1.xpose.msra.mxu0 0.0
        %8584 = vmatprep.subr.mxu0 0.0
        %8585 = vmatpush1.xpose.msra.mxu0 0.0
        %8586 = vmatprep.subr.mxu0 0.0
        %8587 = vmatpush1.xpose.msra.mxu0 0.0
        %8588 = vmatprep.subr.mxu0 0.0
        %8589 = vmatpush1.xpose.msra.mxu0 0.0
        %8590 = vmatprep.subr.mxu0 0.0
        %8591 = vmatpush1.xpose.msra.mxu0 0.0
        %8592 = vmatprep.subr.mxu0 0.0
        %8593 = vmatpush1.xpose.msra.mxu0 0.0
        %8594 = vmatprep.subr.mxu0 0.0
        %8595 = vmatpush1.xpose.msra.mxu0 0.0
        %8596 = vmatprep.subr.mxu0 0.0
        %8597 = vmatpush1.xpose.msra.mxu0 0.0
        %8598 = vmatprep.subr.mxu0 0.0
        %8599 = vmatpush1.xpose.msra.mxu0 0.0
        %8600 = vmatprep.subr.mxu0 0.0
        %8601 = vmatpush1.xpose.msra.mxu0 0.0
        %8602 = vmatprep.subr.mxu0 0.0
        %8603 = vmatpush1.xpose.msra.mxu0 0.0
        %8604 = vmatprep.subr.mxu0 0.0
        %8605 = vmatpush1.xpose.msra.mxu0 0.0
        %8606 = vmatprep.subr.mxu0 0.0
        %8607 = vmatpush1.xpose.msra.mxu0 0.0
        %8608 = vmatprep.subr.mxu0 0.0
        %8609 = vmatpush1.xpose.msra.mxu0 0.0
        %8610 = vmatprep.subr.mxu0 0.0
        %8611 = vmatpush1.xpose.msra.mxu0 0.0
        %8612 = vmatprep.subr.mxu0 0.0
        %8613 = vmatpush1.xpose.msra.mxu0 0.0
        %8614 = vmatprep.subr.mxu0 0.0
        %8615 = vmatpush1.xpose.msra.mxu0 0.0
        %8616 = vmatprep.subr.mxu0 0.0
        %8617 = vmatpush1.xpose.msra.mxu0 0.0
        %8618 = vmatprep.subr.mxu0 0.0
        %8619 = vmatpush1.xpose.msra.mxu0 0.0
        %8620 = vmatprep.subr.mxu0 0.0
        %8621 = vmatpush1.xpose.msra.mxu0 0.0
        %8622 = vmatprep.subr.mxu0 0.0
        %8623 = vmatpush1.xpose.msra.mxu0 0.0
        %8624 = vmatprep.subr.mxu0 0.0
        %8625 = vmatpush1.xpose.msra.mxu0 0.0
        %8626 = vmatprep.subr.mxu0 0.0
        %8627 = vmatpush1.xpose.msra.mxu0 0.0
        %8628 = vmatprep.subr.mxu0 0.0
        %8629 = vmatpush1.xpose.msra.mxu0 0.0
        %8630 = vmatprep.subr.mxu0 0.0
        %8631 = vmatpush1.xpose.msra.mxu0 0.0
        %8632 = vmatprep.subr.mxu0 0.0
        %8633 = vmatpush1.xpose.msra.mxu0 0.0
        %8634 = vmatprep.mubr.f32.mxu0 0.0
        %v8635 = vand.u32 %v8137, 4294901760
        %8636 = vmatmul.mubr.f32.gmra.mrb[0].mxu0 %v8635
        %v8637 = vpop.f32.mrb[0].mxu0
        %v8638 = vadd.f32 %v8559, %v8637
        %v8639 = vpop.f32.mrb[0].mxu0
        %8640 = vmatprep.mubr.f32.mxu0 0.0
        %v8641 = vand.u32 %v8139, 4294901760
        %8642 = vmatmul.mubr.f32.gmra.mrb[0].mxu0 %v8641
        %v8643 = vpop.f32.mrb[0].mxu0
        %v8644 = vadd.f32 %v8565, %v8643
        %v8645 = vpop.f32.mrb[0].mxu0
        %8646 = vdwg.mxu0
        %v8647 = vmul.f32 %v8638, %v6362
        %v8648 = vmul.f32 %v8644, %v6363
        %v8649 = vsel %vm4028, %v8647, -inf
        %8650 = vmax.xlane.f32.xlu0 %v8649
        %v8651 = vpop.xlane.xlu0 %8650
        %v8652 = vsel %vm4028, %v8648, -inf
        %8653 = vmax.xlane.f32.xlu0 %v8652
        %v8654 = vpop.xlane.xlu0 %8653
        %v8655 = vsub.f32 %v8647, %v8651
        %v8656 = vsub.f32 %v8648, %v8654
        %v8657 = vmul.f32 %v8655, 1.442695
        %v8658 = vpow.pop %v8657
        %v8659 = vmul.f32 %v8656, 1.442695
        %v8660 = vpow.pop %v8659
        %v8661 = vsel %vm4028, %v8658, 0.0
        %8662 = vadd.xlane.f32.xlu0 %v8661
        %v8663 = vpop.xlane.xlu0 %8662
        %v8664 = vsel %vm4028, %v8660, 0.0
        %8665 = vadd.xlane.f32.xlu0 %v8664
        %v8666 = vpop.xlane.xlu0 %8665
        %v8667 = vld [vmem:[#allocation4] sm:$0xff]
        %v8668 = vld [vmem:[#allocation4 + $0x8] sm:$0xff]
        %8671 = vrot.lane.b32.xlu0 %v8667, 64
        %v8672 = vpop.permute.xlu0 %8671
        %8673 = vrot.lane.b32.xlu0 %v8668, 64
        %v8674 = vpop.permute.xlu0 %8673
        %v8678 = vsel %vm4028, %v8658, 0
        %v8681 = vsel %vm4028, %v8660, 0
        %8683 = vmatprep.subr.mxu0 0.0
        %v8684 = vand.u32 %v8672, 4294901760
        %8685 = vmatpush1.msra.mxu0 %v8684
        %8686 = vmatprep.subr.mxu0 0.0
        %v8687 = vand.u32 %v8674, 4294901760
        %8688 = vmatpush1.msra.mxu0 %v8687
        %8689 = vmatprep.subr.mxu0 0.0
        %8690 = vmatpush1.msra.mxu0 0.0
        %8691 = vmatprep.subr.mxu0 0.0
        %8692 = vmatpush1.msra.mxu0 0.0
        %8693 = vmatprep.subr.mxu0 0.0
        %8694 = vmatpush1.msra.mxu0 0.0
        %8695 = vmatprep.subr.mxu0 0.0
        %8696 = vmatpush1.msra.mxu0 0.0
        %8697 = vmatprep.subr.mxu0 0.0
        %8698 = vmatpush1.msra.mxu0 0.0
        %8699 = vmatprep.subr.mxu0 0.0
        %8700 = vmatpush1.msra.mxu0 0.0
        %8701 = vmatprep.subr.mxu0 0.0
        %8702 = vmatpush1.msra.mxu0 0.0
        %8703 = vmatprep.subr.mxu0 0.0
        %8704 = vmatpush1.msra.mxu0 0.0
        %8705 = vmatprep.subr.mxu0 0.0
        %8706 = vmatpush1.msra.mxu0 0.0
        %8707 = vmatprep.subr.mxu0 0.0
        %8708 = vmatpush1.msra.mxu0 0.0
        %8709 = vmatprep.subr.mxu0 0.0
        %8710 = vmatpush1.msra.mxu0 0.0
        %8711 = vmatprep.subr.mxu0 0.0
        %8712 = vmatpush1.msra.mxu0 0.0
        %8713 = vmatprep.subr.mxu0 0.0
        %8714 = vmatpush1.msra.mxu0 0.0
        %8715 = vmatprep.subr.mxu0 0.0
        %8716 = vmatpush1.msra.mxu0 0.0
        %8717 = vmatprep.subr.mxu0 0.0
        %8718 = vmatpush1.msra.mxu0 0.0
        %8719 = vmatprep.subr.mxu0 0.0
        %8720 = vmatpush1.msra.mxu0 0.0
        %8721 = vmatprep.subr.mxu0 0.0
        %8722 = vmatpush1.msra.mxu0 0.0
        %8723 = vmatprep.subr.mxu0 0.0
        %8724 = vmatpush1.msra.mxu0 0.0
        %8725 = vmatprep.subr.mxu0 0.0
        %8726 = vmatpush1.msra.mxu0 0.0
        %8727 = vmatprep.subr.mxu0 0.0
        %8728 = vmatpush1.msra.mxu0 0.0
        %8729 = vmatprep.subr.mxu0 0.0
        %8730 = vmatpush1.msra.mxu0 0.0
        %8731 = vmatprep.subr.mxu0 0.0
        %8732 = vmatpush1.msra.mxu0 0.0
        %8733 = vmatprep.subr.mxu0 0.0
        %8734 = vmatpush1.msra.mxu0 0.0
        %8735 = vmatprep.subr.mxu0 0.0
        %8736 = vmatpush1.msra.mxu0 0.0
        %8737 = vmatprep.subr.mxu0 0.0
        %8738 = vmatpush1.msra.mxu0 0.0
        %8739 = vmatprep.subr.mxu0 0.0
        %8740 = vmatpush1.msra.mxu0 0.0
        %8741 = vmatprep.subr.mxu0 0.0
        %8742 = vmatpush1.msra.mxu0 0.0
        %8743 = vmatprep.subr.mxu0 0.0
        %8744 = vmatpush1.msra.mxu0 0.0
        %8745 = vmatprep.subr.mxu0 0.0
        %8746 = vmatpush1.msra.mxu0 0.0
        %8747 = vmatprep.subr.mxu0 0.0
        %8748 = vmatpush1.msra.mxu0 0.0
        %8749 = vmatprep.mubr.f32.mxu0 0.0
        %v8750 = vand.u32 %v8678, 4294901760
        %v8751 = vsub.f32 %v8678, %v8750
        %v8752 = vand.u32 %v8751, 4294901760
        %v8753 = vsub.f32 %v8751, %v8752
        %v8754 = vand.u32 %v8753, 4294901760
        %8755 = vmatmul.mubr.f32.gmra.mrb[0].mxu0 %v8754
        %v8756 = vpop.f32.mrb[0].mxu0
        %v8757 = vadd.f32 0.0, %v8756
        %v8758 = vpop.f32.mrb[0].mxu0
        %8759 = vmatprep.mubr.f32.mxu0 0.0
        %v8760 = vand.u32 %v8681, 4294901760
        %v8761 = vsub.f32 %v8681, %v8760
        %v8762 = vand.u32 %v8761, 4294901760
        %v8763 = vsub.f32 %v8761, %v8762
        %v8764 = vand.u32 %v8763, 4294901760
        %8765 = vmatmul.mubr.f32.gmra.mrb[0].mxu0 %v8764
        %v8766 = vpop.f32.mrb[0].mxu0
        %v8767 = vadd.f32 0.0, %v8766
        %v8768 = vpop.f32.mrb[0].mxu0
        %8769 = vdwg.mxu0
        %8770 = vmatprep.subr.mxu0 0.0
        %v8771 = vand.u32 %v8672, 4294901760
        %v8772 = vsub.f32 %v8672, %v8771
        %v8773 = vand.u32 %v8772, 4294901760
        %v8774 = vsub.f32 %v8772, %v8773
        %v8775 = vand.u32 %v8774, 4294901760
        %8776 = vmatpush1.msra.mxu0 %v8775
        %8777 = vmatprep.subr.mxu0 0.0
        %v8778 = vand.u32 %v8674, 4294901760
        %v8779 = vsub.f32 %v8674, %v8778
        %v8780 = vand.u32 %v8779, 4294901760
        %v8781 = vsub.f32 %v8779, %v8780
        %v8782 = vand.u32 %v8781, 4294901760
        %8783 = vmatpush1.msra.mxu0 %v8782
        %8784 = vmatprep.subr.mxu0 0.0
        %8785 = vmatpush1.msra.mxu0 0.0
        %8786 = vmatprep.subr.mxu0 0.0
        %8787 = vmatpush1.msra.mxu0 0.0
        %8788 = vmatprep.subr.mxu0 0.0
        %8789 = vmatpush1.msra.mxu0 0.0
        %8790 = vmatprep.subr.mxu0 0.0
        %8791 = vmatpush1.msra.mxu0 0.0
        %8792 = vmatprep.subr.mxu0 0.0
        %8793 = vmatpush1.msra.mxu0 0.0
        %8794 = vmatprep.subr.mxu0 0.0
        %8795 = vmatpush1.msra.mxu0 0.0
        %8796 = vmatprep.subr.mxu0 0.0
        %8797 = vmatpush1.msra.mxu0 0.0
        %8798 = vmatprep.subr.mxu0 0.0
        %8799 = vmatpush1.msra.mxu0 0.0
        %8800 = vmatprep.subr.mxu0 0.0
        %8801 = vmatpush1.msra.mxu0 0.0
        %8802 = vmatprep.subr.mxu0 0.0
        %8803 = vmatpush1.msra.mxu0 0.0
        %8804 = vmatprep.subr.mxu0 0.0
        %8805 = vmatpush1.msra.mxu0 0.0
        %8806 = vmatprep.subr.mxu0 0.0
        %8807 = vmatpush1.msra.mxu0 0.0
        %8808 = vmatprep.subr.mxu0 0.0
        %8809 = vmatpush1.msra.mxu0 0.0
        %8810 = vmatprep.subr.mxu0 0.0
        %8811 = vmatpush1.msra.mxu0 0.0
        %8812 = vmatprep.subr.mxu0 0.0
        %8813 = vmatpush1.msra.mxu0 0.0
        %8814 = vmatprep.subr.mxu0 0.0
        %8815 = vmatpush1.msra.mxu0 0.0
        %8816 = vmatprep.subr.mxu0 0.0
        %8817 = vmatpush1.msra.mxu0 0.0
        %8818 = vmatprep.subr.mxu0 0.0
        %8819 = vmatpush1.msra.mxu0 0.0
        %8820 = vmatprep.subr.mxu0 0.0
        %8821 = vmatpush1.msra.mxu0 0.0
        %8822 = vmatprep.subr.mxu0 0.0
        %8823 = vmatpush1.msra.mxu0 0.0
        %8824 = vmatprep.subr.mxu0 0.0
        %8825 = vmatpush1.msra.mxu0 0.0
        %8826 = vmatprep.subr.mxu0 0.0
        %8827 = vmatpush1.msra.mxu0 0.0
        %8828 = vmatprep.subr.mxu0 0.0
        %8829 = vmatpush1.msra.mxu0 0.0
        %8830 = vmatprep.subr.mxu0 0.0
        %8831 = vmatpush1.msra.mxu0 0.0
        %8832 = vmatprep.subr.mxu0 0.0
        %8833 = vmatpush1.msra.mxu0 0.0
        %8834 = vmatprep.subr.mxu0 0.0
        %8835 = vmatpush1.msra.mxu0 0.0
        %8836 = vmatprep.subr.mxu0 0.0
        %8837 = vmatpush1.msra.mxu0 0.0
        %8838 = vmatprep.subr.mxu0 0.0
        %8839 = vmatpush1.msra.mxu0 0.0
        %8840 = vmatprep.subr.mxu0 0.0
        %8841 = vmatpush1.msra.mxu0 0.0
        %8842 = vmatprep.subr.mxu0 0.0
        %8843 = vmatpush1.msra.mxu0 0.0
        %8844 = vmatprep.mubr.f32.mxu0 0.0
        %v8845 = vand.u32 %v8678, 4294901760
        %8846 = vmatmul.mubr.f32.gmra.mrb[0].mxu0 %v8845
        %v8847 = vpop.f32.mrb[0].mxu0
        %v8848 = vadd.f32 %v8757, %v8847
        %v8849 = vpop.f32.mrb[0].mxu0
        %8850 = vmatprep.mubr.f32.mxu0 0.0
        %v8851 = vand.u32 %v8681, 4294901760
        %8852 = vmatmul.mubr.f32.gmra.mrb[0].mxu0 %v8851
        %v8853 = vpop.f32.mrb[0].mxu0
        %v8854 = vadd.f32 %v8767, %v8853
        %v8855 = vpop.f32.mrb[0].mxu0
        %8856 = vdwg.mxu0
        %8857 = vmatprep.subr.mxu0 0.0
        %v8858 = vand.u32 %v8672, 4294901760
        %v8859 = vsub.f32 %v8672, %v8858
        %8860 = vmatpush1.msra.mxu0 %v8859
        %8861 = vmatprep.subr.mxu0 0.0
        %v8862 = vand.u32 %v8674, 4294901760
        %v8863 = vsub.f32 %v8674, %v8862
        %8864 = vmatpush1.msra.mxu0 %v8863
        %8865 = vmatprep.subr.mxu0 0.0
        %8866 = vmatpush1.msra.mxu0 0.0
        %8867 = vmatprep.subr.mxu0 0.0
        %8868 = vmatpush1.msra.mxu0 0.0
        %8869 = vmatprep.subr.mxu0 0.0
        %8870 = vmatpush1.msra.mxu0 0.0
        %8871 = vmatprep.subr.mxu0 0.0
        %8872 = vmatpush1.msra.mxu0 0.0
        %8873 = vmatprep.subr.mxu0 0.0
        %8874 = vmatpush1.msra.mxu0 0.0
        %8875 = vmatprep.subr.mxu0 0.0
        %8876 = vmatpush1.msra.mxu0 0.0
        %8877 = vmatprep.subr.mxu0 0.0
        %8878 = vmatpush1.msra.mxu0 0.0
        %8879 = vmatprep.subr.mxu0 0.0
        %8880 = vmatpush1.msra.mxu0 0.0
        %8881 = vmatprep.subr.mxu0 0.0
        %8882 = vmatpush1.msra.mxu0 0.0
        %8883 = vmatprep.subr.mxu0 0.0
        %8884 = vmatpush1.msra.mxu0 0.0
        %8885 = vmatprep.subr.mxu0 0.0
        %8886 = vmatpush1.msra.mxu0 0.0
        %8887 = vmatprep.subr.mxu0 0.0
        %8888 = vmatpush1.msra.mxu0 0.0
        %8889 = vmatprep.subr.mxu0 0.0
        %8890 = vmatpush1.msra.mxu0 0.0
        %8891 = vmatprep.subr.mxu0 0.0
        %8892 = vmatpush1.msra.mxu0 0.0
        %8893 = vmatprep.subr.mxu0 0.0
        %8894 = vmatpush1.msra.mxu0 0.0
        %8895 = vmatprep.subr.mxu0 0.0
        %8896 = vmatpush1.msra.mxu0 0.0
        %8897 = vmatprep.subr.mxu0 0.0
        %8898 = vmatpush1.msra.mxu0 0.0
        %8899 = vmatprep.subr.mxu0 0.0
        %8900 = vmatpush1.msra.mxu0 0.0
        %8901 = vmatprep.subr.mxu0 0.0
        %8902 = vmatpush1.msra.mxu0 0.0
        %8903 = vmatprep.subr.mxu0 0.0
        %8904 = vmatpush1.msra.mxu0 0.0
        %8905 = vmatprep.subr.mxu0 0.0
        %8906 = vmatpush1.msra.mxu0 0.0
        %8907 = vmatprep.subr.mxu0 0.0
        %8908 = vmatpush1.msra.mxu0 0.0
        %8909 = vmatprep.subr.mxu0 0.0
        %8910 = vmatpush1.msra.mxu0 0.0
        %8911 = vmatprep.subr.mxu0 0.0
        %8912 = vmatpush1.msra.mxu0 0.0
        %8913 = vmatprep.subr.mxu0 0.0
        %8914 = vmatpush1.msra.mxu0 0.0
        %8915 = vmatprep.subr.mxu0 0.0
        %8916 = vmatpush1.msra.mxu0 0.0
        %8917 = vmatprep.subr.mxu0 0.0
        %8918 = vmatpush1.msra.mxu0 0.0
        %8919 = vmatprep.subr.mxu0 0.0
        %8920 = vmatpush1.msra.mxu0 0.0
        %8921 = vmatprep.subr.mxu0 0.0
        %8922 = vmatpush1.msra.mxu0 0.0
        %8923 = vmatprep.subr.mxu0 0.0
        %8924 = vmatpush1.msra.mxu0 0.0
        %8925 = vmatprep.mubr.f32.mxu0 0.0
        %v8926 = vand.u32 %v8678, 4294901760
        %v8927 = vsub.f32 %v8678, %v8926
        %8928 = vmatmul.mubr.f32.gmra.mrb[0].mxu0 %v8927
        %v8929 = vpop.f32.mrb[0].mxu0
        %v8930 = vadd.f32 %v8848, %v8929
        %v8931 = vpop.f32.mrb[0].mxu0
        %8932 = vmatprep.mubr.f32.mxu0 0.0
        %v8933 = vand.u32 %v8681, 4294901760
        %v8934 = vsub.f32 %v8681, %v8933
        %8935 = vmatmul.mubr.f32.gmra.mrb[0].mxu0 %v8934
        %v8936 = vpop.f32.mrb[0].mxu0
        %v8937 = vadd.f32 %v8854, %v8936
        %v8938 = vpop.f32.mrb[0].mxu0
        %8939 = vdwg.mxu0
        %8940 = vmatprep.subr.mxu0 0.0
        %v8941 = vand.u32 %v8672, 4294901760
        %8942 = vmatpush1.msra.mxu0 %v8941
        %8943 = vmatprep.subr.mxu0 0.0
        %v8944 = vand.u32 %v8674, 4294901760
        %8945 = vmatpush1.msra.mxu0 %v8944
        %8946 = vmatprep.subr.mxu0 0.0
        %8947 = vmatpush1.msra.mxu0 0.0
        %8948 = vmatprep.subr.mxu0 0.0
        %8949 = vmatpush1.msra.mxu0 0.0
        %8950 = vmatprep.subr.mxu0 0.0
        %8951 = vmatpush1.msra.mxu0 0.0
        %8952 = vmatprep.subr.mxu0 0.0
        %8953 = vmatpush1.msra.mxu0 0.0
        %8954 = vmatprep.subr.mxu0 0.0
        %8955 = vmatpush1.msra.mxu0 0.0
        %8956 = vmatprep.subr.mxu0 0.0
        %8957 = vmatpush1.msra.mxu0 0.0
        %8958 = vmatprep.subr.mxu0 0.0
        %8959 = vmatpush1.msra.mxu0 0.0
        %8960 = vmatprep.subr.mxu0 0.0
        %8961 = vmatpush1.msra.mxu0 0.0
        %8962 = vmatprep.subr.mxu0 0.0
        %8963 = vmatpush1.msra.mxu0 0.0
        %8964 = vmatprep.subr.mxu0 0.0
        %8965 = vmatpush1.msra.mxu0 0.0
        %8966 = vmatprep.subr.mxu0 0.0
        %8967 = vmatpush1.msra.mxu0 0.0
        %8968 = vmatprep.subr.mxu0 0.0
        %8969 = vmatpush1.msra.mxu0 0.0
        %8970 = vmatprep.subr.mxu0 0.0
        %8971 = vmatpush1.msra.mxu0 0.0
        %8972 = vmatprep.subr.mxu0 0.0
        %8973 = vmatpush1.msra.mxu0 0.0
        %8974 = vmatprep.subr.mxu0 0.0
        %8975 = vmatpush1.msra.mxu0 0.0
        %8976 = vmatprep.subr.mxu0 0.0
        %8977 = vmatpush1.msra.mxu0 0.0
        %8978 = vmatprep.subr.mxu0 0.0
        %8979 = vmatpush1.msra.mxu0 0.0
        %8980 = vmatprep.subr.mxu0 0.0
        %8981 = vmatpush1.msra.mxu0 0.0
        %8982 = vmatprep.subr.mxu0 0.0
        %8983 = vmatpush1.msra.mxu0 0.0
        %8984 = vmatprep.subr.mxu0 0.0
        %8985 = vmatpush1.msra.mxu0 0.0
        %8986 = vmatprep.subr.mxu0 0.0
        %8987 = vmatpush1.msra.mxu0 0.0
        %8988 = vmatprep.subr.mxu0 0.0
        %8989 = vmatpush1.msra.mxu0 0.0
        %8990 = vmatprep.subr.mxu0 0.0
        %8991 = vmatpush1.msra.mxu0 0.0
        %8992 = vmatprep.subr.mxu0 0.0
        %8993 = vmatpush1.msra.mxu0 0.0
        %8994 = vmatprep.subr.mxu0 0.0
        %8995 = vmatpush1.msra.mxu0 0.0
        %8996 = vmatprep.subr.mxu0 0.0
        %8997 = vmatpush1.msra.mxu0 0.0
        %8998 = vmatprep.subr.mxu0 0.0
        %8999 = vmatpush1.msra.mxu0 0.0
        %9000 = vmatprep.subr.mxu0 0.0
        %9001 = vmatpush1.msra.mxu0 0.0
        %9002 = vmatprep.subr.mxu0 0.0
        %9003 = vmatpush1.msra.mxu0 0.0
        %9004 = vmatprep.subr.mxu0 0.0
        %9005 = vmatpush1.msra.mxu0 0.0
        %9006 = vmatprep.mubr.f32.mxu0 0.0
        %v9007 = vand.u32 %v8678, 4294901760
        %v9008 = vsub.f32 %v8678, %v9007
        %v9009 = vand.u32 %v9008, 4294901760
        %9010 = vmatmul.mubr.f32.gmra.mrb[0].mxu0 %v9009
        %v9011 = vpop.f32.mrb[0].mxu0
        %v9012 = vadd.f32 %v8930, %v9011
        %v9013 = vpop.f32.mrb[0].mxu0
        %9014 = vmatprep.mubr.f32.mxu0 0.0
        %v9015 = vand.u32 %v8681, 4294901760
        %v9016 = vsub.f32 %v8681, %v9015
        %v9017 = vand.u32 %v9016, 4294901760
        %9018 = vmatmul.mubr.f32.gmra.mrb[0].mxu0 %v9017
        %v9019 = vpop.f32.mrb[0].mxu0
        %v9020 = vadd.f32 %v8937, %v9019
        %v9021 = vpop.f32.mrb[0].mxu0
        %9022 = vdwg.mxu0
        %9023 = vmatprep.subr.mxu0 0.0
        %v9024 = vand.u32 %v8672, 4294901760
        %v9025 = vsub.f32 %v8672, %v9024
        %v9026 = vand.u32 %v9025, 4294901760
        %9027 = vmatpush1.msra.mxu0 %v9026
        %9028 = vmatprep.subr.mxu0 0.0
        %v9029 = vand.u32 %v8674, 4294901760
        %v9030 = vsub.f32 %v8674, %v9029
        %v9031 = vand.u32 %v9030, 4294901760
        %9032 = vmatpush1.msra.mxu0 %v9031
        %9033 = vmatprep.subr.mxu0 0.0
        %9034 = vmatpush1.msra.mxu0 0.0
        %9035 = vmatprep.subr.mxu0 0.0
        %9036 = vmatpush1.msra.mxu0 0.0
        %9037 = vmatprep.subr.mxu0 0.0
        %9038 = vmatpush1.msra.mxu0 0.0
        %9039 = vmatprep.subr.mxu0 0.0
        %9040 = vmatpush1.msra.mxu0 0.0
        %9041 = vmatprep.subr.mxu0 0.0
        %9042 = vmatpush1.msra.mxu0 0.0
        %9043 = vmatprep.subr.mxu0 0.0
        %9044 = vmatpush1.msra.mxu0 0.0
        %9045 = vmatprep.subr.mxu0 0.0
        %9046 = vmatpush1.msra.mxu0 0.0
        %9047 = vmatprep.subr.mxu0 0.0
        %9048 = vmatpush1.msra.mxu0 0.0
        %9049 = vmatprep.subr.mxu0 0.0
        %9050 = vmatpush1.msra.mxu0 0.0
        %9051 = vmatprep.subr.mxu0 0.0
        %9052 = vmatpush1.msra.mxu0 0.0
        %9053 = vmatprep.subr.mxu0 0.0
        %9054 = vmatpush1.msra.mxu0 0.0
        %9055 = vmatprep.subr.mxu0 0.0
        %9056 = vmatpush1.msra.mxu0 0.0
        %9057 = vmatprep.subr.mxu0 0.0
        %9058 = vmatpush1.msra.mxu0 0.0
        %9059 = vmatprep.subr.mxu0 0.0
        %9060 = vmatpush1.msra.mxu0 0.0
        %9061 = vmatprep.subr.mxu0 0.0
        %9062 = vmatpush1.msra.mxu0 0.0
        %9063 = vmatprep.subr.mxu0 0.0
        %9064 = vmatpush1.msra.mxu0 0.0
        %9065 = vmatprep.subr.mxu0 0.0
        %9066 = vmatpush1.msra.mxu0 0.0
        %9067 = vmatprep.subr.mxu0 0.0
        %9068 = vmatpush1.msra.mxu0 0.0
        %9069 = vmatprep.subr.mxu0 0.0
        %9070 = vmatpush1.msra.mxu0 0.0
        %9071 = vmatprep.subr.mxu0 0.0
        %9072 = vmatpush1.msra.mxu0 0.0
        %9073 = vmatprep.subr.mxu0 0.0
        %9074 = vmatpush1.msra.mxu0 0.0
        %9075 = vmatprep.subr.mxu0 0.0
        %9076 = vmatpush1.msra.mxu0 0.0
        %9077 = vmatprep.subr.mxu0 0.0
        %9078 = vmatpush1.msra.mxu0 0.0
        %9079 = vmatprep.subr.mxu0 0.0
        %9080 = vmatpush1.msra.mxu0 0.0
        %9081 = vmatprep.subr.mxu0 0.0
        %9082 = vmatpush1.msra.mxu0 0.0
        %9083 = vmatprep.subr.mxu0 0.0
        %9084 = vmatpush1.msra.mxu0 0.0
        %9085 = vmatprep.subr.mxu0 0.0
        %9086 = vmatpush1.msra.mxu0 0.0
        %9087 = vmatprep.subr.mxu0 0.0
        %9088 = vmatpush1.msra.mxu0 0.0
        %9089 = vmatprep.subr.mxu0 0.0
        %9090 = vmatpush1.msra.mxu0 0.0
        %9091 = vmatprep.subr.mxu0 0.0
        %9092 = vmatpush1.msra.mxu0 0.0
        %9093 = vmatprep.mubr.f32.mxu0 0.0
        %v9094 = vand.u32 %v8678, 4294901760
        %9095 = vmatmul.mubr.f32.gmra.mrb[0].mxu0 %v9094
        %v9096 = vpop.f32.mrb[0].mxu0
        %v9097 = vadd.f32 %v9012, %v9096
        %v9098 = vpop.f32.mrb[0].mxu0
        %9099 = vmatprep.mubr.f32.mxu0 0.0
        %v9100 = vand.u32 %v8681, 4294901760
        %9101 = vmatmul.mubr.f32.gmra.mrb[0].mxu0 %v9100
        %v9102 = vpop.f32.mrb[0].mxu0
        %v9103 = vadd.f32 %v9020, %v9102
        %v9104 = vpop.f32.mrb[0].mxu0
        %9105 = vdwg.mxu0
        %9106 = vmatprep.subr.mxu0 0.0
        %v9107 = vand.u32 %v8672, 4294901760
        %9108 = vmatpush1.msra.mxu0 %v9107
        %9109 = vmatprep.subr.mxu0 0.0
        %v9110 = vand.u32 %v8674, 4294901760
        %9111 = vmatpush1.msra.mxu0 %v9110
        %9112 = vmatprep.subr.mxu0 0.0
        %9113 = vmatpush1.msra.mxu0 0.0
        %9114 = vmatprep.subr.mxu0 0.0
        %9115 = vmatpush1.msra.mxu0 0.0
        %9116 = vmatprep.subr.mxu0 0.0
        %9117 = vmatpush1.msra.mxu0 0.0
        %9118 = vmatprep.subr.mxu0 0.0
        %9119 = vmatpush1.msra.mxu0 0.0
        %9120 = vmatprep.subr.mxu0 0.0
        %9121 = vmatpush1.msra.mxu0 0.0
        %9122 = vmatprep.subr.mxu0 0.0
        %9123 = vmatpush1.msra.mxu0 0.0
        %9124 = vmatprep.subr.mxu0 0.0
        %9125 = vmatpush1.msra.mxu0 0.0
        %9126 = vmatprep.subr.mxu0 0.0
        %9127 = vmatpush1.msra.mxu0 0.0
        %9128 = vmatprep.subr.mxu0 0.0
        %9129 = vmatpush1.msra.mxu0 0.0
        %9130 = vmatprep.subr.mxu0 0.0
        %9131 = vmatpush1.msra.mxu0 0.0
        %9132 = vmatprep.subr.mxu0 0.0
        %9133 = vmatpush1.msra.mxu0 0.0
        %9134 = vmatprep.subr.mxu0 0.0
        %9135 = vmatpush1.msra.mxu0 0.0
        %9136 = vmatprep.subr.mxu0 0.0
        %9137 = vmatpush1.msra.mxu0 0.0
        %9138 = vmatprep.subr.mxu0 0.0
        %9139 = vmatpush1.msra.mxu0 0.0
        %9140 = vmatprep.subr.mxu0 0.0
        %9141 = vmatpush1.msra.mxu0 0.0
        %9142 = vmatprep.subr.mxu0 0.0
        %9143 = vmatpush1.msra.mxu0 0.0
        %9144 = vmatprep.subr.mxu0 0.0
        %9145 = vmatpush1.msra.mxu0 0.0
        %9146 = vmatprep.subr.mxu0 0.0
        %9147 = vmatpush1.msra.mxu0 0.0
        %9148 = vmatprep.subr.mxu0 0.0
        %9149 = vmatpush1.msra.mxu0 0.0
        %9150 = vmatprep.subr.mxu0 0.0
        %9151 = vmatpush1.msra.mxu0 0.0
        %9152 = vmatprep.subr.mxu0 0.0
        %9153 = vmatpush1.msra.mxu0 0.0
        %9154 = vmatprep.subr.mxu0 0.0
        %9155 = vmatpush1.msra.mxu0 0.0
        %9156 = vmatprep.subr.mxu0 0.0
        %9157 = vmatpush1.msra.mxu0 0.0
        %9158 = vmatprep.subr.mxu0 0.0
        %9159 = vmatpush1.msra.mxu0 0.0
        %9160 = vmatprep.subr.mxu0 0.0
        %9161 = vmatpush1.msra.mxu0 0.0
        %9162 = vmatprep.subr.mxu0 0.0
        %9163 = vmatpush1.msra.mxu0 0.0
        %9164 = vmatprep.subr.mxu0 0.0
        %9165 = vmatpush1.msra.mxu0 0.0
        %9166 = vmatprep.subr.mxu0 0.0
        %9167 = vmatpush1.msra.mxu0 0.0
        %9168 = vmatprep.subr.mxu0 0.0
        %9169 = vmatpush1.msra.mxu0 0.0
        %9170 = vmatprep.subr.mxu0 0.0
        %9171 = vmatpush1.msra.mxu0 0.0
        %9172 = vmatprep.mubr.f32.mxu0 0.0
        %v9173 = vand.u32 %v8678, 4294901760
        %9174 = vmatmul.mubr.f32.gmra.mrb[0].mxu0 %v9173
        %v9175 = vpop.f32.mrb[0].mxu0
        %v9176 = vadd.f32 %v9097, %v9175
        %v9177 = vpop.f32.mrb[0].mxu0
        %9178 = vmatprep.mubr.f32.mxu0 0.0
        %v9179 = vand.u32 %v8681, 4294901760
        %9180 = vmatmul.mubr.f32.gmra.mrb[0].mxu0 %v9179
        %v9181 = vpop.f32.mrb[0].mxu0
        %v9182 = vadd.f32 %v9103, %v9181
        %v9183 = vpop.f32.mrb[0].mxu0
        %9184 = vdwg.mxu0
        %v9185 = vrcp.pop %v8663
        %v9186 = vmul.f32 1.0, %v9185
        %v9187 = vrcp.pop %v8666
        %v9188 = vmul.f32 1.0, %v9187
        %v9189 = vmul.f32 %v9176, %v9186
        %v9190 = vmul.f32 %v9182, %v9188
        %9193 = vrot.lane.b32.xlu0 %v9189, 64
        %v9194 = vpop.permute.xlu0 %9193
        %9195 = vrot.lane.b32.xlu0 %v9190, 64
        %v9196 = vpop.permute.xlu0 %9195
        %9199 = vst.msk [vmem:[#allocation5] sm:$0xff] %vm5639, %v9194
        %9200 = vst.msk [vmem:[#allocation5 + $0x8] sm:$0xff] %vm5639, %v9196
        %v9201 = vld [vmem:[#allocation5] sm:$0xff]
        %v9202 = vld [vmem:[#allocation5 + $0x8] sm:$0xff]
        %v9203 = vld [vmem:[%s13] sm:$0xff]
        %v9204 = vld [vmem:[%s13 + $0x8] sm:$0xff]
        %v9205 = vld [vmem:[%s13 + $0x10] sm:$0xff]
        %v9206 = vld [vmem:[%s13 + $0x18] sm:$0xff]
        %v9207 = vld [vmem:[%s13 + $0x20] sm:$0xff]
        %v9208 = vld [vmem:[%s13 + $0x28] sm:$0xff]
        %v9209 = vld [vmem:[%s13 + $0x30] sm:$0xff]
        %v9210 = vld [vmem:[%s13 + $0x38] sm:$0xff]
        %v9211 = vld [vmem:[%s13 + $0x40] sm:$0xff]
        %v9212 = vld [vmem:[%s13 + $0x48] sm:$0xff]
        %v9213 = vld [vmem:[%s13 + $0x50] sm:$0xff]
        %v9214 = vld [vmem:[%s13 + $0x58] sm:$0xff]
        %v9215 = vld [vmem:[%s13 + $0x60] sm:$0xff]
        %v9216 = vld [vmem:[%s13 + $0x68] sm:$0xff]
        %v9217 = vld [vmem:[%s13 + $0x70] sm:$0xff]
        %v9218 = vld [vmem:[%s13 + $0x78] sm:$0xff]
        %v9219 = vld [vmem:[%s14] sm:$0x1]
        %v9221 = vlaneseq
        %v9222 = vshrl.u32 %v9221, 7
        %v9223 = vsub.s32 0, %v9222
        %v9224 = vrot.slane %v9219, %v9223
        %9226 = vmatprep.subr.mxu0 0.0
        %v9227 = vand.u32 %v9203, 4294901760
        %9228 = vmatpush1.msra.mxu0 %v9227
        %9229 = vmatprep.subr.mxu0 0.0
        %v9230 = vand.u32 %v9204, 4294901760
        %9231 = vmatpush1.msra.mxu0 %v9230
        %9232 = vmatprep.subr.mxu0 0.0
        %v9233 = vand.u32 %v9205, 4294901760
        %9234 = vmatpush1.msra.mxu0 %v9233
        %9235 = vmatprep.subr.mxu0 0.0
        %v9236 = vand.u32 %v9206, 4294901760
        %9237 = vmatpush1.msra.mxu0 %v9236
        %9238 = vmatprep.subr.mxu0 0.0
        %v9239 = vand.u32 %v9207, 4294901760
        %9240 = vmatpush1.msra.mxu0 %v9239
        %9241 = vmatprep.subr.mxu0 0.0
        %v9242 = vand.u32 %v9208, 4294901760
        %9243 = vmatpush1.msra.mxu0 %v9242
        %9244 = vmatprep.subr.mxu0 0.0
        %v9245 = vand.u32 %v9209, 4294901760
        %9246 = vmatpush1.msra.mxu0 %v9245
        %9247 = vmatprep.subr.mxu0 0.0
        %v9248 = vand.u32 %v9210, 4294901760
        %9249 = vmatpush1.msra.mxu0 %v9248
        %9250 = vmatprep.subr.mxu0 0.0
        %v9251 = vand.u32 %v9211, 4294901760
        %9252 = vmatpush1.msra.mxu0 %v9251
        %9253 = vmatprep.subr.mxu0 0.0
        %v9254 = vand.u32 %v9212, 4294901760
        %9255 = vmatpush1.msra.mxu0 %v9254
        %9256 = vmatprep.subr.mxu0 0.0
        %v9257 = vand.u32 %v9213, 4294901760
        %9258 = vmatpush1.msra.mxu0 %v9257
        %9259 = vmatprep.subr.mxu0 0.0
        %v9260 = vand.u32 %v9214, 4294901760
        %9261 = vmatpush1.msra.mxu0 %v9260
        %9262 = vmatprep.subr.mxu0 0.0
        %v9263 = vand.u32 %v9215, 4294901760
        %9264 = vmatpush1.msra.mxu0 %v9263
        %9265 = vmatprep.subr.mxu0 0.0
        %v9266 = vand.u32 %v9216, 4294901760
        %9267 = vmatpush1.msra.mxu0 %v9266
        %9268 = vmatprep.subr.mxu0 0.0
        %v9269 = vand.u32 %v9217, 4294901760
        %9270 = vmatpush1.msra.mxu0 %v9269
        %9271 = vmatprep.subr.mxu0 0.0
        %v9272 = vand.u32 %v9218, 4294901760
        %9273 = vmatpush1.msra.mxu0 %v9272
        %9274 = vmatprep.subr.mxu0 0.0
        %9275 = vmatpush1.msra.mxu0 0.0
        %9276 = vmatprep.subr.mxu0 0.0
        %9277 = vmatpush1.msra.mxu0 0.0
        %9278 = vmatprep.subr.mxu0 0.0
        %9279 = vmatpush1.msra.mxu0 0.0
        %9280 = vmatprep.subr.mxu0 0.0
        %9281 = vmatpush1.msra.mxu0 0.0
        %9282 = vmatprep.subr.mxu0 0.0
        %9283 = vmatpush1.msra.mxu0 0.0
        %9284 = vmatprep.subr.mxu0 0.0
        %9285 = vmatpush1.msra.mxu0 0.0
        %9286 = vmatprep.subr.mxu0 0.0
        %9287 = vmatpush1.msra.mxu0 0.0
        %9288 = vmatprep.subr.mxu0 0.0
        %9289 = vmatpush1.msra.mxu0 0.0
        %9290 = vmatprep.subr.mxu0 0.0
        %9291 = vmatpush1.msra.mxu0 0.0
        %9292 = vmatprep.subr.mxu0 0.0
        %9293 = vmatpush1.msra.mxu0 0.0
        %9294 = vmatprep.subr.mxu0 0.0
        %9295 = vmatpush1.msra.mxu0 0.0
        %9296 = vmatprep.subr.mxu0 0.0
        %9297 = vmatpush1.msra.mxu0 0.0
        %9298 = vmatprep.subr.mxu0 0.0
        %9299 = vmatpush1.msra.mxu0 0.0
        %9300 = vmatprep.subr.mxu0 0.0
        %9301 = vmatpush1.msra.mxu0 0.0
        %9302 = vmatprep.subr.mxu0 0.0
        %9303 = vmatpush1.msra.mxu0 0.0
        %9304 = vmatprep.subr.mxu0 0.0
        %9305 = vmatpush1.msra.mxu0 0.0
        %9306 = vmatprep.mubr.f32.mxu0 0.0
        %v9307 = vand.u32 %v9201, 4294901760
        %v9308 = vsub.f32 %v9201, %v9307
        %v9309 = vand.u32 %v9308, 4294901760
        %v9310 = vsub.f32 %v9308, %v9309
        %v9311 = vand.u32 %v9310, 4294901760
        %9312 = vmatmul.mubr.f32.gmra.mrb[0].mxu0 %v9311
        %v9313 = vpop.f32.mrb[0].mxu0
        %v9314 = vadd.f32 %v9224, %v9313
        %v9315 = vpop.f32.mrb[0].mxu0
        %9316 = vmatprep.mubr.f32.mxu0 0.0
        %v9317 = vand.u32 %v9202, 4294901760
        %v9318 = vsub.f32 %v9202, %v9317
        %v9319 = vand.u32 %v9318, 4294901760
        %v9320 = vsub.f32 %v9318, %v9319
        %v9321 = vand.u32 %v9320, 4294901760
        %9322 = vmatmul.mubr.f32.gmra.mrb[0].mxu0 %v9321
        %v9323 = vpop.f32.mrb[0].mxu0
        %v9324 = vadd.f32 %v9224, %v9323
        %v9325 = vpop.f32.mrb[0].mxu0
        %9326 = vdwg.mxu0
        %9327 = vmatprep.subr.mxu0 0.0
        %v9328 = vand.u32 %v9203, 4294901760
        %v9329 = vsub.f32 %v9203, %v9328
        %v9330 = vand.u32 %v9329, 4294901760
        %v9331 = vsub.f32 %v9329, %v9330
        %v9332 = vand.u32 %v9331, 4294901760
        %9333 = vmatpush1.msra.mxu0 %v9332
        %9334 = vmatprep.subr.mxu0 0.0
        %v9335 = vand.u32 %v9204, 4294901760
        %v9336 = vsub.f32 %v9204, %v9335
        %v9337 = vand.u32 %v9336, 4294901760
        %v9338 = vsub.f32 %v9336, %v9337
        %v9339 = vand.u32 %v9338, 4294901760
        %9340 = vmatpush1.msra.mxu0 %v9339
        %9341 = vmatprep.subr.mxu0 0.0
        %v9342 = vand.u32 %v9205, 4294901760
        %v9343 = vsub.f32 %v9205, %v9342
        %v9344 = vand.u32 %v9343, 4294901760
        %v9345 = vsub.f32 %v9343, %v9344
        %v9346 = vand.u32 %v9345, 4294901760
        %9347 = vmatpush1.msra.mxu0 %v9346
        %9348 = vmatprep.subr.mxu0 0.0
        %v9349 = vand.u32 %v9206, 4294901760
        %v9350 = vsub.f32 %v9206, %v9349
        %v9351 = vand.u32 %v9350, 4294901760
        %v9352 = vsub.f32 %v9350, %v9351
        %v9353 = vand.u32 %v9352, 4294901760
        %9354 = vmatpush1.msra.mxu0 %v9353
        %9355 = vmatprep.subr.mxu0 0.0
        %v9356 = vand.u32 %v9207, 4294901760
        %v9357 = vsub.f32 %v9207, %v9356
        %v9358 = vand.u32 %v9357, 4294901760
        %v9359 = vsub.f32 %v9357, %v9358
        %v9360 = vand.u32 %v9359, 4294901760
        %9361 = vmatpush1.msra.mxu0 %v9360
        %9362 = vmatprep.subr.mxu0 0.0
        %v9363 = vand.u32 %v9208, 4294901760
        %v9364 = vsub.f32 %v9208, %v9363
        %v9365 = vand.u32 %v9364, 4294901760
        %v9366 = vsub.f32 %v9364, %v9365
        %v9367 = vand.u32 %v9366, 4294901760
        %9368 = vmatpush1.msra.mxu0 %v9367
        %9369 = vmatprep.subr.mxu0 0.0
        %v9370 = vand.u32 %v9209, 4294901760
        %v9371 = vsub.f32 %v9209, %v9370
        %v9372 = vand.u32 %v9371, 4294901760
        %v9373 = vsub.f32 %v9371, %v9372
        %v9374 = vand.u32 %v9373, 4294901760
        %9375 = vmatpush1.msra.mxu0 %v9374
        %9376 = vmatprep.subr.mxu0 0.0
        %v9377 = vand.u32 %v9210, 4294901760
        %v9378 = vsub.f32 %v9210, %v9377
        %v9379 = vand.u32 %v9378, 4294901760
        %v9380 = vsub.f32 %v9378, %v9379
        %v9381 = vand.u32 %v9380, 4294901760
        %9382 = vmatpush1.msra.mxu0 %v9381
        %9383 = vmatprep.subr.mxu0 0.0
        %v9384 = vand.u32 %v9211, 4294901760
        %v9385 = vsub.f32 %v9211, %v9384
        %v9386 = vand.u32 %v9385, 4294901760
        %v9387 = vsub.f32 %v9385, %v9386
        %v9388 = vand.u32 %v9387, 4294901760
        %9389 = vmatpush1.msra.mxu0 %v9388
        %9390 = vmatprep.subr.mxu0 0.0
        %v9391 = vand.u32 %v9212, 4294901760
        %v9392 = vsub.f32 %v9212, %v9391
        %v9393 = vand.u32 %v9392, 4294901760
        %v9394 = vsub.f32 %v9392, %v9393
        %v9395 = vand.u32 %v9394, 4294901760
        %9396 = vmatpush1.msra.mxu0 %v9395
        %9397 = vmatprep.subr.mxu0 0.0
        %v9398 = vand.u32 %v9213, 4294901760
        %v9399 = vsub.f32 %v9213, %v9398
        %v9400 = vand.u32 %v9399, 4294901760
        %v9401 = vsub.f32 %v9399, %v9400
        %v9402 = vand.u32 %v9401, 4294901760
        %9403 = vmatpush1.msra.mxu0 %v9402
        %9404 = vmatprep.subr.mxu0 0.0
        %v9405 = vand.u32 %v9214, 4294901760
        %v9406 = vsub.f32 %v9214, %v9405
        %v9407 = vand.u32 %v9406, 4294901760
        %v9408 = vsub.f32 %v9406, %v9407
        %v9409 = vand.u32 %v9408, 4294901760
        %9410 = vmatpush1.msra.mxu0 %v9409
        %9411 = vmatprep.subr.mxu0 0.0
        %v9412 = vand.u32 %v9215, 4294901760
        %v9413 = vsub.f32 %v9215, %v9412
        %v9414 = vand.u32 %v9413, 4294901760
        %v9415 = vsub.f32 %v9413, %v9414
        %v9416 = vand.u32 %v9415, 4294901760
        %9417 = vmatpush1.msra.mxu0 %v9416
        %9418 = vmatprep.subr.mxu0 0.0
        %v9419 = vand.u32 %v9216, 4294901760
        %v9420 = vsub.f32 %v9216, %v9419
        %v9421 = vand.u32 %v9420, 4294901760
        %v9422 = vsub.f32 %v9420, %v9421
        %v9423 = vand.u32 %v9422, 4294901760
        %9424 = vmatpush1.msra.mxu0 %v9423
        %9425 = vmatprep.subr.mxu0 0.0
        %v9426 = vand.u32 %v9217, 4294901760
        %v9427 = vsub.f32 %v9217, %v9426
        %v9428 = vand.u32 %v9427, 4294901760
        %v9429 = vsub.f32 %v9427, %v9428
        %v9430 = vand.u32 %v9429, 4294901760
        %9431 = vmatpush1.msra.mxu0 %v9430
        %9432 = vmatprep.subr.mxu0 0.0
        %v9433 = vand.u32 %v9218, 4294901760
        %v9434 = vsub.f32 %v9218, %v9433
        %v9435 = vand.u32 %v9434, 4294901760
        %v9436 = vsub.f32 %v9434, %v9435
        %v9437 = vand.u32 %v9436, 4294901760
        %9438 = vmatpush1.msra.mxu0 %v9437
        %9439 = vmatprep.subr.mxu0 0.0
        %9440 = vmatpush1.msra.mxu0 0.0
        %9441 = vmatprep.subr.mxu0 0.0
        %9442 = vmatpush1.msra.mxu0 0.0
        %9443 = vmatprep.subr.mxu0 0.0
        %9444 = vmatpush1.msra.mxu0 0.0
        %9445 = vmatprep.subr.mxu0 0.0
        %9446 = vmatpush1.msra.mxu0 0.0
        %9447 = vmatprep.subr.mxu0 0.0
        %9448 = vmatpush1.msra.mxu0 0.0
        %9449 = vmatprep.subr.mxu0 0.0
        %9450 = vmatpush1.msra.mxu0 0.0
        %9451 = vmatprep.subr.mxu0 0.0
        %9452 = vmatpush1.msra.mxu0 0.0
        %9453 = vmatprep.subr.mxu0 0.0
        %9454 = vmatpush1.msra.mxu0 0.0
        %9455 = vmatprep.subr.mxu0 0.0
        %9456 = vmatpush1.msra.mxu0 0.0
        %9457 = vmatprep.subr.mxu0 0.0
        %9458 = vmatpush1.msra.mxu0 0.0
        %9459 = vmatprep.subr.mxu0 0.0
        %9460 = vmatpush1.msra.mxu0 0.0
        %9461 = vmatprep.subr.mxu0 0.0
        %9462 = vmatpush1.msra.mxu0 0.0
        %9463 = vmatprep.subr.mxu0 0.0
        %9464 = vmatpush1.msra.mxu0 0.0
        %9465 = vmatprep.subr.mxu0 0.0
        %9466 = vmatpush1.msra.mxu0 0.0
        %9467 = vmatprep.subr.mxu0 0.0
        %9468 = vmatpush1.msra.mxu0 0.0
        %9469 = vmatprep.subr.mxu0 0.0
        %9470 = vmatpush1.msra.mxu0 0.0
        %9471 = vmatprep.mubr.f32.mxu0 0.0
        %v9472 = vand.u32 %v9201, 4294901760
        %9473 = vmatmul.mubr.f32.gmra.mrb[0].mxu0 %v9472
        %v9474 = vpop.f32.mrb[0].mxu0
        %v9475 = vadd.f32 %v9314, %v9474
        %v9476 = vpop.f32.mrb[0].mxu0
        %9477 = vmatprep.mubr.f32.mxu0 0.0
        %v9478 = vand.u32 %v9202, 4294901760
        %9479 = vmatmul.mubr.f32.gmra.mrb[0].mxu0 %v9478
        %v9480 = vpop.f32.mrb[0].mxu0
        %v9481 = vadd.f32 %v9324, %v9480
        %v9482 = vpop.f32.mrb[0].mxu0
        %9483 = vdwg.mxu0
        %9484 = vmatprep.subr.mxu0 0.0
        %v9485 = vand.u32 %v9203, 4294901760
        %v9486 = vsub.f32 %v9203, %v9485
        %9487 = vmatpush1.msra.mxu0 %v9486
        %9488 = vmatprep.subr.mxu0 0.0
        %v9489 = vand.u32 %v9204, 4294901760
        %v9490 = vsub.f32 %v9204, %v9489
        %9491 = vmatpush1.msra.mxu0 %v9490
        %9492 = vmatprep.subr.mxu0 0.0
        %v9493 = vand.u32 %v9205, 4294901760
        %v9494 = vsub.f32 %v9205, %v9493
        %9495 = vmatpush1.msra.mxu0 %v9494
        %9496 = vmatprep.subr.mxu0 0.0
        %v9497 = vand.u32 %v9206, 4294901760
        %v9498 = vsub.f32 %v9206, %v9497
        %9499 = vmatpush1.msra.mxu0 %v9498
        %9500 = vmatprep.subr.mxu0 0.0
        %v9501 = vand.u32 %v9207, 4294901760
        %v9502 = vsub.f32 %v9207, %v9501
        %9503 = vmatpush1.msra.mxu0 %v9502
        %9504 = vmatprep.subr.mxu0 0.0
        %v9505 = vand.u32 %v9208, 4294901760
        %v9506 = vsub.f32 %v9208, %v9505
        %9507 = vmatpush1.msra.mxu0 %v9506
        %9508 = vmatprep.subr.mxu0 0.0
        %v9509 = vand.u32 %v9209, 4294901760
        %v9510 = vsub.f32 %v9209, %v9509
        %9511 = vmatpush1.msra.mxu0 %v9510
        %9512 = vmatprep.subr.mxu0 0.0
        %v9513 = vand.u32 %v9210, 4294901760
        %v9514 = vsub.f32 %v9210, %v9513
        %9515 = vmatpush1.msra.mxu0 %v9514
        %9516 = vmatprep.subr.mxu0 0.0
        %v9517 = vand.u32 %v9211, 4294901760
        %v9518 = vsub.f32 %v9211, %v9517
        %9519 = vmatpush1.msra.mxu0 %v9518
        %9520 = vmatprep.subr.mxu0 0.0
        %v9521 = vand.u32 %v9212, 4294901760
        %v9522 = vsub.f32 %v9212, %v9521
        %9523 = vmatpush1.msra.mxu0 %v9522
        %9524 = vmatprep.subr.mxu0 0.0
        %v9525 = vand.u32 %v9213, 4294901760
        %v9526 = vsub.f32 %v9213, %v9525
        %9527 = vmatpush1.msra.mxu0 %v9526
        %9528 = vmatprep.subr.mxu0 0.0
        %v9529 = vand.u32 %v9214, 4294901760
        %v9530 = vsub.f32 %v9214, %v9529
        %9531 = vmatpush1.msra.mxu0 %v9530
        %9532 = vmatprep.subr.mxu0 0.0
        %v9533 = vand.u32 %v9215, 4294901760
        %v9534 = vsub.f32 %v9215, %v9533
        %9535 = vmatpush1.msra.mxu0 %v9534
        %9536 = vmatprep.subr.mxu0 0.0
        %v9537 = vand.u32 %v9216, 4294901760
        %v9538 = vsub.f32 %v9216, %v9537
        %9539 = vmatpush1.msra.mxu0 %v9538
        %9540 = vmatprep.subr.mxu0 0.0
        %v9541 = vand.u32 %v9217, 4294901760
        %v9542 = vsub.f32 %v9217, %v9541
        %9543 = vmatpush1.msra.mxu0 %v9542
        %9544 = vmatprep.subr.mxu0 0.0
        %v9545 = vand.u32 %v9218, 4294901760
        %v9546 = vsub.f32 %v9218, %v9545
        %9547 = vmatpush1.msra.mxu0 %v9546
        %9548 = vmatprep.subr.mxu0 0.0
        %9549 = vmatpush1.msra.mxu0 0.0
        %9550 = vmatprep.subr.mxu0 0.0
        %9551 = vmatpush1.msra.mxu0 0.0
        %9552 = vmatprep.subr.mxu0 0.0
        %9553 = vmatpush1.msra.mxu0 0.0
        %9554 = vmatprep.subr.mxu0 0.0
        %9555 = vmatpush1.msra.mxu0 0.0
        %9556 = vmatprep.subr.mxu0 0.0
        %9557 = vmatpush1.msra.mxu0 0.0
        %9558 = vmatprep.subr.mxu0 0.0
        %9559 = vmatpush1.msra.mxu0 0.0
        %9560 = vmatprep.subr.mxu0 0.0
        %9561 = vmatpush1.msra.mxu0 0.0
        %9562 = vmatprep.subr.mxu0 0.0
        %9563 = vmatpush1.msra.mxu0 0.0
        %9564 = vmatprep.subr.mxu0 0.0
        %9565 = vmatpush1.msra.mxu0 0.0
        %9566 = vmatprep.subr.mxu0 0.0
        %9567 = vmatpush1.msra.mxu0 0.0
        %9568 = vmatprep.subr.mxu0 0.0
        %9569 = vmatpush1.msra.mxu0 0.0
        %9570 = vmatprep.subr.mxu0 0.0
        %9571 = vmatpush1.msra.mxu0 0.0
        %9572 = vmatprep.subr.mxu0 0.0
        %9573 = vmatpush1.msra.mxu0 0.0
        %9574 = vmatprep.subr.mxu0 0.0
        %9575 = vmatpush1.msra.mxu0 0.0
        %9576 = vmatprep.subr.mxu0 0.0
        %9577 = vmatpush1.msra.mxu0 0.0
        %9578 = vmatprep.subr.mxu0 0.0
        %9579 = vmatpush1.msra.mxu0 0.0
        %9580 = vmatprep.mubr.f32.mxu0 0.0
        %v9581 = vand.u32 %v9201, 4294901760
        %v9582 = vsub.f32 %v9201, %v9581
        %9583 = vmatmul.mubr.f32.gmra.mrb[0].mxu0 %v9582
        %v9584 = vpop.f32.mrb[0].mxu0
        %v9585 = vadd.f32 %v9475, %v9584
        %v9586 = vpop.f32.mrb[0].mxu0
        %9587 = vmatprep.mubr.f32.mxu0 0.0
        %v9588 = vand.u32 %v9202, 4294901760
        %v9589 = vsub.f32 %v9202, %v9588
        %9590 = vmatmul.mubr.f32.gmra.mrb[0].mxu0 %v9589
        %v9591 = vpop.f32.mrb[0].mxu0
        %v9592 = vadd.f32 %v9481, %v9591
        %v9593 = vpop.f32.mrb[0].mxu0
        %9594 = vdwg.mxu0
        %9595 = vmatprep.subr.mxu0 0.0
        %v9596 = vand.u32 %v9203, 4294901760
        %9597 = vmatpush1.msra.mxu0 %v9596
        %9598 = vmatprep.subr.mxu0 0.0
        %v9599 = vand.u32 %v9204, 4294901760
        %9600 = vmatpush1.msra.mxu0 %v9599
        %9601 = vmatprep.subr.mxu0 0.0
        %v9602 = vand.u32 %v9205, 4294901760
        %9603 = vmatpush1.msra.mxu0 %v9602
        %9604 = vmatprep.subr.mxu0 0.0
        %v9605 = vand.u32 %v9206, 4294901760
        %9606 = vmatpush1.msra.mxu0 %v9605
        %9607 = vmatprep.subr.mxu0 0.0
        %v9608 = vand.u32 %v9207, 4294901760
        %9609 = vmatpush1.msra.mxu0 %v9608
        %9610 = vmatprep.subr.mxu0 0.0
        %v9611 = vand.u32 %v9208, 4294901760
        %9612 = vmatpush1.msra.mxu0 %v9611
        %9613 = vmatprep.subr.mxu0 0.0
        %v9614 = vand.u32 %v9209, 4294901760
        %9615 = vmatpush1.msra.mxu0 %v9614
        %9616 = vmatprep.subr.mxu0 0.0
        %v9617 = vand.u32 %v9210, 4294901760
        %9618 = vmatpush1.msra.mxu0 %v9617
        %9619 = vmatprep.subr.mxu0 0.0
        %v9620 = vand.u32 %v9211, 4294901760
        %9621 = vmatpush1.msra.mxu0 %v9620
        %9622 = vmatprep.subr.mxu0 0.0
        %v9623 = vand.u32 %v9212, 4294901760
        %9624 = vmatpush1.msra.mxu0 %v9623
        %9625 = vmatprep.subr.mxu0 0.0
        %v9626 = vand.u32 %v9213, 4294901760
        %9627 = vmatpush1.msra.mxu0 %v9626
        %9628 = vmatprep.subr.mxu0 0.0
        %v9629 = vand.u32 %v9214, 4294901760
        %9630 = vmatpush1.msra.mxu0 %v9629
        %9631 = vmatprep.subr.mxu0 0.0
        %v9632 = vand.u32 %v9215, 4294901760
        %9633 = vmatpush1.msra.mxu0 %v9632
        %9634 = vmatprep.subr.mxu0 0.0
        %v9635 = vand.u32 %v9216, 4294901760
        %9636 = vmatpush1.msra.mxu0 %v9635
        %9637 = vmatprep.subr.mxu0 0.0
        %v9638 = vand.u32 %v9217, 4294901760
        %9639 = vmatpush1.msra.mxu0 %v9638
        %9640 = vmatprep.subr.mxu0 0.0
        %v9641 = vand.u32 %v9218, 4294901760
        %9642 = vmatpush1.msra.mxu0 %v9641
        %9643 = vmatprep.subr.mxu0 0.0
        %9644 = vmatpush1.msra.mxu0 0.0
        %9645 = vmatprep.subr.mxu0 0.0
        %9646 = vmatpush1.msra.mxu0 0.0
        %9647 = vmatprep.subr.mxu0 0.0
        %9648 = vmatpush1.msra.mxu0 0.0
        %9649 = vmatprep.subr.mxu0 0.0
        %9650 = vmatpush1.msra.mxu0 0.0
        %9651 = vmatprep.subr.mxu0 0.0
        %9652 = vmatpush1.msra.mxu0 0.0
        %9653 = vmatprep.subr.mxu0 0.0
        %9654 = vmatpush1.msra.mxu0 0.0
        %9655 = vmatprep.subr.mxu0 0.0
        %9656 = vmatpush1.msra.mxu0 0.0
        %9657 = vmatprep.subr.mxu0 0.0
        %9658 = vmatpush1.msra.mxu0 0.0
        %9659 = vmatprep.subr.mxu0 0.0
        %9660 = vmatpush1.msra.mxu0 0.0
        %9661 = vmatprep.subr.mxu0 0.0
        %9662 = vmatpush1.msra.mxu0 0.0
        %9663 = vmatprep.subr.mxu0 0.0
        %9664 = vmatpush1.msra.mxu0 0.0
        %9665 = vmatprep.subr.mxu0 0.0
        %9666 = vmatpush1.msra.mxu0 0.0
        %9667 = vmatprep.subr.mxu0 0.0
        %9668 = vmatpush1.msra.mxu0 0.0
        %9669 = vmatprep.subr.mxu0 0.0
        %9670 = vmatpush1.msra.mxu0 0.0
        %9671 = vmatprep.subr.mxu0 0.0
        %9672 = vmatpush1.msra.mxu0 0.0
        %9673 = vmatprep.subr.mxu0 0.0
        %9674 = vmatpush1.msra.mxu0 0.0
        %9675 = vmatprep.mubr.f32.mxu0 0.0
        %v9676 = vand.u32 %v9201, 4294901760
        %v9677 = vsub.f32 %v9201, %v9676
        %v9678 = vand.u32 %v9677, 4294901760
        %9679 = vmatmul.mubr.f32.gmra.mrb[0].mxu0 %v9678
        %v9680 = vpop.f32.mrb[0].mxu0
        %v9681 = vadd.f32 %v9585, %v9680
        %v9682 = vpop.f32.mrb[0].mxu0
        %9683 = vmatprep.mubr.f32.mxu0 0.0
        %v9684 = vand.u32 %v9202, 4294901760
        %v9685 = vsub.f32 %v9202, %v9684
        %v9686 = vand.u32 %v9685, 4294901760
        %9687 = vmatmul.mubr.f32.gmra.mrb[0].mxu0 %v9686
        %v9688 = vpop.f32.mrb[0].mxu0
        %v9689 = vadd.f32 %v9592, %v9688
        %v9690 = vpop.f32.mrb[0].mxu0
        %9691 = vdwg.mxu0
        %9692 = vmatprep.subr.mxu0 0.0
        %v9693 = vand.u32 %v9203, 4294901760
        %v9694 = vsub.f32 %v9203, %v9693
        %v9695 = vand.u32 %v9694, 4294901760
        %9696 = vmatpush1.msra.mxu0 %v9695
        %9697 = vmatprep.subr.mxu0 0.0
        %v9698 = vand.u32 %v9204, 4294901760
        %v9699 = vsub.f32 %v9204, %v9698
        %v9700 = vand.u32 %v9699, 4294901760
        %9701 = vmatpush1.msra.mxu0 %v9700
        %9702 = vmatprep.subr.mxu0 0.0
        %v9703 = vand.u32 %v9205, 4294901760
        %v9704 = vsub.f32 %v9205, %v9703
        %v9705 = vand.u32 %v9704, 4294901760
        %9706 = vmatpush1.msra.mxu0 %v9705
        %9707 = vmatprep.subr.mxu0 0.0
        %v9708 = vand.u32 %v9206, 4294901760
        %v9709 = vsub.f32 %v9206, %v9708
        %v9710 = vand.u32 %v9709, 4294901760
        %9711 = vmatpush1.msra.mxu0 %v9710
        %9712 = vmatprep.subr.mxu0 0.0
        %v9713 = vand.u32 %v9207, 4294901760
        %v9714 = vsub.f32 %v9207, %v9713
        %v9715 = vand.u32 %v9714, 4294901760
        %9716 = vmatpush1.msra.mxu0 %v9715
        %9717 = vmatprep.subr.mxu0 0.0
        %v9718 = vand.u32 %v9208, 4294901760
        %v9719 = vsub.f32 %v9208, %v9718
        %v9720 = vand.u32 %v9719, 4294901760
        %9721 = vmatpush1.msra.mxu0 %v9720
        %9722 = vmatprep.subr.mxu0 0.0
        %v9723 = vand.u32 %v9209, 4294901760
        %v9724 = vsub.f32 %v9209, %v9723
        %v9725 = vand.u32 %v9724, 4294901760
        %9726 = vmatpush1.msra.mxu0 %v9725
        %9727 = vmatprep.subr.mxu0 0.0
        %v9728 = vand.u32 %v9210, 4294901760
        %v9729 = vsub.f32 %v9210, %v9728
        %v9730 = vand.u32 %v9729, 4294901760
        %9731 = vmatpush1.msra.mxu0 %v9730
        %9732 = vmatprep.subr.mxu0 0.0
        %v9733 = vand.u32 %v9211, 4294901760
        %v9734 = vsub.f32 %v9211, %v9733
        %v9735 = vand.u32 %v9734, 4294901760
        %9736 = vmatpush1.msra.mxu0 %v9735
        %9737 = vmatprep.subr.mxu0 0.0
        %v9738 = vand.u32 %v9212, 4294901760
        %v9739 = vsub.f32 %v9212, %v9738
        %v9740 = vand.u32 %v9739, 4294901760
        %9741 = vmatpush1.msra.mxu0 %v9740
        %9742 = vmatprep.subr.mxu0 0.0
        %v9743 = vand.u32 %v9213, 4294901760
        %v9744 = vsub.f32 %v9213, %v9743
        %v9745 = vand.u32 %v9744, 4294901760
        %9746 = vmatpush1.msra.mxu0 %v9745
        %9747 = vmatprep.subr.mxu0 0.0
        %v9748 = vand.u32 %v9214, 4294901760
        %v9749 = vsub.f32 %v9214, %v9748
        %v9750 = vand.u32 %v9749, 4294901760
        %9751 = vmatpush1.msra.mxu0 %v9750
        %9752 = vmatprep.subr.mxu0 0.0
        %v9753 = vand.u32 %v9215, 4294901760
        %v9754 = vsub.f32 %v9215, %v9753
        %v9755 = vand.u32 %v9754, 4294901760
        %9756 = vmatpush1.msra.mxu0 %v9755
        %9757 = vmatprep.subr.mxu0 0.0
        %v9758 = vand.u32 %v9216, 4294901760
        %v9759 = vsub.f32 %v9216, %v9758
        %v9760 = vand.u32 %v9759, 4294901760
        %9761 = vmatpush1.msra.mxu0 %v9760
        %9762 = vmatprep.subr.mxu0 0.0
        %v9763 = vand.u32 %v9217, 4294901760
        %v9764 = vsub.f32 %v9217, %v9763
        %v9765 = vand.u32 %v9764, 4294901760
        %9766 = vmatpush1.msra.mxu0 %v9765
        %9767 = vmatprep.subr.mxu0 0.0
        %v9768 = vand.u32 %v9218, 4294901760
        %v9769 = vsub.f32 %v9218, %v9768
        %v9770 = vand.u32 %v9769, 4294901760
        %9771 = vmatpush1.msra.mxu0 %v9770
        %9772 = vmatprep.subr.mxu0 0.0
        %9773 = vmatpush1.msra.mxu0 0.0
        %9774 = vmatprep.subr.mxu0 0.0
        %9775 = vmatpush1.msra.mxu0 0.0
        %9776 = vmatprep.subr.mxu0 0.0
        %9777 = vmatpush1.msra.mxu0 0.0
        %9778 = vmatprep.subr.mxu0 0.0
        %9779 = vmatpush1.msra.mxu0 0.0
        %9780 = vmatprep.subr.mxu0 0.0
        %9781 = vmatpush1.msra.mxu0 0.0
        %9782 = vmatprep.subr.mxu0 0.0
        %9783 = vmatpush1.msra.mxu0 0.0
        %9784 = vmatprep.subr.mxu0 0.0
        %9785 = vmatpush1.msra.mxu0 0.0
        %9786 = vmatprep.subr.mxu0 0.0
        %9787 = vmatpush1.msra.mxu0 0.0
        %9788 = vmatprep.subr.mxu0 0.0
        %9789 = vmatpush1.msra.mxu0 0.0
        %9790 = vmatprep.subr.mxu0 0.0
        %9791 = vmatpush1.msra.mxu0 0.0
        %9792 = vmatprep.subr.mxu0 0.0
        %9793 = vmatpush1.msra.mxu0 0.0
        %9794 = vmatprep.subr.mxu0 0.0
        %9795 = vmatpush1.msra.mxu0 0.0
        %9796 = vmatprep.subr.mxu0 0.0
        %9797 = vmatpush1.msra.mxu0 0.0
        %9798 = vmatprep.subr.mxu0 0.0
        %9799 = vmatpush1.msra.mxu0 0.0
        %9800 = vmatprep.subr.mxu0 0.0
        %9801 = vmatpush1.msra.mxu0 0.0
        %9802 = vmatprep.subr.mxu0 0.0
        %9803 = vmatpush1.msra.mxu0 0.0
        %9804 = vmatprep.mubr.f32.mxu0 0.0
        %v9805 = vand.u32 %v9201, 4294901760
        %9806 = vmatmul.mubr.f32.gmra.mrb[0].mxu0 %v9805
        %v9807 = vpop.f32.mrb[0].mxu0
        %v9808 = vadd.f32 %v9681, %v9807
        %v9809 = vpop.f32.mrb[0].mxu0
        %9810 = vmatprep.mubr.f32.mxu0 0.0
        %v9811 = vand.u32 %v9202, 4294901760
        %9812 = vmatmul.mubr.f32.gmra.mrb[0].mxu0 %v9811
        %v9813 = vpop.f32.mrb[0].mxu0
        %v9814 = vadd.f32 %v9689, %v9813
        %v9815 = vpop.f32.mrb[0].mxu0
        %9816 = vdwg.mxu0
        %9817 = vmatprep.subr.mxu0 0.0
        %v9818 = vand.u32 %v9203, 4294901760
        %9819 = vmatpush1.msra.mxu0 %v9818
        %9820 = vmatprep.subr.mxu0 0.0
        %v9821 = vand.u32 %v9204, 4294901760
        %9822 = vmatpush1.msra.mxu0 %v9821
        %9823 = vmatprep.subr.mxu0 0.0
        %v9824 = vand.u32 %v9205, 4294901760
        %9825 = vmatpush1.msra.mxu0 %v9824
        %9826 = vmatprep.subr.mxu0 0.0
        %v9827 = vand.u32 %v9206, 4294901760
        %9828 = vmatpush1.msra.mxu0 %v9827
        %9829 = vmatprep.subr.mxu0 0.0
        %v9830 = vand.u32 %v9207, 4294901760
        %9831 = vmatpush1.msra.mxu0 %v9830
        %9832 = vmatprep.subr.mxu0 0.0
        %v9833 = vand.u32 %v9208, 4294901760
        %9834 = vmatpush1.msra.mxu0 %v9833
        %9835 = vmatprep.subr.mxu0 0.0
        %v9836 = vand.u32 %v9209, 4294901760
        %9837 = vmatpush1.msra.mxu0 %v9836
        %9838 = vmatprep.subr.mxu0 0.0
        %v9839 = vand.u32 %v9210, 4294901760
        %9840 = vmatpush1.msra.mxu0 %v9839
        %9841 = vmatprep.subr.mxu0 0.0
        %v9842 = vand.u32 %v9211, 4294901760
        %9843 = vmatpush1.msra.mxu0 %v9842
        %9844 = vmatprep.subr.mxu0 0.0
        %v9845 = vand.u32 %v9212, 4294901760
        %9846 = vmatpush1.msra.mxu0 %v9845
        %9847 = vmatprep.subr.mxu0 0.0
        %v9848 = vand.u32 %v9213, 4294901760
        %9849 = vmatpush1.msra.mxu0 %v9848
        %9850 = vmatprep.subr.mxu0 0.0
        %v9851 = vand.u32 %v9214, 4294901760
        %9852 = vmatpush1.msra.mxu0 %v9851
        %9853 = vmatprep.subr.mxu0 0.0
        %v9854 = vand.u32 %v9215, 4294901760
        %9855 = vmatpush1.msra.mxu0 %v9854
        %9856 = vmatprep.subr.mxu0 0.0
        %v9857 = vand.u32 %v9216, 4294901760
        %9858 = vmatpush1.msra.mxu0 %v9857
        %9859 = vmatprep.subr.mxu0 0.0
        %v9860 = vand.u32 %v9217, 4294901760
        %9861 = vmatpush1.msra.mxu0 %v9860
        %9862 = vmatprep.subr.mxu0 0.0
        %v9863 = vand.u32 %v9218, 4294901760
        %9864 = vmatpush1.msra.mxu0 %v9863
        %9865 = vmatprep.subr.mxu0 0.0
        %9866 = vmatpush1.msra.mxu0 0.0
        %9867 = vmatprep.subr.mxu0 0.0
        %9868 = vmatpush1.msra.mxu0 0.0
        %9869 = vmatprep.subr.mxu0 0.0
        %9870 = vmatpush1.msra.mxu0 0.0
        %9871 = vmatprep.subr.mxu0 0.0
        %9872 = vmatpush1.msra.mxu0 0.0
        %9873 = vmatprep.subr.mxu0 0.0
        %9874 = vmatpush1.msra.mxu0 0.0
        %9875 = vmatprep.subr.mxu0 0.0
        %9876 = vmatpush1.msra.mxu0 0.0
        %9877 = vmatprep.subr.mxu0 0.0
        %9878 = vmatpush1.msra.mxu0 0.0
        %9879 = vmatprep.subr.mxu0 0.0
        %9880 = vmatpush1.msra.mxu0 0.0
        %9881 = vmatprep.subr.mxu0 0.0
        %9882 = vmatpush1.msra.mxu0 0.0
        %9883 = vmatprep.subr.mxu0 0.0
        %9884 = vmatpush1.msra.mxu0 0.0
        %9885 = vmatprep.subr.mxu0 0.0
        %9886 = vmatpush1.msra.mxu0 0.0
        %9887 = vmatprep.subr.mxu0 0.0
        %9888 = vmatpush1.msra.mxu0 0.0
        %9889 = vmatprep.subr.mxu0 0.0
        %9890 = vmatpush1.msra.mxu0 0.0
        %9891 = vmatprep.subr.mxu0 0.0
        %9892 = vmatpush1.msra.mxu0 0.0
        %9893 = vmatprep.subr.mxu0 0.0
        %9894 = vmatpush1.msra.mxu0 0.0
        %9895 = vmatprep.subr.mxu0 0.0
        %9896 = vmatpush1.msra.mxu0 0.0
        %9897 = vmatprep.mubr.f32.mxu0 0.0
        %v9898 = vand.u32 %v9201, 4294901760
        %9899 = vmatmul.mubr.f32.gmra.mrb[0].mxu0 %v9898
        %v9900 = vpop.f32.mrb[0].mxu0
        %v9901 = vadd.f32 %v9808, %v9900
        %v9902 = vpop.f32.mrb[0].mxu0
        %9903 = vmatprep.mubr.f32.mxu0 0.0
        %v9904 = vand.u32 %v9202, 4294901760
        %9905 = vmatmul.mubr.f32.gmra.mrb[0].mxu0 %v9904
        %v9906 = vpop.f32.mrb[0].mxu0
        %v9907 = vadd.f32 %v9814, %v9906
        %v9908 = vpop.f32.mrb[0].mxu0
        %9909 = vdwg.mxu0
        %v9910 = vmax.f32 %v9901, 0.0
        %v9911 = vmax.f32 %v9907, 0.0
        %v9912 = vld [vmem:[%s15] sm:$0x1]
        %v9914 = vlaneseq
        %v9915 = vshrl.u32 %v9914, 7
        %v9916 = vsub.s32 0, %v9915
        %v9917 = vrot.slane %v9912, %v9916
        %v9919 = vadd.f32 %v9910, %v9917
        %v9920 = vadd.f32 %v9911, %v9917
        %v9921 = vadd.f32 %v6360, %v9919
        %v9922 = vadd.f32 %v6361, %v9920
        %9923 = vst [vmem:[%s621] sm:$0xff] %v9921
        %9924 = vst [vmem:[%s621 + $0x8] sm:$0xff] %v9922
        %s9925 = sand.u32 %s419, 1
        %s9926 = scalar_lea.sflag [#allocation7], %s9925
        %s9927 = sand.u32 %s419, 1
        %s9928 = smul.addr %s9927, 16
        %s9929 = scalar_lea.vmem [#allocation6], %s9928
        // Predicated region
        $region89: #{hgn_forward.3} parent=83 // pred_check
          %p9930 = pneg %p429
        $region90: #{hgn_forward.3} parent=83 // pred_check_branch
          %9932 = sbr.rel (%p9930) target = $region92
        $region91: #{hgn_forward.3} parent=83 // pred_region
          %s9933 = smul.u32 2, %s35
          %s9935 = ssub.s32 256, 256
          %9936 = vsyncadd %s9926, %s9935
          %s9937 = smul.addr %s34, 2
          %s9938 = sadd.s32 %s9933, %s9937
          %s9939 = smul.addr %s9938, 128
          %s9940 = scalar_lea.hbm %s16, %s9939
          %s9941 = sshll.u32 %s9929, 4
          %s9942 = int_to_ptr.vmem [resolvable:$true] %s9941
          %9947 = dma.vmem_to_hbm [thread:$0]  %s9942, 256, %s9940, %s9926, 128, 128, 8
        $region92: #{hgn_forward.3} parent=83 // pred_fallthru
          _
      $region84: #{hgn_forward.3} parent=5 // pred_fallthru
        _
      %p9948 = scmp.le.s32.totalorder 2, %s25
      // Predicated region
      $region93: #{hgn_forward.3} parent=5 // pred_check
        %p9949 = pneg %p9948
      $region94: #{hgn_forward.3} parent=5 // pred_check_branch
        %9951 = sbr.rel (%p9949) target = $region96
      $region95: #{hgn_forward.3} parent=5 // pred_region
        %s9952 = ssub.s32 %s25, 2
        // Predicated region
        $region97: #{hgn_forward.3} parent=95 // pred_check
          %p9953 = pneg %p435
        $region98: #{hgn_forward.3} parent=95 // pred_check_branch
          %9955 = sbr.rel (%p9953) target = $region100
        $region99: #{hgn_forward.3} parent=95 // pred_region
          %s9956 = sand.u32 %s420, 1
          %s9957 = scalar_lea.sflag [#allocation7], %s9956
          %s9958 = sand.u32 %s420, 1
          %s9959 = smul.addr %s9958, 16
          %s9960 = scalar_lea.vmem [#allocation6], %s9959
          %9961 = dma.done %s9957, 256
        $region100: #{hgn_forward.3} parent=95 // pred_fallthru
          _
      $region96: #{hgn_forward.3} parent=5 // pred_fallthru
        _
    $region6: #{hgn_forward.3} parent=1 // loop_footer
      %s29 = sadd.s32 1, %s25
    $region7: #{hgn_forward.3} parent=1 // loop_footer_branch
      %24 = sbr.rel target = $region3
    $region8: #{hgn_forward.3} parent=1 // loop_exit
      _
    %9962 = vsyncpa [#allocation7], 1
    %s9963 = scalar_lea.sflag [#allocation7], 1
    %9964 = vsyncpa %s9963, 1

</llo_original>
